<compile_context>
chip_gen: v7x
topology: tpu7x:2x2x1
jax: 0.10.0
libtpu: 0.0.40
codegen_flags: <defaults>
</compile_context>

<pallas_src>
import math
import functools

import jax
import jax.numpy as jnp
from jax.experimental import pallas as pl
from jax.experimental.pallas import tpu as pltpu


# --------------------------- fused forward kernel ----------------------------

def _fused_eff_attn_kernel(x_ref, wr_ref, wq_ref, wp_ref, bp_ref, o_ref, ocat_ref, *,
                           num_heads, num_chunks):
    # x_ref:    (1, N, dim)  current batch element (f32)
    # wr_ref:   (dim, C)     reduce.weight^T  (bf16, resident in VMEM)
    # wq_ref:   (C, 3C)      qkv.weight^T, softmax scale pre-folded into q cols (bf16)
    # wp_ref:   (C, dim)     proj.weight^T    (bf16, resident in VMEM)
    # bp_ref:   (1, dim)     proj.bias        (f32)
    # o_ref:    (1, N, dim)  output (lane-dense: dim on lanes)
    # ocat_ref: (N, C)       f32 VMEM scratch for the concatenated per-head outputs
    N, dim = x_ref.shape[1], x_ref.shape[2]
    C = wr_ref.shape[1]
    hd = C // num_heads
    chunk = N // num_chunks

    x = x_ref[0].astype(jnp.bfloat16)                                   # (N, dim)

    # reduce: x @ Wr^T -> (N, C); bf16 MXU operands, f32 accumulate.
    xr = jnp.dot(x, wr_ref[...], preferred_element_type=jnp.float32)
    # qkv: xr @ Wq^T -> (N, 3C); column layout is [q | k | v], each split per head
    # as [h0 | h1 | ...] (matches torch's reshape order).  q is pre-scaled.
    qkv = jnp.dot(xr.astype(jnp.bfloat16), wq_ref[...],
                  preferred_element_type=jnp.float32)

    # Per-head block-local attention.  Heads are a short static loop; the 4 sequence
    # chunks are the leading batch dim of one dot_general per head (no per-chunk
    # tiny matmuls, no head transposes: slices are lanes, chunk split is sublanes).
    for h in range(num_heads):
        qh = qkv[:, h * hd:(h + 1) * hd]
        kh = qkv[:, C + h * hd: C + (h + 1) * hd]
        vh = qkv[:, 2 * C + h * hd: 2 * C + (h + 1) * hd]
        # (N, hd) -> (num_chunks, chunk, hd): pure sublane split, no lane movement.
        qh = qh.reshape(num_chunks, chunk, hd).astype(jnp.bfloat16)
        kh = kh.reshape(num_chunks, chunk, hd).astype(jnp.bfloat16)
        vh = vh.reshape(num_chunks, chunk, hd).astype(jnp.bfloat16)

        s = jnp.einsum('cqd,ckd->cqk', qh, kh,
                       preferred_element_type=jnp.float32)    # (nc, chunk, chunk) f32
        m = jnp.max(s, axis=-1, keepdims=True)
        p = jnp.exp(s - m)
        p = p / jnp.sum(p, axis=-1, keepdims=True)             # exact softmax (f32)
        # attn_drop has p = 0.0 -> identity.
        oh = jnp.einsum('cqk,ckd->cqd', p.astype(jnp.bfloat16), vh,
                        preferred_element_type=jnp.float32)    # (nc, chunk, hd) f32
        # Same layout as torch's (attn @ v).transpose(1, 2).reshape(B, N, C):
        # rows back in token order, this head's hd columns of o_cat.
        ocat_ref[:, h * hd:(h + 1) * hd] = oh.reshape(N, hd)

    # proj epilogue: (N, C) @ (C, dim) + bias -> (N, dim); one lane-dense store.
    out = jnp.dot(ocat_ref[...].astype(jnp.bfloat16), wp_ref[...],
                  preferred_element_type=jnp.float32)
    out = out + bp_ref[...]
    o_ref[0] = out.astype(o_ref.dtype)


# ------------------------------- weight prep ----------------------------------

def prepare_params(params, dim, num_heads):
    """One-time prep (outside the hot path): transpose weights, fold the softmax
    scale into Wq's q columns, cast to bf16, reshape the bias."""
    C = dim // 2
    scale = (dim // num_heads) ** (-0.5)   # PyTorch uses head_dim of the PRE-reduce dim
    wr_t = jnp.asarray(params['reduce_w'], jnp.float32).T           # (dim, C)
    wq_t = jnp.asarray(params['qkv_w'], jnp.float32).T              # (C, 3C)
    wq_t = wq_t.at[:, :C].multiply(scale)                           # fold scale into q
    wp_t = jnp.asarray(params['proj_w'], jnp.float32).T             # (C, dim)
    bp = jnp.asarray(params['proj_b'], jnp.float32).reshape(1, dim)
    return {
        'wr_t': wr_t.astype(jnp.bfloat16),
        'wq_t': wq_t.astype(jnp.bfloat16),
        'wp_t': wp_t.astype(jnp.bfloat16),
        'bp': bp,
    }


# --------------------------------- wrapper ------------------------------------

@functools.partial(jax.jit, static_argnames=('num_heads',))
def eff_attention_forward(x, prepared, num_heads):
    B, N, dim = x.shape
    C = dim // 2
    assert C % num_heads == 0, "C must split evenly across heads"
    # torch: chunk = math.ceil(N // 4) (floor-div then no-op ceil); with N % 4 == 0
    # this equals N // 4.
    # TODO(synk): ragged last chunk (N % 4 != 0) is not supported by this fused kernel.
    num_chunks = 4
    assert N % num_chunks == 0, "N must split evenly into 4 chunks"
    chunk = N // num_chunks
    assert chunk % 8 == 0, "chunk must be a multiple of 8 for TPU sublane tiling"

    kernel = functools.partial(_fused_eff_attn_kernel,
                               num_heads=num_heads, num_chunks=num_chunks)

    return pl.pallas_call(
        kernel,
        out_shape=jax.ShapeDtypeStruct((B, N, dim), x.dtype),
        grid=(B,),
        in_specs=[
            pl.BlockSpec((1, N, dim), lambda b: (b, 0, 0)),      # x: one batch element/step
            pl.BlockSpec((dim, C), lambda b: (0, 0)),            # reduce W^T (resident)
            pl.BlockSpec((C, 3 * C), lambda b: (0, 0)),          # qkv W^T    (resident)
            pl.BlockSpec((C, dim), lambda b: (0, 0)),            # proj W^T   (resident)
            pl.BlockSpec((1, dim), lambda b: (0, 0)),            # proj bias
        ],
        out_specs=pl.BlockSpec((1, N, dim), lambda b: (b, 0, 0)),
        scratch_shapes=[pltpu.VMEM((N, C), jnp.float32)],        # o_cat head-concat buffer
        compiler_params=pltpu.CompilerParams(
            dimension_semantics=("parallel",),    # batch axis feeds both v7x TensorCores
            vmem_limit_bytes=32 * 1024 * 1024,
        ),
    )(x, prepared['wr_t'], prepared['wq_t'], prepared['wp_t'], prepared['bp'])


# ------------------------------ pure-JAX reference ----------------------------

def eff_attention_reference(x, params, num_heads):
    with jax.default_matmul_precision("float32"):
        B, N, dim = x.shape
        C = dim // 2
        hd = C // num_heads
        scale = (dim // num_heads) ** (-0.5)
        xr = x @ params['reduce_w'].T
        qkv = (xr @ params['qkv_w'].T).reshape(B, N, 3, num_heads, hd).transpose(2, 0, 3, 1, 4)
        q, k, v = qkv[0], qkv[1], qkv[2]
        chunk = N // 4
        outs = []
        for s in range(0, N, chunk):
            qc, kc, vc = q[:, :, s:s + chunk], k[:, :, s:s + chunk], v[:, :, s:s + chunk]
            attn = jnp.einsum('bhqd,bhkd->bhqk', qc, kc) * scale
            attn = jax.nn.softmax(attn, axis=-1)
            outs.append(jnp.einsum('bhqk,bhkd->bhqd', attn, vc).transpose(0, 2, 1, 3))
        xo = jnp.concatenate(outs, axis=1).reshape(B, N, C)
        return xo @ params['proj_w'].T + params['proj_b']


# ----------------------------------- main --------------------------------------

if __name__ == "__main__":
    # Small but MXU-meaningful shapes consistent with EffAttention: N tokens (H*W of
    # a feature map) x channel dim.  dim=128 keeps vregs/stores lane-dense, N=128
    # gives matmul M=128 per grid step, chunk=32 (4 block-local chunks), 8 heads as
    # in the module default.
    B, N, dim, num_heads = 2, 128, 128, 8
    C = dim // 2

    key = jax.random.PRNGKey(0)
    kx, kr, kq, kpw, kpb = jax.random.split(key, 5)

    def uinit(k, shape, fan_in):
        bound = 1.0 / math.sqrt(fan_in)
        return jax.random.uniform(k, shape, jnp.float32, -bound, bound)

    params = {
        'reduce_w': uinit(kr, (C, dim), dim),        # Linear(dim, dim//2, bias=False)
        'qkv_w':    uinit(kq, (3 * C, C), C),        # Linear(dim//2, 3*dim//2, bias=False)
        'proj_w':   uinit(kpw, (dim, C), C),         # Linear(dim//2, dim)
        'proj_b':   uinit(kpb, (dim,), C),
    }

    x = jax.random.normal(kx, (B, N, dim), jnp.float32)

    prepared = prepare_params(params, dim, num_heads)   # one-time, outside the hot path
    out = jax.block_until_ready(eff_attention_forward(x, prepared, num_heads))
    ref = eff_attention_reference(x, params, num_heads)

    assert out.shape == (B, N, dim)
    max_err = float(jnp.max(jnp.abs(out - ref)))
    # Tolerance covers the bf16 MXU operands (f32 accumulation); typical observed
    # error is a few 1e-3 at these magnitudes.
    assert jnp.allclose(out, ref, atol=2e-2, rtol=2e-2), f"max abs err = {max_err}"

    print("KERNEL_OK")
</pallas_src>

<mosaic_0001>
module attributes {stable_mosaic.version = 11 : i64} {
  func.func @_fused_eff_attn_kernel(%arg0: i32, %arg1: memref<1x128x128xf32, #tpu.memory_space<vmem>>, %arg2: memref<128x64xbf16, #tpu.memory_space<vmem>>, %arg3: memref<64x192xbf16, #tpu.memory_space<vmem>>, %arg4: memref<64x128xbf16, #tpu.memory_space<vmem>>, %arg5: memref<1x128xf32, #tpu.memory_space<vmem>>, %arg6: memref<1x128x128xf32, #tpu.memory_space<vmem>>, %arg7: memref<128x64xf32, #tpu.memory_space<vmem>>) attributes {dimension_semantics = [#tpu.dimension_semantics<parallel>], iteration_bounds = array<i64: 2>, scalar_prefetch = 0 : i64, scratch_operands = 1 : i64, tpu.core_type = #tpu.core_type<tc>, window_params = [{transform_indices = @transform_0, window_bounds = array<i64: 1, 128, 128>}, {pipeline_mode = #tpu.pipeline_mode<synchronous>, transform_indices = @transform_1, window_bounds = array<i64: 128, 64>}, {pipeline_mode = #tpu.pipeline_mode<synchronous>, transform_indices = @transform_2, window_bounds = array<i64: 64, 192>}, {pipeline_mode = #tpu.pipeline_mode<synchronous>, transform_indices = @transform_3, window_bounds = array<i64: 64, 128>}, {pipeline_mode = #tpu.pipeline_mode<synchronous>, transform_indices = @transform_4, window_bounds = array<i64: 1, 128>}, {transform_indices = @transform_5, window_bounds = array<i64: 1, 128, 128>}]} {
    %c0 = arith.constant 0 : index
    %c0_0 = arith.constant 0 : index
    %c0_1 = arith.constant 0 : index
    %0 = vector.load %arg1[%c0, %c0_0, %c0_1] : memref<1x128x128xf32, #tpu.memory_space<vmem>>, vector<1x128x128xf32>
    %1 = vector.shape_cast %0 : vector<1x128x128xf32> to vector<128x128xf32>
    %2 = arith.truncf %1 : vector<128x128xf32> to vector<128x128xbf16>
    %c0_2 = arith.constant 0 : index
    %c0_3 = arith.constant 0 : index
    %3 = vector.load %arg2[%c0_2, %c0_3] : memref<128x64xbf16, #tpu.memory_space<vmem>>, vector<128x64xbf16>
    %cst = arith.constant dense<0.000000e+00> : vector<128x64xf32>
    %4 = tpu.matmul %2, %3, %cst {dimension_numbers = #tpu.dot_dimension_numbers<[1], [0], [0], [1], [0, 0, 1, 1], [], []>} : vector<128x128xbf16>, vector<128x64xbf16>, vector<128x64xf32> -> vector<128x64xf32>
    %5 = arith.truncf %4 : vector<128x64xf32> to vector<128x64xbf16>
    %c0_4 = arith.constant 0 : index
    %c0_5 = arith.constant 0 : index
    %6 = vector.load %arg3[%c0_4, %c0_5] : memref<64x192xbf16, #tpu.memory_space<vmem>>, vector<64x192xbf16>
    %cst_6 = arith.constant dense<0.000000e+00> : vector<128x192xf32>
    %7 = tpu.matmul %5, %6, %cst_6 {dimension_numbers = #tpu.dot_dimension_numbers<[1], [0], [0], [1], [0, 0, 1, 1], [], []>} : vector<128x64xbf16>, vector<64x192xbf16>, vector<128x192xf32> -> vector<128x192xf32>
    %8 = vector.extract_strided_slice %7 {offsets = [0, 0], sizes = [128, 8], strides = [1, 1]} : vector<128x192xf32> to vector<128x8xf32>
    %9 = vector.extract_strided_slice %7 {offsets = [0, 64], sizes = [128, 8], strides = [1, 1]} : vector<128x192xf32> to vector<128x8xf32>
    %10 = vector.extract_strided_slice %7 {offsets = [0, 128], sizes = [128, 8], strides = [1, 1]} : vector<128x192xf32> to vector<128x8xf32>
    %11 = vector.shape_cast %8 : vector<128x8xf32> to vector<4x32x8xf32>
    %12 = arith.truncf %11 : vector<4x32x8xf32> to vector<4x32x8xbf16>
    %13 = vector.shape_cast %9 : vector<128x8xf32> to vector<4x32x8xf32>
    %14 = arith.truncf %13 : vector<4x32x8xf32> to vector<4x32x8xbf16>
    %15 = vector.shape_cast %10 : vector<128x8xf32> to vector<4x32x8xf32>
    %16 = arith.truncf %15 : vector<4x32x8xf32> to vector<4x32x8xbf16>
    "tpu.trace_start"() <{level = 10 : i32, message = "cqd,ckd->cqk"}> : () -> ()
    %cst_7 = arith.constant dense<0.000000e+00> : vector<4x32x32xf32>
    %17 = tpu.matmul %12, %14, %cst_7 {dimension_numbers = #tpu.dot_dimension_numbers<[2], [2], [1], [1], [0, 0, 0, 1, 1, 1], [0], [0]>} : vector<4x32x8xbf16>, vector<4x32x8xbf16>, vector<4x32x32xf32> -> vector<4x32x32xf32>
    "tpu.trace_stop"() : () -> ()
    %cst_8 = arith.constant dense<0xFF800000> : vector<4x32xf32>
    %18 = vector.multi_reduction <maximumf>, %17, %cst_8 [2] : vector<4x32x32xf32> to vector<4x32xf32>
    %19 = vector.shape_cast %18 : vector<4x32xf32> to vector<4x32x1xf32>
    %20 = vector.broadcast %19 : vector<4x32x1xf32> to vector<4x32x32xf32>
    %21 = arith.subf %17, %20 : vector<4x32x32xf32>
    %22 = math.exp %21 : vector<4x32x32xf32>
    %cst_9 = arith.constant dense<0.000000e+00> : vector<4x32xf32>
    %23 = vector.multi_reduction <add>, %22, %cst_9 [2] : vector<4x32x32xf32> to vector<4x32xf32>
    %24 = vector.shape_cast %23 : vector<4x32xf32> to vector<4x32x1xf32>
    %25 = vector.broadcast %24 : vector<4x32x1xf32> to vector<4x32x32xf32>
    %26 = arith.divf %22, %25 : vector<4x32x32xf32>
    %27 = arith.truncf %26 : vector<4x32x32xf32> to vector<4x32x32xbf16>
    "tpu.trace_start"() <{level = 10 : i32, message = "cqk,ckd->cqd"}> : () -> ()
    %cst_10 = arith.constant dense<0.000000e+00> : vector<4x32x8xf32>
    %28 = tpu.matmul %27, %16, %cst_10 {dimension_numbers = #tpu.dot_dimension_numbers<[2], [1], [1], [2], [0, 0, 0, 1, 1, 2], [0], [0]>} : vector<4x32x32xbf16>, vector<4x32x8xbf16>, vector<4x32x8xf32> -> vector<4x32x8xf32>
    "tpu.trace_stop"() : () -> ()
    %29 = vector.shape_cast %28 : vector<4x32x8xf32> to vector<128x8xf32>
    %c0_11 = arith.constant 0 : index
    %c0_12 = arith.constant 0 : index
    %30 = vector.load %arg7[%c0_11, %c0_12] : memref<128x64xf32, #tpu.memory_space<vmem>>, vector<128x8xf32>
    tpu.vector_store %arg7[%c0_11, %c0_12], %29 {strides = array<i32>} : memref<128x64xf32, #tpu.memory_space<vmem>>, vector<128x8xf32>,
    %31 = vector.extract_strided_slice %7 {offsets = [0, 8], sizes = [128, 8], strides = [1, 1]} : vector<128x192xf32> to vector<128x8xf32>
    %32 = vector.extract_strided_slice %7 {offsets = [0, 72], sizes = [128, 8], strides = [1, 1]} : vector<128x192xf32> to vector<128x8xf32>
    %33 = vector.extract_strided_slice %7 {offsets = [0, 136], sizes = [128, 8], strides = [1, 1]} : vector<128x192xf32> to vector<128x8xf32>
    %34 = vector.shape_cast %31 : vector<128x8xf32> to vector<4x32x8xf32>
    %35 = arith.truncf %34 : vector<4x32x8xf32> to vector<4x32x8xbf16>
    %36 = vector.shape_cast %32 : vector<128x8xf32> to vector<4x32x8xf32>
    %37 = arith.truncf %36 : vector<4x32x8xf32> to vector<4x32x8xbf16>
    %38 = vector.shape_cast %33 : vector<128x8xf32> to vector<4x32x8xf32>
    %39 = arith.truncf %38 : vector<4x32x8xf32> to vector<4x32x8xbf16>
    "tpu.trace_start"() <{level = 10 : i32, message = "cqd,ckd->cqk"}> : () -> ()
    %cst_13 = arith.constant dense<0.000000e+00> : vector<4x32x32xf32>
    %40 = tpu.matmul %35, %37, %cst_13 {dimension_numbers = #tpu.dot_dimension_numbers<[2], [2], [1], [1], [0, 0, 0, 1, 1, 1], [0], [0]>} : vector<4x32x8xbf16>, vector<4x32x8xbf16>, vector<4x32x32xf32> -> vector<4x32x32xf32>
    "tpu.trace_stop"() : () -> ()
    %cst_14 = arith.constant dense<0xFF800000> : vector<4x32xf32>
    %41 = vector.multi_reduction <maximumf>, %40, %cst_14 [2] : vector<4x32x32xf32> to vector<4x32xf32>
    %42 = vector.shape_cast %41 : vector<4x32xf32> to vector<4x32x1xf32>
    %43 = vector.broadcast %42 : vector<4x32x1xf32> to vector<4x32x32xf32>
    %44 = arith.subf %40, %43 : vector<4x32x32xf32>
    %45 = math.exp %44 : vector<4x32x32xf32>
    %cst_15 = arith.constant dense<0.000000e+00> : vector<4x32xf32>
    %46 = vector.multi_reduction <add>, %45, %cst_15 [2] : vector<4x32x32xf32> to vector<4x32xf32>
    %47 = vector.shape_cast %46 : vector<4x32xf32> to vector<4x32x1xf32>
    %48 = vector.broadcast %47 : vector<4x32x1xf32> to vector<4x32x32xf32>
    %49 = arith.divf %45, %48 : vector<4x32x32xf32>
    %50 = arith.truncf %49 : vector<4x32x32xf32> to vector<4x32x32xbf16>
    "tpu.trace_start"() <{level = 10 : i32, message = "cqk,ckd->cqd"}> : () -> ()
    %cst_16 = arith.constant dense<0.000000e+00> : vector<4x32x8xf32>
    %51 = tpu.matmul %50, %39, %cst_16 {dimension_numbers = #tpu.dot_dimension_numbers<[2], [1], [1], [2], [0, 0, 0, 1, 1, 2], [0], [0]>} : vector<4x32x32xbf16>, vector<4x32x8xbf16>, vector<4x32x8xf32> -> vector<4x32x8xf32>
    "tpu.trace_stop"() : () -> ()
    %52 = vector.shape_cast %51 : vector<4x32x8xf32> to vector<128x8xf32>
    %c0_17 = arith.constant 0 : index
    %c8 = arith.constant 8 : index
    %53 = vector.load %arg7[%c0_17, %c8] : memref<128x64xf32, #tpu.memory_space<vmem>>, vector<128x8xf32>
    tpu.vector_store %arg7[%c0_17, %c8], %52 {strides = array<i32>} : memref<128x64xf32, #tpu.memory_space<vmem>>, vector<128x8xf32>,
    %54 = vector.extract_strided_slice %7 {offsets = [0, 16], sizes = [128, 8], strides = [1, 1]} : vector<128x192xf32> to vector<128x8xf32>
    %55 = vector.extract_strided_slice %7 {offsets = [0, 80], sizes = [128, 8], strides = [1, 1]} : vector<128x192xf32> to vector<128x8xf32>
    %56 = vector.extract_strided_slice %7 {offsets = [0, 144], sizes = [128, 8], strides = [1, 1]} : vector<128x192xf32> to vector<128x8xf32>
    %57 = vector.shape_cast %54 : vector<128x8xf32> to vector<4x32x8xf32>
    %58 = arith.truncf %57 : vector<4x32x8xf32> to vector<4x32x8xbf16>
    %59 = vector.shape_cast %55 : vector<128x8xf32> to vector<4x32x8xf32>
    %60 = arith.truncf %59 : vector<4x32x8xf32> to vector<4x32x8xbf16>
    %61 = vector.shape_cast %56 : vector<128x8xf32> to vector<4x32x8xf32>
    %62 = arith.truncf %61 : vector<4x32x8xf32> to vector<4x32x8xbf16>
    "tpu.trace_start"() <{level = 10 : i32, message = "cqd,ckd->cqk"}> : () -> ()
    %cst_18 = arith.constant dense<0.000000e+00> : vector<4x32x32xf32>
    %63 = tpu.matmul %58, %60, %cst_18 {dimension_numbers = #tpu.dot_dimension_numbers<[2], [2], [1], [1], [0, 0, 0, 1, 1, 1], [0], [0]>} : vector<4x32x8xbf16>, vector<4x32x8xbf16>, vector<4x32x32xf32> -> vector<4x32x32xf32>
    "tpu.trace_stop"() : () -> ()
    %cst_19 = arith.constant dense<0xFF800000> : vector<4x32xf32>
    %64 = vector.multi_reduction <maximumf>, %63, %cst_19 [2] : vector<4x32x32xf32> to vector<4x32xf32>
    %65 = vector.shape_cast %64 : vector<4x32xf32> to vector<4x32x1xf32>
    %66 = vector.broadcast %65 : vector<4x32x1xf32> to vector<4x32x32xf32>
    %67 = arith.subf %63, %66 : vector<4x32x32xf32>
    %68 = math.exp %67 : vector<4x32x32xf32>
    %cst_20 = arith.constant dense<0.000000e+00> : vector<4x32xf32>
    %69 = vector.multi_reduction <add>, %68, %cst_20 [2] : vector<4x32x32xf32> to vector<4x32xf32>
    %70 = vector.shape_cast %69 : vector<4x32xf32> to vector<4x32x1xf32>
    %71 = vector.broadcast %70 : vector<4x32x1xf32> to vector<4x32x32xf32>
    %72 = arith.divf %68, %71 : vector<4x32x32xf32>
    %73 = arith.truncf %72 : vector<4x32x32xf32> to vector<4x32x32xbf16>
    "tpu.trace_start"() <{level = 10 : i32, message = "cqk,ckd->cqd"}> : () -> ()
    %cst_21 = arith.constant dense<0.000000e+00> : vector<4x32x8xf32>
    %74 = tpu.matmul %73, %62, %cst_21 {dimension_numbers = #tpu.dot_dimension_numbers<[2], [1], [1], [2], [0, 0, 0, 1, 1, 2], [0], [0]>} : vector<4x32x32xbf16>, vector<4x32x8xbf16>, vector<4x32x8xf32> -> vector<4x32x8xf32>
    "tpu.trace_stop"() : () -> ()
    %75 = vector.shape_cast %74 : vector<4x32x8xf32> to vector<128x8xf32>
    %c0_22 = arith.constant 0 : index
    %c16 = arith.constant 16 : index
    %76 = vector.load %arg7[%c0_22, %c16] : memref<128x64xf32, #tpu.memory_space<vmem>>, vector<128x8xf32>
    tpu.vector_store %arg7[%c0_22, %c16], %75 {strides = array<i32>} : memref<128x64xf32, #tpu.memory_space<vmem>>, vector<128x8xf32>,
    %77 = vector.extract_strided_slice %7 {offsets = [0, 24], sizes = [128, 8], strides = [1, 1]} : vector<128x192xf32> to vector<128x8xf32>
    %78 = vector.extract_strided_slice %7 {offsets = [0, 88], sizes = [128, 8], strides = [1, 1]} : vector<128x192xf32> to vector<128x8xf32>
    %79 = vector.extract_strided_slice %7 {offsets = [0, 152], sizes = [128, 8], strides = [1, 1]} : vector<128x192xf32> to vector<128x8xf32>
    %80 = vector.shape_cast %77 : vector<128x8xf32> to vector<4x32x8xf32>
    %81 = arith.truncf %80 : vector<4x32x8xf32> to vector<4x32x8xbf16>
    %82 = vector.shape_cast %78 : vector<128x8xf32> to vector<4x32x8xf32>
    %83 = arith.truncf %82 : vector<4x32x8xf32> to vector<4x32x8xbf16>
    %84 = vector.shape_cast %79 : vector<128x8xf32> to vector<4x32x8xf32>
    %85 = arith.truncf %84 : vector<4x32x8xf32> to vector<4x32x8xbf16>
    "tpu.trace_start"() <{level = 10 : i32, message = "cqd,ckd->cqk"}> : () -> ()
    %cst_23 = arith.constant dense<0.000000e+00> : vector<4x32x32xf32>
    %86 = tpu.matmul %81, %83, %cst_23 {dimension_numbers = #tpu.dot_dimension_numbers<[2], [2], [1], [1], [0, 0, 0, 1, 1, 1], [0], [0]>} : vector<4x32x8xbf16>, vector<4x32x8xbf16>, vector<4x32x32xf32> -> vector<4x32x32xf32>
    "tpu.trace_stop"() : () -> ()
    %cst_24 = arith.constant dense<0xFF800000> : vector<4x32xf32>
    %87 = vector.multi_reduction <maximumf>, %86, %cst_24 [2] : vector<4x32x32xf32> to vector<4x32xf32>
    %88 = vector.shape_cast %87 : vector<4x32xf32> to vector<4x32x1xf32>
    %89 = vector.broadcast %88 : vector<4x32x1xf32> to vector<4x32x32xf32>
    %90 = arith.subf %86, %89 : vector<4x32x32xf32>
    %91 = math.exp %90 : vector<4x32x32xf32>
    %cst_25 = arith.constant dense<0.000000e+00> : vector<4x32xf32>
    %92 = vector.multi_reduction <add>, %91, %cst_25 [2] : vector<4x32x32xf32> to vector<4x32xf32>
    %93 = vector.shape_cast %92 : vector<4x32xf32> to vector<4x32x1xf32>
    %94 = vector.broadcast %93 : vector<4x32x1xf32> to vector<4x32x32xf32>
    %95 = arith.divf %91, %94 : vector<4x32x32xf32>
    %96 = arith.truncf %95 : vector<4x32x32xf32> to vector<4x32x32xbf16>
    "tpu.trace_start"() <{level = 10 : i32, message = "cqk,ckd->cqd"}> : () -> ()
    %cst_26 = arith.constant dense<0.000000e+00> : vector<4x32x8xf32>
    %97 = tpu.matmul %96, %85, %cst_26 {dimension_numbers = #tpu.dot_dimension_numbers<[2], [1], [1], [2], [0, 0, 0, 1, 1, 2], [0], [0]>} : vector<4x32x32xbf16>, vector<4x32x8xbf16>, vector<4x32x8xf32> -> vector<4x32x8xf32>
    "tpu.trace_stop"() : () -> ()
    %98 = vector.shape_cast %97 : vector<4x32x8xf32> to vector<128x8xf32>
    %c0_27 = arith.constant 0 : index
    %c24 = arith.constant 24 : index
    %99 = vector.load %arg7[%c0_27, %c24] : memref<128x64xf32, #tpu.memory_space<vmem>>, vector<128x8xf32>
    tpu.vector_store %arg7[%c0_27, %c24], %98 {strides = array<i32>} : memref<128x64xf32, #tpu.memory_space<vmem>>, vector<128x8xf32>,
    %100 = vector.extract_strided_slice %7 {offsets = [0, 32], sizes = [128, 8], strides = [1, 1]} : vector<128x192xf32> to vector<128x8xf32>
    %101 = vector.extract_strided_slice %7 {offsets = [0, 96], sizes = [128, 8], strides = [1, 1]} : vector<128x192xf32> to vector<128x8xf32>
    %102 = vector.extract_strided_slice %7 {offsets = [0, 160], sizes = [128, 8], strides = [1, 1]} : vector<128x192xf32> to vector<128x8xf32>
    %103 = vector.shape_cast %100 : vector<128x8xf32> to vector<4x32x8xf32>
    %104 = arith.truncf %103 : vector<4x32x8xf32> to vector<4x32x8xbf16>
    %105 = vector.shape_cast %101 : vector<128x8xf32> to vector<4x32x8xf32>
    %106 = arith.truncf %105 : vector<4x32x8xf32> to vector<4x32x8xbf16>
    %107 = vector.shape_cast %102 : vector<128x8xf32> to vector<4x32x8xf32>
    %108 = arith.truncf %107 : vector<4x32x8xf32> to vector<4x32x8xbf16>
    "tpu.trace_start"() <{level = 10 : i32, message = "cqd,ckd->cqk"}> : () -> ()
    %cst_28 = arith.constant dense<0.000000e+00> : vector<4x32x32xf32>
    %109 = tpu.matmul %104, %106, %cst_28 {dimension_numbers = #tpu.dot_dimension_numbers<[2], [2], [1], [1], [0, 0, 0, 1, 1, 1], [0], [0]>} : vector<4x32x8xbf16>, vector<4x32x8xbf16>, vector<4x32x32xf32> -> vector<4x32x32xf32>
    "tpu.trace_stop"() : () -> ()
    %cst_29 = arith.constant dense<0xFF800000> : vector<4x32xf32>
    %110 = vector.multi_reduction <maximumf>, %109, %cst_29 [2] : vector<4x32x32xf32> to vector<4x32xf32>
    %111 = vector.shape_cast %110 : vector<4x32xf32> to vector<4x32x1xf32>
    %112 = vector.broadcast %111 : vector<4x32x1xf32> to vector<4x32x32xf32>
    %113 = arith.subf %109, %112 : vector<4x32x32xf32>
    %114 = math.exp %113 : vector<4x32x32xf32>
    %cst_30 = arith.constant dense<0.000000e+00> : vector<4x32xf32>
    %115 = vector.multi_reduction <add>, %114, %cst_30 [2] : vector<4x32x32xf32> to vector<4x32xf32>
    %116 = vector.shape_cast %115 : vector<4x32xf32> to vector<4x32x1xf32>
    %117 = vector.broadcast %116 : vector<4x32x1xf32> to vector<4x32x32xf32>
    %118 = arith.divf %114, %117 : vector<4x32x32xf32>
    %119 = arith.truncf %118 : vector<4x32x32xf32> to vector<4x32x32xbf16>
    "tpu.trace_start"() <{level = 10 : i32, message = "cqk,ckd->cqd"}> : () -> ()
    %cst_31 = arith.constant dense<0.000000e+00> : vector<4x32x8xf32>
    %120 = tpu.matmul %119, %108, %cst_31 {dimension_numbers = #tpu.dot_dimension_numbers<[2], [1], [1], [2], [0, 0, 0, 1, 1, 2], [0], [0]>} : vector<4x32x32xbf16>, vector<4x32x8xbf16>, vector<4x32x8xf32> -> vector<4x32x8xf32>
    "tpu.trace_stop"() : () -> ()
    %121 = vector.shape_cast %120 : vector<4x32x8xf32> to vector<128x8xf32>
    %c0_32 = arith.constant 0 : index
    %c32 = arith.constant 32 : index
    %122 = vector.load %arg7[%c0_32, %c32] : memref<128x64xf32, #tpu.memory_space<vmem>>, vector<128x8xf32>
    tpu.vector_store %arg7[%c0_32, %c32], %121 {strides = array<i32>} : memref<128x64xf32, #tpu.memory_space<vmem>>, vector<128x8xf32>,
    %123 = vector.extract_strided_slice %7 {offsets = [0, 40], sizes = [128, 8], strides = [1, 1]} : vector<128x192xf32> to vector<128x8xf32>
    %124 = vector.extract_strided_slice %7 {offsets = [0, 104], sizes = [128, 8], strides = [1, 1]} : vector<128x192xf32> to vector<128x8xf32>
    %125 = vector.extract_strided_slice %7 {offsets = [0, 168], sizes = [128, 8], strides = [1, 1]} : vector<128x192xf32> to vector<128x8xf32>
    %126 = vector.shape_cast %123 : vector<128x8xf32> to vector<4x32x8xf32>
    %127 = arith.truncf %126 : vector<4x32x8xf32> to vector<4x32x8xbf16>
    %128 = vector.shape_cast %124 : vector<128x8xf32> to vector<4x32x8xf32>
    %129 = arith.truncf %128 : vector<4x32x8xf32> to vector<4x32x8xbf16>
    %130 = vector.shape_cast %125 : vector<128x8xf32> to vector<4x32x8xf32>
    %131 = arith.truncf %130 : vector<4x32x8xf32> to vector<4x32x8xbf16>
    "tpu.trace_start"() <{level = 10 : i32, message = "cqd,ckd->cqk"}> : () -> ()
    %cst_33 = arith.constant dense<0.000000e+00> : vector<4x32x32xf32>
    %132 = tpu.matmul %127, %129, %cst_33 {dimension_numbers = #tpu.dot_dimension_numbers<[2], [2], [1], [1], [0, 0, 0, 1, 1, 1], [0], [0]>} : vector<4x32x8xbf16>, vector<4x32x8xbf16>, vector<4x32x32xf32> -> vector<4x32x32xf32>
    "tpu.trace_stop"() : () -> ()
    %cst_34 = arith.constant dense<0xFF800000> : vector<4x32xf32>
    %133 = vector.multi_reduction <maximumf>, %132, %cst_34 [2] : vector<4x32x32xf32> to vector<4x32xf32>
    %134 = vector.shape_cast %133 : vector<4x32xf32> to vector<4x32x1xf32>
    %135 = vector.broadcast %134 : vector<4x32x1xf32> to vector<4x32x32xf32>
    %136 = arith.subf %132, %135 : vector<4x32x32xf32>
    %137 = math.exp %136 : vector<4x32x32xf32>
    %cst_35 = arith.constant dense<0.000000e+00> : vector<4x32xf32>
    %138 = vector.multi_reduction <add>, %137, %cst_35 [2] : vector<4x32x32xf32> to vector<4x32xf32>
    %139 = vector.shape_cast %138 : vector<4x32xf32> to vector<4x32x1xf32>
    %140 = vector.broadcast %139 : vector<4x32x1xf32> to vector<4x32x32xf32>
    %141 = arith.divf %137, %140 : vector<4x32x32xf32>
    %142 = arith.truncf %141 : vector<4x32x32xf32> to vector<4x32x32xbf16>
    "tpu.trace_start"() <{level = 10 : i32, message = "cqk,ckd->cqd"}> : () -> ()
    %cst_36 = arith.constant dense<0.000000e+00> : vector<4x32x8xf32>
    %143 = tpu.matmul %142, %131, %cst_36 {dimension_numbers = #tpu.dot_dimension_numbers<[2], [1], [1], [2], [0, 0, 0, 1, 1, 2], [0], [0]>} : vector<4x32x32xbf16>, vector<4x32x8xbf16>, vector<4x32x8xf32> -> vector<4x32x8xf32>
    "tpu.trace_stop"() : () -> ()
    %144 = vector.shape_cast %143 : vector<4x32x8xf32> to vector<128x8xf32>
    %c0_37 = arith.constant 0 : index
    %c40 = arith.constant 40 : index
    %145 = vector.load %arg7[%c0_37, %c40] : memref<128x64xf32, #tpu.memory_space<vmem>>, vector<128x8xf32>
    tpu.vector_store %arg7[%c0_37, %c40], %144 {strides = array<i32>} : memref<128x64xf32, #tpu.memory_space<vmem>>, vector<128x8xf32>,
    %146 = vector.extract_strided_slice %7 {offsets = [0, 48], sizes = [128, 8], strides = [1, 1]} : vector<128x192xf32> to vector<128x8xf32>
    %147 = vector.extract_strided_slice %7 {offsets = [0, 112], sizes = [128, 8], strides = [1, 1]} : vector<128x192xf32> to vector<128x8xf32>
    %148 = vector.extract_strided_slice %7 {offsets = [0, 176], sizes = [128, 8], strides = [1, 1]} : vector<128x192xf32> to vector<128x8xf32>
    %149 = vector.shape_cast %146 : vector<128x8xf32> to vector<4x32x8xf32>
    %150 = arith.truncf %149 : vector<4x32x8xf32> to vector<4x32x8xbf16>
    %151 = vector.shape_cast %147 : vector<128x8xf32> to vector<4x32x8xf32>
    %152 = arith.truncf %151 : vector<4x32x8xf32> to vector<4x32x8xbf16>
    %153 = vector.shape_cast %148 : vector<128x8xf32> to vector<4x32x8xf32>
    %154 = arith.truncf %153 : vector<4x32x8xf32> to vector<4x32x8xbf16>
    "tpu.trace_start"() <{level = 10 : i32, message = "cqd,ckd->cqk"}> : () -> ()
    %cst_38 = arith.constant dense<0.000000e+00> : vector<4x32x32xf32>
    %155 = tpu.matmul %150, %152, %cst_38 {dimension_numbers = #tpu.dot_dimension_numbers<[2], [2], [1], [1], [0, 0, 0, 1, 1, 1], [0], [0]>} : vector<4x32x8xbf16>, vector<4x32x8xbf16>, vector<4x32x32xf32> -> vector<4x32x32xf32>
    "tpu.trace_stop"() : () -> ()
    %cst_39 = arith.constant dense<0xFF800000> : vector<4x32xf32>
    %156 = vector.multi_reduction <maximumf>, %155, %cst_39 [2] : vector<4x32x32xf32> to vector<4x32xf32>
    %157 = vector.shape_cast %156 : vector<4x32xf32> to vector<4x32x1xf32>
    %158 = vector.broadcast %157 : vector<4x32x1xf32> to vector<4x32x32xf32>
    %159 = arith.subf %155, %158 : vector<4x32x32xf32>
    %160 = math.exp %159 : vector<4x32x32xf32>
    %cst_40 = arith.constant dense<0.000000e+00> : vector<4x32xf32>
    %161 = vector.multi_reduction <add>, %160, %cst_40 [2] : vector<4x32x32xf32> to vector<4x32xf32>
    %162 = vector.shape_cast %161 : vector<4x32xf32> to vector<4x32x1xf32>
    %163 = vector.broadcast %162 : vector<4x32x1xf32> to vector<4x32x32xf32>
    %164 = arith.divf %160, %163 : vector<4x32x32xf32>
    %165 = arith.truncf %164 : vector<4x32x32xf32> to vector<4x32x32xbf16>
    "tpu.trace_start"() <{level = 10 : i32, message = "cqk,ckd->cqd"}> : () -> ()
    %cst_41 = arith.constant dense<0.000000e+00> : vector<4x32x8xf32>
    %166 = tpu.matmul %165, %154, %cst_41 {dimension_numbers = #tpu.dot_dimension_numbers<[2], [1], [1], [2], [0, 0, 0, 1, 1, 2], [0], [0]>} : vector<4x32x32xbf16>, vector<4x32x8xbf16>, vector<4x32x8xf32> -> vector<4x32x8xf32>
    "tpu.trace_stop"() : () -> ()
    %167 = vector.shape_cast %166 : vector<4x32x8xf32> to vector<128x8xf32>
    %c0_42 = arith.constant 0 : index
    %c48 = arith.constant 48 : index
    %168 = vector.load %arg7[%c0_42, %c48] : memref<128x64xf32, #tpu.memory_space<vmem>>, vector<128x8xf32>
    tpu.vector_store %arg7[%c0_42, %c48], %167 {strides = array<i32>} : memref<128x64xf32, #tpu.memory_space<vmem>>, vector<128x8xf32>,
    %169 = vector.extract_strided_slice %7 {offsets = [0, 56], sizes = [128, 8], strides = [1, 1]} : vector<128x192xf32> to vector<128x8xf32>
    %170 = vector.extract_strided_slice %7 {offsets = [0, 120], sizes = [128, 8], strides = [1, 1]} : vector<128x192xf32> to vector<128x8xf32>
    %171 = vector.extract_strided_slice %7 {offsets = [0, 184], sizes = [128, 8], strides = [1, 1]} : vector<128x192xf32> to vector<128x8xf32>
    %172 = vector.shape_cast %169 : vector<128x8xf32> to vector<4x32x8xf32>
    %173 = arith.truncf %172 : vector<4x32x8xf32> to vector<4x32x8xbf16>
    %174 = vector.shape_cast %170 : vector<128x8xf32> to vector<4x32x8xf32>
    %175 = arith.truncf %174 : vector<4x32x8xf32> to vector<4x32x8xbf16>
    %176 = vector.shape_cast %171 : vector<128x8xf32> to vector<4x32x8xf32>
    %177 = arith.truncf %176 : vector<4x32x8xf32> to vector<4x32x8xbf16>
    "tpu.trace_start"() <{level = 10 : i32, message = "cqd,ckd->cqk"}> : () -> ()
    %cst_43 = arith.constant dense<0.000000e+00> : vector<4x32x32xf32>
    %178 = tpu.matmul %173, %175, %cst_43 {dimension_numbers = #tpu.dot_dimension_numbers<[2], [2], [1], [1], [0, 0, 0, 1, 1, 1], [0], [0]>} : vector<4x32x8xbf16>, vector<4x32x8xbf16>, vector<4x32x32xf32> -> vector<4x32x32xf32>
    "tpu.trace_stop"() : () -> ()
    %cst_44 = arith.constant dense<0xFF800000> : vector<4x32xf32>
    %179 = vector.multi_reduction <maximumf>, %178, %cst_44 [2] : vector<4x32x32xf32> to vector<4x32xf32>
    %180 = vector.shape_cast %179 : vector<4x32xf32> to vector<4x32x1xf32>
    %181 = vector.broadcast %180 : vector<4x32x1xf32> to vector<4x32x32xf32>
    %182 = arith.subf %178, %181 : vector<4x32x32xf32>
    %183 = math.exp %182 : vector<4x32x32xf32>
    %cst_45 = arith.constant dense<0.000000e+00> : vector<4x32xf32>
    %184 = vector.multi_reduction <add>, %183, %cst_45 [2] : vector<4x32x32xf32> to vector<4x32xf32>
    %185 = vector.shape_cast %184 : vector<4x32xf32> to vector<4x32x1xf32>
    %186 = vector.broadcast %185 : vector<4x32x1xf32> to vector<4x32x32xf32>
    %187 = arith.divf %183, %186 : vector<4x32x32xf32>
    %188 = arith.truncf %187 : vector<4x32x32xf32> to vector<4x32x32xbf16>
    "tpu.trace_start"() <{level = 10 : i32, message = "cqk,ckd->cqd"}> : () -> ()
    %cst_46 = arith.constant dense<0.000000e+00> : vector<4x32x8xf32>
    %189 = tpu.matmul %188, %177, %cst_46 {dimension_numbers = #tpu.dot_dimension_numbers<[2], [1], [1], [2], [0, 0, 0, 1, 1, 2], [0], [0]>} : vector<4x32x32xbf16>, vector<4x32x8xbf16>, vector<4x32x8xf32> -> vector<4x32x8xf32>
    "tpu.trace_stop"() : () -> ()
    %190 = vector.shape_cast %189 : vector<4x32x8xf32> to vector<128x8xf32>
    %c0_47 = arith.constant 0 : index
    %c56 = arith.constant 56 : index
    %191 = vector.load %arg7[%c0_47, %c56] : memref<128x64xf32, #tpu.memory_space<vmem>>, vector<128x8xf32>
    tpu.vector_store %arg7[%c0_47, %c56], %190 {strides = array<i32>} : memref<128x64xf32, #tpu.memory_space<vmem>>, vector<128x8xf32>,
    %c0_48 = arith.constant 0 : index
    %c0_49 = arith.constant 0 : index
    %192 = vector.load %arg7[%c0_48, %c0_49] : memref<128x64xf32, #tpu.memory_space<vmem>>, vector<128x64xf32>
    %193 = arith.truncf %192 : vector<128x64xf32> to vector<128x64xbf16>
    %c0_50 = arith.constant 0 : index
    %c0_51 = arith.constant 0 : index
    %194 = vector.load %arg4[%c0_50, %c0_51] : memref<64x128xbf16, #tpu.memory_space<vmem>>, vector<64x128xbf16>
    %cst_52 = arith.constant dense<0.000000e+00> : vector<128x128xf32>
    %195 = tpu.matmul %193, %194, %cst_52 {dimension_numbers = #tpu.dot_dimension_numbers<[1], [0], [0], [1], [0, 0, 1, 1], [], []>} : vector<128x64xbf16>, vector<64x128xbf16>, vector<128x128xf32> -> vector<128x128xf32>
    %c0_53 = arith.constant 0 : index
    %c0_54 = arith.constant 0 : index
    %196 = vector.load %arg5[%c0_53, %c0_54] : memref<1x128xf32, #tpu.memory_space<vmem>>, vector<1x128xf32>
    %197 = vector.broadcast %196 : vector<1x128xf32> to vector<128x128xf32>
    %198 = arith.addf %195, %197 : vector<128x128xf32>
    %c0_55 = arith.constant 0 : index
    %c0_56 = arith.constant 0 : index
    %c0_57 = arith.constant 0 : index
    %199 = vector.load %arg6[%c0_55, %c0_56, %c0_57] : memref<1x128x128xf32, #tpu.memory_space<vmem>>, vector<1x128x128xf32>
    %200 = vector.shape_cast %199 : vector<1x128x128xf32> to vector<128x128xf32>
    %201 = vector.shape_cast %198 : vector<128x128xf32> to vector<1x128x128xf32>
    tpu.vector_store %arg6[%c0_55, %c0_56, %c0_57], %201 {strides = array<i32>} : memref<1x128x128xf32, #tpu.memory_space<vmem>>, vector<1x128x128xf32>,
    return
  }
  func.func @transform_0(%arg0: i32) -> (i32, i32, i32) {
    %c0_i32 = arith.constant 0 : i32
    %c0_i32_0 = arith.constant 0 : i32
    %c0_i32_1 = arith.constant 0 : i32
    return %arg0, %c0_i32, %c0_i32_0 : i32, i32, i32
  }
  func.func @transform_1(%arg0: i32) -> (i32, i32) {
    %c0_i32 = arith.constant 0 : i32
    %c0_i32_0 = arith.constant 0 : i32
    %c0_i32_1 = arith.constant 0 : i32
    return %c0_i32, %c0_i32_0 : i32, i32
  }
  func.func @transform_2(%arg0: i32) -> (i32, i32) {
    %c0_i32 = arith.constant 0 : i32
    %c0_i32_0 = arith.constant 0 : i32
    %c0_i32_1 = arith.constant 0 : i32
    return %c0_i32, %c0_i32_0 : i32, i32
  }
  func.func @transform_3(%arg0: i32) -> (i32, i32) {
    %c0_i32 = arith.constant 0 : i32
    %c0_i32_0 = arith.constant 0 : i32
    %c0_i32_1 = arith.constant 0 : i32
    return %c0_i32, %c0_i32_0 : i32, i32
  }
  func.func @transform_4(%arg0: i32) -> (i32, i32) {
    %c0_i32 = arith.constant 0 : i32
    %c0_i32_0 = arith.constant 0 : i32
    %c0_i32_1 = arith.constant 0 : i32
    return %c0_i32, %c0_i32_0 : i32, i32
  }
  func.func @transform_5(%arg0: i32) -> (i32, i32, i32) {
    %c0_i32 = arith.constant 0 : i32
    %c0_i32_0 = arith.constant 0 : i32
    %c0_i32_1 = arith.constant 0 : i32
    return %arg0, %c0_i32, %c0_i32_0 : i32, i32, i32
  }
}

</mosaic_0001>

<llo_original>
// kernel: eff_attention_forward.1
$region0: #{eff_attention_forward.1}
  #allocation0 [shape = 'u32[]', space=smem, size = 0x4, offset = 0x4, fixed_abs, tag = 'smem constant byte address 0x4 - core index']
  #allocation1 [shape = 'u32[144,128]{1,0:T(1,128)}', space=vmem, size = 0x12000, scoped, tag = 'internal scratch']
  #allocation2 [shape = 'f32[128,64]{1,0:T(8,128)}', space=vmem, size = 0x10000, scoped, tag = 'scratch operand']
  %s0 = inlined_call_operand.hbm [shape: f32[2,128,128], index: 0, kind: input, shape index: {}]
  %s1 = inlined_call_operand.vmem [shape: bf16[128,64], index: 1, kind: input, shape index: {}]
  %s2 = inlined_call_operand.vmem [shape: bf16[64,192], index: 2, kind: input, shape index: {}]
  %s3 = inlined_call_operand.vmem [shape: bf16[64,128], index: 3, kind: input, shape index: {}]
  %s4 = inlined_call_operand.vmem [shape: f32[1,128], index: 4, kind: input, shape index: {}]
  %s5 = inlined_call_operand.hbm [shape: f32[2,128,128], index: 5, kind: output, shape index: {}]
  %s6 = sld [smem:[#allocation0]]
  $region57: #{eff_attention_forward.1} parent=0
    _
  %s8 = ssub.s32 1, %s6
  %s9 = scalar_select 0, %s8, %s6
  $region1: #{eff_attention_forward.1} parent=0
    #allocation3 [shape = 'u8[131072]{0}', space=vmem, size = 0x20000, scoped, tag = 'input window, operand 0']
    #allocation4 [shape = 's32[2]{0}', space=sflag, size = 0x8, scoped, tag = 'scoped memory for eff_attention_forward.1']
    #allocation5 [shape = 's32[2]{0}', space=sflag, size = 0x8, scoped, tag = 'scoped memory for eff_attention_forward.1']
    #allocation6 [shape = 'u8[131072]{0}', space=vmem, size = 0x20000, scoped, tag = 'output window, operand 0']
    %10 = vsyncpa [#allocation4], 0
    %s11 = scalar_lea.sflag [#allocation4], 1
    %12 = vsyncpa %s11, 0
    %13 = vsyncpa [#allocation5], 0
    %s14 = scalar_lea.sflag [#allocation5], 1
    %15 = vsyncpa %s14, 0
    loop: start=0, step=1, limit=4
    $region2: #{eff_attention_forward.1} parent=1 // loop_pre_header
      _
    $region3: #{eff_attention_forward.1} parent=1 // loop_header
      %s17 = sphi 0, %s21
      %p18 = scmp.ge.s32.totalorder %s17, 4
      %s27 = sphi 0, %s29
      %s30 = sphi 0, %s27
      %s31 = sphi 0, %s30
      %s47 = sphi 0, %s31
      %s51 = sphi 0, %s51
      %s53 = sphi 0, %s51
      %s54 = sphi 0, %s53
      %s68 = sphi 0, %s54
      %s72 = sphi 0, %s72
      %s74 = sphi 0, %s72
      %s75 = sphi 0, %s74
      %s89 = sphi 0, %s75
      %s93 = sphi 0, %s93
      %s95 = sphi 0, %s93
      %s96 = sphi 0, %s95
      %s110 = sphi 0, %s96
      %s114 = sphi 0, %s114
      %s116 = sphi 0, %s114
      %s117 = sphi 0, %s116
      %s131 = sphi 0, %s117
      %s137 = sphi 0, %s139
      %s140 = sphi 0, %s137
      %s141 = sphi 0, %s140
      %s157 = sphi 0, %s141
    $region4: #{eff_attention_forward.1} parent=1 // loop_header_branch
      %20 = sbr.rel (%p18) target = $region8
    $region5: #{eff_attention_forward.1} parent=1 // loop_body
      %s22 = ssub.s32 %s17, 1
      %s23 = ssub.s32 %s17, 2
      %s24 = sadd.s32 %s17, 1
      %s25 = ssub.s32 %s17, %s24
      %p26 = scmp.eq.s32.totalorder %s25, 0
      %s28 = sadd.s32 %s27, 1
      %s29 = scalar_select %p26, %s27, %s28
      %p32 = pneg %p26
      %p33 = scmp.eq.s32.totalorder %s17, 1
      %p34 = por %p32, %p33
      %p35 = scmp.ne.s32.totalorder %s27, %s30
      %p36 = scmp.eq.s32.totalorder %s17, 0
      %p37 = por %p35, %p36
      %p38 = scmp.ne.s32.totalorder %s27, %s30
      %p39 = scmp.eq.s32.totalorder %s22, 1
      %p40 = por %p38, %p39
      %p41 = scmp.ne.s32.totalorder %s30, %s31
      %p42 = scmp.eq.s32.totalorder %s22, 0
      %p43 = por %p41, %p42
      %p44 = scmp.ne.s32.totalorder %s30, %s31
      %p45 = scmp.eq.s32.totalorder %s23, 1
      %p46 = por %p44, %p45
      %p48 = scmp.ne.s32.totalorder %s31, %s47
      %p49 = scmp.eq.s32.totalorder %s23, 0
      %p50 = por %p48, %p49
      %s52 = sadd.s32 %s51, 1
      %p55 = scmp.eq.s32.totalorder %s17, 1
      %p56 = scmp.ne.s32.totalorder %s51, %s53
      %p57 = scmp.eq.s32.totalorder %s17, 0
      %p58 = por %p56, %p57
      %p59 = scmp.ne.s32.totalorder %s51, %s53
      %p60 = scmp.eq.s32.totalorder %s22, 1
      %p61 = por %p59, %p60
      %p62 = scmp.ne.s32.totalorder %s53, %s54
      %p63 = scmp.eq.s32.totalorder %s22, 0
      %p64 = por %p62, %p63
      %p65 = scmp.ne.s32.totalorder %s53, %s54
      %p66 = scmp.eq.s32.totalorder %s23, 1
      %p67 = por %p65, %p66
      %p69 = scmp.ne.s32.totalorder %s54, %s68
      %p70 = scmp.eq.s32.totalorder %s23, 0
      %p71 = por %p69, %p70
      %s73 = sadd.s32 %s72, 1
      %p76 = scmp.eq.s32.totalorder %s17, 1
      %p77 = scmp.ne.s32.totalorder %s72, %s74
      %p78 = scmp.eq.s32.totalorder %s17, 0
      %p79 = por %p77, %p78
      %p80 = scmp.ne.s32.totalorder %s72, %s74
      %p81 = scmp.eq.s32.totalorder %s22, 1
      %p82 = por %p80, %p81
      %p83 = scmp.ne.s32.totalorder %s74, %s75
      %p84 = scmp.eq.s32.totalorder %s22, 0
      %p85 = por %p83, %p84
      %p86 = scmp.ne.s32.totalorder %s74, %s75
      %p87 = scmp.eq.s32.totalorder %s23, 1
      %p88 = por %p86, %p87
      %p90 = scmp.ne.s32.totalorder %s75, %s89
      %p91 = scmp.eq.s32.totalorder %s23, 0
      %p92 = por %p90, %p91
      %s94 = sadd.s32 %s93, 1
      %p97 = scmp.eq.s32.totalorder %s17, 1
      %p98 = scmp.ne.s32.totalorder %s93, %s95
      %p99 = scmp.eq.s32.totalorder %s17, 0
      %p100 = por %p98, %p99
      %p101 = scmp.ne.s32.totalorder %s93, %s95
      %p102 = scmp.eq.s32.totalorder %s22, 1
      %p103 = por %p101, %p102
      %p104 = scmp.ne.s32.totalorder %s95, %s96
      %p105 = scmp.eq.s32.totalorder %s22, 0
      %p106 = por %p104, %p105
      %p107 = scmp.ne.s32.totalorder %s95, %s96
      %p108 = scmp.eq.s32.totalorder %s23, 1
      %p109 = por %p107, %p108
      %p111 = scmp.ne.s32.totalorder %s96, %s110
      %p112 = scmp.eq.s32.totalorder %s23, 0
      %p113 = por %p111, %p112
      %s115 = sadd.s32 %s114, 1
      %p118 = scmp.eq.s32.totalorder %s17, 1
      %p119 = scmp.ne.s32.totalorder %s114, %s116
      %p120 = scmp.eq.s32.totalorder %s17, 0
      %p121 = por %p119, %p120
      %p122 = scmp.ne.s32.totalorder %s114, %s116
      %p123 = scmp.eq.s32.totalorder %s22, 1
      %p124 = por %p122, %p123
      %p125 = scmp.ne.s32.totalorder %s116, %s117
      %p126 = scmp.eq.s32.totalorder %s22, 0
      %p127 = por %p125, %p126
      %p128 = scmp.ne.s32.totalorder %s116, %s117
      %p129 = scmp.eq.s32.totalorder %s23, 1
      %p130 = por %p128, %p129
      %p132 = scmp.ne.s32.totalorder %s117, %s131
      %p133 = scmp.eq.s32.totalorder %s23, 0
      %p134 = por %p132, %p133
      %s135 = ssub.s32 %s17, %s24
      %p136 = scmp.eq.s32.totalorder %s135, 0
      %s138 = sadd.s32 %s137, 1
      %s139 = scalar_select %p136, %s137, %s138
      %p142 = pneg %p136
      %p143 = scmp.eq.s32.totalorder %s17, 1
      %p144 = por %p142, %p143
      %p145 = scmp.ne.s32.totalorder %s137, %s140
      %p146 = scmp.eq.s32.totalorder %s17, 0
      %p147 = por %p145, %p146
      %p148 = scmp.ne.s32.totalorder %s137, %s140
      %p149 = scmp.eq.s32.totalorder %s22, 1
      %p150 = por %p148, %p149
      %p151 = scmp.ne.s32.totalorder %s140, %s141
      %p152 = scmp.eq.s32.totalorder %s22, 0
      %p153 = por %p151, %p152
      %p154 = scmp.ne.s32.totalorder %s140, %s141
      %p155 = scmp.eq.s32.totalorder %s23, 1
      %p156 = por %p154, %p155
      %p158 = scmp.ne.s32.totalorder %s141, %s157
      %p159 = scmp.eq.s32.totalorder %s23, 0
      %p160 = por %p158, %p159
      %p161 = scmp.le.s32.totalorder 1, %s17
      %p162 = scmp.lt.s32.totalorder %s17, 3
      %p163 = pnand %p161, %p162
      %p164 = pneg %p163
      // Predicated region
      $region9: #{eff_attention_forward.1} parent=5 // pred_check
        _
      $region10: #{eff_attention_forward.1} parent=5 // pred_check_branch
        %166 = sbr.rel (%p163) target = $region12
      $region11: #{eff_attention_forward.1} parent=5 // pred_region
        %s167 = ssub.s32 %s17, 1
        // Predicated region
        $region13: #{eff_attention_forward.1} parent=11 // pred_check
          %p168 = pneg %p64
        $region14: #{eff_attention_forward.1} parent=11 // pred_check_branch
          %170 = sbr.rel (%p168) target = $region16
        $region15: #{eff_attention_forward.1} parent=11 // pred_region
          _
        $region16: #{eff_attention_forward.1} parent=11 // pred_fallthru
          _
        // Predicated region
        $region17: #{eff_attention_forward.1} parent=11 // pred_check
          %p171 = pneg %p85
        $region18: #{eff_attention_forward.1} parent=11 // pred_check_branch
          %173 = sbr.rel (%p171) target = $region20
        $region19: #{eff_attention_forward.1} parent=11 // pred_region
          _
        $region20: #{eff_attention_forward.1} parent=11 // pred_fallthru
          _
        // Predicated region
        $region21: #{eff_attention_forward.1} parent=11 // pred_check
          %p174 = pneg %p106
        $region22: #{eff_attention_forward.1} parent=11 // pred_check_branch
          %176 = sbr.rel (%p174) target = $region24
        $region23: #{eff_attention_forward.1} parent=11 // pred_region
          _
        $region24: #{eff_attention_forward.1} parent=11 // pred_fallthru
          _
        // Predicated region
        $region25: #{eff_attention_forward.1} parent=11 // pred_check
          %p177 = pneg %p127
        $region26: #{eff_attention_forward.1} parent=11 // pred_check_branch
          %179 = sbr.rel (%p177) target = $region28
        $region27: #{eff_attention_forward.1} parent=11 // pred_region
          _
        $region28: #{eff_attention_forward.1} parent=11 // pred_fallthru
          _
      $region12: #{eff_attention_forward.1} parent=5 // pred_fallthru
        _
      %p180 = scmp.lt.s32.totalorder %s17, 2
      // Predicated region
      $region29: #{eff_attention_forward.1} parent=5 // pred_check
        %p181 = pneg %p180
      $region30: #{eff_attention_forward.1} parent=5 // pred_check_branch
        %183 = sbr.rel (%p181) target = $region32
      $region31: #{eff_attention_forward.1} parent=5 // pred_region
        // Predicated region
        $region33: #{eff_attention_forward.1} parent=31 // pred_check
          %p184 = pneg %p37
        $region34: #{eff_attention_forward.1} parent=31 // pred_check_branch
          %186 = sbr.rel (%p184) target = $region36
        $region35: #{eff_attention_forward.1} parent=31 // pred_region
          %s187 = sand.u32 %s27, 1
          %s188 = scalar_lea.sflag [#allocation4], %s187
          %s189 = sand.u32 %s27, 1
          %s190 = smul.addr %s189, 128
          %s191 = scalar_lea.vmem [#allocation3], %s190
          %s193 = ssub.s32 2048, 2048
          %194 = vsyncadd %s188, %s193
          %s195 = smul.addr %s17, 16
          %s196 = smul.addr %s195, 128
          %s197 = scalar_lea.hbm %s0, %s196
          %s198 = sshll.u32 %s191, 4
          %s199 = int_to_ptr.vmem [resolvable:$true] %s198
          %204 = dma.hbm_to_vmem [thread:$0]  %s197, 2048, %s199, %s188, 128, 128, 8
        $region36: #{eff_attention_forward.1} parent=31 // pred_fallthru
          _
      $region32: #{eff_attention_forward.1} parent=5 // pred_fallthru
        _
      %p205 = scmp.le.s32.totalorder 1, %s17
      %p206 = scmp.lt.s32.totalorder %s17, 3
      %p207 = pnand %p205, %p206
      %p208 = pneg %p207
      // Predicated region
      $region37: #{eff_attention_forward.1} parent=5 // pred_check
        _
      $region38: #{eff_attention_forward.1} parent=5 // pred_check_branch
        %210 = sbr.rel (%p207) target = $region40
      $region39: #{eff_attention_forward.1} parent=5 // pred_region
        %s211 = ssub.s32 %s17, 1
        %s212 = sand.u32 %s30, 1
        %s213 = scalar_lea.sflag [#allocation4], %s212
        %s214 = sand.u32 %s30, 1
        %s215 = smul.addr %s214, 128
        %s216 = scalar_lea.vmem [#allocation3], %s215
        // Predicated region
        $region41: #{eff_attention_forward.1} parent=39 // pred_check
          %p217 = pneg %p43
        $region42: #{eff_attention_forward.1} parent=39 // pred_check_branch
          %219 = sbr.rel (%p217) target = $region44
        $region43: #{eff_attention_forward.1} parent=39 // pred_region
          %220 = dma.done %s213, 2048
        $region44: #{eff_attention_forward.1} parent=39 // pred_fallthru
          _
        %s221 = sand.u32 %s30, 1
        %s222 = scalar_lea.sflag [#allocation4], %s221
        %s223 = sand.u32 %s30, 1
        %s224 = smul.addr %s223, 128
        %s225 = scalar_lea.vmem [#allocation3], %s224
        %p226 = pneg %p43
        %p227 = pneg %p40
        %p228 = pneg %p64
        %p229 = pneg %p61
        %p230 = pneg %p85
        %p231 = pneg %p82
        %p232 = pneg %p106
        %p233 = pneg %p103
        %p234 = pneg %p127
        %p235 = pneg %p124
        %p236 = pneg %p153
        %p237 = pneg %p150
        %s238 = sand.u32 %s140, 1
        %s239 = scalar_lea.sflag [#allocation5], %s238
        %s240 = sand.u32 %s140, 1
        %s241 = smul.addr %s240, 128
        %s242 = scalar_lea.vmem [#allocation6], %s241
        %v244 = vld [vmem:[%s216] sm:$0xff]
        %v245 = vld [vmem:[%s216 + $0x8] sm:$0xff]
        %v246 = vld [vmem:[%s216 + $0x10] sm:$0xff]
        %v247 = vld [vmem:[%s216 + $0x18] sm:$0xff]
        %v248 = vld [vmem:[%s216 + $0x20] sm:$0xff]
        %v249 = vld [vmem:[%s216 + $0x28] sm:$0xff]
        %v250 = vld [vmem:[%s216 + $0x30] sm:$0xff]
        %v251 = vld [vmem:[%s216 + $0x38] sm:$0xff]
        %v252 = vld [vmem:[%s216 + $0x40] sm:$0xff]
        %v253 = vld [vmem:[%s216 + $0x48] sm:$0xff]
        %v254 = vld [vmem:[%s216 + $0x50] sm:$0xff]
        %v255 = vld [vmem:[%s216 + $0x58] sm:$0xff]
        %v256 = vld [vmem:[%s216 + $0x60] sm:$0xff]
        %v257 = vld [vmem:[%s216 + $0x68] sm:$0xff]
        %v258 = vld [vmem:[%s216 + $0x70] sm:$0xff]
        %v259 = vld [vmem:[%s216 + $0x78] sm:$0xff]
        %v260 = vpack.c.bf16 %v245, %v244
        %v261 = vpack.c.bf16 %v247, %v246
        %v262 = vpack.c.bf16 %v249, %v248
        %v263 = vpack.c.bf16 %v251, %v250
        %v264 = vpack.c.bf16 %v253, %v252
        %v265 = vpack.c.bf16 %v255, %v254
        %v266 = vpack.c.bf16 %v257, %v256
        %v267 = vpack.c.bf16 %v259, %v258
        %v268 = vld [vmem:[%s1] sm:$0xf]
        %v269 = vld [vmem:[%s1 + $0x4] sm:$0xf]
        %v270 = vld [vmem:[%s1 + $0x8] sm:$0xf]
        %v271 = vld [vmem:[%s1 + $0xc] sm:$0xf]
        %v272 = vld [vmem:[%s1 + $0x10] sm:$0xf]
        %v273 = vld [vmem:[%s1 + $0x14] sm:$0xf]
        %v274 = vld [vmem:[%s1 + $0x18] sm:$0xf]
        %v275 = vld [vmem:[%s1 + $0x1c] sm:$0xf]
        %v276 = vld [vmem:[%s1 + $0x20] sm:$0xf]
        %v277 = vld [vmem:[%s1 + $0x24] sm:$0xf]
        %v278 = vld [vmem:[%s1 + $0x28] sm:$0xf]
        %v279 = vld [vmem:[%s1 + $0x2c] sm:$0xf]
        %v280 = vld [vmem:[%s1 + $0x30] sm:$0xf]
        %v281 = vld [vmem:[%s1 + $0x34] sm:$0xf]
        %v282 = vld [vmem:[%s1 + $0x38] sm:$0xf]
        %v283 = vld [vmem:[%s1 + $0x3c] sm:$0xf]
        %v300 = vunpack.c.l.b16 %v268
        %v301 = vunpack.c.l.b16 %v269
        %v302 = vunpack.c.l.b16 %v270
        %v303 = vunpack.c.l.b16 %v271
        %v304 = vunpack.c.l.b16 %v272
        %v305 = vunpack.c.l.b16 %v273
        %v306 = vunpack.c.l.b16 %v274
        %v307 = vunpack.c.l.b16 %v275
        %v308 = vunpack.c.l.b16 %v276
        %v309 = vunpack.c.l.b16 %v277
        %v310 = vunpack.c.l.b16 %v278
        %v311 = vunpack.c.l.b16 %v279
        %v312 = vunpack.c.l.b16 %v280
        %v313 = vunpack.c.l.b16 %v281
        %v314 = vunpack.c.l.b16 %v282
        %v315 = vunpack.c.l.b16 %v283
        %v316 = vpack.c.b16 %v301, %v300
        %v317 = vpack.c.b16 %v303, %v302
        %v318 = vpack.c.b16 %v305, %v304
        %v319 = vpack.c.b16 %v307, %v306
        %v320 = vpack.c.b16 %v309, %v308
        %v321 = vpack.c.b16 %v311, %v310
        %v322 = vpack.c.b16 %v313, %v312
        %v323 = vpack.c.b16 %v315, %v314
        %332 = vmatprep.subr.bf16.mxu0 0
        %333 = vmatpush1.bf16.msra.mxu0 %v316
        %334 = vmatprep.subr.bf16.mxu0 0
        %335 = vmatpush1.bf16.msra.mxu0 %v317
        %336 = vmatprep.subr.bf16.mxu0 0
        %337 = vmatpush1.bf16.msra.mxu0 %v318
        %338 = vmatprep.subr.bf16.mxu0 0
        %339 = vmatpush1.bf16.msra.mxu0 %v319
        %340 = vmatprep.subr.bf16.mxu0 0
        %341 = vmatpush1.bf16.msra.mxu0 %v320
        %342 = vmatprep.subr.bf16.mxu0 0
        %343 = vmatpush1.bf16.msra.mxu0 %v321
        %344 = vmatprep.subr.bf16.mxu0 0
        %345 = vmatpush1.bf16.msra.mxu0 %v322
        %346 = vmatprep.subr.bf16.mxu0 0
        %347 = vmatpush1.bf16.msra.mxu0 %v323
        %348 = vmatprep.subr.bf16.mxu0 0
        %349 = vmatpush1.bf16.msra.mxu0 0
        %350 = vmatprep.subr.bf16.mxu0 0
        %351 = vmatpush1.bf16.msra.mxu0 0
        %352 = vmatprep.subr.bf16.mxu0 0
        %353 = vmatpush1.bf16.msra.mxu0 0
        %354 = vmatprep.subr.bf16.mxu0 0
        %355 = vmatpush1.bf16.msra.mxu0 0
        %356 = vmatprep.subr.bf16.mxu0 0
        %357 = vmatpush1.bf16.msra.mxu0 0
        %358 = vmatprep.subr.bf16.mxu0 0
        %359 = vmatpush1.bf16.msra.mxu0 0
        %360 = vmatprep.subr.bf16.mxu0 0
        %361 = vmatpush1.bf16.msra.mxu0 0
        %362 = vmatprep.subr.bf16.mxu0 0
        %363 = vmatpush1.bf16.msra.mxu0 0
        %364 = vmatprep.mubr.bf16.mxu0 0
        %365 = vmatmul.mubr.bf16.gmra.mrb[0].mxu0 %v260
        %v366 = vpop.f32.mrb[0].mxu0
        %v367 = vadd.f32 0.0, %v366
        %v368 = vpop.f32.mrb[0].mxu0
        %v369 = vpop.f32.mrb[0].mxu0
        %v370 = vadd.f32 0.0, %v369
        %v371 = vpop.f32.mrb[0].mxu0
        %372 = vmatprep.mubr.bf16.mxu0 0
        %373 = vmatmul.mubr.bf16.gmra.mrb[0].mxu0 %v261
        %v374 = vpop.f32.mrb[0].mxu0
        %v375 = vadd.f32 0.0, %v374
        %v376 = vpop.f32.mrb[0].mxu0
        %v377 = vpop.f32.mrb[0].mxu0
        %v378 = vadd.f32 0.0, %v377
        %v379 = vpop.f32.mrb[0].mxu0
        %380 = vmatprep.mubr.bf16.mxu0 0
        %381 = vmatmul.mubr.bf16.gmra.mrb[0].mxu0 %v262
        %v382 = vpop.f32.mrb[0].mxu0
        %v383 = vadd.f32 0.0, %v382
        %v384 = vpop.f32.mrb[0].mxu0
        %v385 = vpop.f32.mrb[0].mxu0
        %v386 = vadd.f32 0.0, %v385
        %v387 = vpop.f32.mrb[0].mxu0
        %388 = vmatprep.mubr.bf16.mxu0 0
        %389 = vmatmul.mubr.bf16.gmra.mrb[0].mxu0 %v263
        %v390 = vpop.f32.mrb[0].mxu0
        %v391 = vadd.f32 0.0, %v390
        %v392 = vpop.f32.mrb[0].mxu0
        %v393 = vpop.f32.mrb[0].mxu0
        %v394 = vadd.f32 0.0, %v393
        %v395 = vpop.f32.mrb[0].mxu0
        %396 = vmatprep.mubr.bf16.mxu0 0
        %397 = vmatmul.mubr.bf16.gmra.mrb[0].mxu0 %v264
        %v398 = vpop.f32.mrb[0].mxu0
        %v399 = vadd.f32 0.0, %v398
        %v400 = vpop.f32.mrb[0].mxu0
        %v401 = vpop.f32.mrb[0].mxu0
        %v402 = vadd.f32 0.0, %v401
        %v403 = vpop.f32.mrb[0].mxu0
        %404 = vmatprep.mubr.bf16.mxu0 0
        %405 = vmatmul.mubr.bf16.gmra.mrb[0].mxu0 %v265
        %v406 = vpop.f32.mrb[0].mxu0
        %v407 = vadd.f32 0.0, %v406
        %v408 = vpop.f32.mrb[0].mxu0
        %v409 = vpop.f32.mrb[0].mxu0
        %v410 = vadd.f32 0.0, %v409
        %v411 = vpop.f32.mrb[0].mxu0
        %412 = vmatprep.mubr.bf16.mxu0 0
        %413 = vmatmul.mubr.bf16.gmra.mrb[0].mxu0 %v266
        %v414 = vpop.f32.mrb[0].mxu0
        %v415 = vadd.f32 0.0, %v414
        %v416 = vpop.f32.mrb[0].mxu0
        %v417 = vpop.f32.mrb[0].mxu0
        %v418 = vadd.f32 0.0, %v417
        %v419 = vpop.f32.mrb[0].mxu0
        %420 = vmatprep.mubr.bf16.mxu0 0
        %421 = vmatmul.mubr.bf16.gmra.mrb[0].mxu0 %v267
        %v422 = vpop.f32.mrb[0].mxu0
        %v423 = vadd.f32 0.0, %v422
        %v424 = vpop.f32.mrb[0].mxu0
        %v425 = vpop.f32.mrb[0].mxu0
        %v426 = vadd.f32 0.0, %v425
        %v427 = vpop.f32.mrb[0].mxu0
        %428 = vdwg.mxu0
        %v429 = vpack.c.bf16 %v370, %v367
        %v430 = vpack.c.bf16 %v378, %v375
        %v431 = vpack.c.bf16 %v386, %v383
        %v432 = vpack.c.bf16 %v394, %v391
        %v433 = vpack.c.bf16 %v402, %v399
        %v434 = vpack.c.bf16 %v410, %v407
        %v435 = vpack.c.bf16 %v418, %v415
        %v436 = vpack.c.bf16 %v426, %v423
        %v437 = vld [vmem:[%s2] sm:$0xff]
        %v438 = vld [vmem:[%s2 + $0x8] sm:$0xff]
        %v439 = vld [vmem:[%s2 + $0x10] sm:$0xff]
        %v440 = vld [vmem:[%s2 + $0x18] sm:$0xff]
        %v441 = vld [vmem:[%s2 + $0x20] sm:$0xff]
        %v442 = vld [vmem:[%s2 + $0x28] sm:$0xff]
        %v443 = vld [vmem:[%s2 + $0x30] sm:$0xff]
        %v444 = vld [vmem:[%s2 + $0x38] sm:$0xff]
        %v453 = vunpack.c.l.b16 %v437
        %v454 = vunpack.c.h.b16 %v437
        %v455 = vunpack.c.l.b16 %v438
        %v456 = vunpack.c.h.b16 %v438
        %v457 = vunpack.c.l.b16 %v439
        %v458 = vunpack.c.h.b16 %v439
        %v459 = vunpack.c.l.b16 %v440
        %v460 = vunpack.c.h.b16 %v440
        %v461 = vunpack.c.l.b16 %v441
        %v462 = vunpack.c.h.b16 %v441
        %v463 = vunpack.c.l.b16 %v442
        %v464 = vunpack.c.h.b16 %v442
        %v465 = vunpack.c.l.b16 %v443
        %v466 = vunpack.c.h.b16 %v443
        %v467 = vunpack.c.l.b16 %v444
        %v468 = vunpack.c.h.b16 %v444
        %v469 = vpack.c.b16 %v455, %v453
        %v470 = vpack.c.b16 %v456, %v454
        %v471 = vpack.c.b16 %v459, %v457
        %v472 = vpack.c.b16 %v460, %v458
        %v473 = vpack.c.b16 %v463, %v461
        %v474 = vpack.c.b16 %v464, %v462
        %v475 = vpack.c.b16 %v467, %v465
        %v476 = vpack.c.b16 %v468, %v466
        %vm485 = vcmask 523264
        %v487 = vsel %vm485, %v429, 0
        %v490 = vsel %vm485, %v430, 0
        %v493 = vsel %vm485, %v431, 0
        %v496 = vsel %vm485, %v432, 0
        %v499 = vsel %vm485, %v433, 0
        %v502 = vsel %vm485, %v434, 0
        %v505 = vsel %vm485, %v435, 0
        %v508 = vsel %vm485, %v436, 0
        %510 = vmatprep.subr.bf16.mxu0 %v470
        %511 = vmatpush1.bf16.msra.mxu0 %v469
        %512 = vmatprep.subr.bf16.mxu0 %v472
        %513 = vmatpush1.bf16.msra.mxu0 %v471
        %514 = vmatprep.subr.bf16.mxu0 %v474
        %515 = vmatpush1.bf16.msra.mxu0 %v473
        %516 = vmatprep.subr.bf16.mxu0 %v476
        %517 = vmatpush1.bf16.msra.mxu0 %v475
        %518 = vmatprep.subr.bf16.mxu0 0
        %519 = vmatpush1.bf16.msra.mxu0 0
        %520 = vmatprep.subr.bf16.mxu0 0
        %521 = vmatpush1.bf16.msra.mxu0 0
        %522 = vmatprep.subr.bf16.mxu0 0
        %523 = vmatpush1.bf16.msra.mxu0 0
        %524 = vmatprep.subr.bf16.mxu0 0
        %525 = vmatpush1.bf16.msra.mxu0 0
        %526 = vmatprep.subr.bf16.mxu0 0
        %527 = vmatpush1.bf16.msra.mxu0 0
        %528 = vmatprep.subr.bf16.mxu0 0
        %529 = vmatpush1.bf16.msra.mxu0 0
        %530 = vmatprep.subr.bf16.mxu0 0
        %531 = vmatpush1.bf16.msra.mxu0 0
        %532 = vmatprep.subr.bf16.mxu0 0
        %533 = vmatpush1.bf16.msra.mxu0 0
        %534 = vmatprep.subr.bf16.mxu0 0
        %535 = vmatpush1.bf16.msra.mxu0 0
        %536 = vmatprep.subr.bf16.mxu0 0
        %537 = vmatpush1.bf16.msra.mxu0 0
        %538 = vmatprep.subr.bf16.mxu0 0
        %539 = vmatpush1.bf16.msra.mxu0 0
        %540 = vmatprep.subr.bf16.mxu0 0
        %541 = vmatpush1.bf16.msra.mxu0 0
        %542 = vmatprep.mubr.bf16.mxu0 0
        %543 = vmatmul.mubr.bf16.gmra.mrb[0].mxu0 %v487
        %v544 = vpop.f32.mrb[0].mxu0
        %v545 = vadd.f32 0.0, %v544
        %v546 = vpop.f32.mrb[0].mxu0
        %v547 = vadd.f32 0.0, %v546
        %v548 = vpop.f32.mrb[0].mxu0
        %v549 = vadd.f32 0.0, %v548
        %v550 = vpop.f32.mrb[0].mxu0
        %v551 = vadd.f32 0.0, %v550
        %552 = vmatprep.mubr.bf16.mxu0 0
        %553 = vmatmul.mubr.bf16.gmra.mrb[0].mxu0 %v490
        %v554 = vpop.f32.mrb[0].mxu0
        %v555 = vadd.f32 0.0, %v554
        %v556 = vpop.f32.mrb[0].mxu0
        %v557 = vadd.f32 0.0, %v556
        %v558 = vpop.f32.mrb[0].mxu0
        %v559 = vadd.f32 0.0, %v558
        %v560 = vpop.f32.mrb[0].mxu0
        %v561 = vadd.f32 0.0, %v560
        %562 = vmatprep.mubr.bf16.mxu0 0
        %563 = vmatmul.mubr.bf16.gmra.mrb[0].mxu0 %v493
        %v564 = vpop.f32.mrb[0].mxu0
        %v565 = vadd.f32 0.0, %v564
        %v566 = vpop.f32.mrb[0].mxu0
        %v567 = vadd.f32 0.0, %v566
        %v568 = vpop.f32.mrb[0].mxu0
        %v569 = vadd.f32 0.0, %v568
        %v570 = vpop.f32.mrb[0].mxu0
        %v571 = vadd.f32 0.0, %v570
        %572 = vmatprep.mubr.bf16.mxu0 0
        %573 = vmatmul.mubr.bf16.gmra.mrb[0].mxu0 %v496
        %v574 = vpop.f32.mrb[0].mxu0
        %v575 = vadd.f32 0.0, %v574
        %v576 = vpop.f32.mrb[0].mxu0
        %v577 = vadd.f32 0.0, %v576
        %v578 = vpop.f32.mrb[0].mxu0
        %v579 = vadd.f32 0.0, %v578
        %v580 = vpop.f32.mrb[0].mxu0
        %v581 = vadd.f32 0.0, %v580
        %582 = vmatprep.mubr.bf16.mxu0 0
        %583 = vmatmul.mubr.bf16.gmra.mrb[0].mxu0 %v499
        %v584 = vpop.f32.mrb[0].mxu0
        %v585 = vadd.f32 0.0, %v584
        %v586 = vpop.f32.mrb[0].mxu0
        %v587 = vadd.f32 0.0, %v586
        %v588 = vpop.f32.mrb[0].mxu0
        %v589 = vadd.f32 0.0, %v588
        %v590 = vpop.f32.mrb[0].mxu0
        %v591 = vadd.f32 0.0, %v590
        %592 = vmatprep.mubr.bf16.mxu0 0
        %593 = vmatmul.mubr.bf16.gmra.mrb[0].mxu0 %v502
        %v594 = vpop.f32.mrb[0].mxu0
        %v595 = vadd.f32 0.0, %v594
        %v596 = vpop.f32.mrb[0].mxu0
        %v597 = vadd.f32 0.0, %v596
        %v598 = vpop.f32.mrb[0].mxu0
        %v599 = vadd.f32 0.0, %v598
        %v600 = vpop.f32.mrb[0].mxu0
        %v601 = vadd.f32 0.0, %v600
        %602 = vmatprep.mubr.bf16.mxu0 0
        %603 = vmatmul.mubr.bf16.gmra.mrb[0].mxu0 %v505
        %v604 = vpop.f32.mrb[0].mxu0
        %v605 = vadd.f32 0.0, %v604
        %v606 = vpop.f32.mrb[0].mxu0
        %v607 = vadd.f32 0.0, %v606
        %v608 = vpop.f32.mrb[0].mxu0
        %v609 = vadd.f32 0.0, %v608
        %v610 = vpop.f32.mrb[0].mxu0
        %v611 = vadd.f32 0.0, %v610
        %612 = vmatprep.mubr.bf16.mxu0 0
        %613 = vmatmul.mubr.bf16.gmra.mrb[0].mxu0 %v508
        %v614 = vpop.f32.mrb[0].mxu0
        %v615 = vadd.f32 0.0, %v614
        %v616 = vpop.f32.mrb[0].mxu0
        %v617 = vadd.f32 0.0, %v616
        %v618 = vpop.f32.mrb[0].mxu0
        %v619 = vadd.f32 0.0, %v618
        %v620 = vpop.f32.mrb[0].mxu0
        %v621 = vadd.f32 0.0, %v620
        %622 = vdwg.mxu0
        %v623 = vpack.c.bf16 %v549, %v545
        %v624 = vpack.c.bf16 %v559, %v555
        %v625 = vpack.c.bf16 %v569, %v565
        %v626 = vpack.c.bf16 %v579, %v575
        %v627 = vpack.c.bf16 %v589, %v585
        %v628 = vpack.c.bf16 %v599, %v595
        %v629 = vpack.c.bf16 %v609, %v605
        %v630 = vpack.c.bf16 %v619, %v615
        %v631 = vpack.c.bf16 %v551, %v547
        %v632 = vpack.c.bf16 %v561, %v557
        %v633 = vpack.c.bf16 %v571, %v567
        %v634 = vpack.c.bf16 %v581, %v577
        %v635 = vpack.c.bf16 %v591, %v587
        %v636 = vpack.c.bf16 %v601, %v597
        %v637 = vpack.c.bf16 %v611, %v607
        %v638 = vpack.c.bf16 %v621, %v617
        %641 = vrot.lane.b32.xlu0 %v623, 64
        %v642 = vpop.permute.xlu0 %641
        %643 = vrot.lane.b32.xlu0 %v624, 64
        %v644 = vpop.permute.xlu0 %643
        %vm645 = vcmask 64512
        %v647 = vsel %vm645, %v623, 0
        %v650 = vsel %vm645, %v624, 0
        %v653 = vsel %vm645, %v642, 0
        %v656 = vsel %vm645, %v644, 0
        %658 = vmatprep.subr.bf16.mxu0 0
        %659 = vmatpush1.bf16.xpose.msra.mxu0 %v653
        %660 = vmatprep.subr.bf16.mxu0 0
        %661 = vmatpush1.bf16.xpose.msra.mxu0 %v656
        %662 = vmatprep.subr.bf16.mxu0 0
        %663 = vmatpush1.bf16.xpose.msra.mxu0 0
        %664 = vmatprep.subr.bf16.mxu0 0
        %665 = vmatpush1.bf16.xpose.msra.mxu0 0
        %666 = vmatprep.subr.bf16.mxu0 0
        %667 = vmatpush1.bf16.xpose.msra.mxu0 0
        %668 = vmatprep.subr.bf16.mxu0 0
        %669 = vmatpush1.bf16.xpose.msra.mxu0 0
        %670 = vmatprep.subr.bf16.mxu0 0
        %671 = vmatpush1.bf16.xpose.msra.mxu0 0
        %672 = vmatprep.subr.bf16.mxu0 0
        %673 = vmatpush1.bf16.xpose.msra.mxu0 0
        %674 = vmatprep.subr.bf16.mxu0 0
        %675 = vmatpush1.bf16.xpose.msra.mxu0 0
        %676 = vmatprep.subr.bf16.mxu0 0
        %677 = vmatpush1.bf16.xpose.msra.mxu0 0
        %678 = vmatprep.subr.bf16.mxu0 0
        %679 = vmatpush1.bf16.xpose.msra.mxu0 0
        %680 = vmatprep.subr.bf16.mxu0 0
        %681 = vmatpush1.bf16.xpose.msra.mxu0 0
        %682 = vmatprep.subr.bf16.mxu0 0
        %683 = vmatpush1.bf16.xpose.msra.mxu0 0
        %684 = vmatprep.subr.bf16.mxu0 0
        %685 = vmatpush1.bf16.xpose.msra.mxu0 0
        %686 = vmatprep.subr.bf16.mxu0 0
        %687 = vmatpush1.bf16.xpose.msra.mxu0 0
        %688 = vmatprep.subr.bf16.mxu0 0
        %689 = vmatpush1.bf16.xpose.msra.mxu0 0
        %690 = vmatprep.mubr.bf16.mxu0 0
        %691 = vmatmul.mubr.bf16.gmra.mrb[0].mxu0 %v647
        %v692 = vpop.f32.mrb[0].mxu0
        %v693 = vadd.f32 0.0, %v692
        %v694 = vpop.f32.mrb[0].mxu0
        %v695 = vpop.f32.mrb[0].mxu0
        %v696 = vadd.f32 0.0, %v695
        %v697 = vpop.f32.mrb[0].mxu0
        %698 = vmatprep.mubr.bf16.mxu0 0
        %699 = vmatmul.mubr.bf16.gmra.mrb[0].mxu0 %v650
        %v700 = vpop.f32.mrb[0].mxu0
        %v701 = vadd.f32 0.0, %v700
        %v702 = vpop.f32.mrb[0].mxu0
        %v703 = vpop.f32.mrb[0].mxu0
        %v704 = vadd.f32 0.0, %v703
        %v705 = vpop.f32.mrb[0].mxu0
        %706 = vdwg.mxu0
        %709 = vrot.lane.b32.xlu0 %v625, 64
        %v710 = vpop.permute.xlu0 %709
        %711 = vrot.lane.b32.xlu0 %v626, 64
        %v712 = vpop.permute.xlu0 %711
        %v714 = vsel %vm645, %v625, 0
        %v717 = vsel %vm645, %v626, 0
        %v720 = vsel %vm645, %v710, 0
        %v723 = vsel %vm645, %v712, 0
        %725 = vmatprep.subr.bf16.mxu0 0
        %726 = vmatpush1.bf16.xpose.msra.mxu0 %v720
        %727 = vmatprep.subr.bf16.mxu0 0
        %728 = vmatpush1.bf16.xpose.msra.mxu0 %v723
        %729 = vmatprep.subr.bf16.mxu0 0
        %730 = vmatpush1.bf16.xpose.msra.mxu0 0
        %731 = vmatprep.subr.bf16.mxu0 0
        %732 = vmatpush1.bf16.xpose.msra.mxu0 0
        %733 = vmatprep.subr.bf16.mxu0 0
        %734 = vmatpush1.bf16.xpose.msra.mxu0 0
        %735 = vmatprep.subr.bf16.mxu0 0
        %736 = vmatpush1.bf16.xpose.msra.mxu0 0
        %737 = vmatprep.subr.bf16.mxu0 0
        %738 = vmatpush1.bf16.xpose.msra.mxu0 0
        %739 = vmatprep.subr.bf16.mxu0 0
        %740 = vmatpush1.bf16.xpose.msra.mxu0 0
        %741 = vmatprep.subr.bf16.mxu0 0
        %742 = vmatpush1.bf16.xpose.msra.mxu0 0
        %743 = vmatprep.subr.bf16.mxu0 0
        %744 = vmatpush1.bf16.xpose.msra.mxu0 0
        %745 = vmatprep.subr.bf16.mxu0 0
        %746 = vmatpush1.bf16.xpose.msra.mxu0 0
        %747 = vmatprep.subr.bf16.mxu0 0
        %748 = vmatpush1.bf16.xpose.msra.mxu0 0
        %749 = vmatprep.subr.bf16.mxu0 0
        %750 = vmatpush1.bf16.xpose.msra.mxu0 0
        %751 = vmatprep.subr.bf16.mxu0 0
        %752 = vmatpush1.bf16.xpose.msra.mxu0 0
        %753 = vmatprep.subr.bf16.mxu0 0
        %754 = vmatpush1.bf16.xpose.msra.mxu0 0
        %755 = vmatprep.subr.bf16.mxu0 0
        %756 = vmatpush1.bf16.xpose.msra.mxu0 0
        %757 = vmatprep.mubr.bf16.mxu0 0
        %758 = vmatmul.mubr.bf16.gmra.mrb[0].mxu0 %v714
        %v759 = vpop.f32.mrb[0].mxu0
        %v760 = vadd.f32 0.0, %v759
        %v761 = vpop.f32.mrb[0].mxu0
        %v762 = vpop.f32.mrb[0].mxu0
        %v763 = vadd.f32 0.0, %v762
        %v764 = vpop.f32.mrb[0].mxu0
        %765 = vmatprep.mubr.bf16.mxu0 0
        %766 = vmatmul.mubr.bf16.gmra.mrb[0].mxu0 %v717
        %v767 = vpop.f32.mrb[0].mxu0
        %v768 = vadd.f32 0.0, %v767
        %v769 = vpop.f32.mrb[0].mxu0
        %v770 = vpop.f32.mrb[0].mxu0
        %v771 = vadd.f32 0.0, %v770
        %v772 = vpop.f32.mrb[0].mxu0
        %773 = vdwg.mxu0
        %776 = vrot.lane.b32.xlu0 %v627, 64
        %v777 = vpop.permute.xlu0 %776
        %778 = vrot.lane.b32.xlu0 %v628, 64
        %v779 = vpop.permute.xlu0 %778
        %v781 = vsel %vm645, %v627, 0
        %v784 = vsel %vm645, %v628, 0
        %v787 = vsel %vm645, %v777, 0
        %v790 = vsel %vm645, %v779, 0
        %792 = vmatprep.subr.bf16.mxu0 0
        %793 = vmatpush1.bf16.xpose.msra.mxu0 %v787
        %794 = vmatprep.subr.bf16.mxu0 0
        %795 = vmatpush1.bf16.xpose.msra.mxu0 %v790
        %796 = vmatprep.subr.bf16.mxu0 0
        %797 = vmatpush1.bf16.xpose.msra.mxu0 0
        %798 = vmatprep.subr.bf16.mxu0 0
        %799 = vmatpush1.bf16.xpose.msra.mxu0 0
        %800 = vmatprep.subr.bf16.mxu0 0
        %801 = vmatpush1.bf16.xpose.msra.mxu0 0
        %802 = vmatprep.subr.bf16.mxu0 0
        %803 = vmatpush1.bf16.xpose.msra.mxu0 0
        %804 = vmatprep.subr.bf16.mxu0 0
        %805 = vmatpush1.bf16.xpose.msra.mxu0 0
        %806 = vmatprep.subr.bf16.mxu0 0
        %807 = vmatpush1.bf16.xpose.msra.mxu0 0
        %808 = vmatprep.subr.bf16.mxu0 0
        %809 = vmatpush1.bf16.xpose.msra.mxu0 0
        %810 = vmatprep.subr.bf16.mxu0 0
        %811 = vmatpush1.bf16.xpose.msra.mxu0 0
        %812 = vmatprep.subr.bf16.mxu0 0
        %813 = vmatpush1.bf16.xpose.msra.mxu0 0
        %814 = vmatprep.subr.bf16.mxu0 0
        %815 = vmatpush1.bf16.xpose.msra.mxu0 0
        %816 = vmatprep.subr.bf16.mxu0 0
        %817 = vmatpush1.bf16.xpose.msra.mxu0 0
        %818 = vmatprep.subr.bf16.mxu0 0
        %819 = vmatpush1.bf16.xpose.msra.mxu0 0
        %820 = vmatprep.subr.bf16.mxu0 0
        %821 = vmatpush1.bf16.xpose.msra.mxu0 0
        %822 = vmatprep.subr.bf16.mxu0 0
        %823 = vmatpush1.bf16.xpose.msra.mxu0 0
        %824 = vmatprep.mubr.bf16.mxu0 0
        %825 = vmatmul.mubr.bf16.gmra.mrb[0].mxu0 %v781
        %v826 = vpop.f32.mrb[0].mxu0
        %v827 = vadd.f32 0.0, %v826
        %v828 = vpop.f32.mrb[0].mxu0
        %v829 = vpop.f32.mrb[0].mxu0
        %v830 = vadd.f32 0.0, %v829
        %v831 = vpop.f32.mrb[0].mxu0
        %832 = vmatprep.mubr.bf16.mxu0 0
        %833 = vmatmul.mubr.bf16.gmra.mrb[0].mxu0 %v784
        %v834 = vpop.f32.mrb[0].mxu0
        %v835 = vadd.f32 0.0, %v834
        %v836 = vpop.f32.mrb[0].mxu0
        %v837 = vpop.f32.mrb[0].mxu0
        %v838 = vadd.f32 0.0, %v837
        %v839 = vpop.f32.mrb[0].mxu0
        %840 = vdwg.mxu0
        %843 = vrot.lane.b32.xlu0 %v629, 64
        %v844 = vpop.permute.xlu0 %843
        %845 = vrot.lane.b32.xlu0 %v630, 64
        %v846 = vpop.permute.xlu0 %845
        %v848 = vsel %vm645, %v629, 0
        %v851 = vsel %vm645, %v630, 0
        %v854 = vsel %vm645, %v844, 0
        %v857 = vsel %vm645, %v846, 0
        %859 = vmatprep.subr.bf16.mxu0 0
        %860 = vmatpush1.bf16.xpose.msra.mxu0 %v854
        %861 = vmatprep.subr.bf16.mxu0 0
        %862 = vmatpush1.bf16.xpose.msra.mxu0 %v857
        %863 = vmatprep.subr.bf16.mxu0 0
        %864 = vmatpush1.bf16.xpose.msra.mxu0 0
        %865 = vmatprep.subr.bf16.mxu0 0
        %866 = vmatpush1.bf16.xpose.msra.mxu0 0
        %867 = vmatprep.subr.bf16.mxu0 0
        %868 = vmatpush1.bf16.xpose.msra.mxu0 0
        %869 = vmatprep.subr.bf16.mxu0 0
        %870 = vmatpush1.bf16.xpose.msra.mxu0 0
        %871 = vmatprep.subr.bf16.mxu0 0
        %872 = vmatpush1.bf16.xpose.msra.mxu0 0
        %873 = vmatprep.subr.bf16.mxu0 0
        %874 = vmatpush1.bf16.xpose.msra.mxu0 0
        %875 = vmatprep.subr.bf16.mxu0 0
        %876 = vmatpush1.bf16.xpose.msra.mxu0 0
        %877 = vmatprep.subr.bf16.mxu0 0
        %878 = vmatpush1.bf16.xpose.msra.mxu0 0
        %879 = vmatprep.subr.bf16.mxu0 0
        %880 = vmatpush1.bf16.xpose.msra.mxu0 0
        %881 = vmatprep.subr.bf16.mxu0 0
        %882 = vmatpush1.bf16.xpose.msra.mxu0 0
        %883 = vmatprep.subr.bf16.mxu0 0
        %884 = vmatpush1.bf16.xpose.msra.mxu0 0
        %885 = vmatprep.subr.bf16.mxu0 0
        %886 = vmatpush1.bf16.xpose.msra.mxu0 0
        %887 = vmatprep.subr.bf16.mxu0 0
        %888 = vmatpush1.bf16.xpose.msra.mxu0 0
        %889 = vmatprep.subr.bf16.mxu0 0
        %890 = vmatpush1.bf16.xpose.msra.mxu0 0
        %891 = vmatprep.mubr.bf16.mxu0 0
        %892 = vmatmul.mubr.bf16.gmra.mrb[0].mxu0 %v848
        %v893 = vpop.f32.mrb[0].mxu0
        %v894 = vadd.f32 0.0, %v893
        %v895 = vpop.f32.mrb[0].mxu0
        %v896 = vpop.f32.mrb[0].mxu0
        %v897 = vadd.f32 0.0, %v896
        %v898 = vpop.f32.mrb[0].mxu0
        %899 = vmatprep.mubr.bf16.mxu0 0
        %900 = vmatmul.mubr.bf16.gmra.mrb[0].mxu0 %v851
        %v901 = vpop.f32.mrb[0].mxu0
        %v902 = vadd.f32 0.0, %v901
        %v903 = vpop.f32.mrb[0].mxu0
        %v904 = vpop.f32.mrb[0].mxu0
        %v905 = vadd.f32 0.0, %v904
        %v906 = vpop.f32.mrb[0].mxu0
        %907 = vdwg.mxu0
        %vm908 = vcmask 261120
        %v909 = vsel %vm908, %v693, -inf
        %910 = vmax.xlane.f32.xlu0 %v909
        %v911 = vpop.xlane.xlu0 %910
        %v912 = vsel %vm908, %v696, -inf
        %913 = vmax.xlane.f32.xlu0 %v912
        %v914 = vpop.xlane.xlu0 %913
        %v915 = vsel %vm908, %v701, -inf
        %916 = vmax.xlane.f32.xlu0 %v915
        %v917 = vpop.xlane.xlu0 %916
        %v918 = vsel %vm908, %v704, -inf
        %919 = vmax.xlane.f32.xlu0 %v918
        %v920 = vpop.xlane.xlu0 %919
        %v921 = vsel %vm908, %v760, -inf
        %922 = vmax.xlane.f32.xlu0 %v921
        %v923 = vpop.xlane.xlu0 %922
        %v924 = vsel %vm908, %v763, -inf
        %925 = vmax.xlane.f32.xlu0 %v924
        %v926 = vpop.xlane.xlu0 %925
        %v927 = vsel %vm908, %v768, -inf
        %928 = vmax.xlane.f32.xlu0 %v927
        %v929 = vpop.xlane.xlu0 %928
        %v930 = vsel %vm908, %v771, -inf
        %931 = vmax.xlane.f32.xlu0 %v930
        %v932 = vpop.xlane.xlu0 %931
        %v933 = vsel %vm908, %v827, -inf
        %934 = vmax.xlane.f32.xlu0 %v933
        %v935 = vpop.xlane.xlu0 %934
        %v936 = vsel %vm908, %v830, -inf
        %937 = vmax.xlane.f32.xlu0 %v936
        %v938 = vpop.xlane.xlu0 %937
        %v939 = vsel %vm908, %v835, -inf
        %940 = vmax.xlane.f32.xlu0 %v939
        %v941 = vpop.xlane.xlu0 %940
        %v942 = vsel %vm908, %v838, -inf
        %943 = vmax.xlane.f32.xlu0 %v942
        %v944 = vpop.xlane.xlu0 %943
        %v945 = vsel %vm908, %v894, -inf
        %946 = vmax.xlane.f32.xlu0 %v945
        %v947 = vpop.xlane.xlu0 %946
        %v948 = vsel %vm908, %v897, -inf
        %949 = vmax.xlane.f32.xlu0 %v948
        %v950 = vpop.xlane.xlu0 %949
        %v951 = vsel %vm908, %v902, -inf
        %952 = vmax.xlane.f32.xlu0 %v951
        %v953 = vpop.xlane.xlu0 %952
        %v954 = vsel %vm908, %v905, -inf
        %955 = vmax.xlane.f32.xlu0 %v954
        %v956 = vpop.xlane.xlu0 %955
        %v957 = vsub.f32 %v693, %v911
        %v958 = vsub.f32 %v696, %v914
        %v959 = vsub.f32 %v701, %v917
        %v960 = vsub.f32 %v704, %v920
        %v961 = vsub.f32 %v760, %v923
        %v962 = vsub.f32 %v763, %v926
        %v963 = vsub.f32 %v768, %v929
        %v964 = vsub.f32 %v771, %v932
        %v965 = vsub.f32 %v827, %v935
        %v966 = vsub.f32 %v830, %v938
        %v967 = vsub.f32 %v835, %v941
        %v968 = vsub.f32 %v838, %v944
        %v969 = vsub.f32 %v894, %v947
        %v970 = vsub.f32 %v897, %v950
        %v971 = vsub.f32 %v902, %v953
        %v972 = vsub.f32 %v905, %v956
        %v973 = vmul.f32 %v957, 1.442695
        %v974 = vpow.pop %v973
        %v975 = vmul.f32 %v958, 1.442695
        %v976 = vpow.pop %v975
        %v977 = vmul.f32 %v959, 1.442695
        %v978 = vpow.pop %v977
        %v979 = vmul.f32 %v960, 1.442695
        %v980 = vpow.pop %v979
        %v981 = vmul.f32 %v961, 1.442695
        %v982 = vpow.pop %v981
        %v983 = vmul.f32 %v962, 1.442695
        %v984 = vpow.pop %v983
        %v985 = vmul.f32 %v963, 1.442695
        %v986 = vpow.pop %v985
        %v987 = vmul.f32 %v964, 1.442695
        %v988 = vpow.pop %v987
        %v989 = vmul.f32 %v965, 1.442695
        %v990 = vpow.pop %v989
        %v991 = vmul.f32 %v966, 1.442695
        %v992 = vpow.pop %v991
        %v993 = vmul.f32 %v967, 1.442695
        %v994 = vpow.pop %v993
        %v995 = vmul.f32 %v968, 1.442695
        %v996 = vpow.pop %v995
        %v997 = vmul.f32 %v969, 1.442695
        %v998 = vpow.pop %v997
        %v999 = vmul.f32 %v970, 1.442695
        %v1000 = vpow.pop %v999
        %v1001 = vmul.f32 %v971, 1.442695
        %v1002 = vpow.pop %v1001
        %v1003 = vmul.f32 %v972, 1.442695
        %v1004 = vpow.pop %v1003
        %v1005 = vsel %vm908, %v974, 0.0
        %1006 = vadd.xlane.f32.xlu0 %v1005
        %v1007 = vpop.xlane.xlu0 %1006
        %v1008 = vsel %vm908, %v976, 0.0
        %1009 = vadd.xlane.f32.xlu0 %v1008
        %v1010 = vpop.xlane.xlu0 %1009
        %v1011 = vsel %vm908, %v978, 0.0
        %1012 = vadd.xlane.f32.xlu0 %v1011
        %v1013 = vpop.xlane.xlu0 %1012
        %v1014 = vsel %vm908, %v980, 0.0
        %1015 = vadd.xlane.f32.xlu0 %v1014
        %v1016 = vpop.xlane.xlu0 %1015
        %v1017 = vsel %vm908, %v982, 0.0
        %1018 = vadd.xlane.f32.xlu0 %v1017
        %v1019 = vpop.xlane.xlu0 %1018
        %v1020 = vsel %vm908, %v984, 0.0
        %1021 = vadd.xlane.f32.xlu0 %v1020
        %v1022 = vpop.xlane.xlu0 %1021
        %v1023 = vsel %vm908, %v986, 0.0
        %1024 = vadd.xlane.f32.xlu0 %v1023
        %v1025 = vpop.xlane.xlu0 %1024
        %v1026 = vsel %vm908, %v988, 0.0
        %1027 = vadd.xlane.f32.xlu0 %v1026
        %v1028 = vpop.xlane.xlu0 %1027
        %v1029 = vsel %vm908, %v990, 0.0
        %1030 = vadd.xlane.f32.xlu0 %v1029
        %v1031 = vpop.xlane.xlu0 %1030
        %v1032 = vsel %vm908, %v992, 0.0
        %1033 = vadd.xlane.f32.xlu0 %v1032
        %v1034 = vpop.xlane.xlu0 %1033
        %v1035 = vsel %vm908, %v994, 0.0
        %1036 = vadd.xlane.f32.xlu0 %v1035
        %v1037 = vpop.xlane.xlu0 %1036
        %v1038 = vsel %vm908, %v996, 0.0
        %1039 = vadd.xlane.f32.xlu0 %v1038
        %v1040 = vpop.xlane.xlu0 %1039
        %v1041 = vsel %vm908, %v998, 0.0
        %1042 = vadd.xlane.f32.xlu0 %v1041
        %v1043 = vpop.xlane.xlu0 %1042
        %v1044 = vsel %vm908, %v1000, 0.0
        %1045 = vadd.xlane.f32.xlu0 %v1044
        %v1046 = vpop.xlane.xlu0 %1045
        %v1047 = vsel %vm908, %v1002, 0.0
        %1048 = vadd.xlane.f32.xlu0 %v1047
        %v1049 = vpop.xlane.xlu0 %1048
        %v1050 = vsel %vm908, %v1004, 0.0
        %1051 = vadd.xlane.f32.xlu0 %v1050
        %v1052 = vpop.xlane.xlu0 %1051
        %v1053 = vrcp.pop %v1007
        %v1054 = vmul.f32 %v974, %v1053
        %v1055 = vrcp.pop %v1010
        %v1056 = vmul.f32 %v976, %v1055
        %v1057 = vrcp.pop %v1013
        %v1058 = vmul.f32 %v978, %v1057
        %v1059 = vrcp.pop %v1016
        %v1060 = vmul.f32 %v980, %v1059
        %v1061 = vrcp.pop %v1019
        %v1062 = vmul.f32 %v982, %v1061
        %v1063 = vrcp.pop %v1022
        %v1064 = vmul.f32 %v984, %v1063
        %v1065 = vrcp.pop %v1025
        %v1066 = vmul.f32 %v986, %v1065
        %v1067 = vrcp.pop %v1028
        %v1068 = vmul.f32 %v988, %v1067
        %v1069 = vrcp.pop %v1031
        %v1070 = vmul.f32 %v990, %v1069
        %v1071 = vrcp.pop %v1034
        %v1072 = vmul.f32 %v992, %v1071
        %v1073 = vrcp.pop %v1037
        %v1074 = vmul.f32 %v994, %v1073
        %v1075 = vrcp.pop %v1040
        %v1076 = vmul.f32 %v996, %v1075
        %v1077 = vrcp.pop %v1043
        %v1078 = vmul.f32 %v998, %v1077
        %v1079 = vrcp.pop %v1046
        %v1080 = vmul.f32 %v1000, %v1079
        %v1081 = vrcp.pop %v1049
        %v1082 = vmul.f32 %v1002, %v1081
        %v1083 = vrcp.pop %v1052
        %v1084 = vmul.f32 %v1004, %v1083
        %v1085 = vpack.c.bf16 %v1056, %v1054
        %v1086 = vpack.c.bf16 %v1060, %v1058
        %v1087 = vpack.c.bf16 %v1064, %v1062
        %v1088 = vpack.c.bf16 %v1068, %v1066
        %v1089 = vpack.c.bf16 %v1072, %v1070
        %v1090 = vpack.c.bf16 %v1076, %v1074
        %v1091 = vpack.c.bf16 %v1080, %v1078
        %v1092 = vpack.c.bf16 %v1084, %v1082
        %v1094 = vsel %vm908, %v1085, 0
        %v1097 = vsel %vm908, %v1086, 0
        %1099 = vmatprep.subr.bf16.mxu0 0
        %1100 = vmatpush1.bf16.msra.mxu0 %v631
        %1101 = vmatprep.subr.bf16.mxu0 0
        %1102 = vmatpush1.bf16.msra.mxu0 %v632
        %1103 = vmatprep.subr.bf16.mxu0 0
        %1104 = vmatpush1.bf16.msra.mxu0 0
        %1105 = vmatprep.subr.bf16.mxu0 0
        %1106 = vmatpush1.bf16.msra.mxu0 0
        %1107 = vmatprep.subr.bf16.mxu0 0
        %1108 = vmatpush1.bf16.msra.mxu0 0
        %1109 = vmatprep.subr.bf16.mxu0 0
        %1110 = vmatpush1.bf16.msra.mxu0 0
        %1111 = vmatprep.subr.bf16.mxu0 0
        %1112 = vmatpush1.bf16.msra.mxu0 0
        %1113 = vmatprep.subr.bf16.mxu0 0
        %1114 = vmatpush1.bf16.msra.mxu0 0
        %1115 = vmatprep.subr.bf16.mxu0 0
        %1116 = vmatpush1.bf16.msra.mxu0 0
        %1117 = vmatprep.subr.bf16.mxu0 0
        %1118 = vmatpush1.bf16.msra.mxu0 0
        %1119 = vmatprep.subr.bf16.mxu0 0
        %1120 = vmatpush1.bf16.msra.mxu0 0
        %1121 = vmatprep.subr.bf16.mxu0 0
        %1122 = vmatpush1.bf16.msra.mxu0 0
        %1123 = vmatprep.subr.bf16.mxu0 0
        %1124 = vmatpush1.bf16.msra.mxu0 0
        %1125 = vmatprep.subr.bf16.mxu0 0
        %1126 = vmatpush1.bf16.msra.mxu0 0
        %1127 = vmatprep.subr.bf16.mxu0 0
        %1128 = vmatpush1.bf16.msra.mxu0 0
        %1129 = vmatprep.subr.bf16.mxu0 0
        %1130 = vmatpush1.bf16.msra.mxu0 0
        %1131 = vmatprep.mubr.bf16.mxu0 0
        %1132 = vmatmul.mubr.bf16.gmra.mrb[0].mxu0 %v1094
        %v1133 = vpop.f32.mrb[0].mxu0
        %v1134 = vadd.f32 0.0, %v1133
        %v1135 = vpop.f32.mrb[0].mxu0
        %v1136 = vpop.f32.mrb[0].mxu0
        %v1137 = vadd.f32 0.0, %v1136
        %v1138 = vpop.f32.mrb[0].mxu0
        %1139 = vmatprep.mubr.bf16.mxu0 0
        %1140 = vmatmul.mubr.bf16.gmra.mrb[0].mxu0 %v1097
        %v1141 = vpop.f32.mrb[0].mxu0
        %v1142 = vadd.f32 0.0, %v1141
        %v1143 = vpop.f32.mrb[0].mxu0
        %v1144 = vpop.f32.mrb[0].mxu0
        %v1145 = vadd.f32 0.0, %v1144
        %v1146 = vpop.f32.mrb[0].mxu0
        %1147 = vdwg.mxu0
        %v1149 = vsel %vm908, %v1087, 0
        %v1152 = vsel %vm908, %v1088, 0
        %1154 = vmatprep.subr.bf16.mxu0 0
        %1155 = vmatpush1.bf16.msra.mxu0 %v633
        %1156 = vmatprep.subr.bf16.mxu0 0
        %1157 = vmatpush1.bf16.msra.mxu0 %v634
        %1158 = vmatprep.subr.bf16.mxu0 0
        %1159 = vmatpush1.bf16.msra.mxu0 0
        %1160 = vmatprep.subr.bf16.mxu0 0
        %1161 = vmatpush1.bf16.msra.mxu0 0
        %1162 = vmatprep.subr.bf16.mxu0 0
        %1163 = vmatpush1.bf16.msra.mxu0 0
        %1164 = vmatprep.subr.bf16.mxu0 0
        %1165 = vmatpush1.bf16.msra.mxu0 0
        %1166 = vmatprep.subr.bf16.mxu0 0
        %1167 = vmatpush1.bf16.msra.mxu0 0
        %1168 = vmatprep.subr.bf16.mxu0 0
        %1169 = vmatpush1.bf16.msra.mxu0 0
        %1170 = vmatprep.subr.bf16.mxu0 0
        %1171 = vmatpush1.bf16.msra.mxu0 0
        %1172 = vmatprep.subr.bf16.mxu0 0
        %1173 = vmatpush1.bf16.msra.mxu0 0
        %1174 = vmatprep.subr.bf16.mxu0 0
        %1175 = vmatpush1.bf16.msra.mxu0 0
        %1176 = vmatprep.subr.bf16.mxu0 0
        %1177 = vmatpush1.bf16.msra.mxu0 0
        %1178 = vmatprep.subr.bf16.mxu0 0
        %1179 = vmatpush1.bf16.msra.mxu0 0
        %1180 = vmatprep.subr.bf16.mxu0 0
        %1181 = vmatpush1.bf16.msra.mxu0 0
        %1182 = vmatprep.subr.bf16.mxu0 0
        %1183 = vmatpush1.bf16.msra.mxu0 0
        %1184 = vmatprep.subr.bf16.mxu0 0
        %1185 = vmatpush1.bf16.msra.mxu0 0
        %1186 = vmatprep.mubr.bf16.mxu0 0
        %1187 = vmatmul.mubr.bf16.gmra.mrb[0].mxu0 %v1149
        %v1188 = vpop.f32.mrb[0].mxu0
        %v1189 = vadd.f32 0.0, %v1188
        %v1190 = vpop.f32.mrb[0].mxu0
        %v1191 = vpop.f32.mrb[0].mxu0
        %v1192 = vadd.f32 0.0, %v1191
        %v1193 = vpop.f32.mrb[0].mxu0
        %1194 = vmatprep.mubr.bf16.mxu0 0
        %1195 = vmatmul.mubr.bf16.gmra.mrb[0].mxu0 %v1152
        %v1196 = vpop.f32.mrb[0].mxu0
        %v1197 = vadd.f32 0.0, %v1196
        %v1198 = vpop.f32.mrb[0].mxu0
        %v1199 = vpop.f32.mrb[0].mxu0
        %v1200 = vadd.f32 0.0, %v1199
        %v1201 = vpop.f32.mrb[0].mxu0
        %1202 = vdwg.mxu0
        %v1204 = vsel %vm908, %v1089, 0
        %v1207 = vsel %vm908, %v1090, 0
        %1209 = vmatprep.subr.bf16.mxu0 0
        %1210 = vmatpush1.bf16.msra.mxu0 %v635
        %1211 = vmatprep.subr.bf16.mxu0 0
        %1212 = vmatpush1.bf16.msra.mxu0 %v636
        %1213 = vmatprep.subr.bf16.mxu0 0
        %1214 = vmatpush1.bf16.msra.mxu0 0
        %1215 = vmatprep.subr.bf16.mxu0 0
        %1216 = vmatpush1.bf16.msra.mxu0 0
        %1217 = vmatprep.subr.bf16.mxu0 0
        %1218 = vmatpush1.bf16.msra.mxu0 0
        %1219 = vmatprep.subr.bf16.mxu0 0
        %1220 = vmatpush1.bf16.msra.mxu0 0
        %1221 = vmatprep.subr.bf16.mxu0 0
        %1222 = vmatpush1.bf16.msra.mxu0 0
        %1223 = vmatprep.subr.bf16.mxu0 0
        %1224 = vmatpush1.bf16.msra.mxu0 0
        %1225 = vmatprep.subr.bf16.mxu0 0
        %1226 = vmatpush1.bf16.msra.mxu0 0
        %1227 = vmatprep.subr.bf16.mxu0 0
        %1228 = vmatpush1.bf16.msra.mxu0 0
        %1229 = vmatprep.subr.bf16.mxu0 0
        %1230 = vmatpush1.bf16.msra.mxu0 0
        %1231 = vmatprep.subr.bf16.mxu0 0
        %1232 = vmatpush1.bf16.msra.mxu0 0
        %1233 = vmatprep.subr.bf16.mxu0 0
        %1234 = vmatpush1.bf16.msra.mxu0 0
        %1235 = vmatprep.subr.bf16.mxu0 0
        %1236 = vmatpush1.bf16.msra.mxu0 0
        %1237 = vmatprep.subr.bf16.mxu0 0
        %1238 = vmatpush1.bf16.msra.mxu0 0
        %1239 = vmatprep.subr.bf16.mxu0 0
        %1240 = vmatpush1.bf16.msra.mxu0 0
        %1241 = vmatprep.mubr.bf16.mxu0 0
        %1242 = vmatmul.mubr.bf16.gmra.mrb[0].mxu0 %v1204
        %v1243 = vpop.f32.mrb[0].mxu0
        %v1244 = vadd.f32 0.0, %v1243
        %v1245 = vpop.f32.mrb[0].mxu0
        %v1246 = vpop.f32.mrb[0].mxu0
        %v1247 = vadd.f32 0.0, %v1246
        %v1248 = vpop.f32.mrb[0].mxu0
        %1249 = vmatprep.mubr.bf16.mxu0 0
        %1250 = vmatmul.mubr.bf16.gmra.mrb[0].mxu0 %v1207
        %v1251 = vpop.f32.mrb[0].mxu0
        %v1252 = vadd.f32 0.0, %v1251
        %v1253 = vpop.f32.mrb[0].mxu0
        %v1254 = vpop.f32.mrb[0].mxu0
        %v1255 = vadd.f32 0.0, %v1254
        %v1256 = vpop.f32.mrb[0].mxu0
        %1257 = vdwg.mxu0
        %v1259 = vsel %vm908, %v1091, 0
        %v1262 = vsel %vm908, %v1092, 0
        %1264 = vmatprep.subr.bf16.mxu0 0
        %1265 = vmatpush1.bf16.msra.mxu0 %v637
        %1266 = vmatprep.subr.bf16.mxu0 0
        %1267 = vmatpush1.bf16.msra.mxu0 %v638
        %1268 = vmatprep.subr.bf16.mxu0 0
        %1269 = vmatpush1.bf16.msra.mxu0 0
        %1270 = vmatprep.subr.bf16.mxu0 0
        %1271 = vmatpush1.bf16.msra.mxu0 0
        %1272 = vmatprep.subr.bf16.mxu0 0
        %1273 = vmatpush1.bf16.msra.mxu0 0
        %1274 = vmatprep.subr.bf16.mxu0 0
        %1275 = vmatpush1.bf16.msra.mxu0 0
        %1276 = vmatprep.subr.bf16.mxu0 0
        %1277 = vmatpush1.bf16.msra.mxu0 0
        %1278 = vmatprep.subr.bf16.mxu0 0
        %1279 = vmatpush1.bf16.msra.mxu0 0
        %1280 = vmatprep.subr.bf16.mxu0 0
        %1281 = vmatpush1.bf16.msra.mxu0 0
        %1282 = vmatprep.subr.bf16.mxu0 0
        %1283 = vmatpush1.bf16.msra.mxu0 0
        %1284 = vmatprep.subr.bf16.mxu0 0
        %1285 = vmatpush1.bf16.msra.mxu0 0
        %1286 = vmatprep.subr.bf16.mxu0 0
        %1287 = vmatpush1.bf16.msra.mxu0 0
        %1288 = vmatprep.subr.bf16.mxu0 0
        %1289 = vmatpush1.bf16.msra.mxu0 0
        %1290 = vmatprep.subr.bf16.mxu0 0
        %1291 = vmatpush1.bf16.msra.mxu0 0
        %1292 = vmatprep.subr.bf16.mxu0 0
        %1293 = vmatpush1.bf16.msra.mxu0 0
        %1294 = vmatprep.subr.bf16.mxu0 0
        %1295 = vmatpush1.bf16.msra.mxu0 0
        %1296 = vmatprep.mubr.bf16.mxu0 0
        %1297 = vmatmul.mubr.bf16.gmra.mrb[0].mxu0 %v1259
        %v1298 = vpop.f32.mrb[0].mxu0
        %v1299 = vadd.f32 0.0, %v1298
        %v1300 = vpop.f32.mrb[0].mxu0
        %v1301 = vpop.f32.mrb[0].mxu0
        %v1302 = vadd.f32 0.0, %v1301
        %v1303 = vpop.f32.mrb[0].mxu0
        %1304 = vmatprep.mubr.bf16.mxu0 0
        %1305 = vmatmul.mubr.bf16.gmra.mrb[0].mxu0 %v1262
        %v1306 = vpop.f32.mrb[0].mxu0
        %v1307 = vadd.f32 0.0, %v1306
        %v1308 = vpop.f32.mrb[0].mxu0
        %v1309 = vpop.f32.mrb[0].mxu0
        %v1310 = vadd.f32 0.0, %v1309
        %v1311 = vpop.f32.mrb[0].mxu0
        %1312 = vdwg.mxu0
        %1313 = vst.msk [vmem:[#allocation2] sm:$0xff] %vm645, %v1134
        %1314 = vst.msk [vmem:[#allocation2 + $0x8] sm:$0xff] %vm645, %v1137
        %1315 = vst.msk [vmem:[#allocation2 + $0x10] sm:$0xff] %vm645, %v1142
        %1316 = vst.msk [vmem:[#allocation2 + $0x18] sm:$0xff] %vm645, %v1145
        %1317 = vst.msk [vmem:[#allocation2 + $0x20] sm:$0xff] %vm645, %v1189
        %1318 = vst.msk [vmem:[#allocation2 + $0x28] sm:$0xff] %vm645, %v1192
        %1319 = vst.msk [vmem:[#allocation2 + $0x30] sm:$0xff] %vm645, %v1197
        %1320 = vst.msk [vmem:[#allocation2 + $0x38] sm:$0xff] %vm645, %v1200
        %1321 = vst.msk [vmem:[#allocation2 + $0x40] sm:$0xff] %vm645, %v1244
        %1322 = vst.msk [vmem:[#allocation2 + $0x48] sm:$0xff] %vm645, %v1247
        %1323 = vst.msk [vmem:[#allocation2 + $0x50] sm:$0xff] %vm645, %v1252
        %1324 = vst.msk [vmem:[#allocation2 + $0x58] sm:$0xff] %vm645, %v1255
        %1325 = vst.msk [vmem:[#allocation2 + $0x60] sm:$0xff] %vm645, %v1299
        %1326 = vst.msk [vmem:[#allocation2 + $0x68] sm:$0xff] %vm645, %v1302
        %1327 = vst.msk [vmem:[#allocation2 + $0x70] sm:$0xff] %vm645, %v1307
        %1328 = vst.msk [vmem:[#allocation2 + $0x78] sm:$0xff] %vm645, %v1310
        %1329 = vrot.lane.b32.xlu0 %v623, 120
        %v1330 = vpop.permute.xlu0 %1329
        %1331 = vrot.lane.b32.xlu0 %v624, 120
        %v1332 = vpop.permute.xlu0 %1331
        %1333 = vrot.lane.b32.xlu0 %v623, 56
        %v1334 = vpop.permute.xlu0 %1333
        %1335 = vrot.lane.b32.xlu0 %v624, 56
        %v1336 = vpop.permute.xlu0 %1335
        %v1338 = vsel %vm645, %v1330, 0
        %v1341 = vsel %vm645, %v1332, 0
        %v1344 = vsel %vm645, %v1334, 0
        %v1347 = vsel %vm645, %v1336, 0
        %1349 = vmatprep.subr.bf16.mxu0 0
        %1350 = vmatpush1.bf16.xpose.msra.mxu0 %v1344
        %1351 = vmatprep.subr.bf16.mxu0 0
        %1352 = vmatpush1.bf16.xpose.msra.mxu0 %v1347
        %1353 = vmatprep.subr.bf16.mxu0 0
        %1354 = vmatpush1.bf16.xpose.msra.mxu0 0
        %1355 = vmatprep.subr.bf16.mxu0 0
        %1356 = vmatpush1.bf16.xpose.msra.mxu0 0
        %1357 = vmatprep.subr.bf16.mxu0 0
        %1358 = vmatpush1.bf16.xpose.msra.mxu0 0
        %1359 = vmatprep.subr.bf16.mxu0 0
        %1360 = vmatpush1.bf16.xpose.msra.mxu0 0
        %1361 = vmatprep.subr.bf16.mxu0 0
        %1362 = vmatpush1.bf16.xpose.msra.mxu0 0
        %1363 = vmatprep.subr.bf16.mxu0 0
        %1364 = vmatpush1.bf16.xpose.msra.mxu0 0
        %1365 = vmatprep.subr.bf16.mxu0 0
        %1366 = vmatpush1.bf16.xpose.msra.mxu0 0
        %1367 = vmatprep.subr.bf16.mxu0 0
        %1368 = vmatpush1.bf16.xpose.msra.mxu0 0
        %1369 = vmatprep.subr.bf16.mxu0 0
        %1370 = vmatpush1.bf16.xpose.msra.mxu0 0
        %1371 = vmatprep.subr.bf16.mxu0 0
        %1372 = vmatpush1.bf16.xpose.msra.mxu0 0
        %1373 = vmatprep.subr.bf16.mxu0 0
        %1374 = vmatpush1.bf16.xpose.msra.mxu0 0
        %1375 = vmatprep.subr.bf16.mxu0 0
        %1376 = vmatpush1.bf16.xpose.msra.mxu0 0
        %1377 = vmatprep.subr.bf16.mxu0 0
        %1378 = vmatpush1.bf16.xpose.msra.mxu0 0
        %1379 = vmatprep.subr.bf16.mxu0 0
        %1380 = vmatpush1.bf16.xpose.msra.mxu0 0
        %1381 = vmatprep.mubr.bf16.mxu0 0
        %1382 = vmatmul.mubr.bf16.gmra.mrb[0].mxu0 %v1338
        %v1383 = vpop.f32.mrb[0].mxu0
        %v1384 = vadd.f32 0.0, %v1383
        %v1385 = vpop.f32.mrb[0].mxu0
        %v1386 = vpop.f32.mrb[0].mxu0
        %v1387 = vadd.f32 0.0, %v1386
        %v1388 = vpop.f32.mrb[0].mxu0
        %1389 = vmatprep.mubr.bf16.mxu0 0
        %1390 = vmatmul.mubr.bf16.gmra.mrb[0].mxu0 %v1341
        %v1391 = vpop.f32.mrb[0].mxu0
        %v1392 = vadd.f32 0.0, %v1391
        %v1393 = vpop.f32.mrb[0].mxu0
        %v1394 = vpop.f32.mrb[0].mxu0
        %v1395 = vadd.f32 0.0, %v1394
        %v1396 = vpop.f32.mrb[0].mxu0
        %1397 = vdwg.mxu0
        %1398 = vrot.lane.b32.xlu0 %v625, 120
        %v1399 = vpop.permute.xlu0 %1398
        %1400 = vrot.lane.b32.xlu0 %v626, 120
        %v1401 = vpop.permute.xlu0 %1400
        %1402 = vrot.lane.b32.xlu0 %v625, 56
        %v1403 = vpop.permute.xlu0 %1402
        %1404 = vrot.lane.b32.xlu0 %v626, 56
        %v1405 = vpop.permute.xlu0 %1404
        %v1407 = vsel %vm645, %v1399, 0
        %v1410 = vsel %vm645, %v1401, 0
        %v1413 = vsel %vm645, %v1403, 0
        %v1416 = vsel %vm645, %v1405, 0
        %1418 = vmatprep.subr.bf16.mxu0 0
        %1419 = vmatpush1.bf16.xpose.msra.mxu0 %v1413
        %1420 = vmatprep.subr.bf16.mxu0 0
        %1421 = vmatpush1.bf16.xpose.msra.mxu0 %v1416
        %1422 = vmatprep.subr.bf16.mxu0 0
        %1423 = vmatpush1.bf16.xpose.msra.mxu0 0
        %1424 = vmatprep.subr.bf16.mxu0 0
        %1425 = vmatpush1.bf16.xpose.msra.mxu0 0
        %1426 = vmatprep.subr.bf16.mxu0 0
        %1427 = vmatpush1.bf16.xpose.msra.mxu0 0
        %1428 = vmatprep.subr.bf16.mxu0 0
        %1429 = vmatpush1.bf16.xpose.msra.mxu0 0
        %1430 = vmatprep.subr.bf16.mxu0 0
        %1431 = vmatpush1.bf16.xpose.msra.mxu0 0
        %1432 = vmatprep.subr.bf16.mxu0 0
        %1433 = vmatpush1.bf16.xpose.msra.mxu0 0
        %1434 = vmatprep.subr.bf16.mxu0 0
        %1435 = vmatpush1.bf16.xpose.msra.mxu0 0
        %1436 = vmatprep.subr.bf16.mxu0 0
        %1437 = vmatpush1.bf16.xpose.msra.mxu0 0
        %1438 = vmatprep.subr.bf16.mxu0 0
        %1439 = vmatpush1.bf16.xpose.msra.mxu0 0
        %1440 = vmatprep.subr.bf16.mxu0 0
        %1441 = vmatpush1.bf16.xpose.msra.mxu0 0
        %1442 = vmatprep.subr.bf16.mxu0 0
        %1443 = vmatpush1.bf16.xpose.msra.mxu0 0
        %1444 = vmatprep.subr.bf16.mxu0 0
        %1445 = vmatpush1.bf16.xpose.msra.mxu0 0
        %1446 = vmatprep.subr.bf16.mxu0 0
        %1447 = vmatpush1.bf16.xpose.msra.mxu0 0
        %1448 = vmatprep.subr.bf16.mxu0 0
        %1449 = vmatpush1.bf16.xpose.msra.mxu0 0
        %1450 = vmatprep.mubr.bf16.mxu0 0
        %1451 = vmatmul.mubr.bf16.gmra.mrb[0].mxu0 %v1407
        %v1452 = vpop.f32.mrb[0].mxu0
        %v1453 = vadd.f32 0.0, %v1452
        %v1454 = vpop.f32.mrb[0].mxu0
        %v1455 = vpop.f32.mrb[0].mxu0
        %v1456 = vadd.f32 0.0, %v1455
        %v1457 = vpop.f32.mrb[0].mxu0
        %1458 = vmatprep.mubr.bf16.mxu0 0
        %1459 = vmatmul.mubr.bf16.gmra.mrb[0].mxu0 %v1410
        %v1460 = vpop.f32.mrb[0].mxu0
        %v1461 = vadd.f32 0.0, %v1460
        %v1462 = vpop.f32.mrb[0].mxu0
        %v1463 = vpop.f32.mrb[0].mxu0
        %v1464 = vadd.f32 0.0, %v1463
        %v1465 = vpop.f32.mrb[0].mxu0
        %1466 = vdwg.mxu0
        %1467 = vrot.lane.b32.xlu0 %v627, 120
        %v1468 = vpop.permute.xlu0 %1467
        %1469 = vrot.lane.b32.xlu0 %v628, 120
        %v1470 = vpop.permute.xlu0 %1469
        %1471 = vrot.lane.b32.xlu0 %v627, 56
        %v1472 = vpop.permute.xlu0 %1471
        %1473 = vrot.lane.b32.xlu0 %v628, 56
        %v1474 = vpop.permute.xlu0 %1473
        %v1476 = vsel %vm645, %v1468, 0
        %v1479 = vsel %vm645, %v1470, 0
        %v1482 = vsel %vm645, %v1472, 0
        %v1485 = vsel %vm645, %v1474, 0
        %1487 = vmatprep.subr.bf16.mxu0 0
        %1488 = vmatpush1.bf16.xpose.msra.mxu0 %v1482
        %1489 = vmatprep.subr.bf16.mxu0 0
        %1490 = vmatpush1.bf16.xpose.msra.mxu0 %v1485
        %1491 = vmatprep.subr.bf16.mxu0 0
        %1492 = vmatpush1.bf16.xpose.msra.mxu0 0
        %1493 = vmatprep.subr.bf16.mxu0 0
        %1494 = vmatpush1.bf16.xpose.msra.mxu0 0
        %1495 = vmatprep.subr.bf16.mxu0 0
        %1496 = vmatpush1.bf16.xpose.msra.mxu0 0
        %1497 = vmatprep.subr.bf16.mxu0 0
        %1498 = vmatpush1.bf16.xpose.msra.mxu0 0
        %1499 = vmatprep.subr.bf16.mxu0 0
        %1500 = vmatpush1.bf16.xpose.msra.mxu0 0
        %1501 = vmatprep.subr.bf16.mxu0 0
        %1502 = vmatpush1.bf16.xpose.msra.mxu0 0
        %1503 = vmatprep.subr.bf16.mxu0 0
        %1504 = vmatpush1.bf16.xpose.msra.mxu0 0
        %1505 = vmatprep.subr.bf16.mxu0 0
        %1506 = vmatpush1.bf16.xpose.msra.mxu0 0
        %1507 = vmatprep.subr.bf16.mxu0 0
        %1508 = vmatpush1.bf16.xpose.msra.mxu0 0
        %1509 = vmatprep.subr.bf16.mxu0 0
        %1510 = vmatpush1.bf16.xpose.msra.mxu0 0
        %1511 = vmatprep.subr.bf16.mxu0 0
        %1512 = vmatpush1.bf16.xpose.msra.mxu0 0
        %1513 = vmatprep.subr.bf16.mxu0 0
        %1514 = vmatpush1.bf16.xpose.msra.mxu0 0
        %1515 = vmatprep.subr.bf16.mxu0 0
        %1516 = vmatpush1.bf16.xpose.msra.mxu0 0
        %1517 = vmatprep.subr.bf16.mxu0 0
        %1518 = vmatpush1.bf16.xpose.msra.mxu0 0
        %1519 = vmatprep.mubr.bf16.mxu0 0
        %1520 = vmatmul.mubr.bf16.gmra.mrb[0].mxu0 %v1476
        %v1521 = vpop.f32.mrb[0].mxu0
        %v1522 = vadd.f32 0.0, %v1521
        %v1523 = vpop.f32.mrb[0].mxu0
        %v1524 = vpop.f32.mrb[0].mxu0
        %v1525 = vadd.f32 0.0, %v1524
        %v1526 = vpop.f32.mrb[0].mxu0
        %1527 = vmatprep.mubr.bf16.mxu0 0
        %1528 = vmatmul.mubr.bf16.gmra.mrb[0].mxu0 %v1479
        %v1529 = vpop.f32.mrb[0].mxu0
        %v1530 = vadd.f32 0.0, %v1529
        %v1531 = vpop.f32.mrb[0].mxu0
        %v1532 = vpop.f32.mrb[0].mxu0
        %v1533 = vadd.f32 0.0, %v1532
        %v1534 = vpop.f32.mrb[0].mxu0
        %1535 = vdwg.mxu0
        %1536 = vrot.lane.b32.xlu0 %v629, 120
        %v1537 = vpop.permute.xlu0 %1536
        %1538 = vrot.lane.b32.xlu0 %v630, 120
        %v1539 = vpop.permute.xlu0 %1538
        %1540 = vrot.lane.b32.xlu0 %v629, 56
        %v1541 = vpop.permute.xlu0 %1540
        %1542 = vrot.lane.b32.xlu0 %v630, 56
        %v1543 = vpop.permute.xlu0 %1542
        %v1545 = vsel %vm645, %v1537, 0
        %v1548 = vsel %vm645, %v1539, 0
        %v1551 = vsel %vm645, %v1541, 0
        %v1554 = vsel %vm645, %v1543, 0
        %1556 = vmatprep.subr.bf16.mxu0 0
        %1557 = vmatpush1.bf16.xpose.msra.mxu0 %v1551
        %1558 = vmatprep.subr.bf16.mxu0 0
        %1559 = vmatpush1.bf16.xpose.msra.mxu0 %v1554
        %1560 = vmatprep.subr.bf16.mxu0 0
        %1561 = vmatpush1.bf16.xpose.msra.mxu0 0
        %1562 = vmatprep.subr.bf16.mxu0 0
        %1563 = vmatpush1.bf16.xpose.msra.mxu0 0
        %1564 = vmatprep.subr.bf16.mxu0 0
        %1565 = vmatpush1.bf16.xpose.msra.mxu0 0
        %1566 = vmatprep.subr.bf16.mxu0 0
        %1567 = vmatpush1.bf16.xpose.msra.mxu0 0
        %1568 = vmatprep.subr.bf16.mxu0 0
        %1569 = vmatpush1.bf16.xpose.msra.mxu0 0
        %1570 = vmatprep.subr.bf16.mxu0 0
        %1571 = vmatpush1.bf16.xpose.msra.mxu0 0
        %1572 = vmatprep.subr.bf16.mxu0 0
        %1573 = vmatpush1.bf16.xpose.msra.mxu0 0
        %1574 = vmatprep.subr.bf16.mxu0 0
        %1575 = vmatpush1.bf16.xpose.msra.mxu0 0
        %1576 = vmatprep.subr.bf16.mxu0 0
        %1577 = vmatpush1.bf16.xpose.msra.mxu0 0
        %1578 = vmatprep.subr.bf16.mxu0 0
        %1579 = vmatpush1.bf16.xpose.msra.mxu0 0
        %1580 = vmatprep.subr.bf16.mxu0 0
        %1581 = vmatpush1.bf16.xpose.msra.mxu0 0
        %1582 = vmatprep.subr.bf16.mxu0 0
        %1583 = vmatpush1.bf16.xpose.msra.mxu0 0
        %1584 = vmatprep.subr.bf16.mxu0 0
        %1585 = vmatpush1.bf16.xpose.msra.mxu0 0
        %1586 = vmatprep.subr.bf16.mxu0 0
        %1587 = vmatpush1.bf16.xpose.msra.mxu0 0
        %1588 = vmatprep.mubr.bf16.mxu0 0
        %1589 = vmatmul.mubr.bf16.gmra.mrb[0].mxu0 %v1545
        %v1590 = vpop.f32.mrb[0].mxu0
        %v1591 = vadd.f32 0.0, %v1590
        %v1592 = vpop.f32.mrb[0].mxu0
        %v1593 = vpop.f32.mrb[0].mxu0
        %v1594 = vadd.f32 0.0, %v1593
        %v1595 = vpop.f32.mrb[0].mxu0
        %1596 = vmatprep.mubr.bf16.mxu0 0
        %1597 = vmatmul.mubr.bf16.gmra.mrb[0].mxu0 %v1548
        %v1598 = vpop.f32.mrb[0].mxu0
        %v1599 = vadd.f32 0.0, %v1598
        %v1600 = vpop.f32.mrb[0].mxu0
        %v1601 = vpop.f32.mrb[0].mxu0
        %v1602 = vadd.f32 0.0, %v1601
        %v1603 = vpop.f32.mrb[0].mxu0
        %1604 = vdwg.mxu0
        %v1605 = vsel %vm908, %v1384, -inf
        %1606 = vmax.xlane.f32.xlu0 %v1605
        %v1607 = vpop.xlane.xlu0 %1606
        %v1608 = vsel %vm908, %v1387, -inf
        %1609 = vmax.xlane.f32.xlu0 %v1608
        %v1610 = vpop.xlane.xlu0 %1609
        %v1611 = vsel %vm908, %v1392, -inf
        %1612 = vmax.xlane.f32.xlu0 %v1611
        %v1613 = vpop.xlane.xlu0 %1612
        %v1614 = vsel %vm908, %v1395, -inf
        %1615 = vmax.xlane.f32.xlu0 %v1614
        %v1616 = vpop.xlane.xlu0 %1615
        %v1617 = vsel %vm908, %v1453, -inf
        %1618 = vmax.xlane.f32.xlu0 %v1617
        %v1619 = vpop.xlane.xlu0 %1618
        %v1620 = vsel %vm908, %v1456, -inf
        %1621 = vmax.xlane.f32.xlu0 %v1620
        %v1622 = vpop.xlane.xlu0 %1621
        %v1623 = vsel %vm908, %v1461, -inf
        %1624 = vmax.xlane.f32.xlu0 %v1623
        %v1625 = vpop.xlane.xlu0 %1624
        %v1626 = vsel %vm908, %v1464, -inf
        %1627 = vmax.xlane.f32.xlu0 %v1626
        %v1628 = vpop.xlane.xlu0 %1627
        %v1629 = vsel %vm908, %v1522, -inf
        %1630 = vmax.xlane.f32.xlu0 %v1629
        %v1631 = vpop.xlane.xlu0 %1630
        %v1632 = vsel %vm908, %v1525, -inf
        %1633 = vmax.xlane.f32.xlu0 %v1632
        %v1634 = vpop.xlane.xlu0 %1633
        %v1635 = vsel %vm908, %v1530, -inf
        %1636 = vmax.xlane.f32.xlu0 %v1635
        %v1637 = vpop.xlane.xlu0 %1636
        %v1638 = vsel %vm908, %v1533, -inf
        %1639 = vmax.xlane.f32.xlu0 %v1638
        %v1640 = vpop.xlane.xlu0 %1639
        %v1641 = vsel %vm908, %v1591, -inf
        %1642 = vmax.xlane.f32.xlu0 %v1641
        %v1643 = vpop.xlane.xlu0 %1642
        %v1644 = vsel %vm908, %v1594, -inf
        %1645 = vmax.xlane.f32.xlu0 %v1644
        %v1646 = vpop.xlane.xlu0 %1645
        %v1647 = vsel %vm908, %v1599, -inf
        %1648 = vmax.xlane.f32.xlu0 %v1647
        %v1649 = vpop.xlane.xlu0 %1648
        %v1650 = vsel %vm908, %v1602, -inf
        %1651 = vmax.xlane.f32.xlu0 %v1650
        %v1652 = vpop.xlane.xlu0 %1651
        %v1653 = vsub.f32 %v1384, %v1607
        %v1654 = vsub.f32 %v1387, %v1610
        %v1655 = vsub.f32 %v1392, %v1613
        %v1656 = vsub.f32 %v1395, %v1616
        %v1657 = vsub.f32 %v1453, %v1619
        %v1658 = vsub.f32 %v1456, %v1622
        %v1659 = vsub.f32 %v1461, %v1625
        %v1660 = vsub.f32 %v1464, %v1628
        %v1661 = vsub.f32 %v1522, %v1631
        %v1662 = vsub.f32 %v1525, %v1634
        %v1663 = vsub.f32 %v1530, %v1637
        %v1664 = vsub.f32 %v1533, %v1640
        %v1665 = vsub.f32 %v1591, %v1643
        %v1666 = vsub.f32 %v1594, %v1646
        %v1667 = vsub.f32 %v1599, %v1649
        %v1668 = vsub.f32 %v1602, %v1652
        %v1669 = vmul.f32 %v1653, 1.442695
        %v1670 = vpow.pop %v1669
        %v1671 = vmul.f32 %v1654, 1.442695
        %v1672 = vpow.pop %v1671
        %v1673 = vmul.f32 %v1655, 1.442695
        %v1674 = vpow.pop %v1673
        %v1675 = vmul.f32 %v1656, 1.442695
        %v1676 = vpow.pop %v1675
        %v1677 = vmul.f32 %v1657, 1.442695
        %v1678 = vpow.pop %v1677
        %v1679 = vmul.f32 %v1658, 1.442695
        %v1680 = vpow.pop %v1679
        %v1681 = vmul.f32 %v1659, 1.442695
        %v1682 = vpow.pop %v1681
        %v1683 = vmul.f32 %v1660, 1.442695
        %v1684 = vpow.pop %v1683
        %v1685 = vmul.f32 %v1661, 1.442695
        %v1686 = vpow.pop %v1685
        %v1687 = vmul.f32 %v1662, 1.442695
        %v1688 = vpow.pop %v1687
        %v1689 = vmul.f32 %v1663, 1.442695
        %v1690 = vpow.pop %v1689
        %v1691 = vmul.f32 %v1664, 1.442695
        %v1692 = vpow.pop %v1691
        %v1693 = vmul.f32 %v1665, 1.442695
        %v1694 = vpow.pop %v1693
        %v1695 = vmul.f32 %v1666, 1.442695
        %v1696 = vpow.pop %v1695
        %v1697 = vmul.f32 %v1667, 1.442695
        %v1698 = vpow.pop %v1697
        %v1699 = vmul.f32 %v1668, 1.442695
        %v1700 = vpow.pop %v1699
        %v1701 = vsel %vm908, %v1670, 0.0
        %1702 = vadd.xlane.f32.xlu0 %v1701
        %v1703 = vpop.xlane.xlu0 %1702
        %v1704 = vsel %vm908, %v1672, 0.0
        %1705 = vadd.xlane.f32.xlu0 %v1704
        %v1706 = vpop.xlane.xlu0 %1705
        %v1707 = vsel %vm908, %v1674, 0.0
        %1708 = vadd.xlane.f32.xlu0 %v1707
        %v1709 = vpop.xlane.xlu0 %1708
        %v1710 = vsel %vm908, %v1676, 0.0
        %1711 = vadd.xlane.f32.xlu0 %v1710
        %v1712 = vpop.xlane.xlu0 %1711
        %v1713 = vsel %vm908, %v1678, 0.0
        %1714 = vadd.xlane.f32.xlu0 %v1713
        %v1715 = vpop.xlane.xlu0 %1714
        %v1716 = vsel %vm908, %v1680, 0.0
        %1717 = vadd.xlane.f32.xlu0 %v1716
        %v1718 = vpop.xlane.xlu0 %1717
        %v1719 = vsel %vm908, %v1682, 0.0
        %1720 = vadd.xlane.f32.xlu0 %v1719
        %v1721 = vpop.xlane.xlu0 %1720
        %v1722 = vsel %vm908, %v1684, 0.0
        %1723 = vadd.xlane.f32.xlu0 %v1722
        %v1724 = vpop.xlane.xlu0 %1723
        %v1725 = vsel %vm908, %v1686, 0.0
        %1726 = vadd.xlane.f32.xlu0 %v1725
        %v1727 = vpop.xlane.xlu0 %1726
        %v1728 = vsel %vm908, %v1688, 0.0
        %1729 = vadd.xlane.f32.xlu0 %v1728
        %v1730 = vpop.xlane.xlu0 %1729
        %v1731 = vsel %vm908, %v1690, 0.0
        %1732 = vadd.xlane.f32.xlu0 %v1731
        %v1733 = vpop.xlane.xlu0 %1732
        %v1734 = vsel %vm908, %v1692, 0.0
        %1735 = vadd.xlane.f32.xlu0 %v1734
        %v1736 = vpop.xlane.xlu0 %1735
        %v1737 = vsel %vm908, %v1694, 0.0
        %1738 = vadd.xlane.f32.xlu0 %v1737
        %v1739 = vpop.xlane.xlu0 %1738
        %v1740 = vsel %vm908, %v1696, 0.0
        %1741 = vadd.xlane.f32.xlu0 %v1740
        %v1742 = vpop.xlane.xlu0 %1741
        %v1743 = vsel %vm908, %v1698, 0.0
        %1744 = vadd.xlane.f32.xlu0 %v1743
        %v1745 = vpop.xlane.xlu0 %1744
        %v1746 = vsel %vm908, %v1700, 0.0
        %1747 = vadd.xlane.f32.xlu0 %v1746
        %v1748 = vpop.xlane.xlu0 %1747
        %v1749 = vrcp.pop %v1703
        %v1750 = vmul.f32 %v1670, %v1749
        %v1751 = vrcp.pop %v1706
        %v1752 = vmul.f32 %v1672, %v1751
        %v1753 = vrcp.pop %v1709
        %v1754 = vmul.f32 %v1674, %v1753
        %v1755 = vrcp.pop %v1712
        %v1756 = vmul.f32 %v1676, %v1755
        %v1757 = vrcp.pop %v1715
        %v1758 = vmul.f32 %v1678, %v1757
        %v1759 = vrcp.pop %v1718
        %v1760 = vmul.f32 %v1680, %v1759
        %v1761 = vrcp.pop %v1721
        %v1762 = vmul.f32 %v1682, %v1761
        %v1763 = vrcp.pop %v1724
        %v1764 = vmul.f32 %v1684, %v1763
        %v1765 = vrcp.pop %v1727
        %v1766 = vmul.f32 %v1686, %v1765
        %v1767 = vrcp.pop %v1730
        %v1768 = vmul.f32 %v1688, %v1767
        %v1769 = vrcp.pop %v1733
        %v1770 = vmul.f32 %v1690, %v1769
        %v1771 = vrcp.pop %v1736
        %v1772 = vmul.f32 %v1692, %v1771
        %v1773 = vrcp.pop %v1739
        %v1774 = vmul.f32 %v1694, %v1773
        %v1775 = vrcp.pop %v1742
        %v1776 = vmul.f32 %v1696, %v1775
        %v1777 = vrcp.pop %v1745
        %v1778 = vmul.f32 %v1698, %v1777
        %v1779 = vrcp.pop %v1748
        %v1780 = vmul.f32 %v1700, %v1779
        %v1781 = vpack.c.bf16 %v1752, %v1750
        %v1782 = vpack.c.bf16 %v1756, %v1754
        %v1783 = vpack.c.bf16 %v1760, %v1758
        %v1784 = vpack.c.bf16 %v1764, %v1762
        %v1785 = vpack.c.bf16 %v1768, %v1766
        %v1786 = vpack.c.bf16 %v1772, %v1770
        %v1787 = vpack.c.bf16 %v1776, %v1774
        %v1788 = vpack.c.bf16 %v1780, %v1778
        %1791 = vrot.lane.b32.xlu0 %v631, 120
        %v1792 = vpop.permute.xlu0 %1791
        %1793 = vrot.lane.b32.xlu0 %v632, 120
        %v1794 = vpop.permute.xlu0 %1793
        %v1798 = vsel %vm908, %v1781, 0
        %v1801 = vsel %vm908, %v1782, 0
        %1803 = vmatprep.subr.bf16.mxu0 0
        %1804 = vmatpush1.bf16.msra.mxu0 %v1792
        %1805 = vmatprep.subr.bf16.mxu0 0
        %1806 = vmatpush1.bf16.msra.mxu0 %v1794
        %1807 = vmatprep.subr.bf16.mxu0 0
        %1808 = vmatpush1.bf16.msra.mxu0 0
        %1809 = vmatprep.subr.bf16.mxu0 0
        %1810 = vmatpush1.bf16.msra.mxu0 0
        %1811 = vmatprep.subr.bf16.mxu0 0
        %1812 = vmatpush1.bf16.msra.mxu0 0
        %1813 = vmatprep.subr.bf16.mxu0 0
        %1814 = vmatpush1.bf16.msra.mxu0 0
        %1815 = vmatprep.subr.bf16.mxu0 0
        %1816 = vmatpush1.bf16.msra.mxu0 0
        %1817 = vmatprep.subr.bf16.mxu0 0
        %1818 = vmatpush1.bf16.msra.mxu0 0
        %1819 = vmatprep.subr.bf16.mxu0 0
        %1820 = vmatpush1.bf16.msra.mxu0 0
        %1821 = vmatprep.subr.bf16.mxu0 0
        %1822 = vmatpush1.bf16.msra.mxu0 0
        %1823 = vmatprep.subr.bf16.mxu0 0
        %1824 = vmatpush1.bf16.msra.mxu0 0
        %1825 = vmatprep.subr.bf16.mxu0 0
        %1826 = vmatpush1.bf16.msra.mxu0 0
        %1827 = vmatprep.subr.bf16.mxu0 0
        %1828 = vmatpush1.bf16.msra.mxu0 0
        %1829 = vmatprep.subr.bf16.mxu0 0
        %1830 = vmatpush1.bf16.msra.mxu0 0
        %1831 = vmatprep.subr.bf16.mxu0 0
        %1832 = vmatpush1.bf16.msra.mxu0 0
        %1833 = vmatprep.subr.bf16.mxu0 0
        %1834 = vmatpush1.bf16.msra.mxu0 0
        %1835 = vmatprep.mubr.bf16.mxu0 0
        %1836 = vmatmul.mubr.bf16.gmra.mrb[0].mxu0 %v1798
        %v1837 = vpop.f32.mrb[0].mxu0
        %v1838 = vadd.f32 0.0, %v1837
        %v1839 = vpop.f32.mrb[0].mxu0
        %v1840 = vpop.f32.mrb[0].mxu0
        %v1841 = vadd.f32 0.0, %v1840
        %v1842 = vpop.f32.mrb[0].mxu0
        %1843 = vmatprep.mubr.bf16.mxu0 0
        %1844 = vmatmul.mubr.bf16.gmra.mrb[0].mxu0 %v1801
        %v1845 = vpop.f32.mrb[0].mxu0
        %v1846 = vadd.f32 0.0, %v1845
        %v1847 = vpop.f32.mrb[0].mxu0
        %v1848 = vpop.f32.mrb[0].mxu0
        %v1849 = vadd.f32 0.0, %v1848
        %v1850 = vpop.f32.mrb[0].mxu0
        %1851 = vdwg.mxu0
        %1854 = vrot.lane.b32.xlu0 %v633, 120
        %v1855 = vpop.permute.xlu0 %1854
        %1856 = vrot.lane.b32.xlu0 %v634, 120
        %v1857 = vpop.permute.xlu0 %1856
        %v1861 = vsel %vm908, %v1783, 0
        %v1864 = vsel %vm908, %v1784, 0
        %1866 = vmatprep.subr.bf16.mxu0 0
        %1867 = vmatpush1.bf16.msra.mxu0 %v1855
        %1868 = vmatprep.subr.bf16.mxu0 0
        %1869 = vmatpush1.bf16.msra.mxu0 %v1857
        %1870 = vmatprep.subr.bf16.mxu0 0
        %1871 = vmatpush1.bf16.msra.mxu0 0
        %1872 = vmatprep.subr.bf16.mxu0 0
        %1873 = vmatpush1.bf16.msra.mxu0 0
        %1874 = vmatprep.subr.bf16.mxu0 0
        %1875 = vmatpush1.bf16.msra.mxu0 0
        %1876 = vmatprep.subr.bf16.mxu0 0
        %1877 = vmatpush1.bf16.msra.mxu0 0
        %1878 = vmatprep.subr.bf16.mxu0 0
        %1879 = vmatpush1.bf16.msra.mxu0 0
        %1880 = vmatprep.subr.bf16.mxu0 0
        %1881 = vmatpush1.bf16.msra.mxu0 0
        %1882 = vmatprep.subr.bf16.mxu0 0
        %1883 = vmatpush1.bf16.msra.mxu0 0
        %1884 = vmatprep.subr.bf16.mxu0 0
        %1885 = vmatpush1.bf16.msra.mxu0 0
        %1886 = vmatprep.subr.bf16.mxu0 0
        %1887 = vmatpush1.bf16.msra.mxu0 0
        %1888 = vmatprep.subr.bf16.mxu0 0
        %1889 = vmatpush1.bf16.msra.mxu0 0
        %1890 = vmatprep.subr.bf16.mxu0 0
        %1891 = vmatpush1.bf16.msra.mxu0 0
        %1892 = vmatprep.subr.bf16.mxu0 0
        %1893 = vmatpush1.bf16.msra.mxu0 0
        %1894 = vmatprep.subr.bf16.mxu0 0
        %1895 = vmatpush1.bf16.msra.mxu0 0
        %1896 = vmatprep.subr.bf16.mxu0 0
        %1897 = vmatpush1.bf16.msra.mxu0 0
        %1898 = vmatprep.mubr.bf16.mxu0 0
        %1899 = vmatmul.mubr.bf16.gmra.mrb[0].mxu0 %v1861
        %v1900 = vpop.f32.mrb[0].mxu0
        %v1901 = vadd.f32 0.0, %v1900
        %v1902 = vpop.f32.mrb[0].mxu0
        %v1903 = vpop.f32.mrb[0].mxu0
        %v1904 = vadd.f32 0.0, %v1903
        %v1905 = vpop.f32.mrb[0].mxu0
        %1906 = vmatprep.mubr.bf16.mxu0 0
        %1907 = vmatmul.mubr.bf16.gmra.mrb[0].mxu0 %v1864
        %v1908 = vpop.f32.mrb[0].mxu0
        %v1909 = vadd.f32 0.0, %v1908
        %v1910 = vpop.f32.mrb[0].mxu0
        %v1911 = vpop.f32.mrb[0].mxu0
        %v1912 = vadd.f32 0.0, %v1911
        %v1913 = vpop.f32.mrb[0].mxu0
        %1914 = vdwg.mxu0
        %1917 = vrot.lane.b32.xlu0 %v635, 120
        %v1918 = vpop.permute.xlu0 %1917
        %1919 = vrot.lane.b32.xlu0 %v636, 120
        %v1920 = vpop.permute.xlu0 %1919
        %v1924 = vsel %vm908, %v1785, 0
        %v1927 = vsel %vm908, %v1786, 0
        %1929 = vmatprep.subr.bf16.mxu0 0
        %1930 = vmatpush1.bf16.msra.mxu0 %v1918
        %1931 = vmatprep.subr.bf16.mxu0 0
        %1932 = vmatpush1.bf16.msra.mxu0 %v1920
        %1933 = vmatprep.subr.bf16.mxu0 0
        %1934 = vmatpush1.bf16.msra.mxu0 0
        %1935 = vmatprep.subr.bf16.mxu0 0
        %1936 = vmatpush1.bf16.msra.mxu0 0
        %1937 = vmatprep.subr.bf16.mxu0 0
        %1938 = vmatpush1.bf16.msra.mxu0 0
        %1939 = vmatprep.subr.bf16.mxu0 0
        %1940 = vmatpush1.bf16.msra.mxu0 0
        %1941 = vmatprep.subr.bf16.mxu0 0
        %1942 = vmatpush1.bf16.msra.mxu0 0
        %1943 = vmatprep.subr.bf16.mxu0 0
        %1944 = vmatpush1.bf16.msra.mxu0 0
        %1945 = vmatprep.subr.bf16.mxu0 0
        %1946 = vmatpush1.bf16.msra.mxu0 0
        %1947 = vmatprep.subr.bf16.mxu0 0
        %1948 = vmatpush1.bf16.msra.mxu0 0
        %1949 = vmatprep.subr.bf16.mxu0 0
        %1950 = vmatpush1.bf16.msra.mxu0 0
        %1951 = vmatprep.subr.bf16.mxu0 0
        %1952 = vmatpush1.bf16.msra.mxu0 0
        %1953 = vmatprep.subr.bf16.mxu0 0
        %1954 = vmatpush1.bf16.msra.mxu0 0
        %1955 = vmatprep.subr.bf16.mxu0 0
        %1956 = vmatpush1.bf16.msra.mxu0 0
        %1957 = vmatprep.subr.bf16.mxu0 0
        %1958 = vmatpush1.bf16.msra.mxu0 0
        %1959 = vmatprep.subr.bf16.mxu0 0
        %1960 = vmatpush1.bf16.msra.mxu0 0
        %1961 = vmatprep.mubr.bf16.mxu0 0
        %1962 = vmatmul.mubr.bf16.gmra.mrb[0].mxu0 %v1924
        %v1963 = vpop.f32.mrb[0].mxu0
        %v1964 = vadd.f32 0.0, %v1963
        %v1965 = vpop.f32.mrb[0].mxu0
        %v1966 = vpop.f32.mrb[0].mxu0
        %v1967 = vadd.f32 0.0, %v1966
        %v1968 = vpop.f32.mrb[0].mxu0
        %1969 = vmatprep.mubr.bf16.mxu0 0
        %1970 = vmatmul.mubr.bf16.gmra.mrb[0].mxu0 %v1927
        %v1971 = vpop.f32.mrb[0].mxu0
        %v1972 = vadd.f32 0.0, %v1971
        %v1973 = vpop.f32.mrb[0].mxu0
        %v1974 = vpop.f32.mrb[0].mxu0
        %v1975 = vadd.f32 0.0, %v1974
        %v1976 = vpop.f32.mrb[0].mxu0
        %1977 = vdwg.mxu0
        %1980 = vrot.lane.b32.xlu0 %v637, 120
        %v1981 = vpop.permute.xlu0 %1980
        %1982 = vrot.lane.b32.xlu0 %v638, 120
        %v1983 = vpop.permute.xlu0 %1982
        %v1987 = vsel %vm908, %v1787, 0
        %v1990 = vsel %vm908, %v1788, 0
        %1992 = vmatprep.subr.bf16.mxu0 0
        %1993 = vmatpush1.bf16.msra.mxu0 %v1981
        %1994 = vmatprep.subr.bf16.mxu0 0
        %1995 = vmatpush1.bf16.msra.mxu0 %v1983
        %1996 = vmatprep.subr.bf16.mxu0 0
        %1997 = vmatpush1.bf16.msra.mxu0 0
        %1998 = vmatprep.subr.bf16.mxu0 0
        %1999 = vmatpush1.bf16.msra.mxu0 0
        %2000 = vmatprep.subr.bf16.mxu0 0
        %2001 = vmatpush1.bf16.msra.mxu0 0
        %2002 = vmatprep.subr.bf16.mxu0 0
        %2003 = vmatpush1.bf16.msra.mxu0 0
        %2004 = vmatprep.subr.bf16.mxu0 0
        %2005 = vmatpush1.bf16.msra.mxu0 0
        %2006 = vmatprep.subr.bf16.mxu0 0
        %2007 = vmatpush1.bf16.msra.mxu0 0
        %2008 = vmatprep.subr.bf16.mxu0 0
        %2009 = vmatpush1.bf16.msra.mxu0 0
        %2010 = vmatprep.subr.bf16.mxu0 0
        %2011 = vmatpush1.bf16.msra.mxu0 0
        %2012 = vmatprep.subr.bf16.mxu0 0
        %2013 = vmatpush1.bf16.msra.mxu0 0
        %2014 = vmatprep.subr.bf16.mxu0 0
        %2015 = vmatpush1.bf16.msra.mxu0 0
        %2016 = vmatprep.subr.bf16.mxu0 0
        %2017 = vmatpush1.bf16.msra.mxu0 0
        %2018 = vmatprep.subr.bf16.mxu0 0
        %2019 = vmatpush1.bf16.msra.mxu0 0
        %2020 = vmatprep.subr.bf16.mxu0 0
        %2021 = vmatpush1.bf16.msra.mxu0 0
        %2022 = vmatprep.subr.bf16.mxu0 0
        %2023 = vmatpush1.bf16.msra.mxu0 0
        %2024 = vmatprep.mubr.bf16.mxu0 0
        %2025 = vmatmul.mubr.bf16.gmra.mrb[0].mxu0 %v1987
        %v2026 = vpop.f32.mrb[0].mxu0
        %v2027 = vadd.f32 0.0, %v2026
        %v2028 = vpop.f32.mrb[0].mxu0
        %v2029 = vpop.f32.mrb[0].mxu0
        %v2030 = vadd.f32 0.0, %v2029
        %v2031 = vpop.f32.mrb[0].mxu0
        %2032 = vmatprep.mubr.bf16.mxu0 0
        %2033 = vmatmul.mubr.bf16.gmra.mrb[0].mxu0 %v1990
        %v2034 = vpop.f32.mrb[0].mxu0
        %v2035 = vadd.f32 0.0, %v2034
        %v2036 = vpop.f32.mrb[0].mxu0
        %v2037 = vpop.f32.mrb[0].mxu0
        %v2038 = vadd.f32 0.0, %v2037
        %v2039 = vpop.f32.mrb[0].mxu0
        %2040 = vdwg.mxu0
        %2057 = vrot.lane.b32.xlu0 %v1838, 8
        %v2058 = vpop.permute.xlu0 %2057
        %2059 = vrot.lane.b32.xlu0 %v1841, 8
        %v2060 = vpop.permute.xlu0 %2059
        %2061 = vrot.lane.b32.xlu0 %v1846, 8
        %v2062 = vpop.permute.xlu0 %2061
        %2063 = vrot.lane.b32.xlu0 %v1849, 8
        %v2064 = vpop.permute.xlu0 %2063
        %2065 = vrot.lane.b32.xlu0 %v1901, 8
        %v2066 = vpop.permute.xlu0 %2065
        %2067 = vrot.lane.b32.xlu0 %v1904, 8
        %v2068 = vpop.permute.xlu0 %2067
        %2069 = vrot.lane.b32.xlu0 %v1909, 8
        %v2070 = vpop.permute.xlu0 %2069
        %2071 = vrot.lane.b32.xlu0 %v1912, 8
        %v2072 = vpop.permute.xlu0 %2071
        %2073 = vrot.lane.b32.xlu0 %v1964, 8
        %v2074 = vpop.permute.xlu0 %2073
        %2075 = vrot.lane.b32.xlu0 %v1967, 8
        %v2076 = vpop.permute.xlu0 %2075
        %2077 = vrot.lane.b32.xlu0 %v1972, 8
        %v2078 = vpop.permute.xlu0 %2077
        %2079 = vrot.lane.b32.xlu0 %v1975, 8
        %v2080 = vpop.permute.xlu0 %2079
        %2081 = vrot.lane.b32.xlu0 %v2027, 8
        %v2082 = vpop.permute.xlu0 %2081
        %2083 = vrot.lane.b32.xlu0 %v2030, 8
        %v2084 = vpop.permute.xlu0 %2083
        %2085 = vrot.lane.b32.xlu0 %v2035, 8
        %v2086 = vpop.permute.xlu0 %2085
        %2087 = vrot.lane.b32.xlu0 %v2038, 8
        %v2088 = vpop.permute.xlu0 %2087
        %vm2105 = vcmask 130112
        %2106 = vst.msk [vmem:[#allocation2] sm:$0xff] %vm2105, %v2058
        %2107 = vst.msk [vmem:[#allocation2 + $0x8] sm:$0xff] %vm2105, %v2060
        %2108 = vst.msk [vmem:[#allocation2 + $0x10] sm:$0xff] %vm2105, %v2062
        %2109 = vst.msk [vmem:[#allocation2 + $0x18] sm:$0xff] %vm2105, %v2064
        %2110 = vst.msk [vmem:[#allocation2 + $0x20] sm:$0xff] %vm2105, %v2066
        %2111 = vst.msk [vmem:[#allocation2 + $0x28] sm:$0xff] %vm2105, %v2068
        %2112 = vst.msk [vmem:[#allocation2 + $0x30] sm:$0xff] %vm2105, %v2070
        %2113 = vst.msk [vmem:[#allocation2 + $0x38] sm:$0xff] %vm2105, %v2072
        %2114 = vst.msk [vmem:[#allocation2 + $0x40] sm:$0xff] %vm2105, %v2074
        %2115 = vst.msk [vmem:[#allocation2 + $0x48] sm:$0xff] %vm2105, %v2076
        %2116 = vst.msk [vmem:[#allocation2 + $0x50] sm:$0xff] %vm2105, %v2078
        %2117 = vst.msk [vmem:[#allocation2 + $0x58] sm:$0xff] %vm2105, %v2080
        %2118 = vst.msk [vmem:[#allocation2 + $0x60] sm:$0xff] %vm2105, %v2082
        %2119 = vst.msk [vmem:[#allocation2 + $0x68] sm:$0xff] %vm2105, %v2084
        %2120 = vst.msk [vmem:[#allocation2 + $0x70] sm:$0xff] %vm2105, %v2086
        %2121 = vst.msk [vmem:[#allocation2 + $0x78] sm:$0xff] %vm2105, %v2088
        %2122 = vrot.lane.b32.xlu0 %v623, 112
        %v2123 = vpop.permute.xlu0 %2122
        %2124 = vrot.lane.b32.xlu0 %v624, 112
        %v2125 = vpop.permute.xlu0 %2124
        %2126 = vrot.lane.b32.xlu0 %v623, 48
        %v2127 = vpop.permute.xlu0 %2126
        %2128 = vrot.lane.b32.xlu0 %v624, 48
        %v2129 = vpop.permute.xlu0 %2128
        %v2131 = vsel %vm645, %v2123, 0
        %v2134 = vsel %vm645, %v2125, 0
        %v2137 = vsel %vm645, %v2127, 0
        %v2140 = vsel %vm645, %v2129, 0
        %2142 = vmatprep.subr.bf16.mxu0 0
        %2143 = vmatpush1.bf16.xpose.msra.mxu0 %v2137
        %2144 = vmatprep.subr.bf16.mxu0 0
        %2145 = vmatpush1.bf16.xpose.msra.mxu0 %v2140
        %2146 = vmatprep.subr.bf16.mxu0 0
        %2147 = vmatpush1.bf16.xpose.msra.mxu0 0
        %2148 = vmatprep.subr.bf16.mxu0 0
        %2149 = vmatpush1.bf16.xpose.msra.mxu0 0
        %2150 = vmatprep.subr.bf16.mxu0 0
        %2151 = vmatpush1.bf16.xpose.msra.mxu0 0
        %2152 = vmatprep.subr.bf16.mxu0 0
        %2153 = vmatpush1.bf16.xpose.msra.mxu0 0
        %2154 = vmatprep.subr.bf16.mxu0 0
        %2155 = vmatpush1.bf16.xpose.msra.mxu0 0
        %2156 = vmatprep.subr.bf16.mxu0 0
        %2157 = vmatpush1.bf16.xpose.msra.mxu0 0
        %2158 = vmatprep.subr.bf16.mxu0 0
        %2159 = vmatpush1.bf16.xpose.msra.mxu0 0
        %2160 = vmatprep.subr.bf16.mxu0 0
        %2161 = vmatpush1.bf16.xpose.msra.mxu0 0
        %2162 = vmatprep.subr.bf16.mxu0 0
        %2163 = vmatpush1.bf16.xpose.msra.mxu0 0
        %2164 = vmatprep.subr.bf16.mxu0 0
        %2165 = vmatpush1.bf16.xpose.msra.mxu0 0
        %2166 = vmatprep.subr.bf16.mxu0 0
        %2167 = vmatpush1.bf16.xpose.msra.mxu0 0
        %2168 = vmatprep.subr.bf16.mxu0 0
        %2169 = vmatpush1.bf16.xpose.msra.mxu0 0
        %2170 = vmatprep.subr.bf16.mxu0 0
        %2171 = vmatpush1.bf16.xpose.msra.mxu0 0
        %2172 = vmatprep.subr.bf16.mxu0 0
        %2173 = vmatpush1.bf16.xpose.msra.mxu0 0
        %2174 = vmatprep.mubr.bf16.mxu0 0
        %2175 = vmatmul.mubr.bf16.gmra.mrb[0].mxu0 %v2131
        %v2176 = vpop.f32.mrb[0].mxu0
        %v2177 = vadd.f32 0.0, %v2176
        %v2178 = vpop.f32.mrb[0].mxu0
        %v2179 = vpop.f32.mrb[0].mxu0
        %v2180 = vadd.f32 0.0, %v2179
        %v2181 = vpop.f32.mrb[0].mxu0
        %2182 = vmatprep.mubr.bf16.mxu0 0
        %2183 = vmatmul.mubr.bf16.gmra.mrb[0].mxu0 %v2134
        %v2184 = vpop.f32.mrb[0].mxu0
        %v2185 = vadd.f32 0.0, %v2184
        %v2186 = vpop.f32.mrb[0].mxu0
        %v2187 = vpop.f32.mrb[0].mxu0
        %v2188 = vadd.f32 0.0, %v2187
        %v2189 = vpop.f32.mrb[0].mxu0
        %2190 = vdwg.mxu0
        %2191 = vrot.lane.b32.xlu0 %v625, 112
        %v2192 = vpop.permute.xlu0 %2191
        %2193 = vrot.lane.b32.xlu0 %v626, 112
        %v2194 = vpop.permute.xlu0 %2193
        %2195 = vrot.lane.b32.xlu0 %v625, 48
        %v2196 = vpop.permute.xlu0 %2195
        %2197 = vrot.lane.b32.xlu0 %v626, 48
        %v2198 = vpop.permute.xlu0 %2197
        %v2200 = vsel %vm645, %v2192, 0
        %v2203 = vsel %vm645, %v2194, 0
        %v2206 = vsel %vm645, %v2196, 0
        %v2209 = vsel %vm645, %v2198, 0
        %2211 = vmatprep.subr.bf16.mxu0 0
        %2212 = vmatpush1.bf16.xpose.msra.mxu0 %v2206
        %2213 = vmatprep.subr.bf16.mxu0 0
        %2214 = vmatpush1.bf16.xpose.msra.mxu0 %v2209
        %2215 = vmatprep.subr.bf16.mxu0 0
        %2216 = vmatpush1.bf16.xpose.msra.mxu0 0
        %2217 = vmatprep.subr.bf16.mxu0 0
        %2218 = vmatpush1.bf16.xpose.msra.mxu0 0
        %2219 = vmatprep.subr.bf16.mxu0 0
        %2220 = vmatpush1.bf16.xpose.msra.mxu0 0
        %2221 = vmatprep.subr.bf16.mxu0 0
        %2222 = vmatpush1.bf16.xpose.msra.mxu0 0
        %2223 = vmatprep.subr.bf16.mxu0 0
        %2224 = vmatpush1.bf16.xpose.msra.mxu0 0
        %2225 = vmatprep.subr.bf16.mxu0 0
        %2226 = vmatpush1.bf16.xpose.msra.mxu0 0
        %2227 = vmatprep.subr.bf16.mxu0 0
        %2228 = vmatpush1.bf16.xpose.msra.mxu0 0
        %2229 = vmatprep.subr.bf16.mxu0 0
        %2230 = vmatpush1.bf16.xpose.msra.mxu0 0
        %2231 = vmatprep.subr.bf16.mxu0 0
        %2232 = vmatpush1.bf16.xpose.msra.mxu0 0
        %2233 = vmatprep.subr.bf16.mxu0 0
        %2234 = vmatpush1.bf16.xpose.msra.mxu0 0
        %2235 = vmatprep.subr.bf16.mxu0 0
        %2236 = vmatpush1.bf16.xpose.msra.mxu0 0
        %2237 = vmatprep.subr.bf16.mxu0 0
        %2238 = vmatpush1.bf16.xpose.msra.mxu0 0
        %2239 = vmatprep.subr.bf16.mxu0 0
        %2240 = vmatpush1.bf16.xpose.msra.mxu0 0
        %2241 = vmatprep.subr.bf16.mxu0 0
        %2242 = vmatpush1.bf16.xpose.msra.mxu0 0
        %2243 = vmatprep.mubr.bf16.mxu0 0
        %2244 = vmatmul.mubr.bf16.gmra.mrb[0].mxu0 %v2200
        %v2245 = vpop.f32.mrb[0].mxu0
        %v2246 = vadd.f32 0.0, %v2245
        %v2247 = vpop.f32.mrb[0].mxu0
        %v2248 = vpop.f32.mrb[0].mxu0
        %v2249 = vadd.f32 0.0, %v2248
        %v2250 = vpop.f32.mrb[0].mxu0
        %2251 = vmatprep.mubr.bf16.mxu0 0
        %2252 = vmatmul.mubr.bf16.gmra.mrb[0].mxu0 %v2203
        %v2253 = vpop.f32.mrb[0].mxu0
        %v2254 = vadd.f32 0.0, %v2253
        %v2255 = vpop.f32.mrb[0].mxu0
        %v2256 = vpop.f32.mrb[0].mxu0
        %v2257 = vadd.f32 0.0, %v2256
        %v2258 = vpop.f32.mrb[0].mxu0
        %2259 = vdwg.mxu0
        %2260 = vrot.lane.b32.xlu0 %v627, 112
        %v2261 = vpop.permute.xlu0 %2260
        %2262 = vrot.lane.b32.xlu0 %v628, 112
        %v2263 = vpop.permute.xlu0 %2262
        %2264 = vrot.lane.b32.xlu0 %v627, 48
        %v2265 = vpop.permute.xlu0 %2264
        %2266 = vrot.lane.b32.xlu0 %v628, 48
        %v2267 = vpop.permute.xlu0 %2266
        %v2269 = vsel %vm645, %v2261, 0
        %v2272 = vsel %vm645, %v2263, 0
        %v2275 = vsel %vm645, %v2265, 0
        %v2278 = vsel %vm645, %v2267, 0
        %2280 = vmatprep.subr.bf16.mxu0 0
        %2281 = vmatpush1.bf16.xpose.msra.mxu0 %v2275
        %2282 = vmatprep.subr.bf16.mxu0 0
        %2283 = vmatpush1.bf16.xpose.msra.mxu0 %v2278
        %2284 = vmatprep.subr.bf16.mxu0 0
        %2285 = vmatpush1.bf16.xpose.msra.mxu0 0
        %2286 = vmatprep.subr.bf16.mxu0 0
        %2287 = vmatpush1.bf16.xpose.msra.mxu0 0
        %2288 = vmatprep.subr.bf16.mxu0 0
        %2289 = vmatpush1.bf16.xpose.msra.mxu0 0
        %2290 = vmatprep.subr.bf16.mxu0 0
        %2291 = vmatpush1.bf16.xpose.msra.mxu0 0
        %2292 = vmatprep.subr.bf16.mxu0 0
        %2293 = vmatpush1.bf16.xpose.msra.mxu0 0
        %2294 = vmatprep.subr.bf16.mxu0 0
        %2295 = vmatpush1.bf16.xpose.msra.mxu0 0
        %2296 = vmatprep.subr.bf16.mxu0 0
        %2297 = vmatpush1.bf16.xpose.msra.mxu0 0
        %2298 = vmatprep.subr.bf16.mxu0 0
        %2299 = vmatpush1.bf16.xpose.msra.mxu0 0
        %2300 = vmatprep.subr.bf16.mxu0 0
        %2301 = vmatpush1.bf16.xpose.msra.mxu0 0
        %2302 = vmatprep.subr.bf16.mxu0 0
        %2303 = vmatpush1.bf16.xpose.msra.mxu0 0
        %2304 = vmatprep.subr.bf16.mxu0 0
        %2305 = vmatpush1.bf16.xpose.msra.mxu0 0
        %2306 = vmatprep.subr.bf16.mxu0 0
        %2307 = vmatpush1.bf16.xpose.msra.mxu0 0
        %2308 = vmatprep.subr.bf16.mxu0 0
        %2309 = vmatpush1.bf16.xpose.msra.mxu0 0
        %2310 = vmatprep.subr.bf16.mxu0 0
        %2311 = vmatpush1.bf16.xpose.msra.mxu0 0
        %2312 = vmatprep.mubr.bf16.mxu0 0
        %2313 = vmatmul.mubr.bf16.gmra.mrb[0].mxu0 %v2269
        %v2314 = vpop.f32.mrb[0].mxu0
        %v2315 = vadd.f32 0.0, %v2314
        %v2316 = vpop.f32.mrb[0].mxu0
        %v2317 = vpop.f32.mrb[0].mxu0
        %v2318 = vadd.f32 0.0, %v2317
        %v2319 = vpop.f32.mrb[0].mxu0
        %2320 = vmatprep.mubr.bf16.mxu0 0
        %2321 = vmatmul.mubr.bf16.gmra.mrb[0].mxu0 %v2272
        %v2322 = vpop.f32.mrb[0].mxu0
        %v2323 = vadd.f32 0.0, %v2322
        %v2324 = vpop.f32.mrb[0].mxu0
        %v2325 = vpop.f32.mrb[0].mxu0
        %v2326 = vadd.f32 0.0, %v2325
        %v2327 = vpop.f32.mrb[0].mxu0
        %2328 = vdwg.mxu0
        %2329 = vrot.lane.b32.xlu0 %v629, 112
        %v2330 = vpop.permute.xlu0 %2329
        %2331 = vrot.lane.b32.xlu0 %v630, 112
        %v2332 = vpop.permute.xlu0 %2331
        %2333 = vrot.lane.b32.xlu0 %v629, 48
        %v2334 = vpop.permute.xlu0 %2333
        %2335 = vrot.lane.b32.xlu0 %v630, 48
        %v2336 = vpop.permute.xlu0 %2335
        %v2338 = vsel %vm645, %v2330, 0
        %v2341 = vsel %vm645, %v2332, 0
        %v2344 = vsel %vm645, %v2334, 0
        %v2347 = vsel %vm645, %v2336, 0
        %2349 = vmatprep.subr.bf16.mxu0 0
        %2350 = vmatpush1.bf16.xpose.msra.mxu0 %v2344
        %2351 = vmatprep.subr.bf16.mxu0 0
        %2352 = vmatpush1.bf16.xpose.msra.mxu0 %v2347
        %2353 = vmatprep.subr.bf16.mxu0 0
        %2354 = vmatpush1.bf16.xpose.msra.mxu0 0
        %2355 = vmatprep.subr.bf16.mxu0 0
        %2356 = vmatpush1.bf16.xpose.msra.mxu0 0
        %2357 = vmatprep.subr.bf16.mxu0 0
        %2358 = vmatpush1.bf16.xpose.msra.mxu0 0
        %2359 = vmatprep.subr.bf16.mxu0 0
        %2360 = vmatpush1.bf16.xpose.msra.mxu0 0
        %2361 = vmatprep.subr.bf16.mxu0 0
        %2362 = vmatpush1.bf16.xpose.msra.mxu0 0
        %2363 = vmatprep.subr.bf16.mxu0 0
        %2364 = vmatpush1.bf16.xpose.msra.mxu0 0
        %2365 = vmatprep.subr.bf16.mxu0 0
        %2366 = vmatpush1.bf16.xpose.msra.mxu0 0
        %2367 = vmatprep.subr.bf16.mxu0 0
        %2368 = vmatpush1.bf16.xpose.msra.mxu0 0
        %2369 = vmatprep.subr.bf16.mxu0 0
        %2370 = vmatpush1.bf16.xpose.msra.mxu0 0
        %2371 = vmatprep.subr.bf16.mxu0 0
        %2372 = vmatpush1.bf16.xpose.msra.mxu0 0
        %2373 = vmatprep.subr.bf16.mxu0 0
        %2374 = vmatpush1.bf16.xpose.msra.mxu0 0
        %2375 = vmatprep.subr.bf16.mxu0 0
        %2376 = vmatpush1.bf16.xpose.msra.mxu0 0
        %2377 = vmatprep.subr.bf16.mxu0 0
        %2378 = vmatpush1.bf16.xpose.msra.mxu0 0
        %2379 = vmatprep.subr.bf16.mxu0 0
        %2380 = vmatpush1.bf16.xpose.msra.mxu0 0
        %2381 = vmatprep.mubr.bf16.mxu0 0
        %2382 = vmatmul.mubr.bf16.gmra.mrb[0].mxu0 %v2338
        %v2383 = vpop.f32.mrb[0].mxu0
        %v2384 = vadd.f32 0.0, %v2383
        %v2385 = vpop.f32.mrb[0].mxu0
        %v2386 = vpop.f32.mrb[0].mxu0
        %v2387 = vadd.f32 0.0, %v2386
        %v2388 = vpop.f32.mrb[0].mxu0
        %2389 = vmatprep.mubr.bf16.mxu0 0
        %2390 = vmatmul.mubr.bf16.gmra.mrb[0].mxu0 %v2341
        %v2391 = vpop.f32.mrb[0].mxu0
        %v2392 = vadd.f32 0.0, %v2391
        %v2393 = vpop.f32.mrb[0].mxu0
        %v2394 = vpop.f32.mrb[0].mxu0
        %v2395 = vadd.f32 0.0, %v2394
        %v2396 = vpop.f32.mrb[0].mxu0
        %2397 = vdwg.mxu0
        %v2398 = vsel %vm908, %v2177, -inf
        %2399 = vmax.xlane.f32.xlu0 %v2398
        %v2400 = vpop.xlane.xlu0 %2399
        %v2401 = vsel %vm908, %v2180, -inf
        %2402 = vmax.xlane.f32.xlu0 %v2401
        %v2403 = vpop.xlane.xlu0 %2402
        %v2404 = vsel %vm908, %v2185, -inf
        %2405 = vmax.xlane.f32.xlu0 %v2404
        %v2406 = vpop.xlane.xlu0 %2405
        %v2407 = vsel %vm908, %v2188, -inf
        %2408 = vmax.xlane.f32.xlu0 %v2407
        %v2409 = vpop.xlane.xlu0 %2408
        %v2410 = vsel %vm908, %v2246, -inf
        %2411 = vmax.xlane.f32.xlu0 %v2410
        %v2412 = vpop.xlane.xlu0 %2411
        %v2413 = vsel %vm908, %v2249, -inf
        %2414 = vmax.xlane.f32.xlu0 %v2413
        %v2415 = vpop.xlane.xlu0 %2414
        %v2416 = vsel %vm908, %v2254, -inf
        %2417 = vmax.xlane.f32.xlu0 %v2416
        %v2418 = vpop.xlane.xlu0 %2417
        %v2419 = vsel %vm908, %v2257, -inf
        %2420 = vmax.xlane.f32.xlu0 %v2419
        %v2421 = vpop.xlane.xlu0 %2420
        %v2422 = vsel %vm908, %v2315, -inf
        %2423 = vmax.xlane.f32.xlu0 %v2422
        %v2424 = vpop.xlane.xlu0 %2423
        %v2425 = vsel %vm908, %v2318, -inf
        %2426 = vmax.xlane.f32.xlu0 %v2425
        %v2427 = vpop.xlane.xlu0 %2426
        %v2428 = vsel %vm908, %v2323, -inf
        %2429 = vmax.xlane.f32.xlu0 %v2428
        %v2430 = vpop.xlane.xlu0 %2429
        %v2431 = vsel %vm908, %v2326, -inf
        %2432 = vmax.xlane.f32.xlu0 %v2431
        %v2433 = vpop.xlane.xlu0 %2432
        %v2434 = vsel %vm908, %v2384, -inf
        %2435 = vmax.xlane.f32.xlu0 %v2434
        %v2436 = vpop.xlane.xlu0 %2435
        %v2437 = vsel %vm908, %v2387, -inf
        %2438 = vmax.xlane.f32.xlu0 %v2437
        %v2439 = vpop.xlane.xlu0 %2438
        %v2440 = vsel %vm908, %v2392, -inf
        %2441 = vmax.xlane.f32.xlu0 %v2440
        %v2442 = vpop.xlane.xlu0 %2441
        %v2443 = vsel %vm908, %v2395, -inf
        %2444 = vmax.xlane.f32.xlu0 %v2443
        %v2445 = vpop.xlane.xlu0 %2444
        %v2446 = vsub.f32 %v2177, %v2400
        %v2447 = vsub.f32 %v2180, %v2403
        %v2448 = vsub.f32 %v2185, %v2406
        %v2449 = vsub.f32 %v2188, %v2409
        %v2450 = vsub.f32 %v2246, %v2412
        %v2451 = vsub.f32 %v2249, %v2415
        %v2452 = vsub.f32 %v2254, %v2418
        %v2453 = vsub.f32 %v2257, %v2421
        %v2454 = vsub.f32 %v2315, %v2424
        %v2455 = vsub.f32 %v2318, %v2427
        %v2456 = vsub.f32 %v2323, %v2430
        %v2457 = vsub.f32 %v2326, %v2433
        %v2458 = vsub.f32 %v2384, %v2436
        %v2459 = vsub.f32 %v2387, %v2439
        %v2460 = vsub.f32 %v2392, %v2442
        %v2461 = vsub.f32 %v2395, %v2445
        %v2462 = vmul.f32 %v2446, 1.442695
        %v2463 = vpow.pop %v2462
        %v2464 = vmul.f32 %v2447, 1.442695
        %v2465 = vpow.pop %v2464
        %v2466 = vmul.f32 %v2448, 1.442695
        %v2467 = vpow.pop %v2466
        %v2468 = vmul.f32 %v2449, 1.442695
        %v2469 = vpow.pop %v2468
        %v2470 = vmul.f32 %v2450, 1.442695
        %v2471 = vpow.pop %v2470
        %v2472 = vmul.f32 %v2451, 1.442695
        %v2473 = vpow.pop %v2472
        %v2474 = vmul.f32 %v2452, 1.442695
        %v2475 = vpow.pop %v2474
        %v2476 = vmul.f32 %v2453, 1.442695
        %v2477 = vpow.pop %v2476
        %v2478 = vmul.f32 %v2454, 1.442695
        %v2479 = vpow.pop %v2478
        %v2480 = vmul.f32 %v2455, 1.442695
        %v2481 = vpow.pop %v2480
        %v2482 = vmul.f32 %v2456, 1.442695
        %v2483 = vpow.pop %v2482
        %v2484 = vmul.f32 %v2457, 1.442695
        %v2485 = vpow.pop %v2484
        %v2486 = vmul.f32 %v2458, 1.442695
        %v2487 = vpow.pop %v2486
        %v2488 = vmul.f32 %v2459, 1.442695
        %v2489 = vpow.pop %v2488
        %v2490 = vmul.f32 %v2460, 1.442695
        %v2491 = vpow.pop %v2490
        %v2492 = vmul.f32 %v2461, 1.442695
        %v2493 = vpow.pop %v2492
        %v2494 = vsel %vm908, %v2463, 0.0
        %2495 = vadd.xlane.f32.xlu0 %v2494
        %v2496 = vpop.xlane.xlu0 %2495
        %v2497 = vsel %vm908, %v2465, 0.0
        %2498 = vadd.xlane.f32.xlu0 %v2497
        %v2499 = vpop.xlane.xlu0 %2498
        %v2500 = vsel %vm908, %v2467, 0.0
        %2501 = vadd.xlane.f32.xlu0 %v2500
        %v2502 = vpop.xlane.xlu0 %2501
        %v2503 = vsel %vm908, %v2469, 0.0
        %2504 = vadd.xlane.f32.xlu0 %v2503
        %v2505 = vpop.xlane.xlu0 %2504
        %v2506 = vsel %vm908, %v2471, 0.0
        %2507 = vadd.xlane.f32.xlu0 %v2506
        %v2508 = vpop.xlane.xlu0 %2507
        %v2509 = vsel %vm908, %v2473, 0.0
        %2510 = vadd.xlane.f32.xlu0 %v2509
        %v2511 = vpop.xlane.xlu0 %2510
        %v2512 = vsel %vm908, %v2475, 0.0
        %2513 = vadd.xlane.f32.xlu0 %v2512
        %v2514 = vpop.xlane.xlu0 %2513
        %v2515 = vsel %vm908, %v2477, 0.0
        %2516 = vadd.xlane.f32.xlu0 %v2515
        %v2517 = vpop.xlane.xlu0 %2516
        %v2518 = vsel %vm908, %v2479, 0.0
        %2519 = vadd.xlane.f32.xlu0 %v2518
        %v2520 = vpop.xlane.xlu0 %2519
        %v2521 = vsel %vm908, %v2481, 0.0
        %2522 = vadd.xlane.f32.xlu0 %v2521
        %v2523 = vpop.xlane.xlu0 %2522
        %v2524 = vsel %vm908, %v2483, 0.0
        %2525 = vadd.xlane.f32.xlu0 %v2524
        %v2526 = vpop.xlane.xlu0 %2525
        %v2527 = vsel %vm908, %v2485, 0.0
        %2528 = vadd.xlane.f32.xlu0 %v2527
        %v2529 = vpop.xlane.xlu0 %2528
        %v2530 = vsel %vm908, %v2487, 0.0
        %2531 = vadd.xlane.f32.xlu0 %v2530
        %v2532 = vpop.xlane.xlu0 %2531
        %v2533 = vsel %vm908, %v2489, 0.0
        %2534 = vadd.xlane.f32.xlu0 %v2533
        %v2535 = vpop.xlane.xlu0 %2534
        %v2536 = vsel %vm908, %v2491, 0.0
        %2537 = vadd.xlane.f32.xlu0 %v2536
        %v2538 = vpop.xlane.xlu0 %2537
        %v2539 = vsel %vm908, %v2493, 0.0
        %2540 = vadd.xlane.f32.xlu0 %v2539
        %v2541 = vpop.xlane.xlu0 %2540
        %v2542 = vrcp.pop %v2496
        %v2543 = vmul.f32 %v2463, %v2542
        %v2544 = vrcp.pop %v2499
        %v2545 = vmul.f32 %v2465, %v2544
        %v2546 = vrcp.pop %v2502
        %v2547 = vmul.f32 %v2467, %v2546
        %v2548 = vrcp.pop %v2505
        %v2549 = vmul.f32 %v2469, %v2548
        %v2550 = vrcp.pop %v2508
        %v2551 = vmul.f32 %v2471, %v2550
        %v2552 = vrcp.pop %v2511
        %v2553 = vmul.f32 %v2473, %v2552
        %v2554 = vrcp.pop %v2514
        %v2555 = vmul.f32 %v2475, %v2554
        %v2556 = vrcp.pop %v2517
        %v2557 = vmul.f32 %v2477, %v2556
        %v2558 = vrcp.pop %v2520
        %v2559 = vmul.f32 %v2479, %v2558
        %v2560 = vrcp.pop %v2523
        %v2561 = vmul.f32 %v2481, %v2560
        %v2562 = vrcp.pop %v2526
        %v2563 = vmul.f32 %v2483, %v2562
        %v2564 = vrcp.pop %v2529
        %v2565 = vmul.f32 %v2485, %v2564
        %v2566 = vrcp.pop %v2532
        %v2567 = vmul.f32 %v2487, %v2566
        %v2568 = vrcp.pop %v2535
        %v2569 = vmul.f32 %v2489, %v2568
        %v2570 = vrcp.pop %v2538
        %v2571 = vmul.f32 %v2491, %v2570
        %v2572 = vrcp.pop %v2541
        %v2573 = vmul.f32 %v2493, %v2572
        %v2574 = vpack.c.bf16 %v2545, %v2543
        %v2575 = vpack.c.bf16 %v2549, %v2547
        %v2576 = vpack.c.bf16 %v2553, %v2551
        %v2577 = vpack.c.bf16 %v2557, %v2555
        %v2578 = vpack.c.bf16 %v2561, %v2559
        %v2579 = vpack.c.bf16 %v2565, %v2563
        %v2580 = vpack.c.bf16 %v2569, %v2567
        %v2581 = vpack.c.bf16 %v2573, %v2571
        %2582 = vrot.lane.b32.xlu0 %v631, 112
        %v2583 = vpop.permute.xlu0 %2582
        %2584 = vrot.lane.b32.xlu0 %v632, 112
        %v2585 = vpop.permute.xlu0 %2584
        %v2589 = vsel %vm908, %v2574, 0
        %v2592 = vsel %vm908, %v2575, 0
        %2594 = vmatprep.subr.bf16.mxu0 0
        %2595 = vmatpush1.bf16.msra.mxu0 %v2583
        %2596 = vmatprep.subr.bf16.mxu0 0
        %2597 = vmatpush1.bf16.msra.mxu0 %v2585
        %2598 = vmatprep.subr.bf16.mxu0 0
        %2599 = vmatpush1.bf16.msra.mxu0 0
        %2600 = vmatprep.subr.bf16.mxu0 0
        %2601 = vmatpush1.bf16.msra.mxu0 0
        %2602 = vmatprep.subr.bf16.mxu0 0
        %2603 = vmatpush1.bf16.msra.mxu0 0
        %2604 = vmatprep.subr.bf16.mxu0 0
        %2605 = vmatpush1.bf16.msra.mxu0 0
        %2606 = vmatprep.subr.bf16.mxu0 0
        %2607 = vmatpush1.bf16.msra.mxu0 0
        %2608 = vmatprep.subr.bf16.mxu0 0
        %2609 = vmatpush1.bf16.msra.mxu0 0
        %2610 = vmatprep.subr.bf16.mxu0 0
        %2611 = vmatpush1.bf16.msra.mxu0 0
        %2612 = vmatprep.subr.bf16.mxu0 0
        %2613 = vmatpush1.bf16.msra.mxu0 0
        %2614 = vmatprep.subr.bf16.mxu0 0
        %2615 = vmatpush1.bf16.msra.mxu0 0
        %2616 = vmatprep.subr.bf16.mxu0 0
        %2617 = vmatpush1.bf16.msra.mxu0 0
        %2618 = vmatprep.subr.bf16.mxu0 0
        %2619 = vmatpush1.bf16.msra.mxu0 0
        %2620 = vmatprep.subr.bf16.mxu0 0
        %2621 = vmatpush1.bf16.msra.mxu0 0
        %2622 = vmatprep.subr.bf16.mxu0 0
        %2623 = vmatpush1.bf16.msra.mxu0 0
        %2624 = vmatprep.subr.bf16.mxu0 0
        %2625 = vmatpush1.bf16.msra.mxu0 0
        %2626 = vmatprep.mubr.bf16.mxu0 0
        %2627 = vmatmul.mubr.bf16.gmra.mrb[0].mxu0 %v2589
        %v2628 = vpop.f32.mrb[0].mxu0
        %v2629 = vadd.f32 0.0, %v2628
        %v2630 = vpop.f32.mrb[0].mxu0
        %v2631 = vpop.f32.mrb[0].mxu0
        %v2632 = vadd.f32 0.0, %v2631
        %v2633 = vpop.f32.mrb[0].mxu0
        %2634 = vmatprep.mubr.bf16.mxu0 0
        %2635 = vmatmul.mubr.bf16.gmra.mrb[0].mxu0 %v2592
        %v2636 = vpop.f32.mrb[0].mxu0
        %v2637 = vadd.f32 0.0, %v2636
        %v2638 = vpop.f32.mrb[0].mxu0
        %v2639 = vpop.f32.mrb[0].mxu0
        %v2640 = vadd.f32 0.0, %v2639
        %v2641 = vpop.f32.mrb[0].mxu0
        %2642 = vdwg.mxu0
        %2643 = vrot.lane.b32.xlu0 %v633, 112
        %v2644 = vpop.permute.xlu0 %2643
        %2645 = vrot.lane.b32.xlu0 %v634, 112
        %v2646 = vpop.permute.xlu0 %2645
        %v2650 = vsel %vm908, %v2576, 0
        %v2653 = vsel %vm908, %v2577, 0
        %2655 = vmatprep.subr.bf16.mxu0 0
        %2656 = vmatpush1.bf16.msra.mxu0 %v2644
        %2657 = vmatprep.subr.bf16.mxu0 0
        %2658 = vmatpush1.bf16.msra.mxu0 %v2646
        %2659 = vmatprep.subr.bf16.mxu0 0
        %2660 = vmatpush1.bf16.msra.mxu0 0
        %2661 = vmatprep.subr.bf16.mxu0 0
        %2662 = vmatpush1.bf16.msra.mxu0 0
        %2663 = vmatprep.subr.bf16.mxu0 0
        %2664 = vmatpush1.bf16.msra.mxu0 0
        %2665 = vmatprep.subr.bf16.mxu0 0
        %2666 = vmatpush1.bf16.msra.mxu0 0
        %2667 = vmatprep.subr.bf16.mxu0 0
        %2668 = vmatpush1.bf16.msra.mxu0 0
        %2669 = vmatprep.subr.bf16.mxu0 0
        %2670 = vmatpush1.bf16.msra.mxu0 0
        %2671 = vmatprep.subr.bf16.mxu0 0
        %2672 = vmatpush1.bf16.msra.mxu0 0
        %2673 = vmatprep.subr.bf16.mxu0 0
        %2674 = vmatpush1.bf16.msra.mxu0 0
        %2675 = vmatprep.subr.bf16.mxu0 0
        %2676 = vmatpush1.bf16.msra.mxu0 0
        %2677 = vmatprep.subr.bf16.mxu0 0
        %2678 = vmatpush1.bf16.msra.mxu0 0
        %2679 = vmatprep.subr.bf16.mxu0 0
        %2680 = vmatpush1.bf16.msra.mxu0 0
        %2681 = vmatprep.subr.bf16.mxu0 0
        %2682 = vmatpush1.bf16.msra.mxu0 0
        %2683 = vmatprep.subr.bf16.mxu0 0
        %2684 = vmatpush1.bf16.msra.mxu0 0
        %2685 = vmatprep.subr.bf16.mxu0 0
        %2686 = vmatpush1.bf16.msra.mxu0 0
        %2687 = vmatprep.mubr.bf16.mxu0 0
        %2688 = vmatmul.mubr.bf16.gmra.mrb[0].mxu0 %v2650
        %v2689 = vpop.f32.mrb[0].mxu0
        %v2690 = vadd.f32 0.0, %v2689
        %v2691 = vpop.f32.mrb[0].mxu0
        %v2692 = vpop.f32.mrb[0].mxu0
        %v2693 = vadd.f32 0.0, %v2692
        %v2694 = vpop.f32.mrb[0].mxu0
        %2695 = vmatprep.mubr.bf16.mxu0 0
        %2696 = vmatmul.mubr.bf16.gmra.mrb[0].mxu0 %v2653
        %v2697 = vpop.f32.mrb[0].mxu0
        %v2698 = vadd.f32 0.0, %v2697
        %v2699 = vpop.f32.mrb[0].mxu0
        %v2700 = vpop.f32.mrb[0].mxu0
        %v2701 = vadd.f32 0.0, %v2700
        %v2702 = vpop.f32.mrb[0].mxu0
        %2703 = vdwg.mxu0
        %2704 = vrot.lane.b32.xlu0 %v635, 112
        %v2705 = vpop.permute.xlu0 %2704
        %2706 = vrot.lane.b32.xlu0 %v636, 112
        %v2707 = vpop.permute.xlu0 %2706
        %v2711 = vsel %vm908, %v2578, 0
        %v2714 = vsel %vm908, %v2579, 0
        %2716 = vmatprep.subr.bf16.mxu0 0
        %2717 = vmatpush1.bf16.msra.mxu0 %v2705
        %2718 = vmatprep.subr.bf16.mxu0 0
        %2719 = vmatpush1.bf16.msra.mxu0 %v2707
        %2720 = vmatprep.subr.bf16.mxu0 0
        %2721 = vmatpush1.bf16.msra.mxu0 0
        %2722 = vmatprep.subr.bf16.mxu0 0
        %2723 = vmatpush1.bf16.msra.mxu0 0
        %2724 = vmatprep.subr.bf16.mxu0 0
        %2725 = vmatpush1.bf16.msra.mxu0 0
        %2726 = vmatprep.subr.bf16.mxu0 0
        %2727 = vmatpush1.bf16.msra.mxu0 0
        %2728 = vmatprep.subr.bf16.mxu0 0
        %2729 = vmatpush1.bf16.msra.mxu0 0
        %2730 = vmatprep.subr.bf16.mxu0 0
        %2731 = vmatpush1.bf16.msra.mxu0 0
        %2732 = vmatprep.subr.bf16.mxu0 0
        %2733 = vmatpush1.bf16.msra.mxu0 0
        %2734 = vmatprep.subr.bf16.mxu0 0
        %2735 = vmatpush1.bf16.msra.mxu0 0
        %2736 = vmatprep.subr.bf16.mxu0 0
        %2737 = vmatpush1.bf16.msra.mxu0 0
        %2738 = vmatprep.subr.bf16.mxu0 0
        %2739 = vmatpush1.bf16.msra.mxu0 0
        %2740 = vmatprep.subr.bf16.mxu0 0
        %2741 = vmatpush1.bf16.msra.mxu0 0
        %2742 = vmatprep.subr.bf16.mxu0 0
        %2743 = vmatpush1.bf16.msra.mxu0 0
        %2744 = vmatprep.subr.bf16.mxu0 0
        %2745 = vmatpush1.bf16.msra.mxu0 0
        %2746 = vmatprep.subr.bf16.mxu0 0
        %2747 = vmatpush1.bf16.msra.mxu0 0
        %2748 = vmatprep.mubr.bf16.mxu0 0
        %2749 = vmatmul.mubr.bf16.gmra.mrb[0].mxu0 %v2711
        %v2750 = vpop.f32.mrb[0].mxu0
        %v2751 = vadd.f32 0.0, %v2750
        %v2752 = vpop.f32.mrb[0].mxu0
        %v2753 = vpop.f32.mrb[0].mxu0
        %v2754 = vadd.f32 0.0, %v2753
        %v2755 = vpop.f32.mrb[0].mxu0
        %2756 = vmatprep.mubr.bf16.mxu0 0
        %2757 = vmatmul.mubr.bf16.gmra.mrb[0].mxu0 %v2714
        %v2758 = vpop.f32.mrb[0].mxu0
        %v2759 = vadd.f32 0.0, %v2758
        %v2760 = vpop.f32.mrb[0].mxu0
        %v2761 = vpop.f32.mrb[0].mxu0
        %v2762 = vadd.f32 0.0, %v2761
        %v2763 = vpop.f32.mrb[0].mxu0
        %2764 = vdwg.mxu0
        %2765 = vrot.lane.b32.xlu0 %v637, 112
        %v2766 = vpop.permute.xlu0 %2765
        %2767 = vrot.lane.b32.xlu0 %v638, 112
        %v2768 = vpop.permute.xlu0 %2767
        %v2772 = vsel %vm908, %v2580, 0
        %v2775 = vsel %vm908, %v2581, 0
        %2777 = vmatprep.subr.bf16.mxu0 0
        %2778 = vmatpush1.bf16.msra.mxu0 %v2766
        %2779 = vmatprep.subr.bf16.mxu0 0
        %2780 = vmatpush1.bf16.msra.mxu0 %v2768
        %2781 = vmatprep.subr.bf16.mxu0 0
        %2782 = vmatpush1.bf16.msra.mxu0 0
        %2783 = vmatprep.subr.bf16.mxu0 0
        %2784 = vmatpush1.bf16.msra.mxu0 0
        %2785 = vmatprep.subr.bf16.mxu0 0
        %2786 = vmatpush1.bf16.msra.mxu0 0
        %2787 = vmatprep.subr.bf16.mxu0 0
        %2788 = vmatpush1.bf16.msra.mxu0 0
        %2789 = vmatprep.subr.bf16.mxu0 0
        %2790 = vmatpush1.bf16.msra.mxu0 0
        %2791 = vmatprep.subr.bf16.mxu0 0
        %2792 = vmatpush1.bf16.msra.mxu0 0
        %2793 = vmatprep.subr.bf16.mxu0 0
        %2794 = vmatpush1.bf16.msra.mxu0 0
        %2795 = vmatprep.subr.bf16.mxu0 0
        %2796 = vmatpush1.bf16.msra.mxu0 0
        %2797 = vmatprep.subr.bf16.mxu0 0
        %2798 = vmatpush1.bf16.msra.mxu0 0
        %2799 = vmatprep.subr.bf16.mxu0 0
        %2800 = vmatpush1.bf16.msra.mxu0 0
        %2801 = vmatprep.subr.bf16.mxu0 0
        %2802 = vmatpush1.bf16.msra.mxu0 0
        %2803 = vmatprep.subr.bf16.mxu0 0
        %2804 = vmatpush1.bf16.msra.mxu0 0
        %2805 = vmatprep.subr.bf16.mxu0 0
        %2806 = vmatpush1.bf16.msra.mxu0 0
        %2807 = vmatprep.subr.bf16.mxu0 0
        %2808 = vmatpush1.bf16.msra.mxu0 0
        %2809 = vmatprep.mubr.bf16.mxu0 0
        %2810 = vmatmul.mubr.bf16.gmra.mrb[0].mxu0 %v2772
        %v2811 = vpop.f32.mrb[0].mxu0
        %v2812 = vadd.f32 0.0, %v2811
        %v2813 = vpop.f32.mrb[0].mxu0
        %v2814 = vpop.f32.mrb[0].mxu0
        %v2815 = vadd.f32 0.0, %v2814
        %v2816 = vpop.f32.mrb[0].mxu0
        %2817 = vmatprep.mubr.bf16.mxu0 0
        %2818 = vmatmul.mubr.bf16.gmra.mrb[0].mxu0 %v2775
        %v2819 = vpop.f32.mrb[0].mxu0
        %v2820 = vadd.f32 0.0, %v2819
        %v2821 = vpop.f32.mrb[0].mxu0
        %v2822 = vpop.f32.mrb[0].mxu0
        %v2823 = vadd.f32 0.0, %v2822
        %v2824 = vpop.f32.mrb[0].mxu0
        %2825 = vdwg.mxu0
        %2842 = vrot.lane.b32.xlu0 %v2629, 16
        %v2843 = vpop.permute.xlu0 %2842
        %2844 = vrot.lane.b32.xlu0 %v2632, 16
        %v2845 = vpop.permute.xlu0 %2844
        %2846 = vrot.lane.b32.xlu0 %v2637, 16
        %v2847 = vpop.permute.xlu0 %2846
        %2848 = vrot.lane.b32.xlu0 %v2640, 16
        %v2849 = vpop.permute.xlu0 %2848
        %2850 = vrot.lane.b32.xlu0 %v2690, 16
        %v2851 = vpop.permute.xlu0 %2850
        %2852 = vrot.lane.b32.xlu0 %v2693, 16
        %v2853 = vpop.permute.xlu0 %2852
        %2854 = vrot.lane.b32.xlu0 %v2698, 16
        %v2855 = vpop.permute.xlu0 %2854
        %2856 = vrot.lane.b32.xlu0 %v2701, 16
        %v2857 = vpop.permute.xlu0 %2856
        %2858 = vrot.lane.b32.xlu0 %v2751, 16
        %v2859 = vpop.permute.xlu0 %2858
        %2860 = vrot.lane.b32.xlu0 %v2754, 16
        %v2861 = vpop.permute.xlu0 %2860
        %2862 = vrot.lane.b32.xlu0 %v2759, 16
        %v2863 = vpop.permute.xlu0 %2862
        %2864 = vrot.lane.b32.xlu0 %v2762, 16
        %v2865 = vpop.permute.xlu0 %2864
        %2866 = vrot.lane.b32.xlu0 %v2812, 16
        %v2867 = vpop.permute.xlu0 %2866
        %2868 = vrot.lane.b32.xlu0 %v2815, 16
        %v2869 = vpop.permute.xlu0 %2868
        %2870 = vrot.lane.b32.xlu0 %v2820, 16
        %v2871 = vpop.permute.xlu0 %2870
        %2872 = vrot.lane.b32.xlu0 %v2823, 16
        %v2873 = vpop.permute.xlu0 %2872
        %vm2890 = vcmask 195712
        %2891 = vst.msk [vmem:[#allocation2] sm:$0xff] %vm2890, %v2843
        %2892 = vst.msk [vmem:[#allocation2 + $0x8] sm:$0xff] %vm2890, %v2845
        %2893 = vst.msk [vmem:[#allocation2 + $0x10] sm:$0xff] %vm2890, %v2847
        %2894 = vst.msk [vmem:[#allocation2 + $0x18] sm:$0xff] %vm2890, %v2849
        %2895 = vst.msk [vmem:[#allocation2 + $0x20] sm:$0xff] %vm2890, %v2851
        %2896 = vst.msk [vmem:[#allocation2 + $0x28] sm:$0xff] %vm2890, %v2853
        %2897 = vst.msk [vmem:[#allocation2 + $0x30] sm:$0xff] %vm2890, %v2855
        %2898 = vst.msk [vmem:[#allocation2 + $0x38] sm:$0xff] %vm2890, %v2857
        %2899 = vst.msk [vmem:[#allocation2 + $0x40] sm:$0xff] %vm2890, %v2859
        %2900 = vst.msk [vmem:[#allocation2 + $0x48] sm:$0xff] %vm2890, %v2861
        %2901 = vst.msk [vmem:[#allocation2 + $0x50] sm:$0xff] %vm2890, %v2863
        %2902 = vst.msk [vmem:[#allocation2 + $0x58] sm:$0xff] %vm2890, %v2865
        %2903 = vst.msk [vmem:[#allocation2 + $0x60] sm:$0xff] %vm2890, %v2867
        %2904 = vst.msk [vmem:[#allocation2 + $0x68] sm:$0xff] %vm2890, %v2869
        %2905 = vst.msk [vmem:[#allocation2 + $0x70] sm:$0xff] %vm2890, %v2871
        %2906 = vst.msk [vmem:[#allocation2 + $0x78] sm:$0xff] %vm2890, %v2873
        %2907 = vrot.lane.b32.xlu0 %v623, 104
        %v2908 = vpop.permute.xlu0 %2907
        %2909 = vrot.lane.b32.xlu0 %v624, 104
        %v2910 = vpop.permute.xlu0 %2909
        %2911 = vrot.lane.b32.xlu0 %v623, 40
        %v2912 = vpop.permute.xlu0 %2911
        %2913 = vrot.lane.b32.xlu0 %v624, 40
        %v2914 = vpop.permute.xlu0 %2913
        %v2916 = vsel %vm645, %v2908, 0
        %v2919 = vsel %vm645, %v2910, 0
        %v2922 = vsel %vm645, %v2912, 0
        %v2925 = vsel %vm645, %v2914, 0
        %2927 = vmatprep.subr.bf16.mxu0 0
        %2928 = vmatpush1.bf16.xpose.msra.mxu0 %v2922
        %2929 = vmatprep.subr.bf16.mxu0 0
        %2930 = vmatpush1.bf16.xpose.msra.mxu0 %v2925
        %2931 = vmatprep.subr.bf16.mxu0 0
        %2932 = vmatpush1.bf16.xpose.msra.mxu0 0
        %2933 = vmatprep.subr.bf16.mxu0 0
        %2934 = vmatpush1.bf16.xpose.msra.mxu0 0
        %2935 = vmatprep.subr.bf16.mxu0 0
        %2936 = vmatpush1.bf16.xpose.msra.mxu0 0
        %2937 = vmatprep.subr.bf16.mxu0 0
        %2938 = vmatpush1.bf16.xpose.msra.mxu0 0
        %2939 = vmatprep.subr.bf16.mxu0 0
        %2940 = vmatpush1.bf16.xpose.msra.mxu0 0
        %2941 = vmatprep.subr.bf16.mxu0 0
        %2942 = vmatpush1.bf16.xpose.msra.mxu0 0
        %2943 = vmatprep.subr.bf16.mxu0 0
        %2944 = vmatpush1.bf16.xpose.msra.mxu0 0
        %2945 = vmatprep.subr.bf16.mxu0 0
        %2946 = vmatpush1.bf16.xpose.msra.mxu0 0
        %2947 = vmatprep.subr.bf16.mxu0 0
        %2948 = vmatpush1.bf16.xpose.msra.mxu0 0
        %2949 = vmatprep.subr.bf16.mxu0 0
        %2950 = vmatpush1.bf16.xpose.msra.mxu0 0
        %2951 = vmatprep.subr.bf16.mxu0 0
        %2952 = vmatpush1.bf16.xpose.msra.mxu0 0
        %2953 = vmatprep.subr.bf16.mxu0 0
        %2954 = vmatpush1.bf16.xpose.msra.mxu0 0
        %2955 = vmatprep.subr.bf16.mxu0 0
        %2956 = vmatpush1.bf16.xpose.msra.mxu0 0
        %2957 = vmatprep.subr.bf16.mxu0 0
        %2958 = vmatpush1.bf16.xpose.msra.mxu0 0
        %2959 = vmatprep.mubr.bf16.mxu0 0
        %2960 = vmatmul.mubr.bf16.gmra.mrb[0].mxu0 %v2916
        %v2961 = vpop.f32.mrb[0].mxu0
        %v2962 = vadd.f32 0.0, %v2961
        %v2963 = vpop.f32.mrb[0].mxu0
        %v2964 = vpop.f32.mrb[0].mxu0
        %v2965 = vadd.f32 0.0, %v2964
        %v2966 = vpop.f32.mrb[0].mxu0
        %2967 = vmatprep.mubr.bf16.mxu0 0
        %2968 = vmatmul.mubr.bf16.gmra.mrb[0].mxu0 %v2919
        %v2969 = vpop.f32.mrb[0].mxu0
        %v2970 = vadd.f32 0.0, %v2969
        %v2971 = vpop.f32.mrb[0].mxu0
        %v2972 = vpop.f32.mrb[0].mxu0
        %v2973 = vadd.f32 0.0, %v2972
        %v2974 = vpop.f32.mrb[0].mxu0
        %2975 = vdwg.mxu0
        %2976 = vrot.lane.b32.xlu0 %v625, 104
        %v2977 = vpop.permute.xlu0 %2976
        %2978 = vrot.lane.b32.xlu0 %v626, 104
        %v2979 = vpop.permute.xlu0 %2978
        %2980 = vrot.lane.b32.xlu0 %v625, 40
        %v2981 = vpop.permute.xlu0 %2980
        %2982 = vrot.lane.b32.xlu0 %v626, 40
        %v2983 = vpop.permute.xlu0 %2982
        %v2985 = vsel %vm645, %v2977, 0
        %v2988 = vsel %vm645, %v2979, 0
        %v2991 = vsel %vm645, %v2981, 0
        %v2994 = vsel %vm645, %v2983, 0
        %2996 = vmatprep.subr.bf16.mxu0 0
        %2997 = vmatpush1.bf16.xpose.msra.mxu0 %v2991
        %2998 = vmatprep.subr.bf16.mxu0 0
        %2999 = vmatpush1.bf16.xpose.msra.mxu0 %v2994
        %3000 = vmatprep.subr.bf16.mxu0 0
        %3001 = vmatpush1.bf16.xpose.msra.mxu0 0
        %3002 = vmatprep.subr.bf16.mxu0 0
        %3003 = vmatpush1.bf16.xpose.msra.mxu0 0
        %3004 = vmatprep.subr.bf16.mxu0 0
        %3005 = vmatpush1.bf16.xpose.msra.mxu0 0
        %3006 = vmatprep.subr.bf16.mxu0 0
        %3007 = vmatpush1.bf16.xpose.msra.mxu0 0
        %3008 = vmatprep.subr.bf16.mxu0 0
        %3009 = vmatpush1.bf16.xpose.msra.mxu0 0
        %3010 = vmatprep.subr.bf16.mxu0 0
        %3011 = vmatpush1.bf16.xpose.msra.mxu0 0
        %3012 = vmatprep.subr.bf16.mxu0 0
        %3013 = vmatpush1.bf16.xpose.msra.mxu0 0
        %3014 = vmatprep.subr.bf16.mxu0 0
        %3015 = vmatpush1.bf16.xpose.msra.mxu0 0
        %3016 = vmatprep.subr.bf16.mxu0 0
        %3017 = vmatpush1.bf16.xpose.msra.mxu0 0
        %3018 = vmatprep.subr.bf16.mxu0 0
        %3019 = vmatpush1.bf16.xpose.msra.mxu0 0
        %3020 = vmatprep.subr.bf16.mxu0 0
        %3021 = vmatpush1.bf16.xpose.msra.mxu0 0
        %3022 = vmatprep.subr.bf16.mxu0 0
        %3023 = vmatpush1.bf16.xpose.msra.mxu0 0
        %3024 = vmatprep.subr.bf16.mxu0 0
        %3025 = vmatpush1.bf16.xpose.msra.mxu0 0
        %3026 = vmatprep.subr.bf16.mxu0 0
        %3027 = vmatpush1.bf16.xpose.msra.mxu0 0
        %3028 = vmatprep.mubr.bf16.mxu0 0
        %3029 = vmatmul.mubr.bf16.gmra.mrb[0].mxu0 %v2985
        %v3030 = vpop.f32.mrb[0].mxu0
        %v3031 = vadd.f32 0.0, %v3030
        %v3032 = vpop.f32.mrb[0].mxu0
        %v3033 = vpop.f32.mrb[0].mxu0
        %v3034 = vadd.f32 0.0, %v3033
        %v3035 = vpop.f32.mrb[0].mxu0
        %3036 = vmatprep.mubr.bf16.mxu0 0
        %3037 = vmatmul.mubr.bf16.gmra.mrb[0].mxu0 %v2988
        %v3038 = vpop.f32.mrb[0].mxu0
        %v3039 = vadd.f32 0.0, %v3038
        %v3040 = vpop.f32.mrb[0].mxu0
        %v3041 = vpop.f32.mrb[0].mxu0
        %v3042 = vadd.f32 0.0, %v3041
        %v3043 = vpop.f32.mrb[0].mxu0
        %3044 = vdwg.mxu0
        %3045 = vrot.lane.b32.xlu0 %v627, 104
        %v3046 = vpop.permute.xlu0 %3045
        %3047 = vrot.lane.b32.xlu0 %v628, 104
        %v3048 = vpop.permute.xlu0 %3047
        %3049 = vrot.lane.b32.xlu0 %v627, 40
        %v3050 = vpop.permute.xlu0 %3049
        %3051 = vrot.lane.b32.xlu0 %v628, 40
        %v3052 = vpop.permute.xlu0 %3051
        %v3054 = vsel %vm645, %v3046, 0
        %v3057 = vsel %vm645, %v3048, 0
        %v3060 = vsel %vm645, %v3050, 0
        %v3063 = vsel %vm645, %v3052, 0
        %3065 = vmatprep.subr.bf16.mxu0 0
        %3066 = vmatpush1.bf16.xpose.msra.mxu0 %v3060
        %3067 = vmatprep.subr.bf16.mxu0 0
        %3068 = vmatpush1.bf16.xpose.msra.mxu0 %v3063
        %3069 = vmatprep.subr.bf16.mxu0 0
        %3070 = vmatpush1.bf16.xpose.msra.mxu0 0
        %3071 = vmatprep.subr.bf16.mxu0 0
        %3072 = vmatpush1.bf16.xpose.msra.mxu0 0
        %3073 = vmatprep.subr.bf16.mxu0 0
        %3074 = vmatpush1.bf16.xpose.msra.mxu0 0
        %3075 = vmatprep.subr.bf16.mxu0 0
        %3076 = vmatpush1.bf16.xpose.msra.mxu0 0
        %3077 = vmatprep.subr.bf16.mxu0 0
        %3078 = vmatpush1.bf16.xpose.msra.mxu0 0
        %3079 = vmatprep.subr.bf16.mxu0 0
        %3080 = vmatpush1.bf16.xpose.msra.mxu0 0
        %3081 = vmatprep.subr.bf16.mxu0 0
        %3082 = vmatpush1.bf16.xpose.msra.mxu0 0
        %3083 = vmatprep.subr.bf16.mxu0 0
        %3084 = vmatpush1.bf16.xpose.msra.mxu0 0
        %3085 = vmatprep.subr.bf16.mxu0 0
        %3086 = vmatpush1.bf16.xpose.msra.mxu0 0
        %3087 = vmatprep.subr.bf16.mxu0 0
        %3088 = vmatpush1.bf16.xpose.msra.mxu0 0
        %3089 = vmatprep.subr.bf16.mxu0 0
        %3090 = vmatpush1.bf16.xpose.msra.mxu0 0
        %3091 = vmatprep.subr.bf16.mxu0 0
        %3092 = vmatpush1.bf16.xpose.msra.mxu0 0
        %3093 = vmatprep.subr.bf16.mxu0 0
        %3094 = vmatpush1.bf16.xpose.msra.mxu0 0
        %3095 = vmatprep.subr.bf16.mxu0 0
        %3096 = vmatpush1.bf16.xpose.msra.mxu0 0
        %3097 = vmatprep.mubr.bf16.mxu0 0
        %3098 = vmatmul.mubr.bf16.gmra.mrb[0].mxu0 %v3054
        %v3099 = vpop.f32.mrb[0].mxu0
        %v3100 = vadd.f32 0.0, %v3099
        %v3101 = vpop.f32.mrb[0].mxu0
        %v3102 = vpop.f32.mrb[0].mxu0
        %v3103 = vadd.f32 0.0, %v3102
        %v3104 = vpop.f32.mrb[0].mxu0
        %3105 = vmatprep.mubr.bf16.mxu0 0
        %3106 = vmatmul.mubr.bf16.gmra.mrb[0].mxu0 %v3057
        %v3107 = vpop.f32.mrb[0].mxu0
        %v3108 = vadd.f32 0.0, %v3107
        %v3109 = vpop.f32.mrb[0].mxu0
        %v3110 = vpop.f32.mrb[0].mxu0
        %v3111 = vadd.f32 0.0, %v3110
        %v3112 = vpop.f32.mrb[0].mxu0
        %3113 = vdwg.mxu0
        %3114 = vrot.lane.b32.xlu0 %v629, 104
        %v3115 = vpop.permute.xlu0 %3114
        %3116 = vrot.lane.b32.xlu0 %v630, 104
        %v3117 = vpop.permute.xlu0 %3116
        %3118 = vrot.lane.b32.xlu0 %v629, 40
        %v3119 = vpop.permute.xlu0 %3118
        %3120 = vrot.lane.b32.xlu0 %v630, 40
        %v3121 = vpop.permute.xlu0 %3120
        %v3123 = vsel %vm645, %v3115, 0
        %v3126 = vsel %vm645, %v3117, 0
        %v3129 = vsel %vm645, %v3119, 0
        %v3132 = vsel %vm645, %v3121, 0
        %3134 = vmatprep.subr.bf16.mxu0 0
        %3135 = vmatpush1.bf16.xpose.msra.mxu0 %v3129
        %3136 = vmatprep.subr.bf16.mxu0 0
        %3137 = vmatpush1.bf16.xpose.msra.mxu0 %v3132
        %3138 = vmatprep.subr.bf16.mxu0 0
        %3139 = vmatpush1.bf16.xpose.msra.mxu0 0
        %3140 = vmatprep.subr.bf16.mxu0 0
        %3141 = vmatpush1.bf16.xpose.msra.mxu0 0
        %3142 = vmatprep.subr.bf16.mxu0 0
        %3143 = vmatpush1.bf16.xpose.msra.mxu0 0
        %3144 = vmatprep.subr.bf16.mxu0 0
        %3145 = vmatpush1.bf16.xpose.msra.mxu0 0
        %3146 = vmatprep.subr.bf16.mxu0 0
        %3147 = vmatpush1.bf16.xpose.msra.mxu0 0
        %3148 = vmatprep.subr.bf16.mxu0 0
        %3149 = vmatpush1.bf16.xpose.msra.mxu0 0
        %3150 = vmatprep.subr.bf16.mxu0 0
        %3151 = vmatpush1.bf16.xpose.msra.mxu0 0
        %3152 = vmatprep.subr.bf16.mxu0 0
        %3153 = vmatpush1.bf16.xpose.msra.mxu0 0
        %3154 = vmatprep.subr.bf16.mxu0 0
        %3155 = vmatpush1.bf16.xpose.msra.mxu0 0
        %3156 = vmatprep.subr.bf16.mxu0 0
        %3157 = vmatpush1.bf16.xpose.msra.mxu0 0
        %3158 = vmatprep.subr.bf16.mxu0 0
        %3159 = vmatpush1.bf16.xpose.msra.mxu0 0
        %3160 = vmatprep.subr.bf16.mxu0 0
        %3161 = vmatpush1.bf16.xpose.msra.mxu0 0
        %3162 = vmatprep.subr.bf16.mxu0 0
        %3163 = vmatpush1.bf16.xpose.msra.mxu0 0
        %3164 = vmatprep.subr.bf16.mxu0 0
        %3165 = vmatpush1.bf16.xpose.msra.mxu0 0
        %3166 = vmatprep.mubr.bf16.mxu0 0
        %3167 = vmatmul.mubr.bf16.gmra.mrb[0].mxu0 %v3123
        %v3168 = vpop.f32.mrb[0].mxu0
        %v3169 = vadd.f32 0.0, %v3168
        %v3170 = vpop.f32.mrb[0].mxu0
        %v3171 = vpop.f32.mrb[0].mxu0
        %v3172 = vadd.f32 0.0, %v3171
        %v3173 = vpop.f32.mrb[0].mxu0
        %3174 = vmatprep.mubr.bf16.mxu0 0
        %3175 = vmatmul.mubr.bf16.gmra.mrb[0].mxu0 %v3126
        %v3176 = vpop.f32.mrb[0].mxu0
        %v3177 = vadd.f32 0.0, %v3176
        %v3178 = vpop.f32.mrb[0].mxu0
        %v3179 = vpop.f32.mrb[0].mxu0
        %v3180 = vadd.f32 0.0, %v3179
        %v3181 = vpop.f32.mrb[0].mxu0
        %3182 = vdwg.mxu0
        %v3183 = vsel %vm908, %v2962, -inf
        %3184 = vmax.xlane.f32.xlu0 %v3183
        %v3185 = vpop.xlane.xlu0 %3184
        %v3186 = vsel %vm908, %v2965, -inf
        %3187 = vmax.xlane.f32.xlu0 %v3186
        %v3188 = vpop.xlane.xlu0 %3187
        %v3189 = vsel %vm908, %v2970, -inf
        %3190 = vmax.xlane.f32.xlu0 %v3189
        %v3191 = vpop.xlane.xlu0 %3190
        %v3192 = vsel %vm908, %v2973, -inf
        %3193 = vmax.xlane.f32.xlu0 %v3192
        %v3194 = vpop.xlane.xlu0 %3193
        %v3195 = vsel %vm908, %v3031, -inf
        %3196 = vmax.xlane.f32.xlu0 %v3195
        %v3197 = vpop.xlane.xlu0 %3196
        %v3198 = vsel %vm908, %v3034, -inf
        %3199 = vmax.xlane.f32.xlu0 %v3198
        %v3200 = vpop.xlane.xlu0 %3199
        %v3201 = vsel %vm908, %v3039, -inf
        %3202 = vmax.xlane.f32.xlu0 %v3201
        %v3203 = vpop.xlane.xlu0 %3202
        %v3204 = vsel %vm908, %v3042, -inf
        %3205 = vmax.xlane.f32.xlu0 %v3204
        %v3206 = vpop.xlane.xlu0 %3205
        %v3207 = vsel %vm908, %v3100, -inf
        %3208 = vmax.xlane.f32.xlu0 %v3207
        %v3209 = vpop.xlane.xlu0 %3208
        %v3210 = vsel %vm908, %v3103, -inf
        %3211 = vmax.xlane.f32.xlu0 %v3210
        %v3212 = vpop.xlane.xlu0 %3211
        %v3213 = vsel %vm908, %v3108, -inf
        %3214 = vmax.xlane.f32.xlu0 %v3213
        %v3215 = vpop.xlane.xlu0 %3214
        %v3216 = vsel %vm908, %v3111, -inf
        %3217 = vmax.xlane.f32.xlu0 %v3216
        %v3218 = vpop.xlane.xlu0 %3217
        %v3219 = vsel %vm908, %v3169, -inf
        %3220 = vmax.xlane.f32.xlu0 %v3219
        %v3221 = vpop.xlane.xlu0 %3220
        %v3222 = vsel %vm908, %v3172, -inf
        %3223 = vmax.xlane.f32.xlu0 %v3222
        %v3224 = vpop.xlane.xlu0 %3223
        %v3225 = vsel %vm908, %v3177, -inf
        %3226 = vmax.xlane.f32.xlu0 %v3225
        %v3227 = vpop.xlane.xlu0 %3226
        %v3228 = vsel %vm908, %v3180, -inf
        %3229 = vmax.xlane.f32.xlu0 %v3228
        %v3230 = vpop.xlane.xlu0 %3229
        %v3231 = vsub.f32 %v2962, %v3185
        %v3232 = vsub.f32 %v2965, %v3188
        %v3233 = vsub.f32 %v2970, %v3191
        %v3234 = vsub.f32 %v2973, %v3194
        %v3235 = vsub.f32 %v3031, %v3197
        %v3236 = vsub.f32 %v3034, %v3200
        %v3237 = vsub.f32 %v3039, %v3203
        %v3238 = vsub.f32 %v3042, %v3206
        %v3239 = vsub.f32 %v3100, %v3209
        %v3240 = vsub.f32 %v3103, %v3212
        %v3241 = vsub.f32 %v3108, %v3215
        %v3242 = vsub.f32 %v3111, %v3218
        %v3243 = vsub.f32 %v3169, %v3221
        %v3244 = vsub.f32 %v3172, %v3224
        %v3245 = vsub.f32 %v3177, %v3227
        %v3246 = vsub.f32 %v3180, %v3230
        %v3247 = vmul.f32 %v3231, 1.442695
        %v3248 = vpow.pop %v3247
        %v3249 = vmul.f32 %v3232, 1.442695
        %v3250 = vpow.pop %v3249
        %v3251 = vmul.f32 %v3233, 1.442695
        %v3252 = vpow.pop %v3251
        %v3253 = vmul.f32 %v3234, 1.442695
        %v3254 = vpow.pop %v3253
        %v3255 = vmul.f32 %v3235, 1.442695
        %v3256 = vpow.pop %v3255
        %v3257 = vmul.f32 %v3236, 1.442695
        %v3258 = vpow.pop %v3257
        %v3259 = vmul.f32 %v3237, 1.442695
        %v3260 = vpow.pop %v3259
        %v3261 = vmul.f32 %v3238, 1.442695
        %v3262 = vpow.pop %v3261
        %v3263 = vmul.f32 %v3239, 1.442695
        %v3264 = vpow.pop %v3263
        %v3265 = vmul.f32 %v3240, 1.442695
        %v3266 = vpow.pop %v3265
        %v3267 = vmul.f32 %v3241, 1.442695
        %v3268 = vpow.pop %v3267
        %v3269 = vmul.f32 %v3242, 1.442695
        %v3270 = vpow.pop %v3269
        %v3271 = vmul.f32 %v3243, 1.442695
        %v3272 = vpow.pop %v3271
        %v3273 = vmul.f32 %v3244, 1.442695
        %v3274 = vpow.pop %v3273
        %v3275 = vmul.f32 %v3245, 1.442695
        %v3276 = vpow.pop %v3275
        %v3277 = vmul.f32 %v3246, 1.442695
        %v3278 = vpow.pop %v3277
        %v3279 = vsel %vm908, %v3248, 0.0
        %3280 = vadd.xlane.f32.xlu0 %v3279
        %v3281 = vpop.xlane.xlu0 %3280
        %v3282 = vsel %vm908, %v3250, 0.0
        %3283 = vadd.xlane.f32.xlu0 %v3282
        %v3284 = vpop.xlane.xlu0 %3283
        %v3285 = vsel %vm908, %v3252, 0.0
        %3286 = vadd.xlane.f32.xlu0 %v3285
        %v3287 = vpop.xlane.xlu0 %3286
        %v3288 = vsel %vm908, %v3254, 0.0
        %3289 = vadd.xlane.f32.xlu0 %v3288
        %v3290 = vpop.xlane.xlu0 %3289
        %v3291 = vsel %vm908, %v3256, 0.0
        %3292 = vadd.xlane.f32.xlu0 %v3291
        %v3293 = vpop.xlane.xlu0 %3292
        %v3294 = vsel %vm908, %v3258, 0.0
        %3295 = vadd.xlane.f32.xlu0 %v3294
        %v3296 = vpop.xlane.xlu0 %3295
        %v3297 = vsel %vm908, %v3260, 0.0
        %3298 = vadd.xlane.f32.xlu0 %v3297
        %v3299 = vpop.xlane.xlu0 %3298
        %v3300 = vsel %vm908, %v3262, 0.0
        %3301 = vadd.xlane.f32.xlu0 %v3300
        %v3302 = vpop.xlane.xlu0 %3301
        %v3303 = vsel %vm908, %v3264, 0.0
        %3304 = vadd.xlane.f32.xlu0 %v3303
        %v3305 = vpop.xlane.xlu0 %3304
        %v3306 = vsel %vm908, %v3266, 0.0
        %3307 = vadd.xlane.f32.xlu0 %v3306
        %v3308 = vpop.xlane.xlu0 %3307
        %v3309 = vsel %vm908, %v3268, 0.0
        %3310 = vadd.xlane.f32.xlu0 %v3309
        %v3311 = vpop.xlane.xlu0 %3310
        %v3312 = vsel %vm908, %v3270, 0.0
        %3313 = vadd.xlane.f32.xlu0 %v3312
        %v3314 = vpop.xlane.xlu0 %3313
        %v3315 = vsel %vm908, %v3272, 0.0
        %3316 = vadd.xlane.f32.xlu0 %v3315
        %v3317 = vpop.xlane.xlu0 %3316
        %v3318 = vsel %vm908, %v3274, 0.0
        %3319 = vadd.xlane.f32.xlu0 %v3318
        %v3320 = vpop.xlane.xlu0 %3319
        %v3321 = vsel %vm908, %v3276, 0.0
        %3322 = vadd.xlane.f32.xlu0 %v3321
        %v3323 = vpop.xlane.xlu0 %3322
        %v3324 = vsel %vm908, %v3278, 0.0
        %3325 = vadd.xlane.f32.xlu0 %v3324
        %v3326 = vpop.xlane.xlu0 %3325
        %v3327 = vrcp.pop %v3281
        %v3328 = vmul.f32 %v3248, %v3327
        %v3329 = vrcp.pop %v3284
        %v3330 = vmul.f32 %v3250, %v3329
        %v3331 = vrcp.pop %v3287
        %v3332 = vmul.f32 %v3252, %v3331
        %v3333 = vrcp.pop %v3290
        %v3334 = vmul.f32 %v3254, %v3333
        %v3335 = vrcp.pop %v3293
        %v3336 = vmul.f32 %v3256, %v3335
        %v3337 = vrcp.pop %v3296
        %v3338 = vmul.f32 %v3258, %v3337
        %v3339 = vrcp.pop %v3299
        %v3340 = vmul.f32 %v3260, %v3339
        %v3341 = vrcp.pop %v3302
        %v3342 = vmul.f32 %v3262, %v3341
        %v3343 = vrcp.pop %v3305
        %v3344 = vmul.f32 %v3264, %v3343
        %v3345 = vrcp.pop %v3308
        %v3346 = vmul.f32 %v3266, %v3345
        %v3347 = vrcp.pop %v3311
        %v3348 = vmul.f32 %v3268, %v3347
        %v3349 = vrcp.pop %v3314
        %v3350 = vmul.f32 %v3270, %v3349
        %v3351 = vrcp.pop %v3317
        %v3352 = vmul.f32 %v3272, %v3351
        %v3353 = vrcp.pop %v3320
        %v3354 = vmul.f32 %v3274, %v3353
        %v3355 = vrcp.pop %v3323
        %v3356 = vmul.f32 %v3276, %v3355
        %v3357 = vrcp.pop %v3326
        %v3358 = vmul.f32 %v3278, %v3357
        %v3359 = vpack.c.bf16 %v3330, %v3328
        %v3360 = vpack.c.bf16 %v3334, %v3332
        %v3361 = vpack.c.bf16 %v3338, %v3336
        %v3362 = vpack.c.bf16 %v3342, %v3340
        %v3363 = vpack.c.bf16 %v3346, %v3344
        %v3364 = vpack.c.bf16 %v3350, %v3348
        %v3365 = vpack.c.bf16 %v3354, %v3352
        %v3366 = vpack.c.bf16 %v3358, %v3356
        %3367 = vrot.lane.b32.xlu0 %v631, 104
        %v3368 = vpop.permute.xlu0 %3367
        %3369 = vrot.lane.b32.xlu0 %v632, 104
        %v3370 = vpop.permute.xlu0 %3369
        %v3374 = vsel %vm908, %v3359, 0
        %v3377 = vsel %vm908, %v3360, 0
        %3379 = vmatprep.subr.bf16.mxu0 0
        %3380 = vmatpush1.bf16.msra.mxu0 %v3368
        %3381 = vmatprep.subr.bf16.mxu0 0
        %3382 = vmatpush1.bf16.msra.mxu0 %v3370
        %3383 = vmatprep.subr.bf16.mxu0 0
        %3384 = vmatpush1.bf16.msra.mxu0 0
        %3385 = vmatprep.subr.bf16.mxu0 0
        %3386 = vmatpush1.bf16.msra.mxu0 0
        %3387 = vmatprep.subr.bf16.mxu0 0
        %3388 = vmatpush1.bf16.msra.mxu0 0
        %3389 = vmatprep.subr.bf16.mxu0 0
        %3390 = vmatpush1.bf16.msra.mxu0 0
        %3391 = vmatprep.subr.bf16.mxu0 0
        %3392 = vmatpush1.bf16.msra.mxu0 0
        %3393 = vmatprep.subr.bf16.mxu0 0
        %3394 = vmatpush1.bf16.msra.mxu0 0
        %3395 = vmatprep.subr.bf16.mxu0 0
        %3396 = vmatpush1.bf16.msra.mxu0 0
        %3397 = vmatprep.subr.bf16.mxu0 0
        %3398 = vmatpush1.bf16.msra.mxu0 0
        %3399 = vmatprep.subr.bf16.mxu0 0
        %3400 = vmatpush1.bf16.msra.mxu0 0
        %3401 = vmatprep.subr.bf16.mxu0 0
        %3402 = vmatpush1.bf16.msra.mxu0 0
        %3403 = vmatprep.subr.bf16.mxu0 0
        %3404 = vmatpush1.bf16.msra.mxu0 0
        %3405 = vmatprep.subr.bf16.mxu0 0
        %3406 = vmatpush1.bf16.msra.mxu0 0
        %3407 = vmatprep.subr.bf16.mxu0 0
        %3408 = vmatpush1.bf16.msra.mxu0 0
        %3409 = vmatprep.subr.bf16.mxu0 0
        %3410 = vmatpush1.bf16.msra.mxu0 0
        %3411 = vmatprep.mubr.bf16.mxu0 0
        %3412 = vmatmul.mubr.bf16.gmra.mrb[0].mxu0 %v3374
        %v3413 = vpop.f32.mrb[0].mxu0
        %v3414 = vadd.f32 0.0, %v3413
        %v3415 = vpop.f32.mrb[0].mxu0
        %v3416 = vpop.f32.mrb[0].mxu0
        %v3417 = vadd.f32 0.0, %v3416
        %v3418 = vpop.f32.mrb[0].mxu0
        %3419 = vmatprep.mubr.bf16.mxu0 0
        %3420 = vmatmul.mubr.bf16.gmra.mrb[0].mxu0 %v3377
        %v3421 = vpop.f32.mrb[0].mxu0
        %v3422 = vadd.f32 0.0, %v3421
        %v3423 = vpop.f32.mrb[0].mxu0
        %v3424 = vpop.f32.mrb[0].mxu0
        %v3425 = vadd.f32 0.0, %v3424
        %v3426 = vpop.f32.mrb[0].mxu0
        %3427 = vdwg.mxu0
        %3428 = vrot.lane.b32.xlu0 %v633, 104
        %v3429 = vpop.permute.xlu0 %3428
        %3430 = vrot.lane.b32.xlu0 %v634, 104
        %v3431 = vpop.permute.xlu0 %3430
        %v3435 = vsel %vm908, %v3361, 0
        %v3438 = vsel %vm908, %v3362, 0
        %3440 = vmatprep.subr.bf16.mxu0 0
        %3441 = vmatpush1.bf16.msra.mxu0 %v3429
        %3442 = vmatprep.subr.bf16.mxu0 0
        %3443 = vmatpush1.bf16.msra.mxu0 %v3431
        %3444 = vmatprep.subr.bf16.mxu0 0
        %3445 = vmatpush1.bf16.msra.mxu0 0
        %3446 = vmatprep.subr.bf16.mxu0 0
        %3447 = vmatpush1.bf16.msra.mxu0 0
        %3448 = vmatprep.subr.bf16.mxu0 0
        %3449 = vmatpush1.bf16.msra.mxu0 0
        %3450 = vmatprep.subr.bf16.mxu0 0
        %3451 = vmatpush1.bf16.msra.mxu0 0
        %3452 = vmatprep.subr.bf16.mxu0 0
        %3453 = vmatpush1.bf16.msra.mxu0 0
        %3454 = vmatprep.subr.bf16.mxu0 0
        %3455 = vmatpush1.bf16.msra.mxu0 0
        %3456 = vmatprep.subr.bf16.mxu0 0
        %3457 = vmatpush1.bf16.msra.mxu0 0
        %3458 = vmatprep.subr.bf16.mxu0 0
        %3459 = vmatpush1.bf16.msra.mxu0 0
        %3460 = vmatprep.subr.bf16.mxu0 0
        %3461 = vmatpush1.bf16.msra.mxu0 0
        %3462 = vmatprep.subr.bf16.mxu0 0
        %3463 = vmatpush1.bf16.msra.mxu0 0
        %3464 = vmatprep.subr.bf16.mxu0 0
        %3465 = vmatpush1.bf16.msra.mxu0 0
        %3466 = vmatprep.subr.bf16.mxu0 0
        %3467 = vmatpush1.bf16.msra.mxu0 0
        %3468 = vmatprep.subr.bf16.mxu0 0
        %3469 = vmatpush1.bf16.msra.mxu0 0
        %3470 = vmatprep.subr.bf16.mxu0 0
        %3471 = vmatpush1.bf16.msra.mxu0 0
        %3472 = vmatprep.mubr.bf16.mxu0 0
        %3473 = vmatmul.mubr.bf16.gmra.mrb[0].mxu0 %v3435
        %v3474 = vpop.f32.mrb[0].mxu0
        %v3475 = vadd.f32 0.0, %v3474
        %v3476 = vpop.f32.mrb[0].mxu0
        %v3477 = vpop.f32.mrb[0].mxu0
        %v3478 = vadd.f32 0.0, %v3477
        %v3479 = vpop.f32.mrb[0].mxu0
        %3480 = vmatprep.mubr.bf16.mxu0 0
        %3481 = vmatmul.mubr.bf16.gmra.mrb[0].mxu0 %v3438
        %v3482 = vpop.f32.mrb[0].mxu0
        %v3483 = vadd.f32 0.0, %v3482
        %v3484 = vpop.f32.mrb[0].mxu0
        %v3485 = vpop.f32.mrb[0].mxu0
        %v3486 = vadd.f32 0.0, %v3485
        %v3487 = vpop.f32.mrb[0].mxu0
        %3488 = vdwg.mxu0
        %3489 = vrot.lane.b32.xlu0 %v635, 104
        %v3490 = vpop.permute.xlu0 %3489
        %3491 = vrot.lane.b32.xlu0 %v636, 104
        %v3492 = vpop.permute.xlu0 %3491
        %v3496 = vsel %vm908, %v3363, 0
        %v3499 = vsel %vm908, %v3364, 0
        %3501 = vmatprep.subr.bf16.mxu0 0
        %3502 = vmatpush1.bf16.msra.mxu0 %v3490
        %3503 = vmatprep.subr.bf16.mxu0 0
        %3504 = vmatpush1.bf16.msra.mxu0 %v3492
        %3505 = vmatprep.subr.bf16.mxu0 0
        %3506 = vmatpush1.bf16.msra.mxu0 0
        %3507 = vmatprep.subr.bf16.mxu0 0
        %3508 = vmatpush1.bf16.msra.mxu0 0
        %3509 = vmatprep.subr.bf16.mxu0 0
        %3510 = vmatpush1.bf16.msra.mxu0 0
        %3511 = vmatprep.subr.bf16.mxu0 0
        %3512 = vmatpush1.bf16.msra.mxu0 0
        %3513 = vmatprep.subr.bf16.mxu0 0
        %3514 = vmatpush1.bf16.msra.mxu0 0
        %3515 = vmatprep.subr.bf16.mxu0 0
        %3516 = vmatpush1.bf16.msra.mxu0 0
        %3517 = vmatprep.subr.bf16.mxu0 0
        %3518 = vmatpush1.bf16.msra.mxu0 0
        %3519 = vmatprep.subr.bf16.mxu0 0
        %3520 = vmatpush1.bf16.msra.mxu0 0
        %3521 = vmatprep.subr.bf16.mxu0 0
        %3522 = vmatpush1.bf16.msra.mxu0 0
        %3523 = vmatprep.subr.bf16.mxu0 0
        %3524 = vmatpush1.bf16.msra.mxu0 0
        %3525 = vmatprep.subr.bf16.mxu0 0
        %3526 = vmatpush1.bf16.msra.mxu0 0
        %3527 = vmatprep.subr.bf16.mxu0 0
        %3528 = vmatpush1.bf16.msra.mxu0 0
        %3529 = vmatprep.subr.bf16.mxu0 0
        %3530 = vmatpush1.bf16.msra.mxu0 0
        %3531 = vmatprep.subr.bf16.mxu0 0
        %3532 = vmatpush1.bf16.msra.mxu0 0
        %3533 = vmatprep.mubr.bf16.mxu0 0
        %3534 = vmatmul.mubr.bf16.gmra.mrb[0].mxu0 %v3496
        %v3535 = vpop.f32.mrb[0].mxu0
        %v3536 = vadd.f32 0.0, %v3535
        %v3537 = vpop.f32.mrb[0].mxu0
        %v3538 = vpop.f32.mrb[0].mxu0
        %v3539 = vadd.f32 0.0, %v3538
        %v3540 = vpop.f32.mrb[0].mxu0
        %3541 = vmatprep.mubr.bf16.mxu0 0
        %3542 = vmatmul.mubr.bf16.gmra.mrb[0].mxu0 %v3499
        %v3543 = vpop.f32.mrb[0].mxu0
        %v3544 = vadd.f32 0.0, %v3543
        %v3545 = vpop.f32.mrb[0].mxu0
        %v3546 = vpop.f32.mrb[0].mxu0
        %v3547 = vadd.f32 0.0, %v3546
        %v3548 = vpop.f32.mrb[0].mxu0
        %3549 = vdwg.mxu0
        %3550 = vrot.lane.b32.xlu0 %v637, 104
        %v3551 = vpop.permute.xlu0 %3550
        %3552 = vrot.lane.b32.xlu0 %v638, 104
        %v3553 = vpop.permute.xlu0 %3552
        %v3557 = vsel %vm908, %v3365, 0
        %v3560 = vsel %vm908, %v3366, 0
        %3562 = vmatprep.subr.bf16.mxu0 0
        %3563 = vmatpush1.bf16.msra.mxu0 %v3551
        %3564 = vmatprep.subr.bf16.mxu0 0
        %3565 = vmatpush1.bf16.msra.mxu0 %v3553
        %3566 = vmatprep.subr.bf16.mxu0 0
        %3567 = vmatpush1.bf16.msra.mxu0 0
        %3568 = vmatprep.subr.bf16.mxu0 0
        %3569 = vmatpush1.bf16.msra.mxu0 0
        %3570 = vmatprep.subr.bf16.mxu0 0
        %3571 = vmatpush1.bf16.msra.mxu0 0
        %3572 = vmatprep.subr.bf16.mxu0 0
        %3573 = vmatpush1.bf16.msra.mxu0 0
        %3574 = vmatprep.subr.bf16.mxu0 0
        %3575 = vmatpush1.bf16.msra.mxu0 0
        %3576 = vmatprep.subr.bf16.mxu0 0
        %3577 = vmatpush1.bf16.msra.mxu0 0
        %3578 = vmatprep.subr.bf16.mxu0 0
        %3579 = vmatpush1.bf16.msra.mxu0 0
        %3580 = vmatprep.subr.bf16.mxu0 0
        %3581 = vmatpush1.bf16.msra.mxu0 0
        %3582 = vmatprep.subr.bf16.mxu0 0
        %3583 = vmatpush1.bf16.msra.mxu0 0
        %3584 = vmatprep.subr.bf16.mxu0 0
        %3585 = vmatpush1.bf16.msra.mxu0 0
        %3586 = vmatprep.subr.bf16.mxu0 0
        %3587 = vmatpush1.bf16.msra.mxu0 0
        %3588 = vmatprep.subr.bf16.mxu0 0
        %3589 = vmatpush1.bf16.msra.mxu0 0
        %3590 = vmatprep.subr.bf16.mxu0 0
        %3591 = vmatpush1.bf16.msra.mxu0 0
        %3592 = vmatprep.subr.bf16.mxu0 0
        %3593 = vmatpush1.bf16.msra.mxu0 0
        %3594 = vmatprep.mubr.bf16.mxu0 0
        %3595 = vmatmul.mubr.bf16.gmra.mrb[0].mxu0 %v3557
        %v3596 = vpop.f32.mrb[0].mxu0
        %v3597 = vadd.f32 0.0, %v3596
        %v3598 = vpop.f32.mrb[0].mxu0
        %v3599 = vpop.f32.mrb[0].mxu0
        %v3600 = vadd.f32 0.0, %v3599
        %v3601 = vpop.f32.mrb[0].mxu0
        %3602 = vmatprep.mubr.bf16.mxu0 0
        %3603 = vmatmul.mubr.bf16.gmra.mrb[0].mxu0 %v3560
        %v3604 = vpop.f32.mrb[0].mxu0
        %v3605 = vadd.f32 0.0, %v3604
        %v3606 = vpop.f32.mrb[0].mxu0
        %v3607 = vpop.f32.mrb[0].mxu0
        %v3608 = vadd.f32 0.0, %v3607
        %v3609 = vpop.f32.mrb[0].mxu0
        %3610 = vdwg.mxu0
        %3627 = vrot.lane.b32.xlu0 %v3414, 24
        %v3628 = vpop.permute.xlu0 %3627
        %3629 = vrot.lane.b32.xlu0 %v3417, 24
        %v3630 = vpop.permute.xlu0 %3629
        %3631 = vrot.lane.b32.xlu0 %v3422, 24
        %v3632 = vpop.permute.xlu0 %3631
        %3633 = vrot.lane.b32.xlu0 %v3425, 24
        %v3634 = vpop.permute.xlu0 %3633
        %3635 = vrot.lane.b32.xlu0 %v3475, 24
        %v3636 = vpop.permute.xlu0 %3635
        %3637 = vrot.lane.b32.xlu0 %v3478, 24
        %v3638 = vpop.permute.xlu0 %3637
        %3639 = vrot.lane.b32.xlu0 %v3483, 24
        %v3640 = vpop.permute.xlu0 %3639
        %3641 = vrot.lane.b32.xlu0 %v3486, 24
        %v3642 = vpop.permute.xlu0 %3641
        %3643 = vrot.lane.b32.xlu0 %v3536, 24
        %v3644 = vpop.permute.xlu0 %3643
        %3645 = vrot.lane.b32.xlu0 %v3539, 24
        %v3646 = vpop.permute.xlu0 %3645
        %3647 = vrot.lane.b32.xlu0 %v3544, 24
        %v3648 = vpop.permute.xlu0 %3647
        %3649 = vrot.lane.b32.xlu0 %v3547, 24
        %v3650 = vpop.permute.xlu0 %3649
        %3651 = vrot.lane.b32.xlu0 %v3597, 24
        %v3652 = vpop.permute.xlu0 %3651
        %3653 = vrot.lane.b32.xlu0 %v3600, 24
        %v3654 = vpop.permute.xlu0 %3653
        %3655 = vrot.lane.b32.xlu0 %v3605, 24
        %v3656 = vpop.permute.xlu0 %3655
        %3657 = vrot.lane.b32.xlu0 %v3608, 24
        %v3658 = vpop.permute.xlu0 %3657
        %vm3675 = vcmask 261312
        %3676 = vst.msk [vmem:[#allocation2] sm:$0xff] %vm3675, %v3628
        %3677 = vst.msk [vmem:[#allocation2 + $0x8] sm:$0xff] %vm3675, %v3630
        %3678 = vst.msk [vmem:[#allocation2 + $0x10] sm:$0xff] %vm3675, %v3632
        %3679 = vst.msk [vmem:[#allocation2 + $0x18] sm:$0xff] %vm3675, %v3634
        %3680 = vst.msk [vmem:[#allocation2 + $0x20] sm:$0xff] %vm3675, %v3636
        %3681 = vst.msk [vmem:[#allocation2 + $0x28] sm:$0xff] %vm3675, %v3638
        %3682 = vst.msk [vmem:[#allocation2 + $0x30] sm:$0xff] %vm3675, %v3640
        %3683 = vst.msk [vmem:[#allocation2 + $0x38] sm:$0xff] %vm3675, %v3642
        %3684 = vst.msk [vmem:[#allocation2 + $0x40] sm:$0xff] %vm3675, %v3644
        %3685 = vst.msk [vmem:[#allocation2 + $0x48] sm:$0xff] %vm3675, %v3646
        %3686 = vst.msk [vmem:[#allocation2 + $0x50] sm:$0xff] %vm3675, %v3648
        %3687 = vst.msk [vmem:[#allocation2 + $0x58] sm:$0xff] %vm3675, %v3650
        %3688 = vst.msk [vmem:[#allocation2 + $0x60] sm:$0xff] %vm3675, %v3652
        %3689 = vst.msk [vmem:[#allocation2 + $0x68] sm:$0xff] %vm3675, %v3654
        %3690 = vst.msk [vmem:[#allocation2 + $0x70] sm:$0xff] %vm3675, %v3656
        %3691 = vst.msk [vmem:[#allocation2 + $0x78] sm:$0xff] %vm3675, %v3658
        %3692 = vrot.lane.b32.xlu0 %v623, 96
        %v3693 = vpop.permute.xlu0 %3692
        %3694 = vrot.lane.b32.xlu0 %v624, 96
        %v3695 = vpop.permute.xlu0 %3694
        %3696 = vrot.lane.b32.xlu0 %v623, 32
        %v3697 = vpop.permute.xlu0 %3696
        %3698 = vrot.lane.b32.xlu0 %v624, 32
        %v3699 = vpop.permute.xlu0 %3698
        %v3701 = vsel %vm645, %v3693, 0
        %v3704 = vsel %vm645, %v3695, 0
        %v3707 = vsel %vm645, %v3697, 0
        %v3710 = vsel %vm645, %v3699, 0
        %3712 = vmatprep.subr.bf16.mxu0 0
        %3713 = vmatpush1.bf16.xpose.msra.mxu0 %v3707
        %3714 = vmatprep.subr.bf16.mxu0 0
        %3715 = vmatpush1.bf16.xpose.msra.mxu0 %v3710
        %3716 = vmatprep.subr.bf16.mxu0 0
        %3717 = vmatpush1.bf16.xpose.msra.mxu0 0
        %3718 = vmatprep.subr.bf16.mxu0 0
        %3719 = vmatpush1.bf16.xpose.msra.mxu0 0
        %3720 = vmatprep.subr.bf16.mxu0 0
        %3721 = vmatpush1.bf16.xpose.msra.mxu0 0
        %3722 = vmatprep.subr.bf16.mxu0 0
        %3723 = vmatpush1.bf16.xpose.msra.mxu0 0
        %3724 = vmatprep.subr.bf16.mxu0 0
        %3725 = vmatpush1.bf16.xpose.msra.mxu0 0
        %3726 = vmatprep.subr.bf16.mxu0 0
        %3727 = vmatpush1.bf16.xpose.msra.mxu0 0
        %3728 = vmatprep.subr.bf16.mxu0 0
        %3729 = vmatpush1.bf16.xpose.msra.mxu0 0
        %3730 = vmatprep.subr.bf16.mxu0 0
        %3731 = vmatpush1.bf16.xpose.msra.mxu0 0
        %3732 = vmatprep.subr.bf16.mxu0 0
        %3733 = vmatpush1.bf16.xpose.msra.mxu0 0
        %3734 = vmatprep.subr.bf16.mxu0 0
        %3735 = vmatpush1.bf16.xpose.msra.mxu0 0
        %3736 = vmatprep.subr.bf16.mxu0 0
        %3737 = vmatpush1.bf16.xpose.msra.mxu0 0
        %3738 = vmatprep.subr.bf16.mxu0 0
        %3739 = vmatpush1.bf16.xpose.msra.mxu0 0
        %3740 = vmatprep.subr.bf16.mxu0 0
        %3741 = vmatpush1.bf16.xpose.msra.mxu0 0
        %3742 = vmatprep.subr.bf16.mxu0 0
        %3743 = vmatpush1.bf16.xpose.msra.mxu0 0
        %3744 = vmatprep.mubr.bf16.mxu0 0
        %3745 = vmatmul.mubr.bf16.gmra.mrb[0].mxu0 %v3701
        %v3746 = vpop.f32.mrb[0].mxu0
        %v3747 = vadd.f32 0.0, %v3746
        %v3748 = vpop.f32.mrb[0].mxu0
        %v3749 = vpop.f32.mrb[0].mxu0
        %v3750 = vadd.f32 0.0, %v3749
        %v3751 = vpop.f32.mrb[0].mxu0
        %3752 = vmatprep.mubr.bf16.mxu0 0
        %3753 = vmatmul.mubr.bf16.gmra.mrb[0].mxu0 %v3704
        %v3754 = vpop.f32.mrb[0].mxu0
        %v3755 = vadd.f32 0.0, %v3754
        %v3756 = vpop.f32.mrb[0].mxu0
        %v3757 = vpop.f32.mrb[0].mxu0
        %v3758 = vadd.f32 0.0, %v3757
        %v3759 = vpop.f32.mrb[0].mxu0
        %3760 = vdwg.mxu0
        %3761 = vrot.lane.b32.xlu0 %v625, 96
        %v3762 = vpop.permute.xlu0 %3761
        %3763 = vrot.lane.b32.xlu0 %v626, 96
        %v3764 = vpop.permute.xlu0 %3763
        %3765 = vrot.lane.b32.xlu0 %v625, 32
        %v3766 = vpop.permute.xlu0 %3765
        %3767 = vrot.lane.b32.xlu0 %v626, 32
        %v3768 = vpop.permute.xlu0 %3767
        %v3770 = vsel %vm645, %v3762, 0
        %v3773 = vsel %vm645, %v3764, 0
        %v3776 = vsel %vm645, %v3766, 0
        %v3779 = vsel %vm645, %v3768, 0
        %3781 = vmatprep.subr.bf16.mxu0 0
        %3782 = vmatpush1.bf16.xpose.msra.mxu0 %v3776
        %3783 = vmatprep.subr.bf16.mxu0 0
        %3784 = vmatpush1.bf16.xpose.msra.mxu0 %v3779
        %3785 = vmatprep.subr.bf16.mxu0 0
        %3786 = vmatpush1.bf16.xpose.msra.mxu0 0
        %3787 = vmatprep.subr.bf16.mxu0 0
        %3788 = vmatpush1.bf16.xpose.msra.mxu0 0
        %3789 = vmatprep.subr.bf16.mxu0 0
        %3790 = vmatpush1.bf16.xpose.msra.mxu0 0
        %3791 = vmatprep.subr.bf16.mxu0 0
        %3792 = vmatpush1.bf16.xpose.msra.mxu0 0
        %3793 = vmatprep.subr.bf16.mxu0 0
        %3794 = vmatpush1.bf16.xpose.msra.mxu0 0
        %3795 = vmatprep.subr.bf16.mxu0 0
        %3796 = vmatpush1.bf16.xpose.msra.mxu0 0
        %3797 = vmatprep.subr.bf16.mxu0 0
        %3798 = vmatpush1.bf16.xpose.msra.mxu0 0
        %3799 = vmatprep.subr.bf16.mxu0 0
        %3800 = vmatpush1.bf16.xpose.msra.mxu0 0
        %3801 = vmatprep.subr.bf16.mxu0 0
        %3802 = vmatpush1.bf16.xpose.msra.mxu0 0
        %3803 = vmatprep.subr.bf16.mxu0 0
        %3804 = vmatpush1.bf16.xpose.msra.mxu0 0
        %3805 = vmatprep.subr.bf16.mxu0 0
        %3806 = vmatpush1.bf16.xpose.msra.mxu0 0
        %3807 = vmatprep.subr.bf16.mxu0 0
        %3808 = vmatpush1.bf16.xpose.msra.mxu0 0
        %3809 = vmatprep.subr.bf16.mxu0 0
        %3810 = vmatpush1.bf16.xpose.msra.mxu0 0
        %3811 = vmatprep.subr.bf16.mxu0 0
        %3812 = vmatpush1.bf16.xpose.msra.mxu0 0
        %3813 = vmatprep.mubr.bf16.mxu0 0
        %3814 = vmatmul.mubr.bf16.gmra.mrb[0].mxu0 %v3770
        %v3815 = vpop.f32.mrb[0].mxu0
        %v3816 = vadd.f32 0.0, %v3815
        %v3817 = vpop.f32.mrb[0].mxu0
        %v3818 = vpop.f32.mrb[0].mxu0
        %v3819 = vadd.f32 0.0, %v3818
        %v3820 = vpop.f32.mrb[0].mxu0
        %3821 = vmatprep.mubr.bf16.mxu0 0
        %3822 = vmatmul.mubr.bf16.gmra.mrb[0].mxu0 %v3773
        %v3823 = vpop.f32.mrb[0].mxu0
        %v3824 = vadd.f32 0.0, %v3823
        %v3825 = vpop.f32.mrb[0].mxu0
        %v3826 = vpop.f32.mrb[0].mxu0
        %v3827 = vadd.f32 0.0, %v3826
        %v3828 = vpop.f32.mrb[0].mxu0
        %3829 = vdwg.mxu0
        %3830 = vrot.lane.b32.xlu0 %v627, 96
        %v3831 = vpop.permute.xlu0 %3830
        %3832 = vrot.lane.b32.xlu0 %v628, 96
        %v3833 = vpop.permute.xlu0 %3832
        %3834 = vrot.lane.b32.xlu0 %v627, 32
        %v3835 = vpop.permute.xlu0 %3834
        %3836 = vrot.lane.b32.xlu0 %v628, 32
        %v3837 = vpop.permute.xlu0 %3836
        %v3839 = vsel %vm645, %v3831, 0
        %v3842 = vsel %vm645, %v3833, 0
        %v3845 = vsel %vm645, %v3835, 0
        %v3848 = vsel %vm645, %v3837, 0
        %3850 = vmatprep.subr.bf16.mxu0 0
        %3851 = vmatpush1.bf16.xpose.msra.mxu0 %v3845
        %3852 = vmatprep.subr.bf16.mxu0 0
        %3853 = vmatpush1.bf16.xpose.msra.mxu0 %v3848
        %3854 = vmatprep.subr.bf16.mxu0 0
        %3855 = vmatpush1.bf16.xpose.msra.mxu0 0
        %3856 = vmatprep.subr.bf16.mxu0 0
        %3857 = vmatpush1.bf16.xpose.msra.mxu0 0
        %3858 = vmatprep.subr.bf16.mxu0 0
        %3859 = vmatpush1.bf16.xpose.msra.mxu0 0
        %3860 = vmatprep.subr.bf16.mxu0 0
        %3861 = vmatpush1.bf16.xpose.msra.mxu0 0
        %3862 = vmatprep.subr.bf16.mxu0 0
        %3863 = vmatpush1.bf16.xpose.msra.mxu0 0
        %3864 = vmatprep.subr.bf16.mxu0 0
        %3865 = vmatpush1.bf16.xpose.msra.mxu0 0
        %3866 = vmatprep.subr.bf16.mxu0 0
        %3867 = vmatpush1.bf16.xpose.msra.mxu0 0
        %3868 = vmatprep.subr.bf16.mxu0 0
        %3869 = vmatpush1.bf16.xpose.msra.mxu0 0
        %3870 = vmatprep.subr.bf16.mxu0 0
        %3871 = vmatpush1.bf16.xpose.msra.mxu0 0
        %3872 = vmatprep.subr.bf16.mxu0 0
        %3873 = vmatpush1.bf16.xpose.msra.mxu0 0
        %3874 = vmatprep.subr.bf16.mxu0 0
        %3875 = vmatpush1.bf16.xpose.msra.mxu0 0
        %3876 = vmatprep.subr.bf16.mxu0 0
        %3877 = vmatpush1.bf16.xpose.msra.mxu0 0
        %3878 = vmatprep.subr.bf16.mxu0 0
        %3879 = vmatpush1.bf16.xpose.msra.mxu0 0
        %3880 = vmatprep.subr.bf16.mxu0 0
        %3881 = vmatpush1.bf16.xpose.msra.mxu0 0
        %3882 = vmatprep.mubr.bf16.mxu0 0
        %3883 = vmatmul.mubr.bf16.gmra.mrb[0].mxu0 %v3839
        %v3884 = vpop.f32.mrb[0].mxu0
        %v3885 = vadd.f32 0.0, %v3884
        %v3886 = vpop.f32.mrb[0].mxu0
        %v3887 = vpop.f32.mrb[0].mxu0
        %v3888 = vadd.f32 0.0, %v3887
        %v3889 = vpop.f32.mrb[0].mxu0
        %3890 = vmatprep.mubr.bf16.mxu0 0
        %3891 = vmatmul.mubr.bf16.gmra.mrb[0].mxu0 %v3842
        %v3892 = vpop.f32.mrb[0].mxu0
        %v3893 = vadd.f32 0.0, %v3892
        %v3894 = vpop.f32.mrb[0].mxu0
        %v3895 = vpop.f32.mrb[0].mxu0
        %v3896 = vadd.f32 0.0, %v3895
        %v3897 = vpop.f32.mrb[0].mxu0
        %3898 = vdwg.mxu0
        %3899 = vrot.lane.b32.xlu0 %v629, 96
        %v3900 = vpop.permute.xlu0 %3899
        %3901 = vrot.lane.b32.xlu0 %v630, 96
        %v3902 = vpop.permute.xlu0 %3901
        %3903 = vrot.lane.b32.xlu0 %v629, 32
        %v3904 = vpop.permute.xlu0 %3903
        %3905 = vrot.lane.b32.xlu0 %v630, 32
        %v3906 = vpop.permute.xlu0 %3905
        %v3908 = vsel %vm645, %v3900, 0
        %v3911 = vsel %vm645, %v3902, 0
        %v3914 = vsel %vm645, %v3904, 0
        %v3917 = vsel %vm645, %v3906, 0
        %3919 = vmatprep.subr.bf16.mxu0 0
        %3920 = vmatpush1.bf16.xpose.msra.mxu0 %v3914
        %3921 = vmatprep.subr.bf16.mxu0 0
        %3922 = vmatpush1.bf16.xpose.msra.mxu0 %v3917
        %3923 = vmatprep.subr.bf16.mxu0 0
        %3924 = vmatpush1.bf16.xpose.msra.mxu0 0
        %3925 = vmatprep.subr.bf16.mxu0 0
        %3926 = vmatpush1.bf16.xpose.msra.mxu0 0
        %3927 = vmatprep.subr.bf16.mxu0 0
        %3928 = vmatpush1.bf16.xpose.msra.mxu0 0
        %3929 = vmatprep.subr.bf16.mxu0 0
        %3930 = vmatpush1.bf16.xpose.msra.mxu0 0
        %3931 = vmatprep.subr.bf16.mxu0 0
        %3932 = vmatpush1.bf16.xpose.msra.mxu0 0
        %3933 = vmatprep.subr.bf16.mxu0 0
        %3934 = vmatpush1.bf16.xpose.msra.mxu0 0
        %3935 = vmatprep.subr.bf16.mxu0 0
        %3936 = vmatpush1.bf16.xpose.msra.mxu0 0
        %3937 = vmatprep.subr.bf16.mxu0 0
        %3938 = vmatpush1.bf16.xpose.msra.mxu0 0
        %3939 = vmatprep.subr.bf16.mxu0 0
        %3940 = vmatpush1.bf16.xpose.msra.mxu0 0
        %3941 = vmatprep.subr.bf16.mxu0 0
        %3942 = vmatpush1.bf16.xpose.msra.mxu0 0
        %3943 = vmatprep.subr.bf16.mxu0 0
        %3944 = vmatpush1.bf16.xpose.msra.mxu0 0
        %3945 = vmatprep.subr.bf16.mxu0 0
        %3946 = vmatpush1.bf16.xpose.msra.mxu0 0
        %3947 = vmatprep.subr.bf16.mxu0 0
        %3948 = vmatpush1.bf16.xpose.msra.mxu0 0
        %3949 = vmatprep.subr.bf16.mxu0 0
        %3950 = vmatpush1.bf16.xpose.msra.mxu0 0
        %3951 = vmatprep.mubr.bf16.mxu0 0
        %3952 = vmatmul.mubr.bf16.gmra.mrb[0].mxu0 %v3908
        %v3953 = vpop.f32.mrb[0].mxu0
        %v3954 = vadd.f32 0.0, %v3953
        %v3955 = vpop.f32.mrb[0].mxu0
        %v3956 = vpop.f32.mrb[0].mxu0
        %v3957 = vadd.f32 0.0, %v3956
        %v3958 = vpop.f32.mrb[0].mxu0
        %3959 = vmatprep.mubr.bf16.mxu0 0
        %3960 = vmatmul.mubr.bf16.gmra.mrb[0].mxu0 %v3911
        %v3961 = vpop.f32.mrb[0].mxu0
        %v3962 = vadd.f32 0.0, %v3961
        %v3963 = vpop.f32.mrb[0].mxu0
        %v3964 = vpop.f32.mrb[0].mxu0
        %v3965 = vadd.f32 0.0, %v3964
        %v3966 = vpop.f32.mrb[0].mxu0
        %3967 = vdwg.mxu0
        %v3968 = vsel %vm908, %v3747, -inf
        %3969 = vmax.xlane.f32.xlu0 %v3968
        %v3970 = vpop.xlane.xlu0 %3969
        %v3971 = vsel %vm908, %v3750, -inf
        %3972 = vmax.xlane.f32.xlu0 %v3971
        %v3973 = vpop.xlane.xlu0 %3972
        %v3974 = vsel %vm908, %v3755, -inf
        %3975 = vmax.xlane.f32.xlu0 %v3974
        %v3976 = vpop.xlane.xlu0 %3975
        %v3977 = vsel %vm908, %v3758, -inf
        %3978 = vmax.xlane.f32.xlu0 %v3977
        %v3979 = vpop.xlane.xlu0 %3978
        %v3980 = vsel %vm908, %v3816, -inf
        %3981 = vmax.xlane.f32.xlu0 %v3980
        %v3982 = vpop.xlane.xlu0 %3981
        %v3983 = vsel %vm908, %v3819, -inf
        %3984 = vmax.xlane.f32.xlu0 %v3983
        %v3985 = vpop.xlane.xlu0 %3984
        %v3986 = vsel %vm908, %v3824, -inf
        %3987 = vmax.xlane.f32.xlu0 %v3986
        %v3988 = vpop.xlane.xlu0 %3987
        %v3989 = vsel %vm908, %v3827, -inf
        %3990 = vmax.xlane.f32.xlu0 %v3989
        %v3991 = vpop.xlane.xlu0 %3990
        %v3992 = vsel %vm908, %v3885, -inf
        %3993 = vmax.xlane.f32.xlu0 %v3992
        %v3994 = vpop.xlane.xlu0 %3993
        %v3995 = vsel %vm908, %v3888, -inf
        %3996 = vmax.xlane.f32.xlu0 %v3995
        %v3997 = vpop.xlane.xlu0 %3996
        %v3998 = vsel %vm908, %v3893, -inf
        %3999 = vmax.xlane.f32.xlu0 %v3998
        %v4000 = vpop.xlane.xlu0 %3999
        %v4001 = vsel %vm908, %v3896, -inf
        %4002 = vmax.xlane.f32.xlu0 %v4001
        %v4003 = vpop.xlane.xlu0 %4002
        %v4004 = vsel %vm908, %v3954, -inf
        %4005 = vmax.xlane.f32.xlu0 %v4004
        %v4006 = vpop.xlane.xlu0 %4005
        %v4007 = vsel %vm908, %v3957, -inf
        %4008 = vmax.xlane.f32.xlu0 %v4007
        %v4009 = vpop.xlane.xlu0 %4008
        %v4010 = vsel %vm908, %v3962, -inf
        %4011 = vmax.xlane.f32.xlu0 %v4010
        %v4012 = vpop.xlane.xlu0 %4011
        %v4013 = vsel %vm908, %v3965, -inf
        %4014 = vmax.xlane.f32.xlu0 %v4013
        %v4015 = vpop.xlane.xlu0 %4014
        %v4016 = vsub.f32 %v3747, %v3970
        %v4017 = vsub.f32 %v3750, %v3973
        %v4018 = vsub.f32 %v3755, %v3976
        %v4019 = vsub.f32 %v3758, %v3979
        %v4020 = vsub.f32 %v3816, %v3982
        %v4021 = vsub.f32 %v3819, %v3985
        %v4022 = vsub.f32 %v3824, %v3988
        %v4023 = vsub.f32 %v3827, %v3991
        %v4024 = vsub.f32 %v3885, %v3994
        %v4025 = vsub.f32 %v3888, %v3997
        %v4026 = vsub.f32 %v3893, %v4000
        %v4027 = vsub.f32 %v3896, %v4003
        %v4028 = vsub.f32 %v3954, %v4006
        %v4029 = vsub.f32 %v3957, %v4009
        %v4030 = vsub.f32 %v3962, %v4012
        %v4031 = vsub.f32 %v3965, %v4015
        %v4032 = vmul.f32 %v4016, 1.442695
        %v4033 = vpow.pop %v4032
        %v4034 = vmul.f32 %v4017, 1.442695
        %v4035 = vpow.pop %v4034
        %v4036 = vmul.f32 %v4018, 1.442695
        %v4037 = vpow.pop %v4036
        %v4038 = vmul.f32 %v4019, 1.442695
        %v4039 = vpow.pop %v4038
        %v4040 = vmul.f32 %v4020, 1.442695
        %v4041 = vpow.pop %v4040
        %v4042 = vmul.f32 %v4021, 1.442695
        %v4043 = vpow.pop %v4042
        %v4044 = vmul.f32 %v4022, 1.442695
        %v4045 = vpow.pop %v4044
        %v4046 = vmul.f32 %v4023, 1.442695
        %v4047 = vpow.pop %v4046
        %v4048 = vmul.f32 %v4024, 1.442695
        %v4049 = vpow.pop %v4048
        %v4050 = vmul.f32 %v4025, 1.442695
        %v4051 = vpow.pop %v4050
        %v4052 = vmul.f32 %v4026, 1.442695
        %v4053 = vpow.pop %v4052
        %v4054 = vmul.f32 %v4027, 1.442695
        %v4055 = vpow.pop %v4054
        %v4056 = vmul.f32 %v4028, 1.442695
        %v4057 = vpow.pop %v4056
        %v4058 = vmul.f32 %v4029, 1.442695
        %v4059 = vpow.pop %v4058
        %v4060 = vmul.f32 %v4030, 1.442695
        %v4061 = vpow.pop %v4060
        %v4062 = vmul.f32 %v4031, 1.442695
        %v4063 = vpow.pop %v4062
        %v4064 = vsel %vm908, %v4033, 0.0
        %4065 = vadd.xlane.f32.xlu0 %v4064
        %v4066 = vpop.xlane.xlu0 %4065
        %v4067 = vsel %vm908, %v4035, 0.0
        %4068 = vadd.xlane.f32.xlu0 %v4067
        %v4069 = vpop.xlane.xlu0 %4068
        %v4070 = vsel %vm908, %v4037, 0.0
        %4071 = vadd.xlane.f32.xlu0 %v4070
        %v4072 = vpop.xlane.xlu0 %4071
        %v4073 = vsel %vm908, %v4039, 0.0
        %4074 = vadd.xlane.f32.xlu0 %v4073
        %v4075 = vpop.xlane.xlu0 %4074
        %v4076 = vsel %vm908, %v4041, 0.0
        %4077 = vadd.xlane.f32.xlu0 %v4076
        %v4078 = vpop.xlane.xlu0 %4077
        %v4079 = vsel %vm908, %v4043, 0.0
        %4080 = vadd.xlane.f32.xlu0 %v4079
        %v4081 = vpop.xlane.xlu0 %4080
        %v4082 = vsel %vm908, %v4045, 0.0
        %4083 = vadd.xlane.f32.xlu0 %v4082
        %v4084 = vpop.xlane.xlu0 %4083
        %v4085 = vsel %vm908, %v4047, 0.0
        %4086 = vadd.xlane.f32.xlu0 %v4085
        %v4087 = vpop.xlane.xlu0 %4086
        %v4088 = vsel %vm908, %v4049, 0.0
        %4089 = vadd.xlane.f32.xlu0 %v4088
        %v4090 = vpop.xlane.xlu0 %4089
        %v4091 = vsel %vm908, %v4051, 0.0
        %4092 = vadd.xlane.f32.xlu0 %v4091
        %v4093 = vpop.xlane.xlu0 %4092
        %v4094 = vsel %vm908, %v4053, 0.0
        %4095 = vadd.xlane.f32.xlu0 %v4094
        %v4096 = vpop.xlane.xlu0 %4095
        %v4097 = vsel %vm908, %v4055, 0.0
        %4098 = vadd.xlane.f32.xlu0 %v4097
        %v4099 = vpop.xlane.xlu0 %4098
        %v4100 = vsel %vm908, %v4057, 0.0
        %4101 = vadd.xlane.f32.xlu0 %v4100
        %v4102 = vpop.xlane.xlu0 %4101
        %v4103 = vsel %vm908, %v4059, 0.0
        %4104 = vadd.xlane.f32.xlu0 %v4103
        %v4105 = vpop.xlane.xlu0 %4104
        %v4106 = vsel %vm908, %v4061, 0.0
        %4107 = vadd.xlane.f32.xlu0 %v4106
        %v4108 = vpop.xlane.xlu0 %4107
        %v4109 = vsel %vm908, %v4063, 0.0
        %4110 = vadd.xlane.f32.xlu0 %v4109
        %v4111 = vpop.xlane.xlu0 %4110
        %v4112 = vrcp.pop %v4066
        %v4113 = vmul.f32 %v4033, %v4112
        %v4114 = vrcp.pop %v4069
        %v4115 = vmul.f32 %v4035, %v4114
        %v4116 = vrcp.pop %v4072
        %v4117 = vmul.f32 %v4037, %v4116
        %v4118 = vrcp.pop %v4075
        %v4119 = vmul.f32 %v4039, %v4118
        %v4120 = vrcp.pop %v4078
        %v4121 = vmul.f32 %v4041, %v4120
        %v4122 = vrcp.pop %v4081
        %v4123 = vmul.f32 %v4043, %v4122
        %v4124 = vrcp.pop %v4084
        %v4125 = vmul.f32 %v4045, %v4124
        %v4126 = vrcp.pop %v4087
        %v4127 = vmul.f32 %v4047, %v4126
        %v4128 = vrcp.pop %v4090
        %v4129 = vmul.f32 %v4049, %v4128
        %v4130 = vrcp.pop %v4093
        %v4131 = vmul.f32 %v4051, %v4130
        %v4132 = vrcp.pop %v4096
        %v4133 = vmul.f32 %v4053, %v4132
        %v4134 = vrcp.pop %v4099
        %v4135 = vmul.f32 %v4055, %v4134
        %v4136 = vrcp.pop %v4102
        %v4137 = vmul.f32 %v4057, %v4136
        %v4138 = vrcp.pop %v4105
        %v4139 = vmul.f32 %v4059, %v4138
        %v4140 = vrcp.pop %v4108
        %v4141 = vmul.f32 %v4061, %v4140
        %v4142 = vrcp.pop %v4111
        %v4143 = vmul.f32 %v4063, %v4142
        %v4144 = vpack.c.bf16 %v4115, %v4113
        %v4145 = vpack.c.bf16 %v4119, %v4117
        %v4146 = vpack.c.bf16 %v4123, %v4121
        %v4147 = vpack.c.bf16 %v4127, %v4125
        %v4148 = vpack.c.bf16 %v4131, %v4129
        %v4149 = vpack.c.bf16 %v4135, %v4133
        %v4150 = vpack.c.bf16 %v4139, %v4137
        %v4151 = vpack.c.bf16 %v4143, %v4141
        %4152 = vrot.lane.b32.xlu0 %v631, 96
        %v4153 = vpop.permute.xlu0 %4152
        %4154 = vrot.lane.b32.xlu0 %v632, 96
        %v4155 = vpop.permute.xlu0 %4154
        %v4159 = vsel %vm908, %v4144, 0
        %v4162 = vsel %vm908, %v4145, 0
        %4164 = vmatprep.subr.bf16.mxu0 0
        %4165 = vmatpush1.bf16.msra.mxu0 %v4153
        %4166 = vmatprep.subr.bf16.mxu0 0
        %4167 = vmatpush1.bf16.msra.mxu0 %v4155
        %4168 = vmatprep.subr.bf16.mxu0 0
        %4169 = vmatpush1.bf16.msra.mxu0 0
        %4170 = vmatprep.subr.bf16.mxu0 0
        %4171 = vmatpush1.bf16.msra.mxu0 0
        %4172 = vmatprep.subr.bf16.mxu0 0
        %4173 = vmatpush1.bf16.msra.mxu0 0
        %4174 = vmatprep.subr.bf16.mxu0 0
        %4175 = vmatpush1.bf16.msra.mxu0 0
        %4176 = vmatprep.subr.bf16.mxu0 0
        %4177 = vmatpush1.bf16.msra.mxu0 0
        %4178 = vmatprep.subr.bf16.mxu0 0
        %4179 = vmatpush1.bf16.msra.mxu0 0
        %4180 = vmatprep.subr.bf16.mxu0 0
        %4181 = vmatpush1.bf16.msra.mxu0 0
        %4182 = vmatprep.subr.bf16.mxu0 0
        %4183 = vmatpush1.bf16.msra.mxu0 0
        %4184 = vmatprep.subr.bf16.mxu0 0
        %4185 = vmatpush1.bf16.msra.mxu0 0
        %4186 = vmatprep.subr.bf16.mxu0 0
        %4187 = vmatpush1.bf16.msra.mxu0 0
        %4188 = vmatprep.subr.bf16.mxu0 0
        %4189 = vmatpush1.bf16.msra.mxu0 0
        %4190 = vmatprep.subr.bf16.mxu0 0
        %4191 = vmatpush1.bf16.msra.mxu0 0
        %4192 = vmatprep.subr.bf16.mxu0 0
        %4193 = vmatpush1.bf16.msra.mxu0 0
        %4194 = vmatprep.subr.bf16.mxu0 0
        %4195 = vmatpush1.bf16.msra.mxu0 0
        %4196 = vmatprep.mubr.bf16.mxu0 0
        %4197 = vmatmul.mubr.bf16.gmra.mrb[0].mxu0 %v4159
        %v4198 = vpop.f32.mrb[0].mxu0
        %v4199 = vadd.f32 0.0, %v4198
        %v4200 = vpop.f32.mrb[0].mxu0
        %v4201 = vpop.f32.mrb[0].mxu0
        %v4202 = vadd.f32 0.0, %v4201
        %v4203 = vpop.f32.mrb[0].mxu0
        %4204 = vmatprep.mubr.bf16.mxu0 0
        %4205 = vmatmul.mubr.bf16.gmra.mrb[0].mxu0 %v4162
        %v4206 = vpop.f32.mrb[0].mxu0
        %v4207 = vadd.f32 0.0, %v4206
        %v4208 = vpop.f32.mrb[0].mxu0
        %v4209 = vpop.f32.mrb[0].mxu0
        %v4210 = vadd.f32 0.0, %v4209
        %v4211 = vpop.f32.mrb[0].mxu0
        %4212 = vdwg.mxu0
        %4213 = vrot.lane.b32.xlu0 %v633, 96
        %v4214 = vpop.permute.xlu0 %4213
        %4215 = vrot.lane.b32.xlu0 %v634, 96
        %v4216 = vpop.permute.xlu0 %4215
        %v4220 = vsel %vm908, %v4146, 0
        %v4223 = vsel %vm908, %v4147, 0
        %4225 = vmatprep.subr.bf16.mxu0 0
        %4226 = vmatpush1.bf16.msra.mxu0 %v4214
        %4227 = vmatprep.subr.bf16.mxu0 0
        %4228 = vmatpush1.bf16.msra.mxu0 %v4216
        %4229 = vmatprep.subr.bf16.mxu0 0
        %4230 = vmatpush1.bf16.msra.mxu0 0
        %4231 = vmatprep.subr.bf16.mxu0 0
        %4232 = vmatpush1.bf16.msra.mxu0 0
        %4233 = vmatprep.subr.bf16.mxu0 0
        %4234 = vmatpush1.bf16.msra.mxu0 0
        %4235 = vmatprep.subr.bf16.mxu0 0
        %4236 = vmatpush1.bf16.msra.mxu0 0
        %4237 = vmatprep.subr.bf16.mxu0 0
        %4238 = vmatpush1.bf16.msra.mxu0 0
        %4239 = vmatprep.subr.bf16.mxu0 0
        %4240 = vmatpush1.bf16.msra.mxu0 0
        %4241 = vmatprep.subr.bf16.mxu0 0
        %4242 = vmatpush1.bf16.msra.mxu0 0
        %4243 = vmatprep.subr.bf16.mxu0 0
        %4244 = vmatpush1.bf16.msra.mxu0 0
        %4245 = vmatprep.subr.bf16.mxu0 0
        %4246 = vmatpush1.bf16.msra.mxu0 0
        %4247 = vmatprep.subr.bf16.mxu0 0
        %4248 = vmatpush1.bf16.msra.mxu0 0
        %4249 = vmatprep.subr.bf16.mxu0 0
        %4250 = vmatpush1.bf16.msra.mxu0 0
        %4251 = vmatprep.subr.bf16.mxu0 0
        %4252 = vmatpush1.bf16.msra.mxu0 0
        %4253 = vmatprep.subr.bf16.mxu0 0
        %4254 = vmatpush1.bf16.msra.mxu0 0
        %4255 = vmatprep.subr.bf16.mxu0 0
        %4256 = vmatpush1.bf16.msra.mxu0 0
        %4257 = vmatprep.mubr.bf16.mxu0 0
        %4258 = vmatmul.mubr.bf16.gmra.mrb[0].mxu0 %v4220
        %v4259 = vpop.f32.mrb[0].mxu0
        %v4260 = vadd.f32 0.0, %v4259
        %v4261 = vpop.f32.mrb[0].mxu0
        %v4262 = vpop.f32.mrb[0].mxu0
        %v4263 = vadd.f32 0.0, %v4262
        %v4264 = vpop.f32.mrb[0].mxu0
        %4265 = vmatprep.mubr.bf16.mxu0 0
        %4266 = vmatmul.mubr.bf16.gmra.mrb[0].mxu0 %v4223
        %v4267 = vpop.f32.mrb[0].mxu0
        %v4268 = vadd.f32 0.0, %v4267
        %v4269 = vpop.f32.mrb[0].mxu0
        %v4270 = vpop.f32.mrb[0].mxu0
        %v4271 = vadd.f32 0.0, %v4270
        %v4272 = vpop.f32.mrb[0].mxu0
        %4273 = vdwg.mxu0
        %4274 = vrot.lane.b32.xlu0 %v635, 96
        %v4275 = vpop.permute.xlu0 %4274
        %4276 = vrot.lane.b32.xlu0 %v636, 96
        %v4277 = vpop.permute.xlu0 %4276
        %v4281 = vsel %vm908, %v4148, 0
        %v4284 = vsel %vm908, %v4149, 0
        %4286 = vmatprep.subr.bf16.mxu0 0
        %4287 = vmatpush1.bf16.msra.mxu0 %v4275
        %4288 = vmatprep.subr.bf16.mxu0 0
        %4289 = vmatpush1.bf16.msra.mxu0 %v4277
        %4290 = vmatprep.subr.bf16.mxu0 0
        %4291 = vmatpush1.bf16.msra.mxu0 0
        %4292 = vmatprep.subr.bf16.mxu0 0
        %4293 = vmatpush1.bf16.msra.mxu0 0
        %4294 = vmatprep.subr.bf16.mxu0 0
        %4295 = vmatpush1.bf16.msra.mxu0 0
        %4296 = vmatprep.subr.bf16.mxu0 0
        %4297 = vmatpush1.bf16.msra.mxu0 0
        %4298 = vmatprep.subr.bf16.mxu0 0
        %4299 = vmatpush1.bf16.msra.mxu0 0
        %4300 = vmatprep.subr.bf16.mxu0 0
        %4301 = vmatpush1.bf16.msra.mxu0 0
        %4302 = vmatprep.subr.bf16.mxu0 0
        %4303 = vmatpush1.bf16.msra.mxu0 0
        %4304 = vmatprep.subr.bf16.mxu0 0
        %4305 = vmatpush1.bf16.msra.mxu0 0
        %4306 = vmatprep.subr.bf16.mxu0 0
        %4307 = vmatpush1.bf16.msra.mxu0 0
        %4308 = vmatprep.subr.bf16.mxu0 0
        %4309 = vmatpush1.bf16.msra.mxu0 0
        %4310 = vmatprep.subr.bf16.mxu0 0
        %4311 = vmatpush1.bf16.msra.mxu0 0
        %4312 = vmatprep.subr.bf16.mxu0 0
        %4313 = vmatpush1.bf16.msra.mxu0 0
        %4314 = vmatprep.subr.bf16.mxu0 0
        %4315 = vmatpush1.bf16.msra.mxu0 0
        %4316 = vmatprep.subr.bf16.mxu0 0
        %4317 = vmatpush1.bf16.msra.mxu0 0
        %4318 = vmatprep.mubr.bf16.mxu0 0
        %4319 = vmatmul.mubr.bf16.gmra.mrb[0].mxu0 %v4281
        %v4320 = vpop.f32.mrb[0].mxu0
        %v4321 = vadd.f32 0.0, %v4320
        %v4322 = vpop.f32.mrb[0].mxu0
        %v4323 = vpop.f32.mrb[0].mxu0
        %v4324 = vadd.f32 0.0, %v4323
        %v4325 = vpop.f32.mrb[0].mxu0
        %4326 = vmatprep.mubr.bf16.mxu0 0
        %4327 = vmatmul.mubr.bf16.gmra.mrb[0].mxu0 %v4284
        %v4328 = vpop.f32.mrb[0].mxu0
        %v4329 = vadd.f32 0.0, %v4328
        %v4330 = vpop.f32.mrb[0].mxu0
        %v4331 = vpop.f32.mrb[0].mxu0
        %v4332 = vadd.f32 0.0, %v4331
        %v4333 = vpop.f32.mrb[0].mxu0
        %4334 = vdwg.mxu0
        %4335 = vrot.lane.b32.xlu0 %v637, 96
        %v4336 = vpop.permute.xlu0 %4335
        %4337 = vrot.lane.b32.xlu0 %v638, 96
        %v4338 = vpop.permute.xlu0 %4337
        %v4342 = vsel %vm908, %v4150, 0
        %v4345 = vsel %vm908, %v4151, 0
        %4347 = vmatprep.subr.bf16.mxu0 0
        %4348 = vmatpush1.bf16.msra.mxu0 %v4336
        %4349 = vmatprep.subr.bf16.mxu0 0
        %4350 = vmatpush1.bf16.msra.mxu0 %v4338
        %4351 = vmatprep.subr.bf16.mxu0 0
        %4352 = vmatpush1.bf16.msra.mxu0 0
        %4353 = vmatprep.subr.bf16.mxu0 0
        %4354 = vmatpush1.bf16.msra.mxu0 0
        %4355 = vmatprep.subr.bf16.mxu0 0
        %4356 = vmatpush1.bf16.msra.mxu0 0
        %4357 = vmatprep.subr.bf16.mxu0 0
        %4358 = vmatpush1.bf16.msra.mxu0 0
        %4359 = vmatprep.subr.bf16.mxu0 0
        %4360 = vmatpush1.bf16.msra.mxu0 0
        %4361 = vmatprep.subr.bf16.mxu0 0
        %4362 = vmatpush1.bf16.msra.mxu0 0
        %4363 = vmatprep.subr.bf16.mxu0 0
        %4364 = vmatpush1.bf16.msra.mxu0 0
        %4365 = vmatprep.subr.bf16.mxu0 0
        %4366 = vmatpush1.bf16.msra.mxu0 0
        %4367 = vmatprep.subr.bf16.mxu0 0
        %4368 = vmatpush1.bf16.msra.mxu0 0
        %4369 = vmatprep.subr.bf16.mxu0 0
        %4370 = vmatpush1.bf16.msra.mxu0 0
        %4371 = vmatprep.subr.bf16.mxu0 0
        %4372 = vmatpush1.bf16.msra.mxu0 0
        %4373 = vmatprep.subr.bf16.mxu0 0
        %4374 = vmatpush1.bf16.msra.mxu0 0
        %4375 = vmatprep.subr.bf16.mxu0 0
        %4376 = vmatpush1.bf16.msra.mxu0 0
        %4377 = vmatprep.subr.bf16.mxu0 0
        %4378 = vmatpush1.bf16.msra.mxu0 0
        %4379 = vmatprep.mubr.bf16.mxu0 0
        %4380 = vmatmul.mubr.bf16.gmra.mrb[0].mxu0 %v4342
        %v4381 = vpop.f32.mrb[0].mxu0
        %v4382 = vadd.f32 0.0, %v4381
        %v4383 = vpop.f32.mrb[0].mxu0
        %v4384 = vpop.f32.mrb[0].mxu0
        %v4385 = vadd.f32 0.0, %v4384
        %v4386 = vpop.f32.mrb[0].mxu0
        %4387 = vmatprep.mubr.bf16.mxu0 0
        %4388 = vmatmul.mubr.bf16.gmra.mrb[0].mxu0 %v4345
        %v4389 = vpop.f32.mrb[0].mxu0
        %v4390 = vadd.f32 0.0, %v4389
        %v4391 = vpop.f32.mrb[0].mxu0
        %v4392 = vpop.f32.mrb[0].mxu0
        %v4393 = vadd.f32 0.0, %v4392
        %v4394 = vpop.f32.mrb[0].mxu0
        %4395 = vdwg.mxu0
        %4412 = vrot.lane.b32.xlu0 %v4199, 32
        %v4413 = vpop.permute.xlu0 %4412
        %4414 = vrot.lane.b32.xlu0 %v4202, 32
        %v4415 = vpop.permute.xlu0 %4414
        %4416 = vrot.lane.b32.xlu0 %v4207, 32
        %v4417 = vpop.permute.xlu0 %4416
        %4418 = vrot.lane.b32.xlu0 %v4210, 32
        %v4419 = vpop.permute.xlu0 %4418
        %4420 = vrot.lane.b32.xlu0 %v4260, 32
        %v4421 = vpop.permute.xlu0 %4420
        %4422 = vrot.lane.b32.xlu0 %v4263, 32
        %v4423 = vpop.permute.xlu0 %4422
        %4424 = vrot.lane.b32.xlu0 %v4268, 32
        %v4425 = vpop.permute.xlu0 %4424
        %4426 = vrot.lane.b32.xlu0 %v4271, 32
        %v4427 = vpop.permute.xlu0 %4426
        %4428 = vrot.lane.b32.xlu0 %v4321, 32
        %v4429 = vpop.permute.xlu0 %4428
        %4430 = vrot.lane.b32.xlu0 %v4324, 32
        %v4431 = vpop.permute.xlu0 %4430
        %4432 = vrot.lane.b32.xlu0 %v4329, 32
        %v4433 = vpop.permute.xlu0 %4432
        %4434 = vrot.lane.b32.xlu0 %v4332, 32
        %v4435 = vpop.permute.xlu0 %4434
        %4436 = vrot.lane.b32.xlu0 %v4382, 32
        %v4437 = vpop.permute.xlu0 %4436
        %4438 = vrot.lane.b32.xlu0 %v4385, 32
        %v4439 = vpop.permute.xlu0 %4438
        %4440 = vrot.lane.b32.xlu0 %v4390, 32
        %v4441 = vpop.permute.xlu0 %4440
        %4442 = vrot.lane.b32.xlu0 %v4393, 32
        %v4443 = vpop.permute.xlu0 %4442
        %vm4460 = vcmask 326912
        %4461 = vst.msk [vmem:[#allocation2] sm:$0xff] %vm4460, %v4413
        %4462 = vst.msk [vmem:[#allocation2 + $0x8] sm:$0xff] %vm4460, %v4415
        %4463 = vst.msk [vmem:[#allocation2 + $0x10] sm:$0xff] %vm4460, %v4417
        %4464 = vst.msk [vmem:[#allocation2 + $0x18] sm:$0xff] %vm4460, %v4419
        %4465 = vst.msk [vmem:[#allocation2 + $0x20] sm:$0xff] %vm4460, %v4421
        %4466 = vst.msk [vmem:[#allocation2 + $0x28] sm:$0xff] %vm4460, %v4423
        %4467 = vst.msk [vmem:[#allocation2 + $0x30] sm:$0xff] %vm4460, %v4425
        %4468 = vst.msk [vmem:[#allocation2 + $0x38] sm:$0xff] %vm4460, %v4427
        %4469 = vst.msk [vmem:[#allocation2 + $0x40] sm:$0xff] %vm4460, %v4429
        %4470 = vst.msk [vmem:[#allocation2 + $0x48] sm:$0xff] %vm4460, %v4431
        %4471 = vst.msk [vmem:[#allocation2 + $0x50] sm:$0xff] %vm4460, %v4433
        %4472 = vst.msk [vmem:[#allocation2 + $0x58] sm:$0xff] %vm4460, %v4435
        %4473 = vst.msk [vmem:[#allocation2 + $0x60] sm:$0xff] %vm4460, %v4437
        %4474 = vst.msk [vmem:[#allocation2 + $0x68] sm:$0xff] %vm4460, %v4439
        %4475 = vst.msk [vmem:[#allocation2 + $0x70] sm:$0xff] %vm4460, %v4441
        %4476 = vst.msk [vmem:[#allocation2 + $0x78] sm:$0xff] %vm4460, %v4443
        %4477 = vrot.lane.b32.xlu0 %v623, 88
        %v4478 = vpop.permute.xlu0 %4477
        %4479 = vrot.lane.b32.xlu0 %v624, 88
        %v4480 = vpop.permute.xlu0 %4479
        %4481 = vrot.lane.b32.xlu0 %v623, 24
        %v4482 = vpop.permute.xlu0 %4481
        %4483 = vrot.lane.b32.xlu0 %v624, 24
        %v4484 = vpop.permute.xlu0 %4483
        %v4486 = vsel %vm645, %v4478, 0
        %v4489 = vsel %vm645, %v4480, 0
        %v4492 = vsel %vm645, %v4482, 0
        %v4495 = vsel %vm645, %v4484, 0
        %4497 = vmatprep.subr.bf16.mxu0 0
        %4498 = vmatpush1.bf16.xpose.msra.mxu0 %v4492
        %4499 = vmatprep.subr.bf16.mxu0 0
        %4500 = vmatpush1.bf16.xpose.msra.mxu0 %v4495
        %4501 = vmatprep.subr.bf16.mxu0 0
        %4502 = vmatpush1.bf16.xpose.msra.mxu0 0
        %4503 = vmatprep.subr.bf16.mxu0 0
        %4504 = vmatpush1.bf16.xpose.msra.mxu0 0
        %4505 = vmatprep.subr.bf16.mxu0 0
        %4506 = vmatpush1.bf16.xpose.msra.mxu0 0
        %4507 = vmatprep.subr.bf16.mxu0 0
        %4508 = vmatpush1.bf16.xpose.msra.mxu0 0
        %4509 = vmatprep.subr.bf16.mxu0 0
        %4510 = vmatpush1.bf16.xpose.msra.mxu0 0
        %4511 = vmatprep.subr.bf16.mxu0 0
        %4512 = vmatpush1.bf16.xpose.msra.mxu0 0
        %4513 = vmatprep.subr.bf16.mxu0 0
        %4514 = vmatpush1.bf16.xpose.msra.mxu0 0
        %4515 = vmatprep.subr.bf16.mxu0 0
        %4516 = vmatpush1.bf16.xpose.msra.mxu0 0
        %4517 = vmatprep.subr.bf16.mxu0 0
        %4518 = vmatpush1.bf16.xpose.msra.mxu0 0
        %4519 = vmatprep.subr.bf16.mxu0 0
        %4520 = vmatpush1.bf16.xpose.msra.mxu0 0
        %4521 = vmatprep.subr.bf16.mxu0 0
        %4522 = vmatpush1.bf16.xpose.msra.mxu0 0
        %4523 = vmatprep.subr.bf16.mxu0 0
        %4524 = vmatpush1.bf16.xpose.msra.mxu0 0
        %4525 = vmatprep.subr.bf16.mxu0 0
        %4526 = vmatpush1.bf16.xpose.msra.mxu0 0
        %4527 = vmatprep.subr.bf16.mxu0 0
        %4528 = vmatpush1.bf16.xpose.msra.mxu0 0
        %4529 = vmatprep.mubr.bf16.mxu0 0
        %4530 = vmatmul.mubr.bf16.gmra.mrb[0].mxu0 %v4486
        %v4531 = vpop.f32.mrb[0].mxu0
        %v4532 = vadd.f32 0.0, %v4531
        %v4533 = vpop.f32.mrb[0].mxu0
        %v4534 = vpop.f32.mrb[0].mxu0
        %v4535 = vadd.f32 0.0, %v4534
        %v4536 = vpop.f32.mrb[0].mxu0
        %4537 = vmatprep.mubr.bf16.mxu0 0
        %4538 = vmatmul.mubr.bf16.gmra.mrb[0].mxu0 %v4489
        %v4539 = vpop.f32.mrb[0].mxu0
        %v4540 = vadd.f32 0.0, %v4539
        %v4541 = vpop.f32.mrb[0].mxu0
        %v4542 = vpop.f32.mrb[0].mxu0
        %v4543 = vadd.f32 0.0, %v4542
        %v4544 = vpop.f32.mrb[0].mxu0
        %4545 = vdwg.mxu0
        %4546 = vrot.lane.b32.xlu0 %v625, 88
        %v4547 = vpop.permute.xlu0 %4546
        %4548 = vrot.lane.b32.xlu0 %v626, 88
        %v4549 = vpop.permute.xlu0 %4548
        %4550 = vrot.lane.b32.xlu0 %v625, 24
        %v4551 = vpop.permute.xlu0 %4550
        %4552 = vrot.lane.b32.xlu0 %v626, 24
        %v4553 = vpop.permute.xlu0 %4552
        %v4555 = vsel %vm645, %v4547, 0
        %v4558 = vsel %vm645, %v4549, 0
        %v4561 = vsel %vm645, %v4551, 0
        %v4564 = vsel %vm645, %v4553, 0
        %4566 = vmatprep.subr.bf16.mxu0 0
        %4567 = vmatpush1.bf16.xpose.msra.mxu0 %v4561
        %4568 = vmatprep.subr.bf16.mxu0 0
        %4569 = vmatpush1.bf16.xpose.msra.mxu0 %v4564
        %4570 = vmatprep.subr.bf16.mxu0 0
        %4571 = vmatpush1.bf16.xpose.msra.mxu0 0
        %4572 = vmatprep.subr.bf16.mxu0 0
        %4573 = vmatpush1.bf16.xpose.msra.mxu0 0
        %4574 = vmatprep.subr.bf16.mxu0 0
        %4575 = vmatpush1.bf16.xpose.msra.mxu0 0
        %4576 = vmatprep.subr.bf16.mxu0 0
        %4577 = vmatpush1.bf16.xpose.msra.mxu0 0
        %4578 = vmatprep.subr.bf16.mxu0 0
        %4579 = vmatpush1.bf16.xpose.msra.mxu0 0
        %4580 = vmatprep.subr.bf16.mxu0 0
        %4581 = vmatpush1.bf16.xpose.msra.mxu0 0
        %4582 = vmatprep.subr.bf16.mxu0 0
        %4583 = vmatpush1.bf16.xpose.msra.mxu0 0
        %4584 = vmatprep.subr.bf16.mxu0 0
        %4585 = vmatpush1.bf16.xpose.msra.mxu0 0
        %4586 = vmatprep.subr.bf16.mxu0 0
        %4587 = vmatpush1.bf16.xpose.msra.mxu0 0
        %4588 = vmatprep.subr.bf16.mxu0 0
        %4589 = vmatpush1.bf16.xpose.msra.mxu0 0
        %4590 = vmatprep.subr.bf16.mxu0 0
        %4591 = vmatpush1.bf16.xpose.msra.mxu0 0
        %4592 = vmatprep.subr.bf16.mxu0 0
        %4593 = vmatpush1.bf16.xpose.msra.mxu0 0
        %4594 = vmatprep.subr.bf16.mxu0 0
        %4595 = vmatpush1.bf16.xpose.msra.mxu0 0
        %4596 = vmatprep.subr.bf16.mxu0 0
        %4597 = vmatpush1.bf16.xpose.msra.mxu0 0
        %4598 = vmatprep.mubr.bf16.mxu0 0
        %4599 = vmatmul.mubr.bf16.gmra.mrb[0].mxu0 %v4555
        %v4600 = vpop.f32.mrb[0].mxu0
        %v4601 = vadd.f32 0.0, %v4600
        %v4602 = vpop.f32.mrb[0].mxu0
        %v4603 = vpop.f32.mrb[0].mxu0
        %v4604 = vadd.f32 0.0, %v4603
        %v4605 = vpop.f32.mrb[0].mxu0
        %4606 = vmatprep.mubr.bf16.mxu0 0
        %4607 = vmatmul.mubr.bf16.gmra.mrb[0].mxu0 %v4558
        %v4608 = vpop.f32.mrb[0].mxu0
        %v4609 = vadd.f32 0.0, %v4608
        %v4610 = vpop.f32.mrb[0].mxu0
        %v4611 = vpop.f32.mrb[0].mxu0
        %v4612 = vadd.f32 0.0, %v4611
        %v4613 = vpop.f32.mrb[0].mxu0
        %4614 = vdwg.mxu0
        %4615 = vrot.lane.b32.xlu0 %v627, 88
        %v4616 = vpop.permute.xlu0 %4615
        %4617 = vrot.lane.b32.xlu0 %v628, 88
        %v4618 = vpop.permute.xlu0 %4617
        %4619 = vrot.lane.b32.xlu0 %v627, 24
        %v4620 = vpop.permute.xlu0 %4619
        %4621 = vrot.lane.b32.xlu0 %v628, 24
        %v4622 = vpop.permute.xlu0 %4621
        %v4624 = vsel %vm645, %v4616, 0
        %v4627 = vsel %vm645, %v4618, 0
        %v4630 = vsel %vm645, %v4620, 0
        %v4633 = vsel %vm645, %v4622, 0
        %4635 = vmatprep.subr.bf16.mxu0 0
        %4636 = vmatpush1.bf16.xpose.msra.mxu0 %v4630
        %4637 = vmatprep.subr.bf16.mxu0 0
        %4638 = vmatpush1.bf16.xpose.msra.mxu0 %v4633
        %4639 = vmatprep.subr.bf16.mxu0 0
        %4640 = vmatpush1.bf16.xpose.msra.mxu0 0
        %4641 = vmatprep.subr.bf16.mxu0 0
        %4642 = vmatpush1.bf16.xpose.msra.mxu0 0
        %4643 = vmatprep.subr.bf16.mxu0 0
        %4644 = vmatpush1.bf16.xpose.msra.mxu0 0
        %4645 = vmatprep.subr.bf16.mxu0 0
        %4646 = vmatpush1.bf16.xpose.msra.mxu0 0
        %4647 = vmatprep.subr.bf16.mxu0 0
        %4648 = vmatpush1.bf16.xpose.msra.mxu0 0
        %4649 = vmatprep.subr.bf16.mxu0 0
        %4650 = vmatpush1.bf16.xpose.msra.mxu0 0
        %4651 = vmatprep.subr.bf16.mxu0 0
        %4652 = vmatpush1.bf16.xpose.msra.mxu0 0
        %4653 = vmatprep.subr.bf16.mxu0 0
        %4654 = vmatpush1.bf16.xpose.msra.mxu0 0
        %4655 = vmatprep.subr.bf16.mxu0 0
        %4656 = vmatpush1.bf16.xpose.msra.mxu0 0
        %4657 = vmatprep.subr.bf16.mxu0 0
        %4658 = vmatpush1.bf16.xpose.msra.mxu0 0
        %4659 = vmatprep.subr.bf16.mxu0 0
        %4660 = vmatpush1.bf16.xpose.msra.mxu0 0
        %4661 = vmatprep.subr.bf16.mxu0 0
        %4662 = vmatpush1.bf16.xpose.msra.mxu0 0
        %4663 = vmatprep.subr.bf16.mxu0 0
        %4664 = vmatpush1.bf16.xpose.msra.mxu0 0
        %4665 = vmatprep.subr.bf16.mxu0 0
        %4666 = vmatpush1.bf16.xpose.msra.mxu0 0
        %4667 = vmatprep.mubr.bf16.mxu0 0
        %4668 = vmatmul.mubr.bf16.gmra.mrb[0].mxu0 %v4624
        %v4669 = vpop.f32.mrb[0].mxu0
        %v4670 = vadd.f32 0.0, %v4669
        %v4671 = vpop.f32.mrb[0].mxu0
        %v4672 = vpop.f32.mrb[0].mxu0
        %v4673 = vadd.f32 0.0, %v4672
        %v4674 = vpop.f32.mrb[0].mxu0
        %4675 = vmatprep.mubr.bf16.mxu0 0
        %4676 = vmatmul.mubr.bf16.gmra.mrb[0].mxu0 %v4627
        %v4677 = vpop.f32.mrb[0].mxu0
        %v4678 = vadd.f32 0.0, %v4677
        %v4679 = vpop.f32.mrb[0].mxu0
        %v4680 = vpop.f32.mrb[0].mxu0
        %v4681 = vadd.f32 0.0, %v4680
        %v4682 = vpop.f32.mrb[0].mxu0
        %4683 = vdwg.mxu0
        %4684 = vrot.lane.b32.xlu0 %v629, 88
        %v4685 = vpop.permute.xlu0 %4684
        %4686 = vrot.lane.b32.xlu0 %v630, 88
        %v4687 = vpop.permute.xlu0 %4686
        %4688 = vrot.lane.b32.xlu0 %v629, 24
        %v4689 = vpop.permute.xlu0 %4688
        %4690 = vrot.lane.b32.xlu0 %v630, 24
        %v4691 = vpop.permute.xlu0 %4690
        %v4693 = vsel %vm645, %v4685, 0
        %v4696 = vsel %vm645, %v4687, 0
        %v4699 = vsel %vm645, %v4689, 0
        %v4702 = vsel %vm645, %v4691, 0
        %4704 = vmatprep.subr.bf16.mxu0 0
        %4705 = vmatpush1.bf16.xpose.msra.mxu0 %v4699
        %4706 = vmatprep.subr.bf16.mxu0 0
        %4707 = vmatpush1.bf16.xpose.msra.mxu0 %v4702
        %4708 = vmatprep.subr.bf16.mxu0 0
        %4709 = vmatpush1.bf16.xpose.msra.mxu0 0
        %4710 = vmatprep.subr.bf16.mxu0 0
        %4711 = vmatpush1.bf16.xpose.msra.mxu0 0
        %4712 = vmatprep.subr.bf16.mxu0 0
        %4713 = vmatpush1.bf16.xpose.msra.mxu0 0
        %4714 = vmatprep.subr.bf16.mxu0 0
        %4715 = vmatpush1.bf16.xpose.msra.mxu0 0
        %4716 = vmatprep.subr.bf16.mxu0 0
        %4717 = vmatpush1.bf16.xpose.msra.mxu0 0
        %4718 = vmatprep.subr.bf16.mxu0 0
        %4719 = vmatpush1.bf16.xpose.msra.mxu0 0
        %4720 = vmatprep.subr.bf16.mxu0 0
        %4721 = vmatpush1.bf16.xpose.msra.mxu0 0
        %4722 = vmatprep.subr.bf16.mxu0 0
        %4723 = vmatpush1.bf16.xpose.msra.mxu0 0
        %4724 = vmatprep.subr.bf16.mxu0 0
        %4725 = vmatpush1.bf16.xpose.msra.mxu0 0
        %4726 = vmatprep.subr.bf16.mxu0 0
        %4727 = vmatpush1.bf16.xpose.msra.mxu0 0
        %4728 = vmatprep.subr.bf16.mxu0 0
        %4729 = vmatpush1.bf16.xpose.msra.mxu0 0
        %4730 = vmatprep.subr.bf16.mxu0 0
        %4731 = vmatpush1.bf16.xpose.msra.mxu0 0
        %4732 = vmatprep.subr.bf16.mxu0 0
        %4733 = vmatpush1.bf16.xpose.msra.mxu0 0
        %4734 = vmatprep.subr.bf16.mxu0 0
        %4735 = vmatpush1.bf16.xpose.msra.mxu0 0
        %4736 = vmatprep.mubr.bf16.mxu0 0
        %4737 = vmatmul.mubr.bf16.gmra.mrb[0].mxu0 %v4693
        %v4738 = vpop.f32.mrb[0].mxu0
        %v4739 = vadd.f32 0.0, %v4738
        %v4740 = vpop.f32.mrb[0].mxu0
        %v4741 = vpop.f32.mrb[0].mxu0
        %v4742 = vadd.f32 0.0, %v4741
        %v4743 = vpop.f32.mrb[0].mxu0
        %4744 = vmatprep.mubr.bf16.mxu0 0
        %4745 = vmatmul.mubr.bf16.gmra.mrb[0].mxu0 %v4696
        %v4746 = vpop.f32.mrb[0].mxu0
        %v4747 = vadd.f32 0.0, %v4746
        %v4748 = vpop.f32.mrb[0].mxu0
        %v4749 = vpop.f32.mrb[0].mxu0
        %v4750 = vadd.f32 0.0, %v4749
        %v4751 = vpop.f32.mrb[0].mxu0
        %4752 = vdwg.mxu0
        %v4753 = vsel %vm908, %v4532, -inf
        %4754 = vmax.xlane.f32.xlu0 %v4753
        %v4755 = vpop.xlane.xlu0 %4754
        %v4756 = vsel %vm908, %v4535, -inf
        %4757 = vmax.xlane.f32.xlu0 %v4756
        %v4758 = vpop.xlane.xlu0 %4757
        %v4759 = vsel %vm908, %v4540, -inf
        %4760 = vmax.xlane.f32.xlu0 %v4759
        %v4761 = vpop.xlane.xlu0 %4760
        %v4762 = vsel %vm908, %v4543, -inf
        %4763 = vmax.xlane.f32.xlu0 %v4762
        %v4764 = vpop.xlane.xlu0 %4763
        %v4765 = vsel %vm908, %v4601, -inf
        %4766 = vmax.xlane.f32.xlu0 %v4765
        %v4767 = vpop.xlane.xlu0 %4766
        %v4768 = vsel %vm908, %v4604, -inf
        %4769 = vmax.xlane.f32.xlu0 %v4768
        %v4770 = vpop.xlane.xlu0 %4769
        %v4771 = vsel %vm908, %v4609, -inf
        %4772 = vmax.xlane.f32.xlu0 %v4771
        %v4773 = vpop.xlane.xlu0 %4772
        %v4774 = vsel %vm908, %v4612, -inf
        %4775 = vmax.xlane.f32.xlu0 %v4774
        %v4776 = vpop.xlane.xlu0 %4775
        %v4777 = vsel %vm908, %v4670, -inf
        %4778 = vmax.xlane.f32.xlu0 %v4777
        %v4779 = vpop.xlane.xlu0 %4778
        %v4780 = vsel %vm908, %v4673, -inf
        %4781 = vmax.xlane.f32.xlu0 %v4780
        %v4782 = vpop.xlane.xlu0 %4781
        %v4783 = vsel %vm908, %v4678, -inf
        %4784 = vmax.xlane.f32.xlu0 %v4783
        %v4785 = vpop.xlane.xlu0 %4784
        %v4786 = vsel %vm908, %v4681, -inf
        %4787 = vmax.xlane.f32.xlu0 %v4786
        %v4788 = vpop.xlane.xlu0 %4787
        %v4789 = vsel %vm908, %v4739, -inf
        %4790 = vmax.xlane.f32.xlu0 %v4789
        %v4791 = vpop.xlane.xlu0 %4790
        %v4792 = vsel %vm908, %v4742, -inf
        %4793 = vmax.xlane.f32.xlu0 %v4792
        %v4794 = vpop.xlane.xlu0 %4793
        %v4795 = vsel %vm908, %v4747, -inf
        %4796 = vmax.xlane.f32.xlu0 %v4795
        %v4797 = vpop.xlane.xlu0 %4796
        %v4798 = vsel %vm908, %v4750, -inf
        %4799 = vmax.xlane.f32.xlu0 %v4798
        %v4800 = vpop.xlane.xlu0 %4799
        %v4801 = vsub.f32 %v4532, %v4755
        %v4802 = vsub.f32 %v4535, %v4758
        %v4803 = vsub.f32 %v4540, %v4761
        %v4804 = vsub.f32 %v4543, %v4764
        %v4805 = vsub.f32 %v4601, %v4767
        %v4806 = vsub.f32 %v4604, %v4770
        %v4807 = vsub.f32 %v4609, %v4773
        %v4808 = vsub.f32 %v4612, %v4776
        %v4809 = vsub.f32 %v4670, %v4779
        %v4810 = vsub.f32 %v4673, %v4782
        %v4811 = vsub.f32 %v4678, %v4785
        %v4812 = vsub.f32 %v4681, %v4788
        %v4813 = vsub.f32 %v4739, %v4791
        %v4814 = vsub.f32 %v4742, %v4794
        %v4815 = vsub.f32 %v4747, %v4797
        %v4816 = vsub.f32 %v4750, %v4800
        %v4817 = vmul.f32 %v4801, 1.442695
        %v4818 = vpow.pop %v4817
        %v4819 = vmul.f32 %v4802, 1.442695
        %v4820 = vpow.pop %v4819
        %v4821 = vmul.f32 %v4803, 1.442695
        %v4822 = vpow.pop %v4821
        %v4823 = vmul.f32 %v4804, 1.442695
        %v4824 = vpow.pop %v4823
        %v4825 = vmul.f32 %v4805, 1.442695
        %v4826 = vpow.pop %v4825
        %v4827 = vmul.f32 %v4806, 1.442695
        %v4828 = vpow.pop %v4827
        %v4829 = vmul.f32 %v4807, 1.442695
        %v4830 = vpow.pop %v4829
        %v4831 = vmul.f32 %v4808, 1.442695
        %v4832 = vpow.pop %v4831
        %v4833 = vmul.f32 %v4809, 1.442695
        %v4834 = vpow.pop %v4833
        %v4835 = vmul.f32 %v4810, 1.442695
        %v4836 = vpow.pop %v4835
        %v4837 = vmul.f32 %v4811, 1.442695
        %v4838 = vpow.pop %v4837
        %v4839 = vmul.f32 %v4812, 1.442695
        %v4840 = vpow.pop %v4839
        %v4841 = vmul.f32 %v4813, 1.442695
        %v4842 = vpow.pop %v4841
        %v4843 = vmul.f32 %v4814, 1.442695
        %v4844 = vpow.pop %v4843
        %v4845 = vmul.f32 %v4815, 1.442695
        %v4846 = vpow.pop %v4845
        %v4847 = vmul.f32 %v4816, 1.442695
        %v4848 = vpow.pop %v4847
        %v4849 = vsel %vm908, %v4818, 0.0
        %4850 = vadd.xlane.f32.xlu0 %v4849
        %v4851 = vpop.xlane.xlu0 %4850
        %v4852 = vsel %vm908, %v4820, 0.0
        %4853 = vadd.xlane.f32.xlu0 %v4852
        %v4854 = vpop.xlane.xlu0 %4853
        %v4855 = vsel %vm908, %v4822, 0.0
        %4856 = vadd.xlane.f32.xlu0 %v4855
        %v4857 = vpop.xlane.xlu0 %4856
        %v4858 = vsel %vm908, %v4824, 0.0
        %4859 = vadd.xlane.f32.xlu0 %v4858
        %v4860 = vpop.xlane.xlu0 %4859
        %v4861 = vsel %vm908, %v4826, 0.0
        %4862 = vadd.xlane.f32.xlu0 %v4861
        %v4863 = vpop.xlane.xlu0 %4862
        %v4864 = vsel %vm908, %v4828, 0.0
        %4865 = vadd.xlane.f32.xlu0 %v4864
        %v4866 = vpop.xlane.xlu0 %4865
        %v4867 = vsel %vm908, %v4830, 0.0
        %4868 = vadd.xlane.f32.xlu0 %v4867
        %v4869 = vpop.xlane.xlu0 %4868
        %v4870 = vsel %vm908, %v4832, 0.0
        %4871 = vadd.xlane.f32.xlu0 %v4870
        %v4872 = vpop.xlane.xlu0 %4871
        %v4873 = vsel %vm908, %v4834, 0.0
        %4874 = vadd.xlane.f32.xlu0 %v4873
        %v4875 = vpop.xlane.xlu0 %4874
        %v4876 = vsel %vm908, %v4836, 0.0
        %4877 = vadd.xlane.f32.xlu0 %v4876
        %v4878 = vpop.xlane.xlu0 %4877
        %v4879 = vsel %vm908, %v4838, 0.0
        %4880 = vadd.xlane.f32.xlu0 %v4879
        %v4881 = vpop.xlane.xlu0 %4880
        %v4882 = vsel %vm908, %v4840, 0.0
        %4883 = vadd.xlane.f32.xlu0 %v4882
        %v4884 = vpop.xlane.xlu0 %4883
        %v4885 = vsel %vm908, %v4842, 0.0
        %4886 = vadd.xlane.f32.xlu0 %v4885
        %v4887 = vpop.xlane.xlu0 %4886
        %v4888 = vsel %vm908, %v4844, 0.0
        %4889 = vadd.xlane.f32.xlu0 %v4888
        %v4890 = vpop.xlane.xlu0 %4889
        %v4891 = vsel %vm908, %v4846, 0.0
        %4892 = vadd.xlane.f32.xlu0 %v4891
        %v4893 = vpop.xlane.xlu0 %4892
        %v4894 = vsel %vm908, %v4848, 0.0
        %4895 = vadd.xlane.f32.xlu0 %v4894
        %v4896 = vpop.xlane.xlu0 %4895
        %v4897 = vrcp.pop %v4851
        %v4898 = vmul.f32 %v4818, %v4897
        %v4899 = vrcp.pop %v4854
        %v4900 = vmul.f32 %v4820, %v4899
        %v4901 = vrcp.pop %v4857
        %v4902 = vmul.f32 %v4822, %v4901
        %v4903 = vrcp.pop %v4860
        %v4904 = vmul.f32 %v4824, %v4903
        %v4905 = vrcp.pop %v4863
        %v4906 = vmul.f32 %v4826, %v4905
        %v4907 = vrcp.pop %v4866
        %v4908 = vmul.f32 %v4828, %v4907
        %v4909 = vrcp.pop %v4869
        %v4910 = vmul.f32 %v4830, %v4909
        %v4911 = vrcp.pop %v4872
        %v4912 = vmul.f32 %v4832, %v4911
        %v4913 = vrcp.pop %v4875
        %v4914 = vmul.f32 %v4834, %v4913
        %v4915 = vrcp.pop %v4878
        %v4916 = vmul.f32 %v4836, %v4915
        %v4917 = vrcp.pop %v4881
        %v4918 = vmul.f32 %v4838, %v4917
        %v4919 = vrcp.pop %v4884
        %v4920 = vmul.f32 %v4840, %v4919
        %v4921 = vrcp.pop %v4887
        %v4922 = vmul.f32 %v4842, %v4921
        %v4923 = vrcp.pop %v4890
        %v4924 = vmul.f32 %v4844, %v4923
        %v4925 = vrcp.pop %v4893
        %v4926 = vmul.f32 %v4846, %v4925
        %v4927 = vrcp.pop %v4896
        %v4928 = vmul.f32 %v4848, %v4927
        %v4929 = vpack.c.bf16 %v4900, %v4898
        %v4930 = vpack.c.bf16 %v4904, %v4902
        %v4931 = vpack.c.bf16 %v4908, %v4906
        %v4932 = vpack.c.bf16 %v4912, %v4910
        %v4933 = vpack.c.bf16 %v4916, %v4914
        %v4934 = vpack.c.bf16 %v4920, %v4918
        %v4935 = vpack.c.bf16 %v4924, %v4922
        %v4936 = vpack.c.bf16 %v4928, %v4926
        %4937 = vrot.lane.b32.xlu0 %v631, 88
        %v4938 = vpop.permute.xlu0 %4937
        %4939 = vrot.lane.b32.xlu0 %v632, 88
        %v4940 = vpop.permute.xlu0 %4939
        %v4944 = vsel %vm908, %v4929, 0
        %v4947 = vsel %vm908, %v4930, 0
        %4949 = vmatprep.subr.bf16.mxu0 0
        %4950 = vmatpush1.bf16.msra.mxu0 %v4938
        %4951 = vmatprep.subr.bf16.mxu0 0
        %4952 = vmatpush1.bf16.msra.mxu0 %v4940
        %4953 = vmatprep.subr.bf16.mxu0 0
        %4954 = vmatpush1.bf16.msra.mxu0 0
        %4955 = vmatprep.subr.bf16.mxu0 0
        %4956 = vmatpush1.bf16.msra.mxu0 0
        %4957 = vmatprep.subr.bf16.mxu0 0
        %4958 = vmatpush1.bf16.msra.mxu0 0
        %4959 = vmatprep.subr.bf16.mxu0 0
        %4960 = vmatpush1.bf16.msra.mxu0 0
        %4961 = vmatprep.subr.bf16.mxu0 0
        %4962 = vmatpush1.bf16.msra.mxu0 0
        %4963 = vmatprep.subr.bf16.mxu0 0
        %4964 = vmatpush1.bf16.msra.mxu0 0
        %4965 = vmatprep.subr.bf16.mxu0 0
        %4966 = vmatpush1.bf16.msra.mxu0 0
        %4967 = vmatprep.subr.bf16.mxu0 0
        %4968 = vmatpush1.bf16.msra.mxu0 0
        %4969 = vmatprep.subr.bf16.mxu0 0
        %4970 = vmatpush1.bf16.msra.mxu0 0
        %4971 = vmatprep.subr.bf16.mxu0 0
        %4972 = vmatpush1.bf16.msra.mxu0 0
        %4973 = vmatprep.subr.bf16.mxu0 0
        %4974 = vmatpush1.bf16.msra.mxu0 0
        %4975 = vmatprep.subr.bf16.mxu0 0
        %4976 = vmatpush1.bf16.msra.mxu0 0
        %4977 = vmatprep.subr.bf16.mxu0 0
        %4978 = vmatpush1.bf16.msra.mxu0 0
        %4979 = vmatprep.subr.bf16.mxu0 0
        %4980 = vmatpush1.bf16.msra.mxu0 0
        %4981 = vmatprep.mubr.bf16.mxu0 0
        %4982 = vmatmul.mubr.bf16.gmra.mrb[0].mxu0 %v4944
        %v4983 = vpop.f32.mrb[0].mxu0
        %v4984 = vadd.f32 0.0, %v4983
        %v4985 = vpop.f32.mrb[0].mxu0
        %v4986 = vpop.f32.mrb[0].mxu0
        %v4987 = vadd.f32 0.0, %v4986
        %v4988 = vpop.f32.mrb[0].mxu0
        %4989 = vmatprep.mubr.bf16.mxu0 0
        %4990 = vmatmul.mubr.bf16.gmra.mrb[0].mxu0 %v4947
        %v4991 = vpop.f32.mrb[0].mxu0
        %v4992 = vadd.f32 0.0, %v4991
        %v4993 = vpop.f32.mrb[0].mxu0
        %v4994 = vpop.f32.mrb[0].mxu0
        %v4995 = vadd.f32 0.0, %v4994
        %v4996 = vpop.f32.mrb[0].mxu0
        %4997 = vdwg.mxu0
        %4998 = vrot.lane.b32.xlu0 %v633, 88
        %v4999 = vpop.permute.xlu0 %4998
        %5000 = vrot.lane.b32.xlu0 %v634, 88
        %v5001 = vpop.permute.xlu0 %5000
        %v5005 = vsel %vm908, %v4931, 0
        %v5008 = vsel %vm908, %v4932, 0
        %5010 = vmatprep.subr.bf16.mxu0 0
        %5011 = vmatpush1.bf16.msra.mxu0 %v4999
        %5012 = vmatprep.subr.bf16.mxu0 0
        %5013 = vmatpush1.bf16.msra.mxu0 %v5001
        %5014 = vmatprep.subr.bf16.mxu0 0
        %5015 = vmatpush1.bf16.msra.mxu0 0
        %5016 = vmatprep.subr.bf16.mxu0 0
        %5017 = vmatpush1.bf16.msra.mxu0 0
        %5018 = vmatprep.subr.bf16.mxu0 0
        %5019 = vmatpush1.bf16.msra.mxu0 0
        %5020 = vmatprep.subr.bf16.mxu0 0
        %5021 = vmatpush1.bf16.msra.mxu0 0
        %5022 = vmatprep.subr.bf16.mxu0 0
        %5023 = vmatpush1.bf16.msra.mxu0 0
        %5024 = vmatprep.subr.bf16.mxu0 0
        %5025 = vmatpush1.bf16.msra.mxu0 0
        %5026 = vmatprep.subr.bf16.mxu0 0
        %5027 = vmatpush1.bf16.msra.mxu0 0
        %5028 = vmatprep.subr.bf16.mxu0 0
        %5029 = vmatpush1.bf16.msra.mxu0 0
        %5030 = vmatprep.subr.bf16.mxu0 0
        %5031 = vmatpush1.bf16.msra.mxu0 0
        %5032 = vmatprep.subr.bf16.mxu0 0
        %5033 = vmatpush1.bf16.msra.mxu0 0
        %5034 = vmatprep.subr.bf16.mxu0 0
        %5035 = vmatpush1.bf16.msra.mxu0 0
        %5036 = vmatprep.subr.bf16.mxu0 0
        %5037 = vmatpush1.bf16.msra.mxu0 0
        %5038 = vmatprep.subr.bf16.mxu0 0
        %5039 = vmatpush1.bf16.msra.mxu0 0
        %5040 = vmatprep.subr.bf16.mxu0 0
        %5041 = vmatpush1.bf16.msra.mxu0 0
        %5042 = vmatprep.mubr.bf16.mxu0 0
        %5043 = vmatmul.mubr.bf16.gmra.mrb[0].mxu0 %v5005
        %v5044 = vpop.f32.mrb[0].mxu0
        %v5045 = vadd.f32 0.0, %v5044
        %v5046 = vpop.f32.mrb[0].mxu0
        %v5047 = vpop.f32.mrb[0].mxu0
        %v5048 = vadd.f32 0.0, %v5047
        %v5049 = vpop.f32.mrb[0].mxu0
        %5050 = vmatprep.mubr.bf16.mxu0 0
        %5051 = vmatmul.mubr.bf16.gmra.mrb[0].mxu0 %v5008
        %v5052 = vpop.f32.mrb[0].mxu0
        %v5053 = vadd.f32 0.0, %v5052
        %v5054 = vpop.f32.mrb[0].mxu0
        %v5055 = vpop.f32.mrb[0].mxu0
        %v5056 = vadd.f32 0.0, %v5055
        %v5057 = vpop.f32.mrb[0].mxu0
        %5058 = vdwg.mxu0
        %5059 = vrot.lane.b32.xlu0 %v635, 88
        %v5060 = vpop.permute.xlu0 %5059
        %5061 = vrot.lane.b32.xlu0 %v636, 88
        %v5062 = vpop.permute.xlu0 %5061
        %v5066 = vsel %vm908, %v4933, 0
        %v5069 = vsel %vm908, %v4934, 0
        %5071 = vmatprep.subr.bf16.mxu0 0
        %5072 = vmatpush1.bf16.msra.mxu0 %v5060
        %5073 = vmatprep.subr.bf16.mxu0 0
        %5074 = vmatpush1.bf16.msra.mxu0 %v5062
        %5075 = vmatprep.subr.bf16.mxu0 0
        %5076 = vmatpush1.bf16.msra.mxu0 0
        %5077 = vmatprep.subr.bf16.mxu0 0
        %5078 = vmatpush1.bf16.msra.mxu0 0
        %5079 = vmatprep.subr.bf16.mxu0 0
        %5080 = vmatpush1.bf16.msra.mxu0 0
        %5081 = vmatprep.subr.bf16.mxu0 0
        %5082 = vmatpush1.bf16.msra.mxu0 0
        %5083 = vmatprep.subr.bf16.mxu0 0
        %5084 = vmatpush1.bf16.msra.mxu0 0
        %5085 = vmatprep.subr.bf16.mxu0 0
        %5086 = vmatpush1.bf16.msra.mxu0 0
        %5087 = vmatprep.subr.bf16.mxu0 0
        %5088 = vmatpush1.bf16.msra.mxu0 0
        %5089 = vmatprep.subr.bf16.mxu0 0
        %5090 = vmatpush1.bf16.msra.mxu0 0
        %5091 = vmatprep.subr.bf16.mxu0 0
        %5092 = vmatpush1.bf16.msra.mxu0 0
        %5093 = vmatprep.subr.bf16.mxu0 0
        %5094 = vmatpush1.bf16.msra.mxu0 0
        %5095 = vmatprep.subr.bf16.mxu0 0
        %5096 = vmatpush1.bf16.msra.mxu0 0
        %5097 = vmatprep.subr.bf16.mxu0 0
        %5098 = vmatpush1.bf16.msra.mxu0 0
        %5099 = vmatprep.subr.bf16.mxu0 0
        %5100 = vmatpush1.bf16.msra.mxu0 0
        %5101 = vmatprep.subr.bf16.mxu0 0
        %5102 = vmatpush1.bf16.msra.mxu0 0
        %5103 = vmatprep.mubr.bf16.mxu0 0
        %5104 = vmatmul.mubr.bf16.gmra.mrb[0].mxu0 %v5066
        %v5105 = vpop.f32.mrb[0].mxu0
        %v5106 = vadd.f32 0.0, %v5105
        %v5107 = vpop.f32.mrb[0].mxu0
        %v5108 = vpop.f32.mrb[0].mxu0
        %v5109 = vadd.f32 0.0, %v5108
        %v5110 = vpop.f32.mrb[0].mxu0
        %5111 = vmatprep.mubr.bf16.mxu0 0
        %5112 = vmatmul.mubr.bf16.gmra.mrb[0].mxu0 %v5069
        %v5113 = vpop.f32.mrb[0].mxu0
        %v5114 = vadd.f32 0.0, %v5113
        %v5115 = vpop.f32.mrb[0].mxu0
        %v5116 = vpop.f32.mrb[0].mxu0
        %v5117 = vadd.f32 0.0, %v5116
        %v5118 = vpop.f32.mrb[0].mxu0
        %5119 = vdwg.mxu0
        %5120 = vrot.lane.b32.xlu0 %v637, 88
        %v5121 = vpop.permute.xlu0 %5120
        %5122 = vrot.lane.b32.xlu0 %v638, 88
        %v5123 = vpop.permute.xlu0 %5122
        %v5127 = vsel %vm908, %v4935, 0
        %v5130 = vsel %vm908, %v4936, 0
        %5132 = vmatprep.subr.bf16.mxu0 0
        %5133 = vmatpush1.bf16.msra.mxu0 %v5121
        %5134 = vmatprep.subr.bf16.mxu0 0
        %5135 = vmatpush1.bf16.msra.mxu0 %v5123
        %5136 = vmatprep.subr.bf16.mxu0 0
        %5137 = vmatpush1.bf16.msra.mxu0 0
        %5138 = vmatprep.subr.bf16.mxu0 0
        %5139 = vmatpush1.bf16.msra.mxu0 0
        %5140 = vmatprep.subr.bf16.mxu0 0
        %5141 = vmatpush1.bf16.msra.mxu0 0
        %5142 = vmatprep.subr.bf16.mxu0 0
        %5143 = vmatpush1.bf16.msra.mxu0 0
        %5144 = vmatprep.subr.bf16.mxu0 0
        %5145 = vmatpush1.bf16.msra.mxu0 0
        %5146 = vmatprep.subr.bf16.mxu0 0
        %5147 = vmatpush1.bf16.msra.mxu0 0
        %5148 = vmatprep.subr.bf16.mxu0 0
        %5149 = vmatpush1.bf16.msra.mxu0 0
        %5150 = vmatprep.subr.bf16.mxu0 0
        %5151 = vmatpush1.bf16.msra.mxu0 0
        %5152 = vmatprep.subr.bf16.mxu0 0
        %5153 = vmatpush1.bf16.msra.mxu0 0
        %5154 = vmatprep.subr.bf16.mxu0 0
        %5155 = vmatpush1.bf16.msra.mxu0 0
        %5156 = vmatprep.subr.bf16.mxu0 0
        %5157 = vmatpush1.bf16.msra.mxu0 0
        %5158 = vmatprep.subr.bf16.mxu0 0
        %5159 = vmatpush1.bf16.msra.mxu0 0
        %5160 = vmatprep.subr.bf16.mxu0 0
        %5161 = vmatpush1.bf16.msra.mxu0 0
        %5162 = vmatprep.subr.bf16.mxu0 0
        %5163 = vmatpush1.bf16.msra.mxu0 0
        %5164 = vmatprep.mubr.bf16.mxu0 0
        %5165 = vmatmul.mubr.bf16.gmra.mrb[0].mxu0 %v5127
        %v5166 = vpop.f32.mrb[0].mxu0
        %v5167 = vadd.f32 0.0, %v5166
        %v5168 = vpop.f32.mrb[0].mxu0
        %v5169 = vpop.f32.mrb[0].mxu0
        %v5170 = vadd.f32 0.0, %v5169
        %v5171 = vpop.f32.mrb[0].mxu0
        %5172 = vmatprep.mubr.bf16.mxu0 0
        %5173 = vmatmul.mubr.bf16.gmra.mrb[0].mxu0 %v5130
        %v5174 = vpop.f32.mrb[0].mxu0
        %v5175 = vadd.f32 0.0, %v5174
        %v5176 = vpop.f32.mrb[0].mxu0
        %v5177 = vpop.f32.mrb[0].mxu0
        %v5178 = vadd.f32 0.0, %v5177
        %v5179 = vpop.f32.mrb[0].mxu0
        %5180 = vdwg.mxu0
        %5197 = vrot.lane.b32.xlu0 %v4984, 40
        %v5198 = vpop.permute.xlu0 %5197
        %5199 = vrot.lane.b32.xlu0 %v4987, 40
        %v5200 = vpop.permute.xlu0 %5199
        %5201 = vrot.lane.b32.xlu0 %v4992, 40
        %v5202 = vpop.permute.xlu0 %5201
        %5203 = vrot.lane.b32.xlu0 %v4995, 40
        %v5204 = vpop.permute.xlu0 %5203
        %5205 = vrot.lane.b32.xlu0 %v5045, 40
        %v5206 = vpop.permute.xlu0 %5205
        %5207 = vrot.lane.b32.xlu0 %v5048, 40
        %v5208 = vpop.permute.xlu0 %5207
        %5209 = vrot.lane.b32.xlu0 %v5053, 40
        %v5210 = vpop.permute.xlu0 %5209
        %5211 = vrot.lane.b32.xlu0 %v5056, 40
        %v5212 = vpop.permute.xlu0 %5211
        %5213 = vrot.lane.b32.xlu0 %v5106, 40
        %v5214 = vpop.permute.xlu0 %5213
        %5215 = vrot.lane.b32.xlu0 %v5109, 40
        %v5216 = vpop.permute.xlu0 %5215
        %5217 = vrot.lane.b32.xlu0 %v5114, 40
        %v5218 = vpop.permute.xlu0 %5217
        %5219 = vrot.lane.b32.xlu0 %v5117, 40
        %v5220 = vpop.permute.xlu0 %5219
        %5221 = vrot.lane.b32.xlu0 %v5167, 40
        %v5222 = vpop.permute.xlu0 %5221
        %5223 = vrot.lane.b32.xlu0 %v5170, 40
        %v5224 = vpop.permute.xlu0 %5223
        %5225 = vrot.lane.b32.xlu0 %v5175, 40
        %v5226 = vpop.permute.xlu0 %5225
        %5227 = vrot.lane.b32.xlu0 %v5178, 40
        %v5228 = vpop.permute.xlu0 %5227
        %vm5245 = vcmask 392512
        %5246 = vst.msk [vmem:[#allocation2] sm:$0xff] %vm5245, %v5198
        %5247 = vst.msk [vmem:[#allocation2 + $0x8] sm:$0xff] %vm5245, %v5200
        %5248 = vst.msk [vmem:[#allocation2 + $0x10] sm:$0xff] %vm5245, %v5202
        %5249 = vst.msk [vmem:[#allocation2 + $0x18] sm:$0xff] %vm5245, %v5204
        %5250 = vst.msk [vmem:[#allocation2 + $0x20] sm:$0xff] %vm5245, %v5206
        %5251 = vst.msk [vmem:[#allocation2 + $0x28] sm:$0xff] %vm5245, %v5208
        %5252 = vst.msk [vmem:[#allocation2 + $0x30] sm:$0xff] %vm5245, %v5210
        %5253 = vst.msk [vmem:[#allocation2 + $0x38] sm:$0xff] %vm5245, %v5212
        %5254 = vst.msk [vmem:[#allocation2 + $0x40] sm:$0xff] %vm5245, %v5214
        %5255 = vst.msk [vmem:[#allocation2 + $0x48] sm:$0xff] %vm5245, %v5216
        %5256 = vst.msk [vmem:[#allocation2 + $0x50] sm:$0xff] %vm5245, %v5218
        %5257 = vst.msk [vmem:[#allocation2 + $0x58] sm:$0xff] %vm5245, %v5220
        %5258 = vst.msk [vmem:[#allocation2 + $0x60] sm:$0xff] %vm5245, %v5222
        %5259 = vst.msk [vmem:[#allocation2 + $0x68] sm:$0xff] %vm5245, %v5224
        %5260 = vst.msk [vmem:[#allocation2 + $0x70] sm:$0xff] %vm5245, %v5226
        %5261 = vst.msk [vmem:[#allocation2 + $0x78] sm:$0xff] %vm5245, %v5228
        %5262 = vrot.lane.b32.xlu0 %v623, 80
        %v5263 = vpop.permute.xlu0 %5262
        %5264 = vrot.lane.b32.xlu0 %v624, 80
        %v5265 = vpop.permute.xlu0 %5264
        %5266 = vrot.lane.b32.xlu0 %v623, 16
        %v5267 = vpop.permute.xlu0 %5266
        %5268 = vrot.lane.b32.xlu0 %v624, 16
        %v5269 = vpop.permute.xlu0 %5268
        %v5271 = vsel %vm645, %v5263, 0
        %v5274 = vsel %vm645, %v5265, 0
        %v5277 = vsel %vm645, %v5267, 0
        %v5280 = vsel %vm645, %v5269, 0
        %5282 = vmatprep.subr.bf16.mxu0 0
        %5283 = vmatpush1.bf16.xpose.msra.mxu0 %v5277
        %5284 = vmatprep.subr.bf16.mxu0 0
        %5285 = vmatpush1.bf16.xpose.msra.mxu0 %v5280
        %5286 = vmatprep.subr.bf16.mxu0 0
        %5287 = vmatpush1.bf16.xpose.msra.mxu0 0
        %5288 = vmatprep.subr.bf16.mxu0 0
        %5289 = vmatpush1.bf16.xpose.msra.mxu0 0
        %5290 = vmatprep.subr.bf16.mxu0 0
        %5291 = vmatpush1.bf16.xpose.msra.mxu0 0
        %5292 = vmatprep.subr.bf16.mxu0 0
        %5293 = vmatpush1.bf16.xpose.msra.mxu0 0
        %5294 = vmatprep.subr.bf16.mxu0 0
        %5295 = vmatpush1.bf16.xpose.msra.mxu0 0
        %5296 = vmatprep.subr.bf16.mxu0 0
        %5297 = vmatpush1.bf16.xpose.msra.mxu0 0
        %5298 = vmatprep.subr.bf16.mxu0 0
        %5299 = vmatpush1.bf16.xpose.msra.mxu0 0
        %5300 = vmatprep.subr.bf16.mxu0 0
        %5301 = vmatpush1.bf16.xpose.msra.mxu0 0
        %5302 = vmatprep.subr.bf16.mxu0 0
        %5303 = vmatpush1.bf16.xpose.msra.mxu0 0
        %5304 = vmatprep.subr.bf16.mxu0 0
        %5305 = vmatpush1.bf16.xpose.msra.mxu0 0
        %5306 = vmatprep.subr.bf16.mxu0 0
        %5307 = vmatpush1.bf16.xpose.msra.mxu0 0
        %5308 = vmatprep.subr.bf16.mxu0 0
        %5309 = vmatpush1.bf16.xpose.msra.mxu0 0
        %5310 = vmatprep.subr.bf16.mxu0 0
        %5311 = vmatpush1.bf16.xpose.msra.mxu0 0
        %5312 = vmatprep.subr.bf16.mxu0 0
        %5313 = vmatpush1.bf16.xpose.msra.mxu0 0
        %5314 = vmatprep.mubr.bf16.mxu0 0
        %5315 = vmatmul.mubr.bf16.gmra.mrb[0].mxu0 %v5271
        %v5316 = vpop.f32.mrb[0].mxu0
        %v5317 = vadd.f32 0.0, %v5316
        %v5318 = vpop.f32.mrb[0].mxu0
        %v5319 = vpop.f32.mrb[0].mxu0
        %v5320 = vadd.f32 0.0, %v5319
        %v5321 = vpop.f32.mrb[0].mxu0
        %5322 = vmatprep.mubr.bf16.mxu0 0
        %5323 = vmatmul.mubr.bf16.gmra.mrb[0].mxu0 %v5274
        %v5324 = vpop.f32.mrb[0].mxu0
        %v5325 = vadd.f32 0.0, %v5324
        %v5326 = vpop.f32.mrb[0].mxu0
        %v5327 = vpop.f32.mrb[0].mxu0
        %v5328 = vadd.f32 0.0, %v5327
        %v5329 = vpop.f32.mrb[0].mxu0
        %5330 = vdwg.mxu0
        %5331 = vrot.lane.b32.xlu0 %v625, 80
        %v5332 = vpop.permute.xlu0 %5331
        %5333 = vrot.lane.b32.xlu0 %v626, 80
        %v5334 = vpop.permute.xlu0 %5333
        %5335 = vrot.lane.b32.xlu0 %v625, 16
        %v5336 = vpop.permute.xlu0 %5335
        %5337 = vrot.lane.b32.xlu0 %v626, 16
        %v5338 = vpop.permute.xlu0 %5337
        %v5340 = vsel %vm645, %v5332, 0
        %v5343 = vsel %vm645, %v5334, 0
        %v5346 = vsel %vm645, %v5336, 0
        %v5349 = vsel %vm645, %v5338, 0
        %5351 = vmatprep.subr.bf16.mxu0 0
        %5352 = vmatpush1.bf16.xpose.msra.mxu0 %v5346
        %5353 = vmatprep.subr.bf16.mxu0 0
        %5354 = vmatpush1.bf16.xpose.msra.mxu0 %v5349
        %5355 = vmatprep.subr.bf16.mxu0 0
        %5356 = vmatpush1.bf16.xpose.msra.mxu0 0
        %5357 = vmatprep.subr.bf16.mxu0 0
        %5358 = vmatpush1.bf16.xpose.msra.mxu0 0
        %5359 = vmatprep.subr.bf16.mxu0 0
        %5360 = vmatpush1.bf16.xpose.msra.mxu0 0
        %5361 = vmatprep.subr.bf16.mxu0 0
        %5362 = vmatpush1.bf16.xpose.msra.mxu0 0
        %5363 = vmatprep.subr.bf16.mxu0 0
        %5364 = vmatpush1.bf16.xpose.msra.mxu0 0
        %5365 = vmatprep.subr.bf16.mxu0 0
        %5366 = vmatpush1.bf16.xpose.msra.mxu0 0
        %5367 = vmatprep.subr.bf16.mxu0 0
        %5368 = vmatpush1.bf16.xpose.msra.mxu0 0
        %5369 = vmatprep.subr.bf16.mxu0 0
        %5370 = vmatpush1.bf16.xpose.msra.mxu0 0
        %5371 = vmatprep.subr.bf16.mxu0 0
        %5372 = vmatpush1.bf16.xpose.msra.mxu0 0
        %5373 = vmatprep.subr.bf16.mxu0 0
        %5374 = vmatpush1.bf16.xpose.msra.mxu0 0
        %5375 = vmatprep.subr.bf16.mxu0 0
        %5376 = vmatpush1.bf16.xpose.msra.mxu0 0
        %5377 = vmatprep.subr.bf16.mxu0 0
        %5378 = vmatpush1.bf16.xpose.msra.mxu0 0
        %5379 = vmatprep.subr.bf16.mxu0 0
        %5380 = vmatpush1.bf16.xpose.msra.mxu0 0
        %5381 = vmatprep.subr.bf16.mxu0 0
        %5382 = vmatpush1.bf16.xpose.msra.mxu0 0
        %5383 = vmatprep.mubr.bf16.mxu0 0
        %5384 = vmatmul.mubr.bf16.gmra.mrb[0].mxu0 %v5340
        %v5385 = vpop.f32.mrb[0].mxu0
        %v5386 = vadd.f32 0.0, %v5385
        %v5387 = vpop.f32.mrb[0].mxu0
        %v5388 = vpop.f32.mrb[0].mxu0
        %v5389 = vadd.f32 0.0, %v5388
        %v5390 = vpop.f32.mrb[0].mxu0
        %5391 = vmatprep.mubr.bf16.mxu0 0
        %5392 = vmatmul.mubr.bf16.gmra.mrb[0].mxu0 %v5343
        %v5393 = vpop.f32.mrb[0].mxu0
        %v5394 = vadd.f32 0.0, %v5393
        %v5395 = vpop.f32.mrb[0].mxu0
        %v5396 = vpop.f32.mrb[0].mxu0
        %v5397 = vadd.f32 0.0, %v5396
        %v5398 = vpop.f32.mrb[0].mxu0
        %5399 = vdwg.mxu0
        %5400 = vrot.lane.b32.xlu0 %v627, 80
        %v5401 = vpop.permute.xlu0 %5400
        %5402 = vrot.lane.b32.xlu0 %v628, 80
        %v5403 = vpop.permute.xlu0 %5402
        %5404 = vrot.lane.b32.xlu0 %v627, 16
        %v5405 = vpop.permute.xlu0 %5404
        %5406 = vrot.lane.b32.xlu0 %v628, 16
        %v5407 = vpop.permute.xlu0 %5406
        %v5409 = vsel %vm645, %v5401, 0
        %v5412 = vsel %vm645, %v5403, 0
        %v5415 = vsel %vm645, %v5405, 0
        %v5418 = vsel %vm645, %v5407, 0
        %5420 = vmatprep.subr.bf16.mxu0 0
        %5421 = vmatpush1.bf16.xpose.msra.mxu0 %v5415
        %5422 = vmatprep.subr.bf16.mxu0 0
        %5423 = vmatpush1.bf16.xpose.msra.mxu0 %v5418
        %5424 = vmatprep.subr.bf16.mxu0 0
        %5425 = vmatpush1.bf16.xpose.msra.mxu0 0
        %5426 = vmatprep.subr.bf16.mxu0 0
        %5427 = vmatpush1.bf16.xpose.msra.mxu0 0
        %5428 = vmatprep.subr.bf16.mxu0 0
        %5429 = vmatpush1.bf16.xpose.msra.mxu0 0
        %5430 = vmatprep.subr.bf16.mxu0 0
        %5431 = vmatpush1.bf16.xpose.msra.mxu0 0
        %5432 = vmatprep.subr.bf16.mxu0 0
        %5433 = vmatpush1.bf16.xpose.msra.mxu0 0
        %5434 = vmatprep.subr.bf16.mxu0 0
        %5435 = vmatpush1.bf16.xpose.msra.mxu0 0
        %5436 = vmatprep.subr.bf16.mxu0 0
        %5437 = vmatpush1.bf16.xpose.msra.mxu0 0
        %5438 = vmatprep.subr.bf16.mxu0 0
        %5439 = vmatpush1.bf16.xpose.msra.mxu0 0
        %5440 = vmatprep.subr.bf16.mxu0 0
        %5441 = vmatpush1.bf16.xpose.msra.mxu0 0
        %5442 = vmatprep.subr.bf16.mxu0 0
        %5443 = vmatpush1.bf16.xpose.msra.mxu0 0
        %5444 = vmatprep.subr.bf16.mxu0 0
        %5445 = vmatpush1.bf16.xpose.msra.mxu0 0
        %5446 = vmatprep.subr.bf16.mxu0 0
        %5447 = vmatpush1.bf16.xpose.msra.mxu0 0
        %5448 = vmatprep.subr.bf16.mxu0 0
        %5449 = vmatpush1.bf16.xpose.msra.mxu0 0
        %5450 = vmatprep.subr.bf16.mxu0 0
        %5451 = vmatpush1.bf16.xpose.msra.mxu0 0
        %5452 = vmatprep.mubr.bf16.mxu0 0
        %5453 = vmatmul.mubr.bf16.gmra.mrb[0].mxu0 %v5409
        %v5454 = vpop.f32.mrb[0].mxu0
        %v5455 = vadd.f32 0.0, %v5454
        %v5456 = vpop.f32.mrb[0].mxu0
        %v5457 = vpop.f32.mrb[0].mxu0
        %v5458 = vadd.f32 0.0, %v5457
        %v5459 = vpop.f32.mrb[0].mxu0
        %5460 = vmatprep.mubr.bf16.mxu0 0
        %5461 = vmatmul.mubr.bf16.gmra.mrb[0].mxu0 %v5412
        %v5462 = vpop.f32.mrb[0].mxu0
        %v5463 = vadd.f32 0.0, %v5462
        %v5464 = vpop.f32.mrb[0].mxu0
        %v5465 = vpop.f32.mrb[0].mxu0
        %v5466 = vadd.f32 0.0, %v5465
        %v5467 = vpop.f32.mrb[0].mxu0
        %5468 = vdwg.mxu0
        %5469 = vrot.lane.b32.xlu0 %v629, 80
        %v5470 = vpop.permute.xlu0 %5469
        %5471 = vrot.lane.b32.xlu0 %v630, 80
        %v5472 = vpop.permute.xlu0 %5471
        %5473 = vrot.lane.b32.xlu0 %v629, 16
        %v5474 = vpop.permute.xlu0 %5473
        %5475 = vrot.lane.b32.xlu0 %v630, 16
        %v5476 = vpop.permute.xlu0 %5475
        %v5478 = vsel %vm645, %v5470, 0
        %v5481 = vsel %vm645, %v5472, 0
        %v5484 = vsel %vm645, %v5474, 0
        %v5487 = vsel %vm645, %v5476, 0
        %5489 = vmatprep.subr.bf16.mxu0 0
        %5490 = vmatpush1.bf16.xpose.msra.mxu0 %v5484
        %5491 = vmatprep.subr.bf16.mxu0 0
        %5492 = vmatpush1.bf16.xpose.msra.mxu0 %v5487
        %5493 = vmatprep.subr.bf16.mxu0 0
        %5494 = vmatpush1.bf16.xpose.msra.mxu0 0
        %5495 = vmatprep.subr.bf16.mxu0 0
        %5496 = vmatpush1.bf16.xpose.msra.mxu0 0
        %5497 = vmatprep.subr.bf16.mxu0 0
        %5498 = vmatpush1.bf16.xpose.msra.mxu0 0
        %5499 = vmatprep.subr.bf16.mxu0 0
        %5500 = vmatpush1.bf16.xpose.msra.mxu0 0
        %5501 = vmatprep.subr.bf16.mxu0 0
        %5502 = vmatpush1.bf16.xpose.msra.mxu0 0
        %5503 = vmatprep.subr.bf16.mxu0 0
        %5504 = vmatpush1.bf16.xpose.msra.mxu0 0
        %5505 = vmatprep.subr.bf16.mxu0 0
        %5506 = vmatpush1.bf16.xpose.msra.mxu0 0
        %5507 = vmatprep.subr.bf16.mxu0 0
        %5508 = vmatpush1.bf16.xpose.msra.mxu0 0
        %5509 = vmatprep.subr.bf16.mxu0 0
        %5510 = vmatpush1.bf16.xpose.msra.mxu0 0
        %5511 = vmatprep.subr.bf16.mxu0 0
        %5512 = vmatpush1.bf16.xpose.msra.mxu0 0
        %5513 = vmatprep.subr.bf16.mxu0 0
        %5514 = vmatpush1.bf16.xpose.msra.mxu0 0
        %5515 = vmatprep.subr.bf16.mxu0 0
        %5516 = vmatpush1.bf16.xpose.msra.mxu0 0
        %5517 = vmatprep.subr.bf16.mxu0 0
        %5518 = vmatpush1.bf16.xpose.msra.mxu0 0
        %5519 = vmatprep.subr.bf16.mxu0 0
        %5520 = vmatpush1.bf16.xpose.msra.mxu0 0
        %5521 = vmatprep.mubr.bf16.mxu0 0
        %5522 = vmatmul.mubr.bf16.gmra.mrb[0].mxu0 %v5478
        %v5523 = vpop.f32.mrb[0].mxu0
        %v5524 = vadd.f32 0.0, %v5523
        %v5525 = vpop.f32.mrb[0].mxu0
        %v5526 = vpop.f32.mrb[0].mxu0
        %v5527 = vadd.f32 0.0, %v5526
        %v5528 = vpop.f32.mrb[0].mxu0
        %5529 = vmatprep.mubr.bf16.mxu0 0
        %5530 = vmatmul.mubr.bf16.gmra.mrb[0].mxu0 %v5481
        %v5531 = vpop.f32.mrb[0].mxu0
        %v5532 = vadd.f32 0.0, %v5531
        %v5533 = vpop.f32.mrb[0].mxu0
        %v5534 = vpop.f32.mrb[0].mxu0
        %v5535 = vadd.f32 0.0, %v5534
        %v5536 = vpop.f32.mrb[0].mxu0
        %5537 = vdwg.mxu0
        %v5538 = vsel %vm908, %v5317, -inf
        %5539 = vmax.xlane.f32.xlu0 %v5538
        %v5540 = vpop.xlane.xlu0 %5539
        %v5541 = vsel %vm908, %v5320, -inf
        %5542 = vmax.xlane.f32.xlu0 %v5541
        %v5543 = vpop.xlane.xlu0 %5542
        %v5544 = vsel %vm908, %v5325, -inf
        %5545 = vmax.xlane.f32.xlu0 %v5544
        %v5546 = vpop.xlane.xlu0 %5545
        %v5547 = vsel %vm908, %v5328, -inf
        %5548 = vmax.xlane.f32.xlu0 %v5547
        %v5549 = vpop.xlane.xlu0 %5548
        %v5550 = vsel %vm908, %v5386, -inf
        %5551 = vmax.xlane.f32.xlu0 %v5550
        %v5552 = vpop.xlane.xlu0 %5551
        %v5553 = vsel %vm908, %v5389, -inf
        %5554 = vmax.xlane.f32.xlu0 %v5553
        %v5555 = vpop.xlane.xlu0 %5554
        %v5556 = vsel %vm908, %v5394, -inf
        %5557 = vmax.xlane.f32.xlu0 %v5556
        %v5558 = vpop.xlane.xlu0 %5557
        %v5559 = vsel %vm908, %v5397, -inf
        %5560 = vmax.xlane.f32.xlu0 %v5559
        %v5561 = vpop.xlane.xlu0 %5560
        %v5562 = vsel %vm908, %v5455, -inf
        %5563 = vmax.xlane.f32.xlu0 %v5562
        %v5564 = vpop.xlane.xlu0 %5563
        %v5565 = vsel %vm908, %v5458, -inf
        %5566 = vmax.xlane.f32.xlu0 %v5565
        %v5567 = vpop.xlane.xlu0 %5566
        %v5568 = vsel %vm908, %v5463, -inf
        %5569 = vmax.xlane.f32.xlu0 %v5568
        %v5570 = vpop.xlane.xlu0 %5569
        %v5571 = vsel %vm908, %v5466, -inf
        %5572 = vmax.xlane.f32.xlu0 %v5571
        %v5573 = vpop.xlane.xlu0 %5572
        %v5574 = vsel %vm908, %v5524, -inf
        %5575 = vmax.xlane.f32.xlu0 %v5574
        %v5576 = vpop.xlane.xlu0 %5575
        %v5577 = vsel %vm908, %v5527, -inf
        %5578 = vmax.xlane.f32.xlu0 %v5577
        %v5579 = vpop.xlane.xlu0 %5578
        %v5580 = vsel %vm908, %v5532, -inf
        %5581 = vmax.xlane.f32.xlu0 %v5580
        %v5582 = vpop.xlane.xlu0 %5581
        %v5583 = vsel %vm908, %v5535, -inf
        %5584 = vmax.xlane.f32.xlu0 %v5583
        %v5585 = vpop.xlane.xlu0 %5584
        %v5586 = vsub.f32 %v5317, %v5540
        %v5587 = vsub.f32 %v5320, %v5543
        %v5588 = vsub.f32 %v5325, %v5546
        %v5589 = vsub.f32 %v5328, %v5549
        %v5590 = vsub.f32 %v5386, %v5552
        %v5591 = vsub.f32 %v5389, %v5555
        %v5592 = vsub.f32 %v5394, %v5558
        %v5593 = vsub.f32 %v5397, %v5561
        %v5594 = vsub.f32 %v5455, %v5564
        %v5595 = vsub.f32 %v5458, %v5567
        %v5596 = vsub.f32 %v5463, %v5570
        %v5597 = vsub.f32 %v5466, %v5573
        %v5598 = vsub.f32 %v5524, %v5576
        %v5599 = vsub.f32 %v5527, %v5579
        %v5600 = vsub.f32 %v5532, %v5582
        %v5601 = vsub.f32 %v5535, %v5585
        %v5602 = vmul.f32 %v5586, 1.442695
        %v5603 = vpow.pop %v5602
        %v5604 = vmul.f32 %v5587, 1.442695
        %v5605 = vpow.pop %v5604
        %v5606 = vmul.f32 %v5588, 1.442695
        %v5607 = vpow.pop %v5606
        %v5608 = vmul.f32 %v5589, 1.442695
        %v5609 = vpow.pop %v5608
        %v5610 = vmul.f32 %v5590, 1.442695
        %v5611 = vpow.pop %v5610
        %v5612 = vmul.f32 %v5591, 1.442695
        %v5613 = vpow.pop %v5612
        %v5614 = vmul.f32 %v5592, 1.442695
        %v5615 = vpow.pop %v5614
        %v5616 = vmul.f32 %v5593, 1.442695
        %v5617 = vpow.pop %v5616
        %v5618 = vmul.f32 %v5594, 1.442695
        %v5619 = vpow.pop %v5618
        %v5620 = vmul.f32 %v5595, 1.442695
        %v5621 = vpow.pop %v5620
        %v5622 = vmul.f32 %v5596, 1.442695
        %v5623 = vpow.pop %v5622
        %v5624 = vmul.f32 %v5597, 1.442695
        %v5625 = vpow.pop %v5624
        %v5626 = vmul.f32 %v5598, 1.442695
        %v5627 = vpow.pop %v5626
        %v5628 = vmul.f32 %v5599, 1.442695
        %v5629 = vpow.pop %v5628
        %v5630 = vmul.f32 %v5600, 1.442695
        %v5631 = vpow.pop %v5630
        %v5632 = vmul.f32 %v5601, 1.442695
        %v5633 = vpow.pop %v5632
        %v5634 = vsel %vm908, %v5603, 0.0
        %5635 = vadd.xlane.f32.xlu0 %v5634
        %v5636 = vpop.xlane.xlu0 %5635
        %v5637 = vsel %vm908, %v5605, 0.0
        %5638 = vadd.xlane.f32.xlu0 %v5637
        %v5639 = vpop.xlane.xlu0 %5638
        %v5640 = vsel %vm908, %v5607, 0.0
        %5641 = vadd.xlane.f32.xlu0 %v5640
        %v5642 = vpop.xlane.xlu0 %5641
        %v5643 = vsel %vm908, %v5609, 0.0
        %5644 = vadd.xlane.f32.xlu0 %v5643
        %v5645 = vpop.xlane.xlu0 %5644
        %v5646 = vsel %vm908, %v5611, 0.0
        %5647 = vadd.xlane.f32.xlu0 %v5646
        %v5648 = vpop.xlane.xlu0 %5647
        %v5649 = vsel %vm908, %v5613, 0.0
        %5650 = vadd.xlane.f32.xlu0 %v5649
        %v5651 = vpop.xlane.xlu0 %5650
        %v5652 = vsel %vm908, %v5615, 0.0
        %5653 = vadd.xlane.f32.xlu0 %v5652
        %v5654 = vpop.xlane.xlu0 %5653
        %v5655 = vsel %vm908, %v5617, 0.0
        %5656 = vadd.xlane.f32.xlu0 %v5655
        %v5657 = vpop.xlane.xlu0 %5656
        %v5658 = vsel %vm908, %v5619, 0.0
        %5659 = vadd.xlane.f32.xlu0 %v5658
        %v5660 = vpop.xlane.xlu0 %5659
        %v5661 = vsel %vm908, %v5621, 0.0
        %5662 = vadd.xlane.f32.xlu0 %v5661
        %v5663 = vpop.xlane.xlu0 %5662
        %v5664 = vsel %vm908, %v5623, 0.0
        %5665 = vadd.xlane.f32.xlu0 %v5664
        %v5666 = vpop.xlane.xlu0 %5665
        %v5667 = vsel %vm908, %v5625, 0.0
        %5668 = vadd.xlane.f32.xlu0 %v5667
        %v5669 = vpop.xlane.xlu0 %5668
        %v5670 = vsel %vm908, %v5627, 0.0
        %5671 = vadd.xlane.f32.xlu0 %v5670
        %v5672 = vpop.xlane.xlu0 %5671
        %v5673 = vsel %vm908, %v5629, 0.0
        %5674 = vadd.xlane.f32.xlu0 %v5673
        %v5675 = vpop.xlane.xlu0 %5674
        %v5676 = vsel %vm908, %v5631, 0.0
        %5677 = vadd.xlane.f32.xlu0 %v5676
        %v5678 = vpop.xlane.xlu0 %5677
        %v5679 = vsel %vm908, %v5633, 0.0
        %5680 = vadd.xlane.f32.xlu0 %v5679
        %v5681 = vpop.xlane.xlu0 %5680
        %v5682 = vrcp.pop %v5636
        %v5683 = vmul.f32 %v5603, %v5682
        %v5684 = vrcp.pop %v5639
        %v5685 = vmul.f32 %v5605, %v5684
        %v5686 = vrcp.pop %v5642
        %v5687 = vmul.f32 %v5607, %v5686
        %v5688 = vrcp.pop %v5645
        %v5689 = vmul.f32 %v5609, %v5688
        %v5690 = vrcp.pop %v5648
        %v5691 = vmul.f32 %v5611, %v5690
        %v5692 = vrcp.pop %v5651
        %v5693 = vmul.f32 %v5613, %v5692
        %v5694 = vrcp.pop %v5654
        %v5695 = vmul.f32 %v5615, %v5694
        %v5696 = vrcp.pop %v5657
        %v5697 = vmul.f32 %v5617, %v5696
        %v5698 = vrcp.pop %v5660
        %v5699 = vmul.f32 %v5619, %v5698
        %v5700 = vrcp.pop %v5663
        %v5701 = vmul.f32 %v5621, %v5700
        %v5702 = vrcp.pop %v5666
        %v5703 = vmul.f32 %v5623, %v5702
        %v5704 = vrcp.pop %v5669
        %v5705 = vmul.f32 %v5625, %v5704
        %v5706 = vrcp.pop %v5672
        %v5707 = vmul.f32 %v5627, %v5706
        %v5708 = vrcp.pop %v5675
        %v5709 = vmul.f32 %v5629, %v5708
        %v5710 = vrcp.pop %v5678
        %v5711 = vmul.f32 %v5631, %v5710
        %v5712 = vrcp.pop %v5681
        %v5713 = vmul.f32 %v5633, %v5712
        %v5714 = vpack.c.bf16 %v5685, %v5683
        %v5715 = vpack.c.bf16 %v5689, %v5687
        %v5716 = vpack.c.bf16 %v5693, %v5691
        %v5717 = vpack.c.bf16 %v5697, %v5695
        %v5718 = vpack.c.bf16 %v5701, %v5699
        %v5719 = vpack.c.bf16 %v5705, %v5703
        %v5720 = vpack.c.bf16 %v5709, %v5707
        %v5721 = vpack.c.bf16 %v5713, %v5711
        %5722 = vrot.lane.b32.xlu0 %v631, 80
        %v5723 = vpop.permute.xlu0 %5722
        %5724 = vrot.lane.b32.xlu0 %v632, 80
        %v5725 = vpop.permute.xlu0 %5724
        %v5729 = vsel %vm908, %v5714, 0
        %v5732 = vsel %vm908, %v5715, 0
        %5734 = vmatprep.subr.bf16.mxu0 0
        %5735 = vmatpush1.bf16.msra.mxu0 %v5723
        %5736 = vmatprep.subr.bf16.mxu0 0
        %5737 = vmatpush1.bf16.msra.mxu0 %v5725
        %5738 = vmatprep.subr.bf16.mxu0 0
        %5739 = vmatpush1.bf16.msra.mxu0 0
        %5740 = vmatprep.subr.bf16.mxu0 0
        %5741 = vmatpush1.bf16.msra.mxu0 0
        %5742 = vmatprep.subr.bf16.mxu0 0
        %5743 = vmatpush1.bf16.msra.mxu0 0
        %5744 = vmatprep.subr.bf16.mxu0 0
        %5745 = vmatpush1.bf16.msra.mxu0 0
        %5746 = vmatprep.subr.bf16.mxu0 0
        %5747 = vmatpush1.bf16.msra.mxu0 0
        %5748 = vmatprep.subr.bf16.mxu0 0
        %5749 = vmatpush1.bf16.msra.mxu0 0
        %5750 = vmatprep.subr.bf16.mxu0 0
        %5751 = vmatpush1.bf16.msra.mxu0 0
        %5752 = vmatprep.subr.bf16.mxu0 0
        %5753 = vmatpush1.bf16.msra.mxu0 0
        %5754 = vmatprep.subr.bf16.mxu0 0
        %5755 = vmatpush1.bf16.msra.mxu0 0
        %5756 = vmatprep.subr.bf16.mxu0 0
        %5757 = vmatpush1.bf16.msra.mxu0 0
        %5758 = vmatprep.subr.bf16.mxu0 0
        %5759 = vmatpush1.bf16.msra.mxu0 0
        %5760 = vmatprep.subr.bf16.mxu0 0
        %5761 = vmatpush1.bf16.msra.mxu0 0
        %5762 = vmatprep.subr.bf16.mxu0 0
        %5763 = vmatpush1.bf16.msra.mxu0 0
        %5764 = vmatprep.subr.bf16.mxu0 0
        %5765 = vmatpush1.bf16.msra.mxu0 0
        %5766 = vmatprep.mubr.bf16.mxu0 0
        %5767 = vmatmul.mubr.bf16.gmra.mrb[0].mxu0 %v5729
        %v5768 = vpop.f32.mrb[0].mxu0
        %v5769 = vadd.f32 0.0, %v5768
        %v5770 = vpop.f32.mrb[0].mxu0
        %v5771 = vpop.f32.mrb[0].mxu0
        %v5772 = vadd.f32 0.0, %v5771
        %v5773 = vpop.f32.mrb[0].mxu0
        %5774 = vmatprep.mubr.bf16.mxu0 0
        %5775 = vmatmul.mubr.bf16.gmra.mrb[0].mxu0 %v5732
        %v5776 = vpop.f32.mrb[0].mxu0
        %v5777 = vadd.f32 0.0, %v5776
        %v5778 = vpop.f32.mrb[0].mxu0
        %v5779 = vpop.f32.mrb[0].mxu0
        %v5780 = vadd.f32 0.0, %v5779
        %v5781 = vpop.f32.mrb[0].mxu0
        %5782 = vdwg.mxu0
        %5783 = vrot.lane.b32.xlu0 %v633, 80
        %v5784 = vpop.permute.xlu0 %5783
        %5785 = vrot.lane.b32.xlu0 %v634, 80
        %v5786 = vpop.permute.xlu0 %5785
        %v5790 = vsel %vm908, %v5716, 0
        %v5793 = vsel %vm908, %v5717, 0
        %5795 = vmatprep.subr.bf16.mxu0 0
        %5796 = vmatpush1.bf16.msra.mxu0 %v5784
        %5797 = vmatprep.subr.bf16.mxu0 0
        %5798 = vmatpush1.bf16.msra.mxu0 %v5786
        %5799 = vmatprep.subr.bf16.mxu0 0
        %5800 = vmatpush1.bf16.msra.mxu0 0
        %5801 = vmatprep.subr.bf16.mxu0 0
        %5802 = vmatpush1.bf16.msra.mxu0 0
        %5803 = vmatprep.subr.bf16.mxu0 0
        %5804 = vmatpush1.bf16.msra.mxu0 0
        %5805 = vmatprep.subr.bf16.mxu0 0
        %5806 = vmatpush1.bf16.msra.mxu0 0
        %5807 = vmatprep.subr.bf16.mxu0 0
        %5808 = vmatpush1.bf16.msra.mxu0 0
        %5809 = vmatprep.subr.bf16.mxu0 0
        %5810 = vmatpush1.bf16.msra.mxu0 0
        %5811 = vmatprep.subr.bf16.mxu0 0
        %5812 = vmatpush1.bf16.msra.mxu0 0
        %5813 = vmatprep.subr.bf16.mxu0 0
        %5814 = vmatpush1.bf16.msra.mxu0 0
        %5815 = vmatprep.subr.bf16.mxu0 0
        %5816 = vmatpush1.bf16.msra.mxu0 0
        %5817 = vmatprep.subr.bf16.mxu0 0
        %5818 = vmatpush1.bf16.msra.mxu0 0
        %5819 = vmatprep.subr.bf16.mxu0 0
        %5820 = vmatpush1.bf16.msra.mxu0 0
        %5821 = vmatprep.subr.bf16.mxu0 0
        %5822 = vmatpush1.bf16.msra.mxu0 0
        %5823 = vmatprep.subr.bf16.mxu0 0
        %5824 = vmatpush1.bf16.msra.mxu0 0
        %5825 = vmatprep.subr.bf16.mxu0 0
        %5826 = vmatpush1.bf16.msra.mxu0 0
        %5827 = vmatprep.mubr.bf16.mxu0 0
        %5828 = vmatmul.mubr.bf16.gmra.mrb[0].mxu0 %v5790
        %v5829 = vpop.f32.mrb[0].mxu0
        %v5830 = vadd.f32 0.0, %v5829
        %v5831 = vpop.f32.mrb[0].mxu0
        %v5832 = vpop.f32.mrb[0].mxu0
        %v5833 = vadd.f32 0.0, %v5832
        %v5834 = vpop.f32.mrb[0].mxu0
        %5835 = vmatprep.mubr.bf16.mxu0 0
        %5836 = vmatmul.mubr.bf16.gmra.mrb[0].mxu0 %v5793
        %v5837 = vpop.f32.mrb[0].mxu0
        %v5838 = vadd.f32 0.0, %v5837
        %v5839 = vpop.f32.mrb[0].mxu0
        %v5840 = vpop.f32.mrb[0].mxu0
        %v5841 = vadd.f32 0.0, %v5840
        %v5842 = vpop.f32.mrb[0].mxu0
        %5843 = vdwg.mxu0
        %5844 = vrot.lane.b32.xlu0 %v635, 80
        %v5845 = vpop.permute.xlu0 %5844
        %5846 = vrot.lane.b32.xlu0 %v636, 80
        %v5847 = vpop.permute.xlu0 %5846
        %v5851 = vsel %vm908, %v5718, 0
        %v5854 = vsel %vm908, %v5719, 0
        %5856 = vmatprep.subr.bf16.mxu0 0
        %5857 = vmatpush1.bf16.msra.mxu0 %v5845
        %5858 = vmatprep.subr.bf16.mxu0 0
        %5859 = vmatpush1.bf16.msra.mxu0 %v5847
        %5860 = vmatprep.subr.bf16.mxu0 0
        %5861 = vmatpush1.bf16.msra.mxu0 0
        %5862 = vmatprep.subr.bf16.mxu0 0
        %5863 = vmatpush1.bf16.msra.mxu0 0
        %5864 = vmatprep.subr.bf16.mxu0 0
        %5865 = vmatpush1.bf16.msra.mxu0 0
        %5866 = vmatprep.subr.bf16.mxu0 0
        %5867 = vmatpush1.bf16.msra.mxu0 0
        %5868 = vmatprep.subr.bf16.mxu0 0
        %5869 = vmatpush1.bf16.msra.mxu0 0
        %5870 = vmatprep.subr.bf16.mxu0 0
        %5871 = vmatpush1.bf16.msra.mxu0 0
        %5872 = vmatprep.subr.bf16.mxu0 0
        %5873 = vmatpush1.bf16.msra.mxu0 0
        %5874 = vmatprep.subr.bf16.mxu0 0
        %5875 = vmatpush1.bf16.msra.mxu0 0
        %5876 = vmatprep.subr.bf16.mxu0 0
        %5877 = vmatpush1.bf16.msra.mxu0 0
        %5878 = vmatprep.subr.bf16.mxu0 0
        %5879 = vmatpush1.bf16.msra.mxu0 0
        %5880 = vmatprep.subr.bf16.mxu0 0
        %5881 = vmatpush1.bf16.msra.mxu0 0
        %5882 = vmatprep.subr.bf16.mxu0 0
        %5883 = vmatpush1.bf16.msra.mxu0 0
        %5884 = vmatprep.subr.bf16.mxu0 0
        %5885 = vmatpush1.bf16.msra.mxu0 0
        %5886 = vmatprep.subr.bf16.mxu0 0
        %5887 = vmatpush1.bf16.msra.mxu0 0
        %5888 = vmatprep.mubr.bf16.mxu0 0
        %5889 = vmatmul.mubr.bf16.gmra.mrb[0].mxu0 %v5851
        %v5890 = vpop.f32.mrb[0].mxu0
        %v5891 = vadd.f32 0.0, %v5890
        %v5892 = vpop.f32.mrb[0].mxu0
        %v5893 = vpop.f32.mrb[0].mxu0
        %v5894 = vadd.f32 0.0, %v5893
        %v5895 = vpop.f32.mrb[0].mxu0
        %5896 = vmatprep.mubr.bf16.mxu0 0
        %5897 = vmatmul.mubr.bf16.gmra.mrb[0].mxu0 %v5854
        %v5898 = vpop.f32.mrb[0].mxu0
        %v5899 = vadd.f32 0.0, %v5898
        %v5900 = vpop.f32.mrb[0].mxu0
        %v5901 = vpop.f32.mrb[0].mxu0
        %v5902 = vadd.f32 0.0, %v5901
        %v5903 = vpop.f32.mrb[0].mxu0
        %5904 = vdwg.mxu0
        %5905 = vrot.lane.b32.xlu0 %v637, 80
        %v5906 = vpop.permute.xlu0 %5905
        %5907 = vrot.lane.b32.xlu0 %v638, 80
        %v5908 = vpop.permute.xlu0 %5907
        %v5912 = vsel %vm908, %v5720, 0
        %v5915 = vsel %vm908, %v5721, 0
        %5917 = vmatprep.subr.bf16.mxu0 0
        %5918 = vmatpush1.bf16.msra.mxu0 %v5906
        %5919 = vmatprep.subr.bf16.mxu0 0
        %5920 = vmatpush1.bf16.msra.mxu0 %v5908
        %5921 = vmatprep.subr.bf16.mxu0 0
        %5922 = vmatpush1.bf16.msra.mxu0 0
        %5923 = vmatprep.subr.bf16.mxu0 0
        %5924 = vmatpush1.bf16.msra.mxu0 0
        %5925 = vmatprep.subr.bf16.mxu0 0
        %5926 = vmatpush1.bf16.msra.mxu0 0
        %5927 = vmatprep.subr.bf16.mxu0 0
        %5928 = vmatpush1.bf16.msra.mxu0 0
        %5929 = vmatprep.subr.bf16.mxu0 0
        %5930 = vmatpush1.bf16.msra.mxu0 0
        %5931 = vmatprep.subr.bf16.mxu0 0
        %5932 = vmatpush1.bf16.msra.mxu0 0
        %5933 = vmatprep.subr.bf16.mxu0 0
        %5934 = vmatpush1.bf16.msra.mxu0 0
        %5935 = vmatprep.subr.bf16.mxu0 0
        %5936 = vmatpush1.bf16.msra.mxu0 0
        %5937 = vmatprep.subr.bf16.mxu0 0
        %5938 = vmatpush1.bf16.msra.mxu0 0
        %5939 = vmatprep.subr.bf16.mxu0 0
        %5940 = vmatpush1.bf16.msra.mxu0 0
        %5941 = vmatprep.subr.bf16.mxu0 0
        %5942 = vmatpush1.bf16.msra.mxu0 0
        %5943 = vmatprep.subr.bf16.mxu0 0
        %5944 = vmatpush1.bf16.msra.mxu0 0
        %5945 = vmatprep.subr.bf16.mxu0 0
        %5946 = vmatpush1.bf16.msra.mxu0 0
        %5947 = vmatprep.subr.bf16.mxu0 0
        %5948 = vmatpush1.bf16.msra.mxu0 0
        %5949 = vmatprep.mubr.bf16.mxu0 0
        %5950 = vmatmul.mubr.bf16.gmra.mrb[0].mxu0 %v5912
        %v5951 = vpop.f32.mrb[0].mxu0
        %v5952 = vadd.f32 0.0, %v5951
        %v5953 = vpop.f32.mrb[0].mxu0
        %v5954 = vpop.f32.mrb[0].mxu0
        %v5955 = vadd.f32 0.0, %v5954
        %v5956 = vpop.f32.mrb[0].mxu0
        %5957 = vmatprep.mubr.bf16.mxu0 0
        %5958 = vmatmul.mubr.bf16.gmra.mrb[0].mxu0 %v5915
        %v5959 = vpop.f32.mrb[0].mxu0
        %v5960 = vadd.f32 0.0, %v5959
        %v5961 = vpop.f32.mrb[0].mxu0
        %v5962 = vpop.f32.mrb[0].mxu0
        %v5963 = vadd.f32 0.0, %v5962
        %v5964 = vpop.f32.mrb[0].mxu0
        %5965 = vdwg.mxu0
        %5982 = vrot.lane.b32.xlu0 %v5769, 48
        %v5983 = vpop.permute.xlu0 %5982
        %5984 = vrot.lane.b32.xlu0 %v5772, 48
        %v5985 = vpop.permute.xlu0 %5984
        %5986 = vrot.lane.b32.xlu0 %v5777, 48
        %v5987 = vpop.permute.xlu0 %5986
        %5988 = vrot.lane.b32.xlu0 %v5780, 48
        %v5989 = vpop.permute.xlu0 %5988
        %5990 = vrot.lane.b32.xlu0 %v5830, 48
        %v5991 = vpop.permute.xlu0 %5990
        %5992 = vrot.lane.b32.xlu0 %v5833, 48
        %v5993 = vpop.permute.xlu0 %5992
        %5994 = vrot.lane.b32.xlu0 %v5838, 48
        %v5995 = vpop.permute.xlu0 %5994
        %5996 = vrot.lane.b32.xlu0 %v5841, 48
        %v5997 = vpop.permute.xlu0 %5996
        %5998 = vrot.lane.b32.xlu0 %v5891, 48
        %v5999 = vpop.permute.xlu0 %5998
        %6000 = vrot.lane.b32.xlu0 %v5894, 48
        %v6001 = vpop.permute.xlu0 %6000
        %6002 = vrot.lane.b32.xlu0 %v5899, 48
        %v6003 = vpop.permute.xlu0 %6002
        %6004 = vrot.lane.b32.xlu0 %v5902, 48
        %v6005 = vpop.permute.xlu0 %6004
        %6006 = vrot.lane.b32.xlu0 %v5952, 48
        %v6007 = vpop.permute.xlu0 %6006
        %6008 = vrot.lane.b32.xlu0 %v5955, 48
        %v6009 = vpop.permute.xlu0 %6008
        %6010 = vrot.lane.b32.xlu0 %v5960, 48
        %v6011 = vpop.permute.xlu0 %6010
        %6012 = vrot.lane.b32.xlu0 %v5963, 48
        %v6013 = vpop.permute.xlu0 %6012
        %vm6030 = vcmask 458112
        %6031 = vst.msk [vmem:[#allocation2] sm:$0xff] %vm6030, %v5983
        %6032 = vst.msk [vmem:[#allocation2 + $0x8] sm:$0xff] %vm6030, %v5985
        %6033 = vst.msk [vmem:[#allocation2 + $0x10] sm:$0xff] %vm6030, %v5987
        %6034 = vst.msk [vmem:[#allocation2 + $0x18] sm:$0xff] %vm6030, %v5989
        %6035 = vst.msk [vmem:[#allocation2 + $0x20] sm:$0xff] %vm6030, %v5991
        %6036 = vst.msk [vmem:[#allocation2 + $0x28] sm:$0xff] %vm6030, %v5993
        %6037 = vst.msk [vmem:[#allocation2 + $0x30] sm:$0xff] %vm6030, %v5995
        %6038 = vst.msk [vmem:[#allocation2 + $0x38] sm:$0xff] %vm6030, %v5997
        %6039 = vst.msk [vmem:[#allocation2 + $0x40] sm:$0xff] %vm6030, %v5999
        %6040 = vst.msk [vmem:[#allocation2 + $0x48] sm:$0xff] %vm6030, %v6001
        %6041 = vst.msk [vmem:[#allocation2 + $0x50] sm:$0xff] %vm6030, %v6003
        %6042 = vst.msk [vmem:[#allocation2 + $0x58] sm:$0xff] %vm6030, %v6005
        %6043 = vst.msk [vmem:[#allocation2 + $0x60] sm:$0xff] %vm6030, %v6007
        %6044 = vst.msk [vmem:[#allocation2 + $0x68] sm:$0xff] %vm6030, %v6009
        %6045 = vst.msk [vmem:[#allocation2 + $0x70] sm:$0xff] %vm6030, %v6011
        %6046 = vst.msk [vmem:[#allocation2 + $0x78] sm:$0xff] %vm6030, %v6013
        %6047 = vrot.lane.b32.xlu0 %v623, 72
        %v6048 = vpop.permute.xlu0 %6047
        %6049 = vrot.lane.b32.xlu0 %v624, 72
        %v6050 = vpop.permute.xlu0 %6049
        %6051 = vrot.lane.b32.xlu0 %v623, 8
        %v6052 = vpop.permute.xlu0 %6051
        %6053 = vrot.lane.b32.xlu0 %v624, 8
        %v6054 = vpop.permute.xlu0 %6053
        %v6056 = vsel %vm645, %v6048, 0
        %v6059 = vsel %vm645, %v6050, 0
        %v6062 = vsel %vm645, %v6052, 0
        %v6065 = vsel %vm645, %v6054, 0
        %6067 = vmatprep.subr.bf16.mxu0 0
        %6068 = vmatpush1.bf16.xpose.msra.mxu0 %v6062
        %6069 = vmatprep.subr.bf16.mxu0 0
        %6070 = vmatpush1.bf16.xpose.msra.mxu0 %v6065
        %6071 = vmatprep.subr.bf16.mxu0 0
        %6072 = vmatpush1.bf16.xpose.msra.mxu0 0
        %6073 = vmatprep.subr.bf16.mxu0 0
        %6074 = vmatpush1.bf16.xpose.msra.mxu0 0
        %6075 = vmatprep.subr.bf16.mxu0 0
        %6076 = vmatpush1.bf16.xpose.msra.mxu0 0
        %6077 = vmatprep.subr.bf16.mxu0 0
        %6078 = vmatpush1.bf16.xpose.msra.mxu0 0
        %6079 = vmatprep.subr.bf16.mxu0 0
        %6080 = vmatpush1.bf16.xpose.msra.mxu0 0
        %6081 = vmatprep.subr.bf16.mxu0 0
        %6082 = vmatpush1.bf16.xpose.msra.mxu0 0
        %6083 = vmatprep.subr.bf16.mxu0 0
        %6084 = vmatpush1.bf16.xpose.msra.mxu0 0
        %6085 = vmatprep.subr.bf16.mxu0 0
        %6086 = vmatpush1.bf16.xpose.msra.mxu0 0
        %6087 = vmatprep.subr.bf16.mxu0 0
        %6088 = vmatpush1.bf16.xpose.msra.mxu0 0
        %6089 = vmatprep.subr.bf16.mxu0 0
        %6090 = vmatpush1.bf16.xpose.msra.mxu0 0
        %6091 = vmatprep.subr.bf16.mxu0 0
        %6092 = vmatpush1.bf16.xpose.msra.mxu0 0
        %6093 = vmatprep.subr.bf16.mxu0 0
        %6094 = vmatpush1.bf16.xpose.msra.mxu0 0
        %6095 = vmatprep.subr.bf16.mxu0 0
        %6096 = vmatpush1.bf16.xpose.msra.mxu0 0
        %6097 = vmatprep.subr.bf16.mxu0 0
        %6098 = vmatpush1.bf16.xpose.msra.mxu0 0
        %6099 = vmatprep.mubr.bf16.mxu0 0
        %6100 = vmatmul.mubr.bf16.gmra.mrb[0].mxu0 %v6056
        %v6101 = vpop.f32.mrb[0].mxu0
        %v6102 = vadd.f32 0.0, %v6101
        %v6103 = vpop.f32.mrb[0].mxu0
        %v6104 = vpop.f32.mrb[0].mxu0
        %v6105 = vadd.f32 0.0, %v6104
        %v6106 = vpop.f32.mrb[0].mxu0
        %6107 = vmatprep.mubr.bf16.mxu0 0
        %6108 = vmatmul.mubr.bf16.gmra.mrb[0].mxu0 %v6059
        %v6109 = vpop.f32.mrb[0].mxu0
        %v6110 = vadd.f32 0.0, %v6109
        %v6111 = vpop.f32.mrb[0].mxu0
        %v6112 = vpop.f32.mrb[0].mxu0
        %v6113 = vadd.f32 0.0, %v6112
        %v6114 = vpop.f32.mrb[0].mxu0
        %6115 = vdwg.mxu0
        %6116 = vrot.lane.b32.xlu0 %v625, 72
        %v6117 = vpop.permute.xlu0 %6116
        %6118 = vrot.lane.b32.xlu0 %v626, 72
        %v6119 = vpop.permute.xlu0 %6118
        %6120 = vrot.lane.b32.xlu0 %v625, 8
        %v6121 = vpop.permute.xlu0 %6120
        %6122 = vrot.lane.b32.xlu0 %v626, 8
        %v6123 = vpop.permute.xlu0 %6122
        %v6125 = vsel %vm645, %v6117, 0
        %v6128 = vsel %vm645, %v6119, 0
        %v6131 = vsel %vm645, %v6121, 0
        %v6134 = vsel %vm645, %v6123, 0
        %6136 = vmatprep.subr.bf16.mxu0 0
        %6137 = vmatpush1.bf16.xpose.msra.mxu0 %v6131
        %6138 = vmatprep.subr.bf16.mxu0 0
        %6139 = vmatpush1.bf16.xpose.msra.mxu0 %v6134
        %6140 = vmatprep.subr.bf16.mxu0 0
        %6141 = vmatpush1.bf16.xpose.msra.mxu0 0
        %6142 = vmatprep.subr.bf16.mxu0 0
        %6143 = vmatpush1.bf16.xpose.msra.mxu0 0
        %6144 = vmatprep.subr.bf16.mxu0 0
        %6145 = vmatpush1.bf16.xpose.msra.mxu0 0
        %6146 = vmatprep.subr.bf16.mxu0 0
        %6147 = vmatpush1.bf16.xpose.msra.mxu0 0
        %6148 = vmatprep.subr.bf16.mxu0 0
        %6149 = vmatpush1.bf16.xpose.msra.mxu0 0
        %6150 = vmatprep.subr.bf16.mxu0 0
        %6151 = vmatpush1.bf16.xpose.msra.mxu0 0
        %6152 = vmatprep.subr.bf16.mxu0 0
        %6153 = vmatpush1.bf16.xpose.msra.mxu0 0
        %6154 = vmatprep.subr.bf16.mxu0 0
        %6155 = vmatpush1.bf16.xpose.msra.mxu0 0
        %6156 = vmatprep.subr.bf16.mxu0 0
        %6157 = vmatpush1.bf16.xpose.msra.mxu0 0
        %6158 = vmatprep.subr.bf16.mxu0 0
        %6159 = vmatpush1.bf16.xpose.msra.mxu0 0
        %6160 = vmatprep.subr.bf16.mxu0 0
        %6161 = vmatpush1.bf16.xpose.msra.mxu0 0
        %6162 = vmatprep.subr.bf16.mxu0 0
        %6163 = vmatpush1.bf16.xpose.msra.mxu0 0
        %6164 = vmatprep.subr.bf16.mxu0 0
        %6165 = vmatpush1.bf16.xpose.msra.mxu0 0
        %6166 = vmatprep.subr.bf16.mxu0 0
        %6167 = vmatpush1.bf16.xpose.msra.mxu0 0
        %6168 = vmatprep.mubr.bf16.mxu0 0
        %6169 = vmatmul.mubr.bf16.gmra.mrb[0].mxu0 %v6125
        %v6170 = vpop.f32.mrb[0].mxu0
        %v6171 = vadd.f32 0.0, %v6170
        %v6172 = vpop.f32.mrb[0].mxu0
        %v6173 = vpop.f32.mrb[0].mxu0
        %v6174 = vadd.f32 0.0, %v6173
        %v6175 = vpop.f32.mrb[0].mxu0
        %6176 = vmatprep.mubr.bf16.mxu0 0
        %6177 = vmatmul.mubr.bf16.gmra.mrb[0].mxu0 %v6128
        %v6178 = vpop.f32.mrb[0].mxu0
        %v6179 = vadd.f32 0.0, %v6178
        %v6180 = vpop.f32.mrb[0].mxu0
        %v6181 = vpop.f32.mrb[0].mxu0
        %v6182 = vadd.f32 0.0, %v6181
        %v6183 = vpop.f32.mrb[0].mxu0
        %6184 = vdwg.mxu0
        %6185 = vrot.lane.b32.xlu0 %v627, 72
        %v6186 = vpop.permute.xlu0 %6185
        %6187 = vrot.lane.b32.xlu0 %v628, 72
        %v6188 = vpop.permute.xlu0 %6187
        %6189 = vrot.lane.b32.xlu0 %v627, 8
        %v6190 = vpop.permute.xlu0 %6189
        %6191 = vrot.lane.b32.xlu0 %v628, 8
        %v6192 = vpop.permute.xlu0 %6191
        %v6194 = vsel %vm645, %v6186, 0
        %v6197 = vsel %vm645, %v6188, 0
        %v6200 = vsel %vm645, %v6190, 0
        %v6203 = vsel %vm645, %v6192, 0
        %6205 = vmatprep.subr.bf16.mxu0 0
        %6206 = vmatpush1.bf16.xpose.msra.mxu0 %v6200
        %6207 = vmatprep.subr.bf16.mxu0 0
        %6208 = vmatpush1.bf16.xpose.msra.mxu0 %v6203
        %6209 = vmatprep.subr.bf16.mxu0 0
        %6210 = vmatpush1.bf16.xpose.msra.mxu0 0
        %6211 = vmatprep.subr.bf16.mxu0 0
        %6212 = vmatpush1.bf16.xpose.msra.mxu0 0
        %6213 = vmatprep.subr.bf16.mxu0 0
        %6214 = vmatpush1.bf16.xpose.msra.mxu0 0
        %6215 = vmatprep.subr.bf16.mxu0 0
        %6216 = vmatpush1.bf16.xpose.msra.mxu0 0
        %6217 = vmatprep.subr.bf16.mxu0 0
        %6218 = vmatpush1.bf16.xpose.msra.mxu0 0
        %6219 = vmatprep.subr.bf16.mxu0 0
        %6220 = vmatpush1.bf16.xpose.msra.mxu0 0
        %6221 = vmatprep.subr.bf16.mxu0 0
        %6222 = vmatpush1.bf16.xpose.msra.mxu0 0
        %6223 = vmatprep.subr.bf16.mxu0 0
        %6224 = vmatpush1.bf16.xpose.msra.mxu0 0
        %6225 = vmatprep.subr.bf16.mxu0 0
        %6226 = vmatpush1.bf16.xpose.msra.mxu0 0
        %6227 = vmatprep.subr.bf16.mxu0 0
        %6228 = vmatpush1.bf16.xpose.msra.mxu0 0
        %6229 = vmatprep.subr.bf16.mxu0 0
        %6230 = vmatpush1.bf16.xpose.msra.mxu0 0
        %6231 = vmatprep.subr.bf16.mxu0 0
        %6232 = vmatpush1.bf16.xpose.msra.mxu0 0
        %6233 = vmatprep.subr.bf16.mxu0 0
        %6234 = vmatpush1.bf16.xpose.msra.mxu0 0
        %6235 = vmatprep.subr.bf16.mxu0 0
        %6236 = vmatpush1.bf16.xpose.msra.mxu0 0
        %6237 = vmatprep.mubr.bf16.mxu0 0
        %6238 = vmatmul.mubr.bf16.gmra.mrb[0].mxu0 %v6194
        %v6239 = vpop.f32.mrb[0].mxu0
        %v6240 = vadd.f32 0.0, %v6239
        %v6241 = vpop.f32.mrb[0].mxu0
        %v6242 = vpop.f32.mrb[0].mxu0
        %v6243 = vadd.f32 0.0, %v6242
        %v6244 = vpop.f32.mrb[0].mxu0
        %6245 = vmatprep.mubr.bf16.mxu0 0
        %6246 = vmatmul.mubr.bf16.gmra.mrb[0].mxu0 %v6197
        %v6247 = vpop.f32.mrb[0].mxu0
        %v6248 = vadd.f32 0.0, %v6247
        %v6249 = vpop.f32.mrb[0].mxu0
        %v6250 = vpop.f32.mrb[0].mxu0
        %v6251 = vadd.f32 0.0, %v6250
        %v6252 = vpop.f32.mrb[0].mxu0
        %6253 = vdwg.mxu0
        %6254 = vrot.lane.b32.xlu0 %v629, 72
        %v6255 = vpop.permute.xlu0 %6254
        %6256 = vrot.lane.b32.xlu0 %v630, 72
        %v6257 = vpop.permute.xlu0 %6256
        %6258 = vrot.lane.b32.xlu0 %v629, 8
        %v6259 = vpop.permute.xlu0 %6258
        %6260 = vrot.lane.b32.xlu0 %v630, 8
        %v6261 = vpop.permute.xlu0 %6260
        %v6263 = vsel %vm645, %v6255, 0
        %v6266 = vsel %vm645, %v6257, 0
        %v6269 = vsel %vm645, %v6259, 0
        %v6272 = vsel %vm645, %v6261, 0
        %6274 = vmatprep.subr.bf16.mxu0 0
        %6275 = vmatpush1.bf16.xpose.msra.mxu0 %v6269
        %6276 = vmatprep.subr.bf16.mxu0 0
        %6277 = vmatpush1.bf16.xpose.msra.mxu0 %v6272
        %6278 = vmatprep.subr.bf16.mxu0 0
        %6279 = vmatpush1.bf16.xpose.msra.mxu0 0
        %6280 = vmatprep.subr.bf16.mxu0 0
        %6281 = vmatpush1.bf16.xpose.msra.mxu0 0
        %6282 = vmatprep.subr.bf16.mxu0 0
        %6283 = vmatpush1.bf16.xpose.msra.mxu0 0
        %6284 = vmatprep.subr.bf16.mxu0 0
        %6285 = vmatpush1.bf16.xpose.msra.mxu0 0
        %6286 = vmatprep.subr.bf16.mxu0 0
        %6287 = vmatpush1.bf16.xpose.msra.mxu0 0
        %6288 = vmatprep.subr.bf16.mxu0 0
        %6289 = vmatpush1.bf16.xpose.msra.mxu0 0
        %6290 = vmatprep.subr.bf16.mxu0 0
        %6291 = vmatpush1.bf16.xpose.msra.mxu0 0
        %6292 = vmatprep.subr.bf16.mxu0 0
        %6293 = vmatpush1.bf16.xpose.msra.mxu0 0
        %6294 = vmatprep.subr.bf16.mxu0 0
        %6295 = vmatpush1.bf16.xpose.msra.mxu0 0
        %6296 = vmatprep.subr.bf16.mxu0 0
        %6297 = vmatpush1.bf16.xpose.msra.mxu0 0
        %6298 = vmatprep.subr.bf16.mxu0 0
        %6299 = vmatpush1.bf16.xpose.msra.mxu0 0
        %6300 = vmatprep.subr.bf16.mxu0 0
        %6301 = vmatpush1.bf16.xpose.msra.mxu0 0
        %6302 = vmatprep.subr.bf16.mxu0 0
        %6303 = vmatpush1.bf16.xpose.msra.mxu0 0
        %6304 = vmatprep.subr.bf16.mxu0 0
        %6305 = vmatpush1.bf16.xpose.msra.mxu0 0
        %6306 = vmatprep.mubr.bf16.mxu0 0
        %6307 = vmatmul.mubr.bf16.gmra.mrb[0].mxu0 %v6263
        %v6308 = vpop.f32.mrb[0].mxu0
        %v6309 = vadd.f32 0.0, %v6308
        %v6310 = vpop.f32.mrb[0].mxu0
        %v6311 = vpop.f32.mrb[0].mxu0
        %v6312 = vadd.f32 0.0, %v6311
        %v6313 = vpop.f32.mrb[0].mxu0
        %6314 = vmatprep.mubr.bf16.mxu0 0
        %6315 = vmatmul.mubr.bf16.gmra.mrb[0].mxu0 %v6266
        %v6316 = vpop.f32.mrb[0].mxu0
        %v6317 = vadd.f32 0.0, %v6316
        %v6318 = vpop.f32.mrb[0].mxu0
        %v6319 = vpop.f32.mrb[0].mxu0
        %v6320 = vadd.f32 0.0, %v6319
        %v6321 = vpop.f32.mrb[0].mxu0
        %6322 = vdwg.mxu0
        %v6323 = vsel %vm908, %v6102, -inf
        %6324 = vmax.xlane.f32.xlu0 %v6323
        %v6325 = vpop.xlane.xlu0 %6324
        %v6326 = vsel %vm908, %v6105, -inf
        %6327 = vmax.xlane.f32.xlu0 %v6326
        %v6328 = vpop.xlane.xlu0 %6327
        %v6329 = vsel %vm908, %v6110, -inf
        %6330 = vmax.xlane.f32.xlu0 %v6329
        %v6331 = vpop.xlane.xlu0 %6330
        %v6332 = vsel %vm908, %v6113, -inf
        %6333 = vmax.xlane.f32.xlu0 %v6332
        %v6334 = vpop.xlane.xlu0 %6333
        %v6335 = vsel %vm908, %v6171, -inf
        %6336 = vmax.xlane.f32.xlu0 %v6335
        %v6337 = vpop.xlane.xlu0 %6336
        %v6338 = vsel %vm908, %v6174, -inf
        %6339 = vmax.xlane.f32.xlu0 %v6338
        %v6340 = vpop.xlane.xlu0 %6339
        %v6341 = vsel %vm908, %v6179, -inf
        %6342 = vmax.xlane.f32.xlu0 %v6341
        %v6343 = vpop.xlane.xlu0 %6342
        %v6344 = vsel %vm908, %v6182, -inf
        %6345 = vmax.xlane.f32.xlu0 %v6344
        %v6346 = vpop.xlane.xlu0 %6345
        %v6347 = vsel %vm908, %v6240, -inf
        %6348 = vmax.xlane.f32.xlu0 %v6347
        %v6349 = vpop.xlane.xlu0 %6348
        %v6350 = vsel %vm908, %v6243, -inf
        %6351 = vmax.xlane.f32.xlu0 %v6350
        %v6352 = vpop.xlane.xlu0 %6351
        %v6353 = vsel %vm908, %v6248, -inf
        %6354 = vmax.xlane.f32.xlu0 %v6353
        %v6355 = vpop.xlane.xlu0 %6354
        %v6356 = vsel %vm908, %v6251, -inf
        %6357 = vmax.xlane.f32.xlu0 %v6356
        %v6358 = vpop.xlane.xlu0 %6357
        %v6359 = vsel %vm908, %v6309, -inf
        %6360 = vmax.xlane.f32.xlu0 %v6359
        %v6361 = vpop.xlane.xlu0 %6360
        %v6362 = vsel %vm908, %v6312, -inf
        %6363 = vmax.xlane.f32.xlu0 %v6362
        %v6364 = vpop.xlane.xlu0 %6363
        %v6365 = vsel %vm908, %v6317, -inf
        %6366 = vmax.xlane.f32.xlu0 %v6365
        %v6367 = vpop.xlane.xlu0 %6366
        %v6368 = vsel %vm908, %v6320, -inf
        %6369 = vmax.xlane.f32.xlu0 %v6368
        %v6370 = vpop.xlane.xlu0 %6369
        %v6371 = vsub.f32 %v6102, %v6325
        %v6372 = vsub.f32 %v6105, %v6328
        %v6373 = vsub.f32 %v6110, %v6331
        %v6374 = vsub.f32 %v6113, %v6334
        %v6375 = vsub.f32 %v6171, %v6337
        %v6376 = vsub.f32 %v6174, %v6340
        %v6377 = vsub.f32 %v6179, %v6343
        %v6378 = vsub.f32 %v6182, %v6346
        %v6379 = vsub.f32 %v6240, %v6349
        %v6380 = vsub.f32 %v6243, %v6352
        %v6381 = vsub.f32 %v6248, %v6355
        %v6382 = vsub.f32 %v6251, %v6358
        %v6383 = vsub.f32 %v6309, %v6361
        %v6384 = vsub.f32 %v6312, %v6364
        %v6385 = vsub.f32 %v6317, %v6367
        %v6386 = vsub.f32 %v6320, %v6370
        %v6387 = vmul.f32 %v6371, 1.442695
        %v6388 = vpow.pop %v6387
        %v6389 = vmul.f32 %v6372, 1.442695
        %v6390 = vpow.pop %v6389
        %v6391 = vmul.f32 %v6373, 1.442695
        %v6392 = vpow.pop %v6391
        %v6393 = vmul.f32 %v6374, 1.442695
        %v6394 = vpow.pop %v6393
        %v6395 = vmul.f32 %v6375, 1.442695
        %v6396 = vpow.pop %v6395
        %v6397 = vmul.f32 %v6376, 1.442695
        %v6398 = vpow.pop %v6397
        %v6399 = vmul.f32 %v6377, 1.442695
        %v6400 = vpow.pop %v6399
        %v6401 = vmul.f32 %v6378, 1.442695
        %v6402 = vpow.pop %v6401
        %v6403 = vmul.f32 %v6379, 1.442695
        %v6404 = vpow.pop %v6403
        %v6405 = vmul.f32 %v6380, 1.442695
        %v6406 = vpow.pop %v6405
        %v6407 = vmul.f32 %v6381, 1.442695
        %v6408 = vpow.pop %v6407
        %v6409 = vmul.f32 %v6382, 1.442695
        %v6410 = vpow.pop %v6409
        %v6411 = vmul.f32 %v6383, 1.442695
        %v6412 = vpow.pop %v6411
        %v6413 = vmul.f32 %v6384, 1.442695
        %v6414 = vpow.pop %v6413
        %v6415 = vmul.f32 %v6385, 1.442695
        %v6416 = vpow.pop %v6415
        %v6417 = vmul.f32 %v6386, 1.442695
        %v6418 = vpow.pop %v6417
        %v6419 = vsel %vm908, %v6388, 0.0
        %6420 = vadd.xlane.f32.xlu0 %v6419
        %v6421 = vpop.xlane.xlu0 %6420
        %v6422 = vsel %vm908, %v6390, 0.0
        %6423 = vadd.xlane.f32.xlu0 %v6422
        %v6424 = vpop.xlane.xlu0 %6423
        %v6425 = vsel %vm908, %v6392, 0.0
        %6426 = vadd.xlane.f32.xlu0 %v6425
        %v6427 = vpop.xlane.xlu0 %6426
        %v6428 = vsel %vm908, %v6394, 0.0
        %6429 = vadd.xlane.f32.xlu0 %v6428
        %v6430 = vpop.xlane.xlu0 %6429
        %v6431 = vsel %vm908, %v6396, 0.0
        %6432 = vadd.xlane.f32.xlu0 %v6431
        %v6433 = vpop.xlane.xlu0 %6432
        %v6434 = vsel %vm908, %v6398, 0.0
        %6435 = vadd.xlane.f32.xlu0 %v6434
        %v6436 = vpop.xlane.xlu0 %6435
        %v6437 = vsel %vm908, %v6400, 0.0
        %6438 = vadd.xlane.f32.xlu0 %v6437
        %v6439 = vpop.xlane.xlu0 %6438
        %v6440 = vsel %vm908, %v6402, 0.0
        %6441 = vadd.xlane.f32.xlu0 %v6440
        %v6442 = vpop.xlane.xlu0 %6441
        %v6443 = vsel %vm908, %v6404, 0.0
        %6444 = vadd.xlane.f32.xlu0 %v6443
        %v6445 = vpop.xlane.xlu0 %6444
        %v6446 = vsel %vm908, %v6406, 0.0
        %6447 = vadd.xlane.f32.xlu0 %v6446
        %v6448 = vpop.xlane.xlu0 %6447
        %v6449 = vsel %vm908, %v6408, 0.0
        %6450 = vadd.xlane.f32.xlu0 %v6449
        %v6451 = vpop.xlane.xlu0 %6450
        %v6452 = vsel %vm908, %v6410, 0.0
        %6453 = vadd.xlane.f32.xlu0 %v6452
        %v6454 = vpop.xlane.xlu0 %6453
        %v6455 = vsel %vm908, %v6412, 0.0
        %6456 = vadd.xlane.f32.xlu0 %v6455
        %v6457 = vpop.xlane.xlu0 %6456
        %v6458 = vsel %vm908, %v6414, 0.0
        %6459 = vadd.xlane.f32.xlu0 %v6458
        %v6460 = vpop.xlane.xlu0 %6459
        %v6461 = vsel %vm908, %v6416, 0.0
        %6462 = vadd.xlane.f32.xlu0 %v6461
        %v6463 = vpop.xlane.xlu0 %6462
        %v6464 = vsel %vm908, %v6418, 0.0
        %6465 = vadd.xlane.f32.xlu0 %v6464
        %v6466 = vpop.xlane.xlu0 %6465
        %v6467 = vrcp.pop %v6421
        %v6468 = vmul.f32 %v6388, %v6467
        %v6469 = vrcp.pop %v6424
        %v6470 = vmul.f32 %v6390, %v6469
        %v6471 = vrcp.pop %v6427
        %v6472 = vmul.f32 %v6392, %v6471
        %v6473 = vrcp.pop %v6430
        %v6474 = vmul.f32 %v6394, %v6473
        %v6475 = vrcp.pop %v6433
        %v6476 = vmul.f32 %v6396, %v6475
        %v6477 = vrcp.pop %v6436
        %v6478 = vmul.f32 %v6398, %v6477
        %v6479 = vrcp.pop %v6439
        %v6480 = vmul.f32 %v6400, %v6479
        %v6481 = vrcp.pop %v6442
        %v6482 = vmul.f32 %v6402, %v6481
        %v6483 = vrcp.pop %v6445
        %v6484 = vmul.f32 %v6404, %v6483
        %v6485 = vrcp.pop %v6448
        %v6486 = vmul.f32 %v6406, %v6485
        %v6487 = vrcp.pop %v6451
        %v6488 = vmul.f32 %v6408, %v6487
        %v6489 = vrcp.pop %v6454
        %v6490 = vmul.f32 %v6410, %v6489
        %v6491 = vrcp.pop %v6457
        %v6492 = vmul.f32 %v6412, %v6491
        %v6493 = vrcp.pop %v6460
        %v6494 = vmul.f32 %v6414, %v6493
        %v6495 = vrcp.pop %v6463
        %v6496 = vmul.f32 %v6416, %v6495
        %v6497 = vrcp.pop %v6466
        %v6498 = vmul.f32 %v6418, %v6497
        %v6499 = vpack.c.bf16 %v6470, %v6468
        %v6500 = vpack.c.bf16 %v6474, %v6472
        %v6501 = vpack.c.bf16 %v6478, %v6476
        %v6502 = vpack.c.bf16 %v6482, %v6480
        %v6503 = vpack.c.bf16 %v6486, %v6484
        %v6504 = vpack.c.bf16 %v6490, %v6488
        %v6505 = vpack.c.bf16 %v6494, %v6492
        %v6506 = vpack.c.bf16 %v6498, %v6496
        %6507 = vrot.lane.b32.xlu0 %v631, 72
        %v6508 = vpop.permute.xlu0 %6507
        %6509 = vrot.lane.b32.xlu0 %v632, 72
        %v6510 = vpop.permute.xlu0 %6509
        %v6514 = vsel %vm908, %v6499, 0
        %v6517 = vsel %vm908, %v6500, 0
        %6519 = vmatprep.subr.bf16.mxu0 0
        %6520 = vmatpush1.bf16.msra.mxu0 %v6508
        %6521 = vmatprep.subr.bf16.mxu0 0
        %6522 = vmatpush1.bf16.msra.mxu0 %v6510
        %6523 = vmatprep.subr.bf16.mxu0 0
        %6524 = vmatpush1.bf16.msra.mxu0 0
        %6525 = vmatprep.subr.bf16.mxu0 0
        %6526 = vmatpush1.bf16.msra.mxu0 0
        %6527 = vmatprep.subr.bf16.mxu0 0
        %6528 = vmatpush1.bf16.msra.mxu0 0
        %6529 = vmatprep.subr.bf16.mxu0 0
        %6530 = vmatpush1.bf16.msra.mxu0 0
        %6531 = vmatprep.subr.bf16.mxu0 0
        %6532 = vmatpush1.bf16.msra.mxu0 0
        %6533 = vmatprep.subr.bf16.mxu0 0
        %6534 = vmatpush1.bf16.msra.mxu0 0
        %6535 = vmatprep.subr.bf16.mxu0 0
        %6536 = vmatpush1.bf16.msra.mxu0 0
        %6537 = vmatprep.subr.bf16.mxu0 0
        %6538 = vmatpush1.bf16.msra.mxu0 0
        %6539 = vmatprep.subr.bf16.mxu0 0
        %6540 = vmatpush1.bf16.msra.mxu0 0
        %6541 = vmatprep.subr.bf16.mxu0 0
        %6542 = vmatpush1.bf16.msra.mxu0 0
        %6543 = vmatprep.subr.bf16.mxu0 0
        %6544 = vmatpush1.bf16.msra.mxu0 0
        %6545 = vmatprep.subr.bf16.mxu0 0
        %6546 = vmatpush1.bf16.msra.mxu0 0
        %6547 = vmatprep.subr.bf16.mxu0 0
        %6548 = vmatpush1.bf16.msra.mxu0 0
        %6549 = vmatprep.subr.bf16.mxu0 0
        %6550 = vmatpush1.bf16.msra.mxu0 0
        %6551 = vmatprep.mubr.bf16.mxu0 0
        %6552 = vmatmul.mubr.bf16.gmra.mrb[0].mxu0 %v6514
        %v6553 = vpop.f32.mrb[0].mxu0
        %v6554 = vadd.f32 0.0, %v6553
        %v6555 = vpop.f32.mrb[0].mxu0
        %v6556 = vpop.f32.mrb[0].mxu0
        %v6557 = vadd.f32 0.0, %v6556
        %v6558 = vpop.f32.mrb[0].mxu0
        %6559 = vmatprep.mubr.bf16.mxu0 0
        %6560 = vmatmul.mubr.bf16.gmra.mrb[0].mxu0 %v6517
        %v6561 = vpop.f32.mrb[0].mxu0
        %v6562 = vadd.f32 0.0, %v6561
        %v6563 = vpop.f32.mrb[0].mxu0
        %v6564 = vpop.f32.mrb[0].mxu0
        %v6565 = vadd.f32 0.0, %v6564
        %v6566 = vpop.f32.mrb[0].mxu0
        %6567 = vdwg.mxu0
        %6568 = vrot.lane.b32.xlu0 %v633, 72
        %v6569 = vpop.permute.xlu0 %6568
        %6570 = vrot.lane.b32.xlu0 %v634, 72
        %v6571 = vpop.permute.xlu0 %6570
        %v6575 = vsel %vm908, %v6501, 0
        %v6578 = vsel %vm908, %v6502, 0
        %6580 = vmatprep.subr.bf16.mxu0 0
        %6581 = vmatpush1.bf16.msra.mxu0 %v6569
        %6582 = vmatprep.subr.bf16.mxu0 0
        %6583 = vmatpush1.bf16.msra.mxu0 %v6571
        %6584 = vmatprep.subr.bf16.mxu0 0
        %6585 = vmatpush1.bf16.msra.mxu0 0
        %6586 = vmatprep.subr.bf16.mxu0 0
        %6587 = vmatpush1.bf16.msra.mxu0 0
        %6588 = vmatprep.subr.bf16.mxu0 0
        %6589 = vmatpush1.bf16.msra.mxu0 0
        %6590 = vmatprep.subr.bf16.mxu0 0
        %6591 = vmatpush1.bf16.msra.mxu0 0
        %6592 = vmatprep.subr.bf16.mxu0 0
        %6593 = vmatpush1.bf16.msra.mxu0 0
        %6594 = vmatprep.subr.bf16.mxu0 0
        %6595 = vmatpush1.bf16.msra.mxu0 0
        %6596 = vmatprep.subr.bf16.mxu0 0
        %6597 = vmatpush1.bf16.msra.mxu0 0
        %6598 = vmatprep.subr.bf16.mxu0 0
        %6599 = vmatpush1.bf16.msra.mxu0 0
        %6600 = vmatprep.subr.bf16.mxu0 0
        %6601 = vmatpush1.bf16.msra.mxu0 0
        %6602 = vmatprep.subr.bf16.mxu0 0
        %6603 = vmatpush1.bf16.msra.mxu0 0
        %6604 = vmatprep.subr.bf16.mxu0 0
        %6605 = vmatpush1.bf16.msra.mxu0 0
        %6606 = vmatprep.subr.bf16.mxu0 0
        %6607 = vmatpush1.bf16.msra.mxu0 0
        %6608 = vmatprep.subr.bf16.mxu0 0
        %6609 = vmatpush1.bf16.msra.mxu0 0
        %6610 = vmatprep.subr.bf16.mxu0 0
        %6611 = vmatpush1.bf16.msra.mxu0 0
        %6612 = vmatprep.mubr.bf16.mxu0 0
        %6613 = vmatmul.mubr.bf16.gmra.mrb[0].mxu0 %v6575
        %v6614 = vpop.f32.mrb[0].mxu0
        %v6615 = vadd.f32 0.0, %v6614
        %v6616 = vpop.f32.mrb[0].mxu0
        %v6617 = vpop.f32.mrb[0].mxu0
        %v6618 = vadd.f32 0.0, %v6617
        %v6619 = vpop.f32.mrb[0].mxu0
        %6620 = vmatprep.mubr.bf16.mxu0 0
        %6621 = vmatmul.mubr.bf16.gmra.mrb[0].mxu0 %v6578
        %v6622 = vpop.f32.mrb[0].mxu0
        %v6623 = vadd.f32 0.0, %v6622
        %v6624 = vpop.f32.mrb[0].mxu0
        %v6625 = vpop.f32.mrb[0].mxu0
        %v6626 = vadd.f32 0.0, %v6625
        %v6627 = vpop.f32.mrb[0].mxu0
        %6628 = vdwg.mxu0
        %6629 = vrot.lane.b32.xlu0 %v635, 72
        %v6630 = vpop.permute.xlu0 %6629
        %6631 = vrot.lane.b32.xlu0 %v636, 72
        %v6632 = vpop.permute.xlu0 %6631
        %v6636 = vsel %vm908, %v6503, 0
        %v6639 = vsel %vm908, %v6504, 0
        %6641 = vmatprep.subr.bf16.mxu0 0
        %6642 = vmatpush1.bf16.msra.mxu0 %v6630
        %6643 = vmatprep.subr.bf16.mxu0 0
        %6644 = vmatpush1.bf16.msra.mxu0 %v6632
        %6645 = vmatprep.subr.bf16.mxu0 0
        %6646 = vmatpush1.bf16.msra.mxu0 0
        %6647 = vmatprep.subr.bf16.mxu0 0
        %6648 = vmatpush1.bf16.msra.mxu0 0
        %6649 = vmatprep.subr.bf16.mxu0 0
        %6650 = vmatpush1.bf16.msra.mxu0 0
        %6651 = vmatprep.subr.bf16.mxu0 0
        %6652 = vmatpush1.bf16.msra.mxu0 0
        %6653 = vmatprep.subr.bf16.mxu0 0
        %6654 = vmatpush1.bf16.msra.mxu0 0
        %6655 = vmatprep.subr.bf16.mxu0 0
        %6656 = vmatpush1.bf16.msra.mxu0 0
        %6657 = vmatprep.subr.bf16.mxu0 0
        %6658 = vmatpush1.bf16.msra.mxu0 0
        %6659 = vmatprep.subr.bf16.mxu0 0
        %6660 = vmatpush1.bf16.msra.mxu0 0
        %6661 = vmatprep.subr.bf16.mxu0 0
        %6662 = vmatpush1.bf16.msra.mxu0 0
        %6663 = vmatprep.subr.bf16.mxu0 0
        %6664 = vmatpush1.bf16.msra.mxu0 0
        %6665 = vmatprep.subr.bf16.mxu0 0
        %6666 = vmatpush1.bf16.msra.mxu0 0
        %6667 = vmatprep.subr.bf16.mxu0 0
        %6668 = vmatpush1.bf16.msra.mxu0 0
        %6669 = vmatprep.subr.bf16.mxu0 0
        %6670 = vmatpush1.bf16.msra.mxu0 0
        %6671 = vmatprep.subr.bf16.mxu0 0
        %6672 = vmatpush1.bf16.msra.mxu0 0
        %6673 = vmatprep.mubr.bf16.mxu0 0
        %6674 = vmatmul.mubr.bf16.gmra.mrb[0].mxu0 %v6636
        %v6675 = vpop.f32.mrb[0].mxu0
        %v6676 = vadd.f32 0.0, %v6675
        %v6677 = vpop.f32.mrb[0].mxu0
        %v6678 = vpop.f32.mrb[0].mxu0
        %v6679 = vadd.f32 0.0, %v6678
        %v6680 = vpop.f32.mrb[0].mxu0
        %6681 = vmatprep.mubr.bf16.mxu0 0
        %6682 = vmatmul.mubr.bf16.gmra.mrb[0].mxu0 %v6639
        %v6683 = vpop.f32.mrb[0].mxu0
        %v6684 = vadd.f32 0.0, %v6683
        %v6685 = vpop.f32.mrb[0].mxu0
        %v6686 = vpop.f32.mrb[0].mxu0
        %v6687 = vadd.f32 0.0, %v6686
        %v6688 = vpop.f32.mrb[0].mxu0
        %6689 = vdwg.mxu0
        %6690 = vrot.lane.b32.xlu0 %v637, 72
        %v6691 = vpop.permute.xlu0 %6690
        %6692 = vrot.lane.b32.xlu0 %v638, 72
        %v6693 = vpop.permute.xlu0 %6692
        %v6697 = vsel %vm908, %v6505, 0
        %v6700 = vsel %vm908, %v6506, 0
        %6702 = vmatprep.subr.bf16.mxu0 0
        %6703 = vmatpush1.bf16.msra.mxu0 %v6691
        %6704 = vmatprep.subr.bf16.mxu0 0
        %6705 = vmatpush1.bf16.msra.mxu0 %v6693
        %6706 = vmatprep.subr.bf16.mxu0 0
        %6707 = vmatpush1.bf16.msra.mxu0 0
        %6708 = vmatprep.subr.bf16.mxu0 0
        %6709 = vmatpush1.bf16.msra.mxu0 0
        %6710 = vmatprep.subr.bf16.mxu0 0
        %6711 = vmatpush1.bf16.msra.mxu0 0
        %6712 = vmatprep.subr.bf16.mxu0 0
        %6713 = vmatpush1.bf16.msra.mxu0 0
        %6714 = vmatprep.subr.bf16.mxu0 0
        %6715 = vmatpush1.bf16.msra.mxu0 0
        %6716 = vmatprep.subr.bf16.mxu0 0
        %6717 = vmatpush1.bf16.msra.mxu0 0
        %6718 = vmatprep.subr.bf16.mxu0 0
        %6719 = vmatpush1.bf16.msra.mxu0 0
        %6720 = vmatprep.subr.bf16.mxu0 0
        %6721 = vmatpush1.bf16.msra.mxu0 0
        %6722 = vmatprep.subr.bf16.mxu0 0
        %6723 = vmatpush1.bf16.msra.mxu0 0
        %6724 = vmatprep.subr.bf16.mxu0 0
        %6725 = vmatpush1.bf16.msra.mxu0 0
        %6726 = vmatprep.subr.bf16.mxu0 0
        %6727 = vmatpush1.bf16.msra.mxu0 0
        %6728 = vmatprep.subr.bf16.mxu0 0
        %6729 = vmatpush1.bf16.msra.mxu0 0
        %6730 = vmatprep.subr.bf16.mxu0 0
        %6731 = vmatpush1.bf16.msra.mxu0 0
        %6732 = vmatprep.subr.bf16.mxu0 0
        %6733 = vmatpush1.bf16.msra.mxu0 0
        %6734 = vmatprep.mubr.bf16.mxu0 0
        %6735 = vmatmul.mubr.bf16.gmra.mrb[0].mxu0 %v6697
        %v6736 = vpop.f32.mrb[0].mxu0
        %v6737 = vadd.f32 0.0, %v6736
        %v6738 = vpop.f32.mrb[0].mxu0
        %v6739 = vpop.f32.mrb[0].mxu0
        %v6740 = vadd.f32 0.0, %v6739
        %v6741 = vpop.f32.mrb[0].mxu0
        %6742 = vmatprep.mubr.bf16.mxu0 0
        %6743 = vmatmul.mubr.bf16.gmra.mrb[0].mxu0 %v6700
        %v6744 = vpop.f32.mrb[0].mxu0
        %v6745 = vadd.f32 0.0, %v6744
        %v6746 = vpop.f32.mrb[0].mxu0
        %v6747 = vpop.f32.mrb[0].mxu0
        %v6748 = vadd.f32 0.0, %v6747
        %v6749 = vpop.f32.mrb[0].mxu0
        %6750 = vdwg.mxu0
        %6767 = vrot.lane.b32.xlu0 %v6554, 56
        %v6768 = vpop.permute.xlu0 %6767
        %6769 = vrot.lane.b32.xlu0 %v6557, 56
        %v6770 = vpop.permute.xlu0 %6769
        %6771 = vrot.lane.b32.xlu0 %v6562, 56
        %v6772 = vpop.permute.xlu0 %6771
        %6773 = vrot.lane.b32.xlu0 %v6565, 56
        %v6774 = vpop.permute.xlu0 %6773
        %6775 = vrot.lane.b32.xlu0 %v6615, 56
        %v6776 = vpop.permute.xlu0 %6775
        %6777 = vrot.lane.b32.xlu0 %v6618, 56
        %v6778 = vpop.permute.xlu0 %6777
        %6779 = vrot.lane.b32.xlu0 %v6623, 56
        %v6780 = vpop.permute.xlu0 %6779
        %6781 = vrot.lane.b32.xlu0 %v6626, 56
        %v6782 = vpop.permute.xlu0 %6781
        %6783 = vrot.lane.b32.xlu0 %v6676, 56
        %v6784 = vpop.permute.xlu0 %6783
        %6785 = vrot.lane.b32.xlu0 %v6679, 56
        %v6786 = vpop.permute.xlu0 %6785
        %6787 = vrot.lane.b32.xlu0 %v6684, 56
        %v6788 = vpop.permute.xlu0 %6787
        %6789 = vrot.lane.b32.xlu0 %v6687, 56
        %v6790 = vpop.permute.xlu0 %6789
        %6791 = vrot.lane.b32.xlu0 %v6737, 56
        %v6792 = vpop.permute.xlu0 %6791
        %6793 = vrot.lane.b32.xlu0 %v6740, 56
        %v6794 = vpop.permute.xlu0 %6793
        %6795 = vrot.lane.b32.xlu0 %v6745, 56
        %v6796 = vpop.permute.xlu0 %6795
        %6797 = vrot.lane.b32.xlu0 %v6748, 56
        %v6798 = vpop.permute.xlu0 %6797
        %vm6815 = vcmask 523712
        %6816 = vst.msk [vmem:[#allocation2] sm:$0xff] %vm6815, %v6768
        %6817 = vst.msk [vmem:[#allocation2 + $0x8] sm:$0xff] %vm6815, %v6770
        %6818 = vst.msk [vmem:[#allocation2 + $0x10] sm:$0xff] %vm6815, %v6772
        %6819 = vst.msk [vmem:[#allocation2 + $0x18] sm:$0xff] %vm6815, %v6774
        %6820 = vst.msk [vmem:[#allocation2 + $0x20] sm:$0xff] %vm6815, %v6776
        %6821 = vst.msk [vmem:[#allocation2 + $0x28] sm:$0xff] %vm6815, %v6778
        %6822 = vst.msk [vmem:[#allocation2 + $0x30] sm:$0xff] %vm6815, %v6780
        %6823 = vst.msk [vmem:[#allocation2 + $0x38] sm:$0xff] %vm6815, %v6782
        %6824 = vst.msk [vmem:[#allocation2 + $0x40] sm:$0xff] %vm6815, %v6784
        %6825 = vst.msk [vmem:[#allocation2 + $0x48] sm:$0xff] %vm6815, %v6786
        %6826 = vst.msk [vmem:[#allocation2 + $0x50] sm:$0xff] %vm6815, %v6788
        %6827 = vst.msk [vmem:[#allocation2 + $0x58] sm:$0xff] %vm6815, %v6790
        %6828 = vst.msk [vmem:[#allocation2 + $0x60] sm:$0xff] %vm6815, %v6792
        %6829 = vst.msk [vmem:[#allocation2 + $0x68] sm:$0xff] %vm6815, %v6794
        %6830 = vst.msk [vmem:[#allocation2 + $0x70] sm:$0xff] %vm6815, %v6796
        %6831 = vst.msk [vmem:[#allocation2 + $0x78] sm:$0xff] %vm6815, %v6798
        %v6832 = vld [vmem:[#allocation2] sm:$0xff]
        %v6833 = vld [vmem:[#allocation2 + $0x8] sm:$0xff]
        %v6834 = vld [vmem:[#allocation2 + $0x10] sm:$0xff]
        %v6835 = vld [vmem:[#allocation2 + $0x18] sm:$0xff]
        %v6836 = vld [vmem:[#allocation2 + $0x20] sm:$0xff]
        %v6837 = vld [vmem:[#allocation2 + $0x28] sm:$0xff]
        %v6838 = vld [vmem:[#allocation2 + $0x30] sm:$0xff]
        %v6839 = vld [vmem:[#allocation2 + $0x38] sm:$0xff]
        %v6840 = vld [vmem:[#allocation2 + $0x40] sm:$0xff]
        %v6841 = vld [vmem:[#allocation2 + $0x48] sm:$0xff]
        %v6842 = vld [vmem:[#allocation2 + $0x50] sm:$0xff]
        %v6843 = vld [vmem:[#allocation2 + $0x58] sm:$0xff]
        %v6844 = vld [vmem:[#allocation2 + $0x60] sm:$0xff]
        %v6845 = vld [vmem:[#allocation2 + $0x68] sm:$0xff]
        %v6846 = vld [vmem:[#allocation2 + $0x70] sm:$0xff]
        %v6847 = vld [vmem:[#allocation2 + $0x78] sm:$0xff]
        %v6848 = vpack.c.bf16 %v6833, %v6832
        %v6849 = vpack.c.bf16 %v6835, %v6834
        %v6850 = vpack.c.bf16 %v6837, %v6836
        %v6851 = vpack.c.bf16 %v6839, %v6838
        %v6852 = vpack.c.bf16 %v6841, %v6840
        %v6853 = vpack.c.bf16 %v6843, %v6842
        %v6854 = vpack.c.bf16 %v6845, %v6844
        %v6855 = vpack.c.bf16 %v6847, %v6846
        %v6856 = vld [vmem:[%s3] sm:$0xf]
        %v6857 = vld [vmem:[%s3 + $0x4] sm:$0xf]
        %v6858 = vld [vmem:[%s3 + $0x8] sm:$0xf]
        %v6859 = vld [vmem:[%s3 + $0xc] sm:$0xf]
        %v6860 = vld [vmem:[%s3 + $0x10] sm:$0xf]
        %v6861 = vld [vmem:[%s3 + $0x14] sm:$0xf]
        %v6862 = vld [vmem:[%s3 + $0x18] sm:$0xf]
        %v6863 = vld [vmem:[%s3 + $0x1c] sm:$0xf]
        %v6864 = vld [vmem:[%s4] sm:$0x1]
        %v6866 = vlaneseq
        %v6867 = vshrl.u32 %v6866, 7
        %v6868 = vsub.s32 0, %v6867
        %v6869 = vrot.slane %v6864, %v6868
        %v6879 = vunpack.c.l.b16 %v6856
        %v6880 = vunpack.c.l.b16 %v6857
        %v6881 = vunpack.c.l.b16 %v6858
        %v6882 = vunpack.c.l.b16 %v6859
        %v6883 = vunpack.c.l.b16 %v6860
        %v6884 = vunpack.c.l.b16 %v6861
        %v6885 = vunpack.c.l.b16 %v6862
        %v6886 = vunpack.c.l.b16 %v6863
        %v6887 = vpack.c.b16 %v6880, %v6879
        %v6888 = vpack.c.b16 %v6882, %v6881
        %v6889 = vpack.c.b16 %v6884, %v6883
        %v6890 = vpack.c.b16 %v6886, %v6885
        %v6896 = vsel %vm485, %v6848, 0
        %v6899 = vsel %vm485, %v6849, 0
        %v6902 = vsel %vm485, %v6850, 0
        %v6905 = vsel %vm485, %v6851, 0
        %v6908 = vsel %vm485, %v6852, 0
        %v6911 = vsel %vm485, %v6853, 0
        %v6914 = vsel %vm485, %v6854, 0
        %v6917 = vsel %vm485, %v6855, 0
        %6919 = vmatprep.subr.bf16.mxu0 0
        %6920 = vmatpush1.bf16.msra.mxu0 %v6887
        %6921 = vmatprep.subr.bf16.mxu0 0
        %6922 = vmatpush1.bf16.msra.mxu0 %v6888
        %6923 = vmatprep.subr.bf16.mxu0 0
        %6924 = vmatpush1.bf16.msra.mxu0 %v6889
        %6925 = vmatprep.subr.bf16.mxu0 0
        %6926 = vmatpush1.bf16.msra.mxu0 %v6890
        %6927 = vmatprep.subr.bf16.mxu0 0
        %6928 = vmatpush1.bf16.msra.mxu0 0
        %6929 = vmatprep.subr.bf16.mxu0 0
        %6930 = vmatpush1.bf16.msra.mxu0 0
        %6931 = vmatprep.subr.bf16.mxu0 0
        %6932 = vmatpush1.bf16.msra.mxu0 0
        %6933 = vmatprep.subr.bf16.mxu0 0
        %6934 = vmatpush1.bf16.msra.mxu0 0
        %6935 = vmatprep.subr.bf16.mxu0 0
        %6936 = vmatpush1.bf16.msra.mxu0 0
        %6937 = vmatprep.subr.bf16.mxu0 0
        %6938 = vmatpush1.bf16.msra.mxu0 0
        %6939 = vmatprep.subr.bf16.mxu0 0
        %6940 = vmatpush1.bf16.msra.mxu0 0
        %6941 = vmatprep.subr.bf16.mxu0 0
        %6942 = vmatpush1.bf16.msra.mxu0 0
        %6943 = vmatprep.subr.bf16.mxu0 0
        %6944 = vmatpush1.bf16.msra.mxu0 0
        %6945 = vmatprep.subr.bf16.mxu0 0
        %6946 = vmatpush1.bf16.msra.mxu0 0
        %6947 = vmatprep.subr.bf16.mxu0 0
        %6948 = vmatpush1.bf16.msra.mxu0 0
        %6949 = vmatprep.subr.bf16.mxu0 0
        %6950 = vmatpush1.bf16.msra.mxu0 0
        %6951 = vmatprep.mubr.bf16.mxu0 0
        %6952 = vmatmul.mubr.bf16.gmra.mrb[0].mxu0 %v6896
        %v6953 = vpop.f32.mrb[0].mxu0
        %v6954 = vadd.f32 %v6869, %v6953
        %v6955 = vpop.f32.mrb[0].mxu0
        %v6956 = vpop.f32.mrb[0].mxu0
        %v6957 = vadd.f32 %v6869, %v6956
        %v6958 = vpop.f32.mrb[0].mxu0
        %6959 = vmatprep.mubr.bf16.mxu0 0
        %6960 = vmatmul.mubr.bf16.gmra.mrb[0].mxu0 %v6899
        %v6961 = vpop.f32.mrb[0].mxu0
        %v6962 = vadd.f32 %v6869, %v6961
        %v6963 = vpop.f32.mrb[0].mxu0
        %v6964 = vpop.f32.mrb[0].mxu0
        %v6965 = vadd.f32 %v6869, %v6964
        %v6966 = vpop.f32.mrb[0].mxu0
        %6967 = vmatprep.mubr.bf16.mxu0 0
        %6968 = vmatmul.mubr.bf16.gmra.mrb[0].mxu0 %v6902
        %v6969 = vpop.f32.mrb[0].mxu0
        %v6970 = vadd.f32 %v6869, %v6969
        %v6971 = vpop.f32.mrb[0].mxu0
        %v6972 = vpop.f32.mrb[0].mxu0
        %v6973 = vadd.f32 %v6869, %v6972
        %v6974 = vpop.f32.mrb[0].mxu0
        %6975 = vmatprep.mubr.bf16.mxu0 0
        %6976 = vmatmul.mubr.bf16.gmra.mrb[0].mxu0 %v6905
        %v6977 = vpop.f32.mrb[0].mxu0
        %v6978 = vadd.f32 %v6869, %v6977
        %v6979 = vpop.f32.mrb[0].mxu0
        %v6980 = vpop.f32.mrb[0].mxu0
        %v6981 = vadd.f32 %v6869, %v6980
        %v6982 = vpop.f32.mrb[0].mxu0
        %6983 = vmatprep.mubr.bf16.mxu0 0
        %6984 = vmatmul.mubr.bf16.gmra.mrb[0].mxu0 %v6908
        %v6985 = vpop.f32.mrb[0].mxu0
        %v6986 = vadd.f32 %v6869, %v6985
        %v6987 = vpop.f32.mrb[0].mxu0
        %v6988 = vpop.f32.mrb[0].mxu0
        %v6989 = vadd.f32 %v6869, %v6988
        %v6990 = vpop.f32.mrb[0].mxu0
        %6991 = vmatprep.mubr.bf16.mxu0 0
        %6992 = vmatmul.mubr.bf16.gmra.mrb[0].mxu0 %v6911
        %v6993 = vpop.f32.mrb[0].mxu0
        %v6994 = vadd.f32 %v6869, %v6993
        %v6995 = vpop.f32.mrb[0].mxu0
        %v6996 = vpop.f32.mrb[0].mxu0
        %v6997 = vadd.f32 %v6869, %v6996
        %v6998 = vpop.f32.mrb[0].mxu0
        %6999 = vmatprep.mubr.bf16.mxu0 0
        %7000 = vmatmul.mubr.bf16.gmra.mrb[0].mxu0 %v6914
        %v7001 = vpop.f32.mrb[0].mxu0
        %v7002 = vadd.f32 %v6869, %v7001
        %v7003 = vpop.f32.mrb[0].mxu0
        %v7004 = vpop.f32.mrb[0].mxu0
        %v7005 = vadd.f32 %v6869, %v7004
        %v7006 = vpop.f32.mrb[0].mxu0
        %7007 = vmatprep.mubr.bf16.mxu0 0
        %7008 = vmatmul.mubr.bf16.gmra.mrb[0].mxu0 %v6917
        %v7009 = vpop.f32.mrb[0].mxu0
        %v7010 = vadd.f32 %v6869, %v7009
        %v7011 = vpop.f32.mrb[0].mxu0
        %v7012 = vpop.f32.mrb[0].mxu0
        %v7013 = vadd.f32 %v6869, %v7012
        %v7014 = vpop.f32.mrb[0].mxu0
        %7015 = vdwg.mxu0
        %7016 = vst [vmem:[%s242] sm:$0xff] %v6954
        %7017 = vst [vmem:[%s242 + $0x8] sm:$0xff] %v6957
        %7018 = vst [vmem:[%s242 + $0x10] sm:$0xff] %v6962
        %7019 = vst [vmem:[%s242 + $0x18] sm:$0xff] %v6965
        %7020 = vst [vmem:[%s242 + $0x20] sm:$0xff] %v6970
        %7021 = vst [vmem:[%s242 + $0x28] sm:$0xff] %v6973
        %7022 = vst [vmem:[%s242 + $0x30] sm:$0xff] %v6978
        %7023 = vst [vmem:[%s242 + $0x38] sm:$0xff] %v6981
        %7024 = vst [vmem:[%s242 + $0x40] sm:$0xff] %v6986
        %7025 = vst [vmem:[%s242 + $0x48] sm:$0xff] %v6989
        %7026 = vst [vmem:[%s242 + $0x50] sm:$0xff] %v6994
        %7027 = vst [vmem:[%s242 + $0x58] sm:$0xff] %v6997
        %7028 = vst [vmem:[%s242 + $0x60] sm:$0xff] %v7002
        %7029 = vst [vmem:[%s242 + $0x68] sm:$0xff] %v7005
        %7030 = vst [vmem:[%s242 + $0x70] sm:$0xff] %v7010
        %7031 = vst [vmem:[%s242 + $0x78] sm:$0xff] %v7013
        %s7032 = sand.u32 %s140, 1
        %s7033 = scalar_lea.sflag [#allocation5], %s7032
        %s7034 = sand.u32 %s140, 1
        %s7035 = smul.addr %s7034, 128
        %s7036 = scalar_lea.vmem [#allocation6], %s7035
        // Predicated region
        $region45: #{eff_attention_forward.1} parent=39 // pred_check
          %p7037 = pneg %p150
        $region46: #{eff_attention_forward.1} parent=39 // pred_check_branch
          %7039 = sbr.rel (%p7037) target = $region48
        $region47: #{eff_attention_forward.1} parent=39 // pred_region
          %s7041 = ssub.s32 2048, 2048
          %7042 = vsyncadd %s7033, %s7041
          %s7043 = smul.addr %s22, 16
          %s7044 = smul.addr %s7043, 128
          %s7045 = scalar_lea.hbm %s5, %s7044
          %s7046 = sshll.u32 %s7036, 4
          %s7047 = int_to_ptr.vmem [resolvable:$true] %s7046
          %7052 = dma.vmem_to_hbm [thread:$0]  %s7047, 2048, %s7045, %s7033, 128, 128, 8
        $region48: #{eff_attention_forward.1} parent=39 // pred_fallthru
          _
      $region40: #{eff_attention_forward.1} parent=5 // pred_fallthru
        _
      %p7053 = scmp.le.s32.totalorder 2, %s17
      // Predicated region
      $region49: #{eff_attention_forward.1} parent=5 // pred_check
        %p7054 = pneg %p7053
      $region50: #{eff_attention_forward.1} parent=5 // pred_check_branch
        %7056 = sbr.rel (%p7054) target = $region52
      $region51: #{eff_attention_forward.1} parent=5 // pred_region
        %s7057 = ssub.s32 %s17, 2
        // Predicated region
        $region53: #{eff_attention_forward.1} parent=51 // pred_check
          %p7058 = pneg %p156
        $region54: #{eff_attention_forward.1} parent=51 // pred_check_branch
          %7060 = sbr.rel (%p7058) target = $region56
        $region55: #{eff_attention_forward.1} parent=51 // pred_region
          %s7061 = sand.u32 %s141, 1
          %s7062 = scalar_lea.sflag [#allocation5], %s7061
          %s7063 = sand.u32 %s141, 1
          %s7064 = smul.addr %s7063, 128
          %s7065 = scalar_lea.vmem [#allocation6], %s7064
          %7066 = dma.done %s7062, 2048
        $region56: #{eff_attention_forward.1} parent=51 // pred_fallthru
          _
      $region52: #{eff_attention_forward.1} parent=5 // pred_fallthru
        _
    $region6: #{eff_attention_forward.1} parent=1 // loop_footer
      %s21 = sadd.s32 1, %s17
    $region7: #{eff_attention_forward.1} parent=1 // loop_footer_branch
      %16 = sbr.rel target = $region3
    $region8: #{eff_attention_forward.1} parent=1 // loop_exit
      _
    %7067 = vsyncpa [#allocation4], 1
    %s7068 = scalar_lea.sflag [#allocation4], 1
    %7069 = vsyncpa %s7068, 1
    %7070 = vsyncpa [#allocation5], 1
    %s7071 = scalar_lea.sflag [#allocation5], 1
    %7072 = vsyncpa %s7071, 1

</llo_original>
